<compile_context>
chip_gen: v7x
topology: tpu7x:2x2x1
jax: 0.10.0
libtpu: 0.0.40
codegen_flags: <defaults>
</compile_context>

<pallas_src>
import jax
import jax.numpy as jnp
from jax import lax
from jax.experimental import pallas as pl
from jax.experimental.pallas import tpu as pltpu


def _leaky(x):
    return jnp.where(x > 0, x, 0.2 * x)


# ----------------------------------------------------------------------------
# Fused discriminator kernel (one grid step == one image)
# ----------------------------------------------------------------------------
def _discriminator_kernel(col1_ref, w1_ref, b1_ref, w2_ref, b2_ref,
                          w3_ref, b3_ref, wfc_ref, bfc_ref,
                          out_ref, s2_ref, s3_ref):
    f32 = jnp.float32

    # Zero the padded scratches; their untouched borders are the conv padding.
    s2_ref[...] = jnp.zeros(s2_ref.shape, f32)
    s3_ref[...] = jnp.zeros(s3_ref.shape, f32)

    # ---- conv1: ONE (1024,9) @ (9,32) dot + bias + leaky -------------------
    # col1 rows are host-ordered as (oh%4, ow%4, oh//4, ow//4), so each 64-row
    # block of the result is one output phase and lands in S2 with a single
    # contiguous store.
    y1 = jnp.dot(col1_ref[0], w1_ref[...], preferred_element_type=f32)  # (1024,32)
    y1 = _leaky(y1 + b1_ref[...])
    for m in range(4):
        for q in range(4):
            k = m * 4 + q
            blk = y1[k * 64:(k + 1) * 64, :]                     # (64, 32)
            uh0, vh = (m + 1) // 4, (m + 1) % 4
            uw0, vw = (q + 1) // 4, (q + 1) % 4
            s2_ref[uh0:uh0 + 8, vh:vh + 1, uw0:uw0 + 8,
                   vw * 32:(vw + 1) * 32] = blk.reshape(8, 1, 8, 32)

    # ---- conv2: 4 output phases x 9 taps, accumulate on the MXU -----------
    for r in range(2):
        for s in range(2):
            acc = jnp.zeros((64, 64), f32)
            for di in range(3):
                for dj in range(3):
                    th, tw = 2 * r + di, 2 * s + dj
                    uh0, vh = th // 4, th % 4
                    uw0, vw = tw // 4, tw % 4
                    tap = s2_ref[uh0:uh0 + 8, vh:vh + 1, uw0:uw0 + 8,
                                 vw * 32:(vw + 1) * 32]          # (8,1,8,32)
                    acc += jnp.dot(tap.reshape(64, 32),
                                   w2_ref[di * 3 + dj],
                                   preferred_element_type=f32)
            acc = _leaky(acc + b2_ref[...])                      # (64, 64)
            a0, p = (r + 1) // 2, (r + 1) % 2
            b0, qq = (s + 1) // 2, (s + 1) % 2
            l0 = (p * 2 + qq) * 64
            s3_ref[a0:a0 + 8, b0:b0 + 8, l0:l0 + 64] = acc.reshape(8, 8, 64)

    # ---- conv3: 9 taps into a single (64, 128) accumulator ----------------
    acc3 = jnp.zeros((64, 128), f32)
    for di in range(3):
        for dj in range(3):
            a0, p = (0, 0, 1)[di], (0, 1, 0)[di]
            b0, qq = (0, 0, 1)[dj], (0, 1, 0)[dj]
            l0 = (p * 2 + qq) * 64
            tap = s3_ref[a0:a0 + 8, b0:b0 + 8, l0:l0 + 64]       # (8, 8, 64)
            acc3 += jnp.dot(tap.reshape(64, 64), w3_ref[di * 3 + dj],
                            preferred_element_type=f32)
    acc3 = _leaky(acc3 + b3_ref[...])                            # (64, 128)

    # ---- Linear(8192,1) + Sigmoid: fused VPU multiply + XLU reduce --------
    # wfc is pre-permuted host-side to the (h*8+w, c) layout of acc3, so the
    # PyTorch NCHW-flatten order is honored with no activation transpose.
    prod = acc3 * wfc_ref[...]                                   # (64, 128)
    row = jnp.sum(prod, axis=1, keepdims=True)                   # (64, 1)
    logit = jnp.sum(row, axis=0, keepdims=True)                  # (1, 1)
    out_ref[0] = jax.nn.sigmoid(logit + bfc_ref[...])


# ----------------------------------------------------------------------------
# Host-side glue
# ----------------------------------------------------------------------------
def _conv1_im2col(x):
    """x: (N,1,64,64) NCHW -> (N, 1024, 9) with rows ordered as
    (oh%4, ow%4, oh//4, ow//4), so conv1's output phases are contiguous."""
    n = x.shape[0]
    img = x[:, 0]
    xp = jnp.pad(img, ((0, 0), (1, 1), (1, 1)))                  # (N, 66, 66)
    taps = [xp[:, di:di + 64:2, dj:dj + 64:2]
            for di in range(3) for dj in range(3)]               # 9 x (N,32,32)
    col = jnp.stack(taps, axis=-1)                               # (N,32,32,9)
    col = col.reshape(n, 8, 4, 8, 4, 9)                          # oh=4a+m, ow=4b+q
    col = col.transpose(0, 2, 4, 1, 3, 5)                        # (N, m, q, a, b, 9)
    return col.reshape(n, 1024, 9)


@jax.jit
def discriminator_forward(x, kp):
    """x: (N,1,64,64) NCHW, kp: kernel-layout params -> (N,1) sigmoid scores."""
    n = x.shape[0]
    col1 = _conv1_im2col(x)
    out = pl.pallas_call(
        _discriminator_kernel,
        out_shape=jax.ShapeDtypeStruct((n, 1, 1), jnp.float32),
        grid_spec=pltpu.PrefetchScalarGridSpec(
            num_scalar_prefetch=0,
            grid=(n,),
            in_specs=[
                pl.BlockSpec((1, 1024, 9), lambda i: (i, 0, 0)),   # conv1 im2col
                pl.BlockSpec((9, 32), lambda i: (0, 0)),           # w1
                pl.BlockSpec((1, 32), lambda i: (0, 0)),           # b1
                pl.BlockSpec((9, 32, 64), lambda i: (0, 0, 0)),    # w2
                pl.BlockSpec((1, 64), lambda i: (0, 0)),           # b2
                pl.BlockSpec((9, 64, 128), lambda i: (0, 0, 0)),   # w3
                pl.BlockSpec((1, 128), lambda i: (0, 0)),          # b3
                pl.BlockSpec((64, 128), lambda i: (0, 0)),         # w_fc (permuted)
                pl.BlockSpec((1, 1), lambda i: (0, 0)),            # b_fc
            ],
            out_specs=pl.BlockSpec((1, 1, 1), lambda i: (i, 0, 0)),
            scratch_shapes=[
                pltpu.VMEM((9, 4, 9, 128), jnp.float32),   # padded conv1 out (S2)
                pltpu.VMEM((9, 9, 256), jnp.float32),      # padded conv2 out (S3)
            ],
        ),
        compiler_params=pltpu.CompilerParams(
            dimension_semantics=("parallel",)),
    )(col1, kp["w1"], kp["b1"], kp["w2"], kp["b2"],
      kp["w3"], kp["b3"], kp["wfc"], kp["bfc"])
    return out.reshape(n, 1)


# ----------------------------------------------------------------------------
# Parameters (PyTorch layout) + one-time re-layout for the kernel
# ----------------------------------------------------------------------------
def init_params(key):
    ks = jax.random.split(key, 8)

    def conv_w(k, cout, cin):
        fan_in = cin * 9
        return (jax.random.normal(k, (cout, cin, 3, 3), jnp.float32)
                / jnp.sqrt(fan_in))

    return {
        "w1": conv_w(ks[0], 32, 1),
        "b1": 0.01 * jax.random.normal(ks[1], (32,), jnp.float32),
        "w2": conv_w(ks[2], 64, 32),
        "b2": 0.01 * jax.random.normal(ks[3], (64,), jnp.float32),
        "w3": conv_w(ks[4], 128, 64),
        "b3": 0.01 * jax.random.normal(ks[5], (128,), jnp.float32),
        "w_fc": (jax.random.normal(ks[6], (128 * 8 * 8, 1), jnp.float32)
                 / jnp.sqrt(128 * 8 * 8)),
        "b_fc": 0.01 * jax.random.normal(ks[7], (1,), jnp.float32),
    }


def prepare_params(params):
    """One-time host-side re-layout of the tiny weights into kernel form."""
    wfc = params["w_fc"][:, 0].reshape(128, 64)          # [c, h*8+w] (NCHW flatten)
    return {
        "w1": jnp.transpose(params["w1"], (2, 3, 1, 0)).reshape(9, 32),
        "b1": params["b1"].reshape(1, 32),
        "w2": jnp.transpose(params["w2"], (2, 3, 1, 0)).reshape(9, 32, 64),
        "b2": params["b2"].reshape(1, 64),
        "w3": jnp.transpose(params["w3"], (2, 3, 1, 0)).reshape(9, 64, 128),
        "b3": params["b3"].reshape(1, 128),
        "wfc": jnp.transpose(wfc),                        # (64, 128): [h*8+w, c]
        "bfc": params["b_fc"].reshape(1, 1),
    }


# ----------------------------------------------------------------------------
# Pure-JAX reference (lax.conv) for a correctness check
# ----------------------------------------------------------------------------
def reference_forward(x, params):
    hp = lax.Precision.HIGHEST

    def conv(h, w, b):
        y = lax.conv_general_dilated(
            h, w, window_strides=(2, 2), padding=((1, 1), (1, 1)),
            dimension_numbers=("NCHW", "OIHW", "NCHW"), precision=hp)
        y = y + b.reshape(1, -1, 1, 1)
        return jnp.where(y > 0, y, 0.2 * y)

    y = conv(x, params["w1"], params["b1"])
    y = conv(y, params["w2"], params["b2"])
    y = conv(y, params["w3"], params["b3"])
    feat = y.reshape(y.shape[0], -1)
    logits = jnp.dot(feat, params["w_fc"], precision=hp)
    logits = logits + params["b_fc"].reshape(1, 1)
    return jax.nn.sigmoid(logits)


if __name__ == "__main__":
    key = jax.random.PRNGKey(0)
    pkey, xkey = jax.random.split(key)
    params = init_params(pkey)
    kparams = prepare_params(params)   # weight re-layout done once, host-side

    # Batch of 2 single-channel 64x64 images (NCHW, as the PyTorch module expects;
    # 64x64 is required by the Linear(128*8*8, 1) head).
    x = jax.random.normal(xkey, (2, 1, 64, 64), jnp.float32)

    out = jax.block_until_ready(discriminator_forward(x, kparams))
    assert out.shape == (2, 1), out.shape

    ref = jax.block_until_ready(reference_forward(x, params))
    assert jnp.allclose(out, ref, atol=2e-3, rtol=2e-3), (out, ref)

    print("KERNEL_OK")
</pallas_src>

<mosaic_0001>
module attributes {stable_mosaic.version = 11 : i64} {
  func.func @_discriminator_kernel(%arg0: i32, %arg1: memref<1x1024x9xf32, #tpu.memory_space<vmem>>, %arg2: memref<9x32xf32, #tpu.memory_space<vmem>>, %arg3: memref<1x32xf32, #tpu.memory_space<vmem>>, %arg4: memref<9x32x64xf32, #tpu.memory_space<vmem>>, %arg5: memref<1x64xf32, #tpu.memory_space<vmem>>, %arg6: memref<9x64x128xf32, #tpu.memory_space<vmem>>, %arg7: memref<1x128xf32, #tpu.memory_space<vmem>>, %arg8: memref<64x128xf32, #tpu.memory_space<vmem>>, %arg9: memref<1x1xf32, #tpu.memory_space<vmem>>, %arg10: memref<1x1x1xf32, #tpu.memory_space<vmem>>, %arg11: memref<9x4x9x128xf32, #tpu.memory_space<vmem>>, %arg12: memref<9x9x256xf32, #tpu.memory_space<vmem>>) attributes {dimension_semantics = [#tpu.dimension_semantics<parallel>], iteration_bounds = array<i64: 2>, scalar_prefetch = 0 : i64, scratch_operands = 2 : i64, tpu.core_type = #tpu.core_type<tc>, window_params = [{transform_indices = @transform_0, window_bounds = array<i64: 1, 1024, 9>}, {pipeline_mode = #tpu.pipeline_mode<synchronous>, transform_indices = @transform_1, window_bounds = array<i64: 9, 32>}, {pipeline_mode = #tpu.pipeline_mode<synchronous>, transform_indices = @transform_2, window_bounds = array<i64: 1, 32>}, {pipeline_mode = #tpu.pipeline_mode<synchronous>, transform_indices = @transform_3, window_bounds = array<i64: 9, 32, 64>}, {pipeline_mode = #tpu.pipeline_mode<synchronous>, transform_indices = @transform_4, window_bounds = array<i64: 1, 64>}, {pipeline_mode = #tpu.pipeline_mode<synchronous>, transform_indices = @transform_5, window_bounds = array<i64: 9, 64, 128>}, {pipeline_mode = #tpu.pipeline_mode<synchronous>, transform_indices = @transform_6, window_bounds = array<i64: 1, 128>}, {pipeline_mode = #tpu.pipeline_mode<synchronous>, transform_indices = @transform_7, window_bounds = array<i64: 64, 128>}, {pipeline_mode = #tpu.pipeline_mode<synchronous>, transform_indices = @transform_8, window_bounds = array<i64: 1, 1>}, {transform_indices = @transform_9, window_bounds = array<i64: 1, 1, 1>}]} {
    %cst = arith.constant 0.000000e+00 : f32
    %0 = vector.broadcast %cst : f32 to vector<9x4x9x128xf32>
    %c0 = arith.constant 0 : index
    %c0_0 = arith.constant 0 : index
    %c0_1 = arith.constant 0 : index
    %c0_2 = arith.constant 0 : index
    %1 = vector.load %arg11[%c0, %c0_0, %c0_1, %c0_2] : memref<9x4x9x128xf32, #tpu.memory_space<vmem>>, vector<9x4x9x128xf32>
    tpu.vector_store %arg11[%c0, %c0_0, %c0_1, %c0_2], %0 {strides = array<i32>} : memref<9x4x9x128xf32, #tpu.memory_space<vmem>>, vector<9x4x9x128xf32>,
    %cst_3 = arith.constant 0.000000e+00 : f32
    %2 = vector.broadcast %cst_3 : f32 to vector<9x9x256xf32>
    %c0_4 = arith.constant 0 : index
    %c0_5 = arith.constant 0 : index
    %c0_6 = arith.constant 0 : index
    %3 = vector.load %arg12[%c0_4, %c0_5, %c0_6] : memref<9x9x256xf32, #tpu.memory_space<vmem>>, vector<9x9x256xf32>
    tpu.vector_store %arg12[%c0_4, %c0_5, %c0_6], %2 {strides = array<i32>} : memref<9x9x256xf32, #tpu.memory_space<vmem>>, vector<9x9x256xf32>,
    %c0_7 = arith.constant 0 : index
    %c0_8 = arith.constant 0 : index
    %c0_9 = arith.constant 0 : index
    %4 = vector.load %arg1[%c0_7, %c0_8, %c0_9] : memref<1x1024x9xf32, #tpu.memory_space<vmem>>, vector<1x1024x9xf32>
    %5 = vector.shape_cast %4 : vector<1x1024x9xf32> to vector<1024x9xf32>
    %c0_10 = arith.constant 0 : index
    %c0_11 = arith.constant 0 : index
    %6 = vector.load %arg2[%c0_10, %c0_11] : memref<9x32xf32, #tpu.memory_space<vmem>>, vector<9x32xf32>
    %cst_12 = arith.constant dense<0.000000e+00> : vector<1024x32xf32>
    %7 = tpu.matmul %5, %6, %cst_12 {dimension_numbers = #tpu.dot_dimension_numbers<[1], [0], [0], [1], [0, 0, 1, 1], [], []>} : vector<1024x9xf32>, vector<9x32xf32>, vector<1024x32xf32> -> vector<1024x32xf32>
    %c0_13 = arith.constant 0 : index
    %c0_14 = arith.constant 0 : index
    %8 = vector.load %arg3[%c0_13, %c0_14] : memref<1x32xf32, #tpu.memory_space<vmem>>, vector<1x32xf32>
    %9 = vector.broadcast %8 : vector<1x32xf32> to vector<1024x32xf32>
    %10 = arith.addf %7, %9 : vector<1024x32xf32>
    %cst_15 = arith.constant 0.000000e+00 : f32
    %11 = vector.broadcast %cst_15 : f32 to vector<1024x32xf32>
    %12 = arith.cmpf ogt, %10, %11 : vector<1024x32xf32>
    %cst_16 = arith.constant 2.000000e-01 : f32
    %13 = vector.broadcast %cst_16 : f32 to vector<1024x32xf32>
    %14 = arith.mulf %13, %10 : vector<1024x32xf32>
    %15 = arith.select %12, %10, %14 : vector<1024x32xi1>, vector<1024x32xf32>
    %16 = vector.extract_strided_slice %15 {offsets = [0, 0], sizes = [64, 32], strides = [1, 1]} : vector<1024x32xf32> to vector<64x32xf32>
    %17 = vector.shape_cast %16 : vector<64x32xf32> to vector<8x1x8x32xf32>
    %c0_17 = arith.constant 0 : index
    %c1 = arith.constant 1 : index
    %c0_18 = arith.constant 0 : index
    %c32 = arith.constant 32 : index
    %18 = vector.load %arg11[%c0_17, %c1, %c0_18, %c32] : memref<9x4x9x128xf32, #tpu.memory_space<vmem>>, vector<8x1x8x32xf32>
    tpu.vector_store %arg11[%c0_17, %c1, %c0_18, %c32], %17 {strides = array<i32>} : memref<9x4x9x128xf32, #tpu.memory_space<vmem>>, vector<8x1x8x32xf32>,
    %19 = vector.extract_strided_slice %15 {offsets = [64, 0], sizes = [64, 32], strides = [1, 1]} : vector<1024x32xf32> to vector<64x32xf32>
    %20 = vector.shape_cast %19 : vector<64x32xf32> to vector<8x1x8x32xf32>
    %c0_19 = arith.constant 0 : index
    %c1_20 = arith.constant 1 : index
    %c0_21 = arith.constant 0 : index
    %c64 = arith.constant 64 : index
    %21 = vector.load %arg11[%c0_19, %c1_20, %c0_21, %c64] : memref<9x4x9x128xf32, #tpu.memory_space<vmem>>, vector<8x1x8x32xf32>
    tpu.vector_store %arg11[%c0_19, %c1_20, %c0_21, %c64], %20 {strides = array<i32>} : memref<9x4x9x128xf32, #tpu.memory_space<vmem>>, vector<8x1x8x32xf32>,
    %22 = vector.extract_strided_slice %15 {offsets = [128, 0], sizes = [64, 32], strides = [1, 1]} : vector<1024x32xf32> to vector<64x32xf32>
    %23 = vector.shape_cast %22 : vector<64x32xf32> to vector<8x1x8x32xf32>
    %c0_22 = arith.constant 0 : index
    %c1_23 = arith.constant 1 : index
    %c0_24 = arith.constant 0 : index
    %c96 = arith.constant 96 : index
    %24 = vector.load %arg11[%c0_22, %c1_23, %c0_24, %c96] : memref<9x4x9x128xf32, #tpu.memory_space<vmem>>, vector<8x1x8x32xf32>
    tpu.vector_store %arg11[%c0_22, %c1_23, %c0_24, %c96], %23 {strides = array<i32>} : memref<9x4x9x128xf32, #tpu.memory_space<vmem>>, vector<8x1x8x32xf32>,
    %25 = vector.extract_strided_slice %15 {offsets = [192, 0], sizes = [64, 32], strides = [1, 1]} : vector<1024x32xf32> to vector<64x32xf32>
    %26 = vector.shape_cast %25 : vector<64x32xf32> to vector<8x1x8x32xf32>
    %c0_25 = arith.constant 0 : index
    %c1_26 = arith.constant 1 : index
    %c1_27 = arith.constant 1 : index
    %c0_28 = arith.constant 0 : index
    %27 = vector.load %arg11[%c0_25, %c1_26, %c1_27, %c0_28] : memref<9x4x9x128xf32, #tpu.memory_space<vmem>>, vector<8x1x8x32xf32>
    tpu.vector_store %arg11[%c0_25, %c1_26, %c1_27, %c0_28], %26 {strides = array<i32>} : memref<9x4x9x128xf32, #tpu.memory_space<vmem>>, vector<8x1x8x32xf32>,
    %28 = vector.extract_strided_slice %15 {offsets = [256, 0], sizes = [64, 32], strides = [1, 1]} : vector<1024x32xf32> to vector<64x32xf32>
    %29 = vector.shape_cast %28 : vector<64x32xf32> to vector<8x1x8x32xf32>
    %c0_29 = arith.constant 0 : index
    %c2 = arith.constant 2 : index
    %c0_30 = arith.constant 0 : index
    %c32_31 = arith.constant 32 : index
    %30 = vector.load %arg11[%c0_29, %c2, %c0_30, %c32_31] : memref<9x4x9x128xf32, #tpu.memory_space<vmem>>, vector<8x1x8x32xf32>
    tpu.vector_store %arg11[%c0_29, %c2, %c0_30, %c32_31], %29 {strides = array<i32>} : memref<9x4x9x128xf32, #tpu.memory_space<vmem>>, vector<8x1x8x32xf32>,
    %31 = vector.extract_strided_slice %15 {offsets = [320, 0], sizes = [64, 32], strides = [1, 1]} : vector<1024x32xf32> to vector<64x32xf32>
    %32 = vector.shape_cast %31 : vector<64x32xf32> to vector<8x1x8x32xf32>
    %c0_32 = arith.constant 0 : index
    %c2_33 = arith.constant 2 : index
    %c0_34 = arith.constant 0 : index
    %c64_35 = arith.constant 64 : index
    %33 = vector.load %arg11[%c0_32, %c2_33, %c0_34, %c64_35] : memref<9x4x9x128xf32, #tpu.memory_space<vmem>>, vector<8x1x8x32xf32>
    tpu.vector_store %arg11[%c0_32, %c2_33, %c0_34, %c64_35], %32 {strides = array<i32>} : memref<9x4x9x128xf32, #tpu.memory_space<vmem>>, vector<8x1x8x32xf32>,
    %34 = vector.extract_strided_slice %15 {offsets = [384, 0], sizes = [64, 32], strides = [1, 1]} : vector<1024x32xf32> to vector<64x32xf32>
    %35 = vector.shape_cast %34 : vector<64x32xf32> to vector<8x1x8x32xf32>
    %c0_36 = arith.constant 0 : index
    %c2_37 = arith.constant 2 : index
    %c0_38 = arith.constant 0 : index
    %c96_39 = arith.constant 96 : index
    %36 = vector.load %arg11[%c0_36, %c2_37, %c0_38, %c96_39] : memref<9x4x9x128xf32, #tpu.memory_space<vmem>>, vector<8x1x8x32xf32>
    tpu.vector_store %arg11[%c0_36, %c2_37, %c0_38, %c96_39], %35 {strides = array<i32>} : memref<9x4x9x128xf32, #tpu.memory_space<vmem>>, vector<8x1x8x32xf32>,
    %37 = vector.extract_strided_slice %15 {offsets = [448, 0], sizes = [64, 32], strides = [1, 1]} : vector<1024x32xf32> to vector<64x32xf32>
    %38 = vector.shape_cast %37 : vector<64x32xf32> to vector<8x1x8x32xf32>
    %c0_40 = arith.constant 0 : index
    %c2_41 = arith.constant 2 : index
    %c1_42 = arith.constant 1 : index
    %c0_43 = arith.constant 0 : index
    %39 = vector.load %arg11[%c0_40, %c2_41, %c1_42, %c0_43] : memref<9x4x9x128xf32, #tpu.memory_space<vmem>>, vector<8x1x8x32xf32>
    tpu.vector_store %arg11[%c0_40, %c2_41, %c1_42, %c0_43], %38 {strides = array<i32>} : memref<9x4x9x128xf32, #tpu.memory_space<vmem>>, vector<8x1x8x32xf32>,
    %40 = vector.extract_strided_slice %15 {offsets = [512, 0], sizes = [64, 32], strides = [1, 1]} : vector<1024x32xf32> to vector<64x32xf32>
    %41 = vector.shape_cast %40 : vector<64x32xf32> to vector<8x1x8x32xf32>
    %c0_44 = arith.constant 0 : index
    %c3 = arith.constant 3 : index
    %c0_45 = arith.constant 0 : index
    %c32_46 = arith.constant 32 : index
    %42 = vector.load %arg11[%c0_44, %c3, %c0_45, %c32_46] : memref<9x4x9x128xf32, #tpu.memory_space<vmem>>, vector<8x1x8x32xf32>
    tpu.vector_store %arg11[%c0_44, %c3, %c0_45, %c32_46], %41 {strides = array<i32>} : memref<9x4x9x128xf32, #tpu.memory_space<vmem>>, vector<8x1x8x32xf32>,
    %43 = vector.extract_strided_slice %15 {offsets = [576, 0], sizes = [64, 32], strides = [1, 1]} : vector<1024x32xf32> to vector<64x32xf32>
    %44 = vector.shape_cast %43 : vector<64x32xf32> to vector<8x1x8x32xf32>
    %c0_47 = arith.constant 0 : index
    %c3_48 = arith.constant 3 : index
    %c0_49 = arith.constant 0 : index
    %c64_50 = arith.constant 64 : index
    %45 = vector.load %arg11[%c0_47, %c3_48, %c0_49, %c64_50] : memref<9x4x9x128xf32, #tpu.memory_space<vmem>>, vector<8x1x8x32xf32>
    tpu.vector_store %arg11[%c0_47, %c3_48, %c0_49, %c64_50], %44 {strides = array<i32>} : memref<9x4x9x128xf32, #tpu.memory_space<vmem>>, vector<8x1x8x32xf32>,
    %46 = vector.extract_strided_slice %15 {offsets = [640, 0], sizes = [64, 32], strides = [1, 1]} : vector<1024x32xf32> to vector<64x32xf32>
    %47 = vector.shape_cast %46 : vector<64x32xf32> to vector<8x1x8x32xf32>
    %c0_51 = arith.constant 0 : index
    %c3_52 = arith.constant 3 : index
    %c0_53 = arith.constant 0 : index
    %c96_54 = arith.constant 96 : index
    %48 = vector.load %arg11[%c0_51, %c3_52, %c0_53, %c96_54] : memref<9x4x9x128xf32, #tpu.memory_space<vmem>>, vector<8x1x8x32xf32>
    tpu.vector_store %arg11[%c0_51, %c3_52, %c0_53, %c96_54], %47 {strides = array<i32>} : memref<9x4x9x128xf32, #tpu.memory_space<vmem>>, vector<8x1x8x32xf32>,
    %49 = vector.extract_strided_slice %15 {offsets = [704, 0], sizes = [64, 32], strides = [1, 1]} : vector<1024x32xf32> to vector<64x32xf32>
    %50 = vector.shape_cast %49 : vector<64x32xf32> to vector<8x1x8x32xf32>
    %c0_55 = arith.constant 0 : index
    %c3_56 = arith.constant 3 : index
    %c1_57 = arith.constant 1 : index
    %c0_58 = arith.constant 0 : index
    %51 = vector.load %arg11[%c0_55, %c3_56, %c1_57, %c0_58] : memref<9x4x9x128xf32, #tpu.memory_space<vmem>>, vector<8x1x8x32xf32>
    tpu.vector_store %arg11[%c0_55, %c3_56, %c1_57, %c0_58], %50 {strides = array<i32>} : memref<9x4x9x128xf32, #tpu.memory_space<vmem>>, vector<8x1x8x32xf32>,
    %52 = vector.extract_strided_slice %15 {offsets = [768, 0], sizes = [64, 32], strides = [1, 1]} : vector<1024x32xf32> to vector<64x32xf32>
    %53 = vector.shape_cast %52 : vector<64x32xf32> to vector<8x1x8x32xf32>
    %c1_59 = arith.constant 1 : index
    %c0_60 = arith.constant 0 : index
    %c0_61 = arith.constant 0 : index
    %c32_62 = arith.constant 32 : index
    %54 = vector.load %arg11[%c1_59, %c0_60, %c0_61, %c32_62] : memref<9x4x9x128xf32, #tpu.memory_space<vmem>>, vector<8x1x8x32xf32>
    tpu.vector_store %arg11[%c1_59, %c0_60, %c0_61, %c32_62], %53 {strides = array<i32>} : memref<9x4x9x128xf32, #tpu.memory_space<vmem>>, vector<8x1x8x32xf32>,
    %55 = vector.extract_strided_slice %15 {offsets = [832, 0], sizes = [64, 32], strides = [1, 1]} : vector<1024x32xf32> to vector<64x32xf32>
    %56 = vector.shape_cast %55 : vector<64x32xf32> to vector<8x1x8x32xf32>
    %c1_63 = arith.constant 1 : index
    %c0_64 = arith.constant 0 : index
    %c0_65 = arith.constant 0 : index
    %c64_66 = arith.constant 64 : index
    %57 = vector.load %arg11[%c1_63, %c0_64, %c0_65, %c64_66] : memref<9x4x9x128xf32, #tpu.memory_space<vmem>>, vector<8x1x8x32xf32>
    tpu.vector_store %arg11[%c1_63, %c0_64, %c0_65, %c64_66], %56 {strides = array<i32>} : memref<9x4x9x128xf32, #tpu.memory_space<vmem>>, vector<8x1x8x32xf32>,
    %58 = vector.extract_strided_slice %15 {offsets = [896, 0], sizes = [64, 32], strides = [1, 1]} : vector<1024x32xf32> to vector<64x32xf32>
    %59 = vector.shape_cast %58 : vector<64x32xf32> to vector<8x1x8x32xf32>
    %c1_67 = arith.constant 1 : index
    %c0_68 = arith.constant 0 : index
    %c0_69 = arith.constant 0 : index
    %c96_70 = arith.constant 96 : index
    %60 = vector.load %arg11[%c1_67, %c0_68, %c0_69, %c96_70] : memref<9x4x9x128xf32, #tpu.memory_space<vmem>>, vector<8x1x8x32xf32>
    tpu.vector_store %arg11[%c1_67, %c0_68, %c0_69, %c96_70], %59 {strides = array<i32>} : memref<9x4x9x128xf32, #tpu.memory_space<vmem>>, vector<8x1x8x32xf32>,
    %61 = vector.extract_strided_slice %15 {offsets = [960, 0], sizes = [64, 32], strides = [1, 1]} : vector<1024x32xf32> to vector<64x32xf32>
    %62 = vector.shape_cast %61 : vector<64x32xf32> to vector<8x1x8x32xf32>
    %c1_71 = arith.constant 1 : index
    %c0_72 = arith.constant 0 : index
    %c1_73 = arith.constant 1 : index
    %c0_74 = arith.constant 0 : index
    %63 = vector.load %arg11[%c1_71, %c0_72, %c1_73, %c0_74] : memref<9x4x9x128xf32, #tpu.memory_space<vmem>>, vector<8x1x8x32xf32>
    tpu.vector_store %arg11[%c1_71, %c0_72, %c1_73, %c0_74], %62 {strides = array<i32>} : memref<9x4x9x128xf32, #tpu.memory_space<vmem>>, vector<8x1x8x32xf32>,
    %cst_75 = arith.constant 0.000000e+00 : f32
    %64 = vector.broadcast %cst_75 : f32 to vector<64x64xf32>
    %c0_76 = arith.constant 0 : index
    %c0_77 = arith.constant 0 : index
    %c0_78 = arith.constant 0 : index
    %c0_79 = arith.constant 0 : index
    %65 = vector.load %arg11[%c0_76, %c0_77, %c0_78, %c0_79] : memref<9x4x9x128xf32, #tpu.memory_space<vmem>>, vector<8x1x8x32xf32>
    %66 = vector.shape_cast %65 : vector<8x1x8x32xf32> to vector<64x32xf32>
    %c0_80 = arith.constant 0 : index
    %c0_81 = arith.constant 0 : index
    %c0_82 = arith.constant 0 : index
    %67 = vector.load %arg4[%c0_80, %c0_81, %c0_82] : memref<9x32x64xf32, #tpu.memory_space<vmem>>, vector<1x32x64xf32>
    %68 = vector.shape_cast %67 : vector<1x32x64xf32> to vector<32x64xf32>
    %cst_83 = arith.constant dense<0.000000e+00> : vector<64x64xf32>
    %69 = tpu.matmul %66, %68, %cst_83 {dimension_numbers = #tpu.dot_dimension_numbers<[1], [0], [0], [1], [0, 0, 1, 1], [], []>} : vector<64x32xf32>, vector<32x64xf32>, vector<64x64xf32> -> vector<64x64xf32>
    %70 = arith.addf %64, %69 : vector<64x64xf32>
    %c0_84 = arith.constant 0 : index
    %c0_85 = arith.constant 0 : index
    %c0_86 = arith.constant 0 : index
    %c32_87 = arith.constant 32 : index
    %71 = vector.load %arg11[%c0_84, %c0_85, %c0_86, %c32_87] : memref<9x4x9x128xf32, #tpu.memory_space<vmem>>, vector<8x1x8x32xf32>
    %72 = vector.shape_cast %71 : vector<8x1x8x32xf32> to vector<64x32xf32>
    %c1_88 = arith.constant 1 : index
    %c0_89 = arith.constant 0 : index
    %c0_90 = arith.constant 0 : index
    %73 = vector.load %arg4[%c1_88, %c0_89, %c0_90] : memref<9x32x64xf32, #tpu.memory_space<vmem>>, vector<1x32x64xf32>
    %74 = vector.shape_cast %73 : vector<1x32x64xf32> to vector<32x64xf32>
    %cst_91 = arith.constant dense<0.000000e+00> : vector<64x64xf32>
    %75 = tpu.matmul %72, %74, %cst_91 {dimension_numbers = #tpu.dot_dimension_numbers<[1], [0], [0], [1], [0, 0, 1, 1], [], []>} : vector<64x32xf32>, vector<32x64xf32>, vector<64x64xf32> -> vector<64x64xf32>
    %76 = arith.addf %70, %75 : vector<64x64xf32>
    %c0_92 = arith.constant 0 : index
    %c0_93 = arith.constant 0 : index
    %c0_94 = arith.constant 0 : index
    %c64_95 = arith.constant 64 : index
    %77 = vector.load %arg11[%c0_92, %c0_93, %c0_94, %c64_95] : memref<9x4x9x128xf32, #tpu.memory_space<vmem>>, vector<8x1x8x32xf32>
    %78 = vector.shape_cast %77 : vector<8x1x8x32xf32> to vector<64x32xf32>
    %c2_96 = arith.constant 2 : index
    %c0_97 = arith.constant 0 : index
    %c0_98 = arith.constant 0 : index
    %79 = vector.load %arg4[%c2_96, %c0_97, %c0_98] : memref<9x32x64xf32, #tpu.memory_space<vmem>>, vector<1x32x64xf32>
    %80 = vector.shape_cast %79 : vector<1x32x64xf32> to vector<32x64xf32>
    %cst_99 = arith.constant dense<0.000000e+00> : vector<64x64xf32>
    %81 = tpu.matmul %78, %80, %cst_99 {dimension_numbers = #tpu.dot_dimension_numbers<[1], [0], [0], [1], [0, 0, 1, 1], [], []>} : vector<64x32xf32>, vector<32x64xf32>, vector<64x64xf32> -> vector<64x64xf32>
    %82 = arith.addf %76, %81 : vector<64x64xf32>
    %c0_100 = arith.constant 0 : index
    %c1_101 = arith.constant 1 : index
    %c0_102 = arith.constant 0 : index
    %c0_103 = arith.constant 0 : index
    %83 = vector.load %arg11[%c0_100, %c1_101, %c0_102, %c0_103] : memref<9x4x9x128xf32, #tpu.memory_space<vmem>>, vector<8x1x8x32xf32>
    %84 = vector.shape_cast %83 : vector<8x1x8x32xf32> to vector<64x32xf32>
    %c3_104 = arith.constant 3 : index
    %c0_105 = arith.constant 0 : index
    %c0_106 = arith.constant 0 : index
    %85 = vector.load %arg4[%c3_104, %c0_105, %c0_106] : memref<9x32x64xf32, #tpu.memory_space<vmem>>, vector<1x32x64xf32>
    %86 = vector.shape_cast %85 : vector<1x32x64xf32> to vector<32x64xf32>
    %cst_107 = arith.constant dense<0.000000e+00> : vector<64x64xf32>
    %87 = tpu.matmul %84, %86, %cst_107 {dimension_numbers = #tpu.dot_dimension_numbers<[1], [0], [0], [1], [0, 0, 1, 1], [], []>} : vector<64x32xf32>, vector<32x64xf32>, vector<64x64xf32> -> vector<64x64xf32>
    %88 = arith.addf %82, %87 : vector<64x64xf32>
    %c0_108 = arith.constant 0 : index
    %c1_109 = arith.constant 1 : index
    %c0_110 = arith.constant 0 : index
    %c32_111 = arith.constant 32 : index
    %89 = vector.load %arg11[%c0_108, %c1_109, %c0_110, %c32_111] : memref<9x4x9x128xf32, #tpu.memory_space<vmem>>, vector<8x1x8x32xf32>
    %90 = vector.shape_cast %89 : vector<8x1x8x32xf32> to vector<64x32xf32>
    %c4 = arith.constant 4 : index
    %c0_112 = arith.constant 0 : index
    %c0_113 = arith.constant 0 : index
    %91 = vector.load %arg4[%c4, %c0_112, %c0_113] : memref<9x32x64xf32, #tpu.memory_space<vmem>>, vector<1x32x64xf32>
    %92 = vector.shape_cast %91 : vector<1x32x64xf32> to vector<32x64xf32>
    %cst_114 = arith.constant dense<0.000000e+00> : vector<64x64xf32>
    %93 = tpu.matmul %90, %92, %cst_114 {dimension_numbers = #tpu.dot_dimension_numbers<[1], [0], [0], [1], [0, 0, 1, 1], [], []>} : vector<64x32xf32>, vector<32x64xf32>, vector<64x64xf32> -> vector<64x64xf32>
    %94 = arith.addf %88, %93 : vector<64x64xf32>
    %c0_115 = arith.constant 0 : index
    %c1_116 = arith.constant 1 : index
    %c0_117 = arith.constant 0 : index
    %c64_118 = arith.constant 64 : index
    %95 = vector.load %arg11[%c0_115, %c1_116, %c0_117, %c64_118] : memref<9x4x9x128xf32, #tpu.memory_space<vmem>>, vector<8x1x8x32xf32>
    %96 = vector.shape_cast %95 : vector<8x1x8x32xf32> to vector<64x32xf32>
    %c5 = arith.constant 5 : index
    %c0_119 = arith.constant 0 : index
    %c0_120 = arith.constant 0 : index
    %97 = vector.load %arg4[%c5, %c0_119, %c0_120] : memref<9x32x64xf32, #tpu.memory_space<vmem>>, vector<1x32x64xf32>
    %98 = vector.shape_cast %97 : vector<1x32x64xf32> to vector<32x64xf32>
    %cst_121 = arith.constant dense<0.000000e+00> : vector<64x64xf32>
    %99 = tpu.matmul %96, %98, %cst_121 {dimension_numbers = #tpu.dot_dimension_numbers<[1], [0], [0], [1], [0, 0, 1, 1], [], []>} : vector<64x32xf32>, vector<32x64xf32>, vector<64x64xf32> -> vector<64x64xf32>
    %100 = arith.addf %94, %99 : vector<64x64xf32>
    %c0_122 = arith.constant 0 : index
    %c2_123 = arith.constant 2 : index
    %c0_124 = arith.constant 0 : index
    %c0_125 = arith.constant 0 : index
    %101 = vector.load %arg11[%c0_122, %c2_123, %c0_124, %c0_125] : memref<9x4x9x128xf32, #tpu.memory_space<vmem>>, vector<8x1x8x32xf32>
    %102 = vector.shape_cast %101 : vector<8x1x8x32xf32> to vector<64x32xf32>
    %c6 = arith.constant 6 : index
    %c0_126 = arith.constant 0 : index
    %c0_127 = arith.constant 0 : index
    %103 = vector.load %arg4[%c6, %c0_126, %c0_127] : memref<9x32x64xf32, #tpu.memory_space<vmem>>, vector<1x32x64xf32>
    %104 = vector.shape_cast %103 : vector<1x32x64xf32> to vector<32x64xf32>
    %cst_128 = arith.constant dense<0.000000e+00> : vector<64x64xf32>
    %105 = tpu.matmul %102, %104, %cst_128 {dimension_numbers = #tpu.dot_dimension_numbers<[1], [0], [0], [1], [0, 0, 1, 1], [], []>} : vector<64x32xf32>, vector<32x64xf32>, vector<64x64xf32> -> vector<64x64xf32>
    %106 = arith.addf %100, %105 : vector<64x64xf32>
    %c0_129 = arith.constant 0 : index
    %c2_130 = arith.constant 2 : index
    %c0_131 = arith.constant 0 : index
    %c32_132 = arith.constant 32 : index
    %107 = vector.load %arg11[%c0_129, %c2_130, %c0_131, %c32_132] : memref<9x4x9x128xf32, #tpu.memory_space<vmem>>, vector<8x1x8x32xf32>
    %108 = vector.shape_cast %107 : vector<8x1x8x32xf32> to vector<64x32xf32>
    %c7 = arith.constant 7 : index
    %c0_133 = arith.constant 0 : index
    %c0_134 = arith.constant 0 : index
    %109 = vector.load %arg4[%c7, %c0_133, %c0_134] : memref<9x32x64xf32, #tpu.memory_space<vmem>>, vector<1x32x64xf32>
    %110 = vector.shape_cast %109 : vector<1x32x64xf32> to vector<32x64xf32>
    %cst_135 = arith.constant dense<0.000000e+00> : vector<64x64xf32>
    %111 = tpu.matmul %108, %110, %cst_135 {dimension_numbers = #tpu.dot_dimension_numbers<[1], [0], [0], [1], [0, 0, 1, 1], [], []>} : vector<64x32xf32>, vector<32x64xf32>, vector<64x64xf32> -> vector<64x64xf32>
    %112 = arith.addf %106, %111 : vector<64x64xf32>
    %c0_136 = arith.constant 0 : index
    %c2_137 = arith.constant 2 : index
    %c0_138 = arith.constant 0 : index
    %c64_139 = arith.constant 64 : index
    %113 = vector.load %arg11[%c0_136, %c2_137, %c0_138, %c64_139] : memref<9x4x9x128xf32, #tpu.memory_space<vmem>>, vector<8x1x8x32xf32>
    %114 = vector.shape_cast %113 : vector<8x1x8x32xf32> to vector<64x32xf32>
    %c8 = arith.constant 8 : index
    %c0_140 = arith.constant 0 : index
    %c0_141 = arith.constant 0 : index
    %115 = vector.load %arg4[%c8, %c0_140, %c0_141] : memref<9x32x64xf32, #tpu.memory_space<vmem>>, vector<1x32x64xf32>
    %116 = vector.shape_cast %115 : vector<1x32x64xf32> to vector<32x64xf32>
    %cst_142 = arith.constant dense<0.000000e+00> : vector<64x64xf32>
    %117 = tpu.matmul %114, %116, %cst_142 {dimension_numbers = #tpu.dot_dimension_numbers<[1], [0], [0], [1], [0, 0, 1, 1], [], []>} : vector<64x32xf32>, vector<32x64xf32>, vector<64x64xf32> -> vector<64x64xf32>
    %118 = arith.addf %112, %117 : vector<64x64xf32>
    %c0_143 = arith.constant 0 : index
    %c0_144 = arith.constant 0 : index
    %119 = vector.load %arg5[%c0_143, %c0_144] : memref<1x64xf32, #tpu.memory_space<vmem>>, vector<1x64xf32>
    %120 = vector.broadcast %119 : vector<1x64xf32> to vector<64x64xf32>
    %121 = arith.addf %118, %120 : vector<64x64xf32>
    %cst_145 = arith.constant 0.000000e+00 : f32
    %122 = vector.broadcast %cst_145 : f32 to vector<64x64xf32>
    %123 = arith.cmpf ogt, %121, %122 : vector<64x64xf32>
    %cst_146 = arith.constant 2.000000e-01 : f32
    %124 = vector.broadcast %cst_146 : f32 to vector<64x64xf32>
    %125 = arith.mulf %124, %121 : vector<64x64xf32>
    %126 = arith.select %123, %121, %125 : vector<64x64xi1>, vector<64x64xf32>
    %127 = vector.shape_cast %126 : vector<64x64xf32> to vector<8x8x64xf32>
    %c0_147 = arith.constant 0 : index
    %c0_148 = arith.constant 0 : index
    %c192 = arith.constant 192 : index
    %128 = vector.load %arg12[%c0_147, %c0_148, %c192] : memref<9x9x256xf32, #tpu.memory_space<vmem>>, vector<8x8x64xf32>
    tpu.vector_store %arg12[%c0_147, %c0_148, %c192], %127 {strides = array<i32>} : memref<9x9x256xf32, #tpu.memory_space<vmem>>, vector<8x8x64xf32>,
    %cst_149 = arith.constant 0.000000e+00 : f32
    %129 = vector.broadcast %cst_149 : f32 to vector<64x64xf32>
    %c0_150 = arith.constant 0 : index
    %c0_151 = arith.constant 0 : index
    %c0_152 = arith.constant 0 : index
    %c64_153 = arith.constant 64 : index
    %130 = vector.load %arg11[%c0_150, %c0_151, %c0_152, %c64_153] : memref<9x4x9x128xf32, #tpu.memory_space<vmem>>, vector<8x1x8x32xf32>
    %131 = vector.shape_cast %130 : vector<8x1x8x32xf32> to vector<64x32xf32>
    %c0_154 = arith.constant 0 : index
    %c0_155 = arith.constant 0 : index
    %c0_156 = arith.constant 0 : index
    %132 = vector.load %arg4[%c0_154, %c0_155, %c0_156] : memref<9x32x64xf32, #tpu.memory_space<vmem>>, vector<1x32x64xf32>
    %133 = vector.shape_cast %132 : vector<1x32x64xf32> to vector<32x64xf32>
    %cst_157 = arith.constant dense<0.000000e+00> : vector<64x64xf32>
    %134 = tpu.matmul %131, %133, %cst_157 {dimension_numbers = #tpu.dot_dimension_numbers<[1], [0], [0], [1], [0, 0, 1, 1], [], []>} : vector<64x32xf32>, vector<32x64xf32>, vector<64x64xf32> -> vector<64x64xf32>
    %135 = arith.addf %129, %134 : vector<64x64xf32>
    %c0_158 = arith.constant 0 : index
    %c0_159 = arith.constant 0 : index
    %c0_160 = arith.constant 0 : index
    %c96_161 = arith.constant 96 : index
    %136 = vector.load %arg11[%c0_158, %c0_159, %c0_160, %c96_161] : memref<9x4x9x128xf32, #tpu.memory_space<vmem>>, vector<8x1x8x32xf32>
    %137 = vector.shape_cast %136 : vector<8x1x8x32xf32> to vector<64x32xf32>
    %c1_162 = arith.constant 1 : index
    %c0_163 = arith.constant 0 : index
    %c0_164 = arith.constant 0 : index
    %138 = vector.load %arg4[%c1_162, %c0_163, %c0_164] : memref<9x32x64xf32, #tpu.memory_space<vmem>>, vector<1x32x64xf32>
    %139 = vector.shape_cast %138 : vector<1x32x64xf32> to vector<32x64xf32>
    %cst_165 = arith.constant dense<0.000000e+00> : vector<64x64xf32>
    %140 = tpu.matmul %137, %139, %cst_165 {dimension_numbers = #tpu.dot_dimension_numbers<[1], [0], [0], [1], [0, 0, 1, 1], [], []>} : vector<64x32xf32>, vector<32x64xf32>, vector<64x64xf32> -> vector<64x64xf32>
    %141 = arith.addf %135, %140 : vector<64x64xf32>
    %c0_166 = arith.constant 0 : index
    %c0_167 = arith.constant 0 : index
    %c1_168 = arith.constant 1 : index
    %c0_169 = arith.constant 0 : index
    %142 = vector.load %arg11[%c0_166, %c0_167, %c1_168, %c0_169] : memref<9x4x9x128xf32, #tpu.memory_space<vmem>>, vector<8x1x8x32xf32>
    %143 = vector.shape_cast %142 : vector<8x1x8x32xf32> to vector<64x32xf32>
    %c2_170 = arith.constant 2 : index
    %c0_171 = arith.constant 0 : index
    %c0_172 = arith.constant 0 : index
    %144 = vector.load %arg4[%c2_170, %c0_171, %c0_172] : memref<9x32x64xf32, #tpu.memory_space<vmem>>, vector<1x32x64xf32>
    %145 = vector.shape_cast %144 : vector<1x32x64xf32> to vector<32x64xf32>
    %cst_173 = arith.constant dense<0.000000e+00> : vector<64x64xf32>
    %146 = tpu.matmul %143, %145, %cst_173 {dimension_numbers = #tpu.dot_dimension_numbers<[1], [0], [0], [1], [0, 0, 1, 1], [], []>} : vector<64x32xf32>, vector<32x64xf32>, vector<64x64xf32> -> vector<64x64xf32>
    %147 = arith.addf %141, %146 : vector<64x64xf32>
    %c0_174 = arith.constant 0 : index
    %c1_175 = arith.constant 1 : index
    %c0_176 = arith.constant 0 : index
    %c64_177 = arith.constant 64 : index
    %148 = vector.load %arg11[%c0_174, %c1_175, %c0_176, %c64_177] : memref<9x4x9x128xf32, #tpu.memory_space<vmem>>, vector<8x1x8x32xf32>
    %149 = vector.shape_cast %148 : vector<8x1x8x32xf32> to vector<64x32xf32>
    %c3_178 = arith.constant 3 : index
    %c0_179 = arith.constant 0 : index
    %c0_180 = arith.constant 0 : index
    %150 = vector.load %arg4[%c3_178, %c0_179, %c0_180] : memref<9x32x64xf32, #tpu.memory_space<vmem>>, vector<1x32x64xf32>
    %151 = vector.shape_cast %150 : vector<1x32x64xf32> to vector<32x64xf32>
    %cst_181 = arith.constant dense<0.000000e+00> : vector<64x64xf32>
    %152 = tpu.matmul %149, %151, %cst_181 {dimension_numbers = #tpu.dot_dimension_numbers<[1], [0], [0], [1], [0, 0, 1, 1], [], []>} : vector<64x32xf32>, vector<32x64xf32>, vector<64x64xf32> -> vector<64x64xf32>
    %153 = arith.addf %147, %152 : vector<64x64xf32>
    %c0_182 = arith.constant 0 : index
    %c1_183 = arith.constant 1 : index
    %c0_184 = arith.constant 0 : index
    %c96_185 = arith.constant 96 : index
    %154 = vector.load %arg11[%c0_182, %c1_183, %c0_184, %c96_185] : memref<9x4x9x128xf32, #tpu.memory_space<vmem>>, vector<8x1x8x32xf32>
    %155 = vector.shape_cast %154 : vector<8x1x8x32xf32> to vector<64x32xf32>
    %c4_186 = arith.constant 4 : index
    %c0_187 = arith.constant 0 : index
    %c0_188 = arith.constant 0 : index
    %156 = vector.load %arg4[%c4_186, %c0_187, %c0_188] : memref<9x32x64xf32, #tpu.memory_space<vmem>>, vector<1x32x64xf32>
    %157 = vector.shape_cast %156 : vector<1x32x64xf32> to vector<32x64xf32>
    %cst_189 = arith.constant dense<0.000000e+00> : vector<64x64xf32>
    %158 = tpu.matmul %155, %157, %cst_189 {dimension_numbers = #tpu.dot_dimension_numbers<[1], [0], [0], [1], [0, 0, 1, 1], [], []>} : vector<64x32xf32>, vector<32x64xf32>, vector<64x64xf32> -> vector<64x64xf32>
    %159 = arith.addf %153, %158 : vector<64x64xf32>
    %c0_190 = arith.constant 0 : index
    %c1_191 = arith.constant 1 : index
    %c1_192 = arith.constant 1 : index
    %c0_193 = arith.constant 0 : index
    %160 = vector.load %arg11[%c0_190, %c1_191, %c1_192, %c0_193] : memref<9x4x9x128xf32, #tpu.memory_space<vmem>>, vector<8x1x8x32xf32>
    %161 = vector.shape_cast %160 : vector<8x1x8x32xf32> to vector<64x32xf32>
    %c5_194 = arith.constant 5 : index
    %c0_195 = arith.constant 0 : index
    %c0_196 = arith.constant 0 : index
    %162 = vector.load %arg4[%c5_194, %c0_195, %c0_196] : memref<9x32x64xf32, #tpu.memory_space<vmem>>, vector<1x32x64xf32>
    %163 = vector.shape_cast %162 : vector<1x32x64xf32> to vector<32x64xf32>
    %cst_197 = arith.constant dense<0.000000e+00> : vector<64x64xf32>
    %164 = tpu.matmul %161, %163, %cst_197 {dimension_numbers = #tpu.dot_dimension_numbers<[1], [0], [0], [1], [0, 0, 1, 1], [], []>} : vector<64x32xf32>, vector<32x64xf32>, vector<64x64xf32> -> vector<64x64xf32>
    %165 = arith.addf %159, %164 : vector<64x64xf32>
    %c0_198 = arith.constant 0 : index
    %c2_199 = arith.constant 2 : index
    %c0_200 = arith.constant 0 : index
    %c64_201 = arith.constant 64 : index
    %166 = vector.load %arg11[%c0_198, %c2_199, %c0_200, %c64_201] : memref<9x4x9x128xf32, #tpu.memory_space<vmem>>, vector<8x1x8x32xf32>
    %167 = vector.shape_cast %166 : vector<8x1x8x32xf32> to vector<64x32xf32>
    %c6_202 = arith.constant 6 : index
    %c0_203 = arith.constant 0 : index
    %c0_204 = arith.constant 0 : index
    %168 = vector.load %arg4[%c6_202, %c0_203, %c0_204] : memref<9x32x64xf32, #tpu.memory_space<vmem>>, vector<1x32x64xf32>
    %169 = vector.shape_cast %168 : vector<1x32x64xf32> to vector<32x64xf32>
    %cst_205 = arith.constant dense<0.000000e+00> : vector<64x64xf32>
    %170 = tpu.matmul %167, %169, %cst_205 {dimension_numbers = #tpu.dot_dimension_numbers<[1], [0], [0], [1], [0, 0, 1, 1], [], []>} : vector<64x32xf32>, vector<32x64xf32>, vector<64x64xf32> -> vector<64x64xf32>
    %171 = arith.addf %165, %170 : vector<64x64xf32>
    %c0_206 = arith.constant 0 : index
    %c2_207 = arith.constant 2 : index
    %c0_208 = arith.constant 0 : index
    %c96_209 = arith.constant 96 : index
    %172 = vector.load %arg11[%c0_206, %c2_207, %c0_208, %c96_209] : memref<9x4x9x128xf32, #tpu.memory_space<vmem>>, vector<8x1x8x32xf32>
    %173 = vector.shape_cast %172 : vector<8x1x8x32xf32> to vector<64x32xf32>
    %c7_210 = arith.constant 7 : index
    %c0_211 = arith.constant 0 : index
    %c0_212 = arith.constant 0 : index
    %174 = vector.load %arg4[%c7_210, %c0_211, %c0_212] : memref<9x32x64xf32, #tpu.memory_space<vmem>>, vector<1x32x64xf32>
    %175 = vector.shape_cast %174 : vector<1x32x64xf32> to vector<32x64xf32>
    %cst_213 = arith.constant dense<0.000000e+00> : vector<64x64xf32>
    %176 = tpu.matmul %173, %175, %cst_213 {dimension_numbers = #tpu.dot_dimension_numbers<[1], [0], [0], [1], [0, 0, 1, 1], [], []>} : vector<64x32xf32>, vector<32x64xf32>, vector<64x64xf32> -> vector<64x64xf32>
    %177 = arith.addf %171, %176 : vector<64x64xf32>
    %c0_214 = arith.constant 0 : index
    %c2_215 = arith.constant 2 : index
    %c1_216 = arith.constant 1 : index
    %c0_217 = arith.constant 0 : index
    %178 = vector.load %arg11[%c0_214, %c2_215, %c1_216, %c0_217] : memref<9x4x9x128xf32, #tpu.memory_space<vmem>>, vector<8x1x8x32xf32>
    %179 = vector.shape_cast %178 : vector<8x1x8x32xf32> to vector<64x32xf32>
    %c8_218 = arith.constant 8 : index
    %c0_219 = arith.constant 0 : index
    %c0_220 = arith.constant 0 : index
    %180 = vector.load %arg4[%c8_218, %c0_219, %c0_220] : memref<9x32x64xf32, #tpu.memory_space<vmem>>, vector<1x32x64xf32>
    %181 = vector.shape_cast %180 : vector<1x32x64xf32> to vector<32x64xf32>
    %cst_221 = arith.constant dense<0.000000e+00> : vector<64x64xf32>
    %182 = tpu.matmul %179, %181, %cst_221 {dimension_numbers = #tpu.dot_dimension_numbers<[1], [0], [0], [1], [0, 0, 1, 1], [], []>} : vector<64x32xf32>, vector<32x64xf32>, vector<64x64xf32> -> vector<64x64xf32>
    %183 = arith.addf %177, %182 : vector<64x64xf32>
    %c0_222 = arith.constant 0 : index
    %c0_223 = arith.constant 0 : index
    %184 = vector.load %arg5[%c0_222, %c0_223] : memref<1x64xf32, #tpu.memory_space<vmem>>, vector<1x64xf32>
    %185 = vector.broadcast %184 : vector<1x64xf32> to vector<64x64xf32>
    %186 = arith.addf %183, %185 : vector<64x64xf32>
    %cst_224 = arith.constant 0.000000e+00 : f32
    %187 = vector.broadcast %cst_224 : f32 to vector<64x64xf32>
    %188 = arith.cmpf ogt, %186, %187 : vector<64x64xf32>
    %cst_225 = arith.constant 2.000000e-01 : f32
    %189 = vector.broadcast %cst_225 : f32 to vector<64x64xf32>
    %190 = arith.mulf %189, %186 : vector<64x64xf32>
    %191 = arith.select %188, %186, %190 : vector<64x64xi1>, vector<64x64xf32>
    %192 = vector.shape_cast %191 : vector<64x64xf32> to vector<8x8x64xf32>
    %c0_226 = arith.constant 0 : index
    %c1_227 = arith.constant 1 : index
    %c128 = arith.constant 128 : index
    %193 = vector.load %arg12[%c0_226, %c1_227, %c128] : memref<9x9x256xf32, #tpu.memory_space<vmem>>, vector<8x8x64xf32>
    tpu.vector_store %arg12[%c0_226, %c1_227, %c128], %192 {strides = array<i32>} : memref<9x9x256xf32, #tpu.memory_space<vmem>>, vector<8x8x64xf32>,
    %cst_228 = arith.constant 0.000000e+00 : f32
    %194 = vector.broadcast %cst_228 : f32 to vector<64x64xf32>
    %c0_229 = arith.constant 0 : index
    %c2_230 = arith.constant 2 : index
    %c0_231 = arith.constant 0 : index
    %c0_232 = arith.constant 0 : index
    %195 = vector.load %arg11[%c0_229, %c2_230, %c0_231, %c0_232] : memref<9x4x9x128xf32, #tpu.memory_space<vmem>>, vector<8x1x8x32xf32>
    %196 = vector.shape_cast %195 : vector<8x1x8x32xf32> to vector<64x32xf32>
    %c0_233 = arith.constant 0 : index
    %c0_234 = arith.constant 0 : index
    %c0_235 = arith.constant 0 : index
    %197 = vector.load %arg4[%c0_233, %c0_234, %c0_235] : memref<9x32x64xf32, #tpu.memory_space<vmem>>, vector<1x32x64xf32>
    %198 = vector.shape_cast %197 : vector<1x32x64xf32> to vector<32x64xf32>
    %cst_236 = arith.constant dense<0.000000e+00> : vector<64x64xf32>
    %199 = tpu.matmul %196, %198, %cst_236 {dimension_numbers = #tpu.dot_dimension_numbers<[1], [0], [0], [1], [0, 0, 1, 1], [], []>} : vector<64x32xf32>, vector<32x64xf32>, vector<64x64xf32> -> vector<64x64xf32>
    %200 = arith.addf %194, %199 : vector<64x64xf32>
    %c0_237 = arith.constant 0 : index
    %c2_238 = arith.constant 2 : index
    %c0_239 = arith.constant 0 : index
    %c32_240 = arith.constant 32 : index
    %201 = vector.load %arg11[%c0_237, %c2_238, %c0_239, %c32_240] : memref<9x4x9x128xf32, #tpu.memory_space<vmem>>, vector<8x1x8x32xf32>
    %202 = vector.shape_cast %201 : vector<8x1x8x32xf32> to vector<64x32xf32>
    %c1_241 = arith.constant 1 : index
    %c0_242 = arith.constant 0 : index
    %c0_243 = arith.constant 0 : index
    %203 = vector.load %arg4[%c1_241, %c0_242, %c0_243] : memref<9x32x64xf32, #tpu.memory_space<vmem>>, vector<1x32x64xf32>
    %204 = vector.shape_cast %203 : vector<1x32x64xf32> to vector<32x64xf32>
    %cst_244 = arith.constant dense<0.000000e+00> : vector<64x64xf32>
    %205 = tpu.matmul %202, %204, %cst_244 {dimension_numbers = #tpu.dot_dimension_numbers<[1], [0], [0], [1], [0, 0, 1, 1], [], []>} : vector<64x32xf32>, vector<32x64xf32>, vector<64x64xf32> -> vector<64x64xf32>
    %206 = arith.addf %200, %205 : vector<64x64xf32>
    %c0_245 = arith.constant 0 : index
    %c2_246 = arith.constant 2 : index
    %c0_247 = arith.constant 0 : index
    %c64_248 = arith.constant 64 : index
    %207 = vector.load %arg11[%c0_245, %c2_246, %c0_247, %c64_248] : memref<9x4x9x128xf32, #tpu.memory_space<vmem>>, vector<8x1x8x32xf32>
    %208 = vector.shape_cast %207 : vector<8x1x8x32xf32> to vector<64x32xf32>
    %c2_249 = arith.constant 2 : index
    %c0_250 = arith.constant 0 : index
    %c0_251 = arith.constant 0 : index
    %209 = vector.load %arg4[%c2_249, %c0_250, %c0_251] : memref<9x32x64xf32, #tpu.memory_space<vmem>>, vector<1x32x64xf32>
    %210 = vector.shape_cast %209 : vector<1x32x64xf32> to vector<32x64xf32>
    %cst_252 = arith.constant dense<0.000000e+00> : vector<64x64xf32>
    %211 = tpu.matmul %208, %210, %cst_252 {dimension_numbers = #tpu.dot_dimension_numbers<[1], [0], [0], [1], [0, 0, 1, 1], [], []>} : vector<64x32xf32>, vector<32x64xf32>, vector<64x64xf32> -> vector<64x64xf32>
    %212 = arith.addf %206, %211 : vector<64x64xf32>
    %c0_253 = arith.constant 0 : index
    %c3_254 = arith.constant 3 : index
    %c0_255 = arith.constant 0 : index
    %c0_256 = arith.constant 0 : index
    %213 = vector.load %arg11[%c0_253, %c3_254, %c0_255, %c0_256] : memref<9x4x9x128xf32, #tpu.memory_space<vmem>>, vector<8x1x8x32xf32>
    %214 = vector.shape_cast %213 : vector<8x1x8x32xf32> to vector<64x32xf32>
    %c3_257 = arith.constant 3 : index
    %c0_258 = arith.constant 0 : index
    %c0_259 = arith.constant 0 : index
    %215 = vector.load %arg4[%c3_257, %c0_258, %c0_259] : memref<9x32x64xf32, #tpu.memory_space<vmem>>, vector<1x32x64xf32>
    %216 = vector.shape_cast %215 : vector<1x32x64xf32> to vector<32x64xf32>
    %cst_260 = arith.constant dense<0.000000e+00> : vector<64x64xf32>
    %217 = tpu.matmul %214, %216, %cst_260 {dimension_numbers = #tpu.dot_dimension_numbers<[1], [0], [0], [1], [0, 0, 1, 1], [], []>} : vector<64x32xf32>, vector<32x64xf32>, vector<64x64xf32> -> vector<64x64xf32>
    %218 = arith.addf %212, %217 : vector<64x64xf32>
    %c0_261 = arith.constant 0 : index
    %c3_262 = arith.constant 3 : index
    %c0_263 = arith.constant 0 : index
    %c32_264 = arith.constant 32 : index
    %219 = vector.load %arg11[%c0_261, %c3_262, %c0_263, %c32_264] : memref<9x4x9x128xf32, #tpu.memory_space<vmem>>, vector<8x1x8x32xf32>
    %220 = vector.shape_cast %219 : vector<8x1x8x32xf32> to vector<64x32xf32>
    %c4_265 = arith.constant 4 : index
    %c0_266 = arith.constant 0 : index
    %c0_267 = arith.constant 0 : index
    %221 = vector.load %arg4[%c4_265, %c0_266, %c0_267] : memref<9x32x64xf32, #tpu.memory_space<vmem>>, vector<1x32x64xf32>
    %222 = vector.shape_cast %221 : vector<1x32x64xf32> to vector<32x64xf32>
    %cst_268 = arith.constant dense<0.000000e+00> : vector<64x64xf32>
    %223 = tpu.matmul %220, %222, %cst_268 {dimension_numbers = #tpu.dot_dimension_numbers<[1], [0], [0], [1], [0, 0, 1, 1], [], []>} : vector<64x32xf32>, vector<32x64xf32>, vector<64x64xf32> -> vector<64x64xf32>
    %224 = arith.addf %218, %223 : vector<64x64xf32>
    %c0_269 = arith.constant 0 : index
    %c3_270 = arith.constant 3 : index
    %c0_271 = arith.constant 0 : index
    %c64_272 = arith.constant 64 : index
    %225 = vector.load %arg11[%c0_269, %c3_270, %c0_271, %c64_272] : memref<9x4x9x128xf32, #tpu.memory_space<vmem>>, vector<8x1x8x32xf32>
    %226 = vector.shape_cast %225 : vector<8x1x8x32xf32> to vector<64x32xf32>
    %c5_273 = arith.constant 5 : index
    %c0_274 = arith.constant 0 : index
    %c0_275 = arith.constant 0 : index
    %227 = vector.load %arg4[%c5_273, %c0_274, %c0_275] : memref<9x32x64xf32, #tpu.memory_space<vmem>>, vector<1x32x64xf32>
    %228 = vector.shape_cast %227 : vector<1x32x64xf32> to vector<32x64xf32>
    %cst_276 = arith.constant dense<0.000000e+00> : vector<64x64xf32>
    %229 = tpu.matmul %226, %228, %cst_276 {dimension_numbers = #tpu.dot_dimension_numbers<[1], [0], [0], [1], [0, 0, 1, 1], [], []>} : vector<64x32xf32>, vector<32x64xf32>, vector<64x64xf32> -> vector<64x64xf32>
    %230 = arith.addf %224, %229 : vector<64x64xf32>
    %c1_277 = arith.constant 1 : index
    %c0_278 = arith.constant 0 : index
    %c0_279 = arith.constant 0 : index
    %c0_280 = arith.constant 0 : index
    %231 = vector.load %arg11[%c1_277, %c0_278, %c0_279, %c0_280] : memref<9x4x9x128xf32, #tpu.memory_space<vmem>>, vector<8x1x8x32xf32>
    %232 = vector.shape_cast %231 : vector<8x1x8x32xf32> to vector<64x32xf32>
    %c6_281 = arith.constant 6 : index
    %c0_282 = arith.constant 0 : index
    %c0_283 = arith.constant 0 : index
    %233 = vector.load %arg4[%c6_281, %c0_282, %c0_283] : memref<9x32x64xf32, #tpu.memory_space<vmem>>, vector<1x32x64xf32>
    %234 = vector.shape_cast %233 : vector<1x32x64xf32> to vector<32x64xf32>
    %cst_284 = arith.constant dense<0.000000e+00> : vector<64x64xf32>
    %235 = tpu.matmul %232, %234, %cst_284 {dimension_numbers = #tpu.dot_dimension_numbers<[1], [0], [0], [1], [0, 0, 1, 1], [], []>} : vector<64x32xf32>, vector<32x64xf32>, vector<64x64xf32> -> vector<64x64xf32>
    %236 = arith.addf %230, %235 : vector<64x64xf32>
    %c1_285 = arith.constant 1 : index
    %c0_286 = arith.constant 0 : index
    %c0_287 = arith.constant 0 : index
    %c32_288 = arith.constant 32 : index
    %237 = vector.load %arg11[%c1_285, %c0_286, %c0_287, %c32_288] : memref<9x4x9x128xf32, #tpu.memory_space<vmem>>, vector<8x1x8x32xf32>
    %238 = vector.shape_cast %237 : vector<8x1x8x32xf32> to vector<64x32xf32>
    %c7_289 = arith.constant 7 : index
    %c0_290 = arith.constant 0 : index
    %c0_291 = arith.constant 0 : index
    %239 = vector.load %arg4[%c7_289, %c0_290, %c0_291] : memref<9x32x64xf32, #tpu.memory_space<vmem>>, vector<1x32x64xf32>
    %240 = vector.shape_cast %239 : vector<1x32x64xf32> to vector<32x64xf32>
    %cst_292 = arith.constant dense<0.000000e+00> : vector<64x64xf32>
    %241 = tpu.matmul %238, %240, %cst_292 {dimension_numbers = #tpu.dot_dimension_numbers<[1], [0], [0], [1], [0, 0, 1, 1], [], []>} : vector<64x32xf32>, vector<32x64xf32>, vector<64x64xf32> -> vector<64x64xf32>
    %242 = arith.addf %236, %241 : vector<64x64xf32>
    %c1_293 = arith.constant 1 : index
    %c0_294 = arith.constant 0 : index
    %c0_295 = arith.constant 0 : index
    %c64_296 = arith.constant 64 : index
    %243 = vector.load %arg11[%c1_293, %c0_294, %c0_295, %c64_296] : memref<9x4x9x128xf32, #tpu.memory_space<vmem>>, vector<8x1x8x32xf32>
    %244 = vector.shape_cast %243 : vector<8x1x8x32xf32> to vector<64x32xf32>
    %c8_297 = arith.constant 8 : index
    %c0_298 = arith.constant 0 : index
    %c0_299 = arith.constant 0 : index
    %245 = vector.load %arg4[%c8_297, %c0_298, %c0_299] : memref<9x32x64xf32, #tpu.memory_space<vmem>>, vector<1x32x64xf32>
    %246 = vector.shape_cast %245 : vector<1x32x64xf32> to vector<32x64xf32>
    %cst_300 = arith.constant dense<0.000000e+00> : vector<64x64xf32>
    %247 = tpu.matmul %244, %246, %cst_300 {dimension_numbers = #tpu.dot_dimension_numbers<[1], [0], [0], [1], [0, 0, 1, 1], [], []>} : vector<64x32xf32>, vector<32x64xf32>, vector<64x64xf32> -> vector<64x64xf32>
    %248 = arith.addf %242, %247 : vector<64x64xf32>
    %c0_301 = arith.constant 0 : index
    %c0_302 = arith.constant 0 : index
    %249 = vector.load %arg5[%c0_301, %c0_302] : memref<1x64xf32, #tpu.memory_space<vmem>>, vector<1x64xf32>
    %250 = vector.broadcast %249 : vector<1x64xf32> to vector<64x64xf32>
    %251 = arith.addf %248, %250 : vector<64x64xf32>
    %cst_303 = arith.constant 0.000000e+00 : f32
    %252 = vector.broadcast %cst_303 : f32 to vector<64x64xf32>
    %253 = arith.cmpf ogt, %251, %252 : vector<64x64xf32>
    %cst_304 = arith.constant 2.000000e-01 : f32
    %254 = vector.broadcast %cst_304 : f32 to vector<64x64xf32>
    %255 = arith.mulf %254, %251 : vector<64x64xf32>
    %256 = arith.select %253, %251, %255 : vector<64x64xi1>, vector<64x64xf32>
    %257 = vector.shape_cast %256 : vector<64x64xf32> to vector<8x8x64xf32>
    %c1_305 = arith.constant 1 : index
    %c0_306 = arith.constant 0 : index
    %c64_307 = arith.constant 64 : index
    %258 = vector.load %arg12[%c1_305, %c0_306, %c64_307] : memref<9x9x256xf32, #tpu.memory_space<vmem>>, vector<8x8x64xf32>
    tpu.vector_store %arg12[%c1_305, %c0_306, %c64_307], %257 {strides = array<i32>} : memref<9x9x256xf32, #tpu.memory_space<vmem>>, vector<8x8x64xf32>,
    %cst_308 = arith.constant 0.000000e+00 : f32
    %259 = vector.broadcast %cst_308 : f32 to vector<64x64xf32>
    %c0_309 = arith.constant 0 : index
    %c2_310 = arith.constant 2 : index
    %c0_311 = arith.constant 0 : index
    %c64_312 = arith.constant 64 : index
    %260 = vector.load %arg11[%c0_309, %c2_310, %c0_311, %c64_312] : memref<9x4x9x128xf32, #tpu.memory_space<vmem>>, vector<8x1x8x32xf32>
    %261 = vector.shape_cast %260 : vector<8x1x8x32xf32> to vector<64x32xf32>
    %c0_313 = arith.constant 0 : index
    %c0_314 = arith.constant 0 : index
    %c0_315 = arith.constant 0 : index
    %262 = vector.load %arg4[%c0_313, %c0_314, %c0_315] : memref<9x32x64xf32, #tpu.memory_space<vmem>>, vector<1x32x64xf32>
    %263 = vector.shape_cast %262 : vector<1x32x64xf32> to vector<32x64xf32>
    %cst_316 = arith.constant dense<0.000000e+00> : vector<64x64xf32>
    %264 = tpu.matmul %261, %263, %cst_316 {dimension_numbers = #tpu.dot_dimension_numbers<[1], [0], [0], [1], [0, 0, 1, 1], [], []>} : vector<64x32xf32>, vector<32x64xf32>, vector<64x64xf32> -> vector<64x64xf32>
    %265 = arith.addf %259, %264 : vector<64x64xf32>
    %c0_317 = arith.constant 0 : index
    %c2_318 = arith.constant 2 : index
    %c0_319 = arith.constant 0 : index
    %c96_320 = arith.constant 96 : index
    %266 = vector.load %arg11[%c0_317, %c2_318, %c0_319, %c96_320] : memref<9x4x9x128xf32, #tpu.memory_space<vmem>>, vector<8x1x8x32xf32>
    %267 = vector.shape_cast %266 : vector<8x1x8x32xf32> to vector<64x32xf32>
    %c1_321 = arith.constant 1 : index
    %c0_322 = arith.constant 0 : index
    %c0_323 = arith.constant 0 : index
    %268 = vector.load %arg4[%c1_321, %c0_322, %c0_323] : memref<9x32x64xf32, #tpu.memory_space<vmem>>, vector<1x32x64xf32>
    %269 = vector.shape_cast %268 : vector<1x32x64xf32> to vector<32x64xf32>
    %cst_324 = arith.constant dense<0.000000e+00> : vector<64x64xf32>
    %270 = tpu.matmul %267, %269, %cst_324 {dimension_numbers = #tpu.dot_dimension_numbers<[1], [0], [0], [1], [0, 0, 1, 1], [], []>} : vector<64x32xf32>, vector<32x64xf32>, vector<64x64xf32> -> vector<64x64xf32>
    %271 = arith.addf %265, %270 : vector<64x64xf32>
    %c0_325 = arith.constant 0 : index
    %c2_326 = arith.constant 2 : index
    %c1_327 = arith.constant 1 : index
    %c0_328 = arith.constant 0 : index
    %272 = vector.load %arg11[%c0_325, %c2_326, %c1_327, %c0_328] : memref<9x4x9x128xf32, #tpu.memory_space<vmem>>, vector<8x1x8x32xf32>
    %273 = vector.shape_cast %272 : vector<8x1x8x32xf32> to vector<64x32xf32>
    %c2_329 = arith.constant 2 : index
    %c0_330 = arith.constant 0 : index
    %c0_331 = arith.constant 0 : index
    %274 = vector.load %arg4[%c2_329, %c0_330, %c0_331] : memref<9x32x64xf32, #tpu.memory_space<vmem>>, vector<1x32x64xf32>
    %275 = vector.shape_cast %274 : vector<1x32x64xf32> to vector<32x64xf32>
    %cst_332 = arith.constant dense<0.000000e+00> : vector<64x64xf32>
    %276 = tpu.matmul %273, %275, %cst_332 {dimension_numbers = #tpu.dot_dimension_numbers<[1], [0], [0], [1], [0, 0, 1, 1], [], []>} : vector<64x32xf32>, vector<32x64xf32>, vector<64x64xf32> -> vector<64x64xf32>
    %277 = arith.addf %271, %276 : vector<64x64xf32>
    %c0_333 = arith.constant 0 : index
    %c3_334 = arith.constant 3 : index
    %c0_335 = arith.constant 0 : index
    %c64_336 = arith.constant 64 : index
    %278 = vector.load %arg11[%c0_333, %c3_334, %c0_335, %c64_336] : memref<9x4x9x128xf32, #tpu.memory_space<vmem>>, vector<8x1x8x32xf32>
    %279 = vector.shape_cast %278 : vector<8x1x8x32xf32> to vector<64x32xf32>
    %c3_337 = arith.constant 3 : index
    %c0_338 = arith.constant 0 : index
    %c0_339 = arith.constant 0 : index
    %280 = vector.load %arg4[%c3_337, %c0_338, %c0_339] : memref<9x32x64xf32, #tpu.memory_space<vmem>>, vector<1x32x64xf32>
    %281 = vector.shape_cast %280 : vector<1x32x64xf32> to vector<32x64xf32>
    %cst_340 = arith.constant dense<0.000000e+00> : vector<64x64xf32>
    %282 = tpu.matmul %279, %281, %cst_340 {dimension_numbers = #tpu.dot_dimension_numbers<[1], [0], [0], [1], [0, 0, 1, 1], [], []>} : vector<64x32xf32>, vector<32x64xf32>, vector<64x64xf32> -> vector<64x64xf32>
    %283 = arith.addf %277, %282 : vector<64x64xf32>
    %c0_341 = arith.constant 0 : index
    %c3_342 = arith.constant 3 : index
    %c0_343 = arith.constant 0 : index
    %c96_344 = arith.constant 96 : index
    %284 = vector.load %arg11[%c0_341, %c3_342, %c0_343, %c96_344] : memref<9x4x9x128xf32, #tpu.memory_space<vmem>>, vector<8x1x8x32xf32>
    %285 = vector.shape_cast %284 : vector<8x1x8x32xf32> to vector<64x32xf32>
    %c4_345 = arith.constant 4 : index
    %c0_346 = arith.constant 0 : index
    %c0_347 = arith.constant 0 : index
    %286 = vector.load %arg4[%c4_345, %c0_346, %c0_347] : memref<9x32x64xf32, #tpu.memory_space<vmem>>, vector<1x32x64xf32>
    %287 = vector.shape_cast %286 : vector<1x32x64xf32> to vector<32x64xf32>
    %cst_348 = arith.constant dense<0.000000e+00> : vector<64x64xf32>
    %288 = tpu.matmul %285, %287, %cst_348 {dimension_numbers = #tpu.dot_dimension_numbers<[1], [0], [0], [1], [0, 0, 1, 1], [], []>} : vector<64x32xf32>, vector<32x64xf32>, vector<64x64xf32> -> vector<64x64xf32>
    %289 = arith.addf %283, %288 : vector<64x64xf32>
    %c0_349 = arith.constant 0 : index
    %c3_350 = arith.constant 3 : index
    %c1_351 = arith.constant 1 : index
    %c0_352 = arith.constant 0 : index
    %290 = vector.load %arg11[%c0_349, %c3_350, %c1_351, %c0_352] : memref<9x4x9x128xf32, #tpu.memory_space<vmem>>, vector<8x1x8x32xf32>
    %291 = vector.shape_cast %290 : vector<8x1x8x32xf32> to vector<64x32xf32>
    %c5_353 = arith.constant 5 : index
    %c0_354 = arith.constant 0 : index
    %c0_355 = arith.constant 0 : index
    %292 = vector.load %arg4[%c5_353, %c0_354, %c0_355] : memref<9x32x64xf32, #tpu.memory_space<vmem>>, vector<1x32x64xf32>
    %293 = vector.shape_cast %292 : vector<1x32x64xf32> to vector<32x64xf32>
    %cst_356 = arith.constant dense<0.000000e+00> : vector<64x64xf32>
    %294 = tpu.matmul %291, %293, %cst_356 {dimension_numbers = #tpu.dot_dimension_numbers<[1], [0], [0], [1], [0, 0, 1, 1], [], []>} : vector<64x32xf32>, vector<32x64xf32>, vector<64x64xf32> -> vector<64x64xf32>
    %295 = arith.addf %289, %294 : vector<64x64xf32>
    %c1_357 = arith.constant 1 : index
    %c0_358 = arith.constant 0 : index
    %c0_359 = arith.constant 0 : index
    %c64_360 = arith.constant 64 : index
    %296 = vector.load %arg11[%c1_357, %c0_358, %c0_359, %c64_360] : memref<9x4x9x128xf32, #tpu.memory_space<vmem>>, vector<8x1x8x32xf32>
    %297 = vector.shape_cast %296 : vector<8x1x8x32xf32> to vector<64x32xf32>
    %c6_361 = arith.constant 6 : index
    %c0_362 = arith.constant 0 : index
    %c0_363 = arith.constant 0 : index
    %298 = vector.load %arg4[%c6_361, %c0_362, %c0_363] : memref<9x32x64xf32, #tpu.memory_space<vmem>>, vector<1x32x64xf32>
    %299 = vector.shape_cast %298 : vector<1x32x64xf32> to vector<32x64xf32>
    %cst_364 = arith.constant dense<0.000000e+00> : vector<64x64xf32>
    %300 = tpu.matmul %297, %299, %cst_364 {dimension_numbers = #tpu.dot_dimension_numbers<[1], [0], [0], [1], [0, 0, 1, 1], [], []>} : vector<64x32xf32>, vector<32x64xf32>, vector<64x64xf32> -> vector<64x64xf32>
    %301 = arith.addf %295, %300 : vector<64x64xf32>
    %c1_365 = arith.constant 1 : index
    %c0_366 = arith.constant 0 : index
    %c0_367 = arith.constant 0 : index
    %c96_368 = arith.constant 96 : index
    %302 = vector.load %arg11[%c1_365, %c0_366, %c0_367, %c96_368] : memref<9x4x9x128xf32, #tpu.memory_space<vmem>>, vector<8x1x8x32xf32>
    %303 = vector.shape_cast %302 : vector<8x1x8x32xf32> to vector<64x32xf32>
    %c7_369 = arith.constant 7 : index
    %c0_370 = arith.constant 0 : index
    %c0_371 = arith.constant 0 : index
    %304 = vector.load %arg4[%c7_369, %c0_370, %c0_371] : memref<9x32x64xf32, #tpu.memory_space<vmem>>, vector<1x32x64xf32>
    %305 = vector.shape_cast %304 : vector<1x32x64xf32> to vector<32x64xf32>
    %cst_372 = arith.constant dense<0.000000e+00> : vector<64x64xf32>
    %306 = tpu.matmul %303, %305, %cst_372 {dimension_numbers = #tpu.dot_dimension_numbers<[1], [0], [0], [1], [0, 0, 1, 1], [], []>} : vector<64x32xf32>, vector<32x64xf32>, vector<64x64xf32> -> vector<64x64xf32>
    %307 = arith.addf %301, %306 : vector<64x64xf32>
    %c1_373 = arith.constant 1 : index
    %c0_374 = arith.constant 0 : index
    %c1_375 = arith.constant 1 : index
    %c0_376 = arith.constant 0 : index
    %308 = vector.load %arg11[%c1_373, %c0_374, %c1_375, %c0_376] : memref<9x4x9x128xf32, #tpu.memory_space<vmem>>, vector<8x1x8x32xf32>
    %309 = vector.shape_cast %308 : vector<8x1x8x32xf32> to vector<64x32xf32>
    %c8_377 = arith.constant 8 : index
    %c0_378 = arith.constant 0 : index
    %c0_379 = arith.constant 0 : index
    %310 = vector.load %arg4[%c8_377, %c0_378, %c0_379] : memref<9x32x64xf32, #tpu.memory_space<vmem>>, vector<1x32x64xf32>
    %311 = vector.shape_cast %310 : vector<1x32x64xf32> to vector<32x64xf32>
    %cst_380 = arith.constant dense<0.000000e+00> : vector<64x64xf32>
    %312 = tpu.matmul %309, %311, %cst_380 {dimension_numbers = #tpu.dot_dimension_numbers<[1], [0], [0], [1], [0, 0, 1, 1], [], []>} : vector<64x32xf32>, vector<32x64xf32>, vector<64x64xf32> -> vector<64x64xf32>
    %313 = arith.addf %307, %312 : vector<64x64xf32>
    %c0_381 = arith.constant 0 : index
    %c0_382 = arith.constant 0 : index
    %314 = vector.load %arg5[%c0_381, %c0_382] : memref<1x64xf32, #tpu.memory_space<vmem>>, vector<1x64xf32>
    %315 = vector.broadcast %314 : vector<1x64xf32> to vector<64x64xf32>
    %316 = arith.addf %313, %315 : vector<64x64xf32>
    %cst_383 = arith.constant 0.000000e+00 : f32
    %317 = vector.broadcast %cst_383 : f32 to vector<64x64xf32>
    %318 = arith.cmpf ogt, %316, %317 : vector<64x64xf32>
    %cst_384 = arith.constant 2.000000e-01 : f32
    %319 = vector.broadcast %cst_384 : f32 to vector<64x64xf32>
    %320 = arith.mulf %319, %316 : vector<64x64xf32>
    %321 = arith.select %318, %316, %320 : vector<64x64xi1>, vector<64x64xf32>
    %322 = vector.shape_cast %321 : vector<64x64xf32> to vector<8x8x64xf32>
    %c1_385 = arith.constant 1 : index
    %c1_386 = arith.constant 1 : index
    %c0_387 = arith.constant 0 : index
    %323 = vector.load %arg12[%c1_385, %c1_386, %c0_387] : memref<9x9x256xf32, #tpu.memory_space<vmem>>, vector<8x8x64xf32>
    tpu.vector_store %arg12[%c1_385, %c1_386, %c0_387], %322 {strides = array<i32>} : memref<9x9x256xf32, #tpu.memory_space<vmem>>, vector<8x8x64xf32>,
    %cst_388 = arith.constant 0.000000e+00 : f32
    %324 = vector.broadcast %cst_388 : f32 to vector<64x128xf32>
    %c0_389 = arith.constant 0 : index
    %c0_390 = arith.constant 0 : index
    %c0_391 = arith.constant 0 : index
    %325 = vector.load %arg12[%c0_389, %c0_390, %c0_391] : memref<9x9x256xf32, #tpu.memory_space<vmem>>, vector<8x8x64xf32>
    %326 = vector.shape_cast %325 : vector<8x8x64xf32> to vector<64x64xf32>
    %c0_392 = arith.constant 0 : index
    %c0_393 = arith.constant 0 : index
    %c0_394 = arith.constant 0 : index
    %327 = vector.load %arg6[%c0_392, %c0_393, %c0_394] : memref<9x64x128xf32, #tpu.memory_space<vmem>>, vector<1x64x128xf32>
    %328 = vector.shape_cast %327 : vector<1x64x128xf32> to vector<64x128xf32>
    %cst_395 = arith.constant dense<0.000000e+00> : vector<64x128xf32>
    %329 = tpu.matmul %326, %328, %cst_395 {dimension_numbers = #tpu.dot_dimension_numbers<[1], [0], [0], [1], [0, 0, 1, 1], [], []>} : vector<64x64xf32>, vector<64x128xf32>, vector<64x128xf32> -> vector<64x128xf32>
    %330 = arith.addf %324, %329 : vector<64x128xf32>
    %c0_396 = arith.constant 0 : index
    %c0_397 = arith.constant 0 : index
    %c64_398 = arith.constant 64 : index
    %331 = vector.load %arg12[%c0_396, %c0_397, %c64_398] : memref<9x9x256xf32, #tpu.memory_space<vmem>>, vector<8x8x64xf32>
    %332 = vector.shape_cast %331 : vector<8x8x64xf32> to vector<64x64xf32>
    %c1_399 = arith.constant 1 : index
    %c0_400 = arith.constant 0 : index
    %c0_401 = arith.constant 0 : index
    %333 = vector.load %arg6[%c1_399, %c0_400, %c0_401] : memref<9x64x128xf32, #tpu.memory_space<vmem>>, vector<1x64x128xf32>
    %334 = vector.shape_cast %333 : vector<1x64x128xf32> to vector<64x128xf32>
    %cst_402 = arith.constant dense<0.000000e+00> : vector<64x128xf32>
    %335 = tpu.matmul %332, %334, %cst_402 {dimension_numbers = #tpu.dot_dimension_numbers<[1], [0], [0], [1], [0, 0, 1, 1], [], []>} : vector<64x64xf32>, vector<64x128xf32>, vector<64x128xf32> -> vector<64x128xf32>
    %336 = arith.addf %330, %335 : vector<64x128xf32>
    %c0_403 = arith.constant 0 : index
    %c1_404 = arith.constant 1 : index
    %c0_405 = arith.constant 0 : index
    %337 = vector.load %arg12[%c0_403, %c1_404, %c0_405] : memref<9x9x256xf32, #tpu.memory_space<vmem>>, vector<8x8x64xf32>
    %338 = vector.shape_cast %337 : vector<8x8x64xf32> to vector<64x64xf32>
    %c2_406 = arith.constant 2 : index
    %c0_407 = arith.constant 0 : index
    %c0_408 = arith.constant 0 : index
    %339 = vector.load %arg6[%c2_406, %c0_407, %c0_408] : memref<9x64x128xf32, #tpu.memory_space<vmem>>, vector<1x64x128xf32>
    %340 = vector.shape_cast %339 : vector<1x64x128xf32> to vector<64x128xf32>
    %cst_409 = arith.constant dense<0.000000e+00> : vector<64x128xf32>
    %341 = tpu.matmul %338, %340, %cst_409 {dimension_numbers = #tpu.dot_dimension_numbers<[1], [0], [0], [1], [0, 0, 1, 1], [], []>} : vector<64x64xf32>, vector<64x128xf32>, vector<64x128xf32> -> vector<64x128xf32>
    %342 = arith.addf %336, %341 : vector<64x128xf32>
    %c0_410 = arith.constant 0 : index
    %c0_411 = arith.constant 0 : index
    %c128_412 = arith.constant 128 : index
    %343 = vector.load %arg12[%c0_410, %c0_411, %c128_412] : memref<9x9x256xf32, #tpu.memory_space<vmem>>, vector<8x8x64xf32>
    %344 = vector.shape_cast %343 : vector<8x8x64xf32> to vector<64x64xf32>
    %c3_413 = arith.constant 3 : index
    %c0_414 = arith.constant 0 : index
    %c0_415 = arith.constant 0 : index
    %345 = vector.load %arg6[%c3_413, %c0_414, %c0_415] : memref<9x64x128xf32, #tpu.memory_space<vmem>>, vector<1x64x128xf32>
    %346 = vector.shape_cast %345 : vector<1x64x128xf32> to vector<64x128xf32>
    %cst_416 = arith.constant dense<0.000000e+00> : vector<64x128xf32>
    %347 = tpu.matmul %344, %346, %cst_416 {dimension_numbers = #tpu.dot_dimension_numbers<[1], [0], [0], [1], [0, 0, 1, 1], [], []>} : vector<64x64xf32>, vector<64x128xf32>, vector<64x128xf32> -> vector<64x128xf32>
    %348 = arith.addf %342, %347 : vector<64x128xf32>
    %c0_417 = arith.constant 0 : index
    %c0_418 = arith.constant 0 : index
    %c192_419 = arith.constant 192 : index
    %349 = vector.load %arg12[%c0_417, %c0_418, %c192_419] : memref<9x9x256xf32, #tpu.memory_space<vmem>>, vector<8x8x64xf32>
    %350 = vector.shape_cast %349 : vector<8x8x64xf32> to vector<64x64xf32>
    %c4_420 = arith.constant 4 : index
    %c0_421 = arith.constant 0 : index
    %c0_422 = arith.constant 0 : index
    %351 = vector.load %arg6[%c4_420, %c0_421, %c0_422] : memref<9x64x128xf32, #tpu.memory_space<vmem>>, vector<1x64x128xf32>
    %352 = vector.shape_cast %351 : vector<1x64x128xf32> to vector<64x128xf32>
    %cst_423 = arith.constant dense<0.000000e+00> : vector<64x128xf32>
    %353 = tpu.matmul %350, %352, %cst_423 {dimension_numbers = #tpu.dot_dimension_numbers<[1], [0], [0], [1], [0, 0, 1, 1], [], []>} : vector<64x64xf32>, vector<64x128xf32>, vector<64x128xf32> -> vector<64x128xf32>
    %354 = arith.addf %348, %353 : vector<64x128xf32>
    %c0_424 = arith.constant 0 : index
    %c1_425 = arith.constant 1 : index
    %c128_426 = arith.constant 128 : index
    %355 = vector.load %arg12[%c0_424, %c1_425, %c128_426] : memref<9x9x256xf32, #tpu.memory_space<vmem>>, vector<8x8x64xf32>
    %356 = vector.shape_cast %355 : vector<8x8x64xf32> to vector<64x64xf32>
    %c5_427 = arith.constant 5 : index
    %c0_428 = arith.constant 0 : index
    %c0_429 = arith.constant 0 : index
    %357 = vector.load %arg6[%c5_427, %c0_428, %c0_429] : memref<9x64x128xf32, #tpu.memory_space<vmem>>, vector<1x64x128xf32>
    %358 = vector.shape_cast %357 : vector<1x64x128xf32> to vector<64x128xf32>
    %cst_430 = arith.constant dense<0.000000e+00> : vector<64x128xf32>
    %359 = tpu.matmul %356, %358, %cst_430 {dimension_numbers = #tpu.dot_dimension_numbers<[1], [0], [0], [1], [0, 0, 1, 1], [], []>} : vector<64x64xf32>, vector<64x128xf32>, vector<64x128xf32> -> vector<64x128xf32>
    %360 = arith.addf %354, %359 : vector<64x128xf32>
    %c1_431 = arith.constant 1 : index
    %c0_432 = arith.constant 0 : index
    %c0_433 = arith.constant 0 : index
    %361 = vector.load %arg12[%c1_431, %c0_432, %c0_433] : memref<9x9x256xf32, #tpu.memory_space<vmem>>, vector<8x8x64xf32>
    %362 = vector.shape_cast %361 : vector<8x8x64xf32> to vector<64x64xf32>
    %c6_434 = arith.constant 6 : index
    %c0_435 = arith.constant 0 : index
    %c0_436 = arith.constant 0 : index
    %363 = vector.load %arg6[%c6_434, %c0_435, %c0_436] : memref<9x64x128xf32, #tpu.memory_space<vmem>>, vector<1x64x128xf32>
    %364 = vector.shape_cast %363 : vector<1x64x128xf32> to vector<64x128xf32>
    %cst_437 = arith.constant dense<0.000000e+00> : vector<64x128xf32>
    %365 = tpu.matmul %362, %364, %cst_437 {dimension_numbers = #tpu.dot_dimension_numbers<[1], [0], [0], [1], [0, 0, 1, 1], [], []>} : vector<64x64xf32>, vector<64x128xf32>, vector<64x128xf32> -> vector<64x128xf32>
    %366 = arith.addf %360, %365 : vector<64x128xf32>
    %c1_438 = arith.constant 1 : index
    %c0_439 = arith.constant 0 : index
    %c64_440 = arith.constant 64 : index
    %367 = vector.load %arg12[%c1_438, %c0_439, %c64_440] : memref<9x9x256xf32, #tpu.memory_space<vmem>>, vector<8x8x64xf32>
    %368 = vector.shape_cast %367 : vector<8x8x64xf32> to vector<64x64xf32>
    %c7_441 = arith.constant 7 : index
    %c0_442 = arith.constant 0 : index
    %c0_443 = arith.constant 0 : index
    %369 = vector.load %arg6[%c7_441, %c0_442, %c0_443] : memref<9x64x128xf32, #tpu.memory_space<vmem>>, vector<1x64x128xf32>
    %370 = vector.shape_cast %369 : vector<1x64x128xf32> to vector<64x128xf32>
    %cst_444 = arith.constant dense<0.000000e+00> : vector<64x128xf32>
    %371 = tpu.matmul %368, %370, %cst_444 {dimension_numbers = #tpu.dot_dimension_numbers<[1], [0], [0], [1], [0, 0, 1, 1], [], []>} : vector<64x64xf32>, vector<64x128xf32>, vector<64x128xf32> -> vector<64x128xf32>
    %372 = arith.addf %366, %371 : vector<64x128xf32>
    %c1_445 = arith.constant 1 : index
    %c1_446 = arith.constant 1 : index
    %c0_447 = arith.constant 0 : index
    %373 = vector.load %arg12[%c1_445, %c1_446, %c0_447] : memref<9x9x256xf32, #tpu.memory_space<vmem>>, vector<8x8x64xf32>
    %374 = vector.shape_cast %373 : vector<8x8x64xf32> to vector<64x64xf32>
    %c8_448 = arith.constant 8 : index
    %c0_449 = arith.constant 0 : index
    %c0_450 = arith.constant 0 : index
    %375 = vector.load %arg6[%c8_448, %c0_449, %c0_450] : memref<9x64x128xf32, #tpu.memory_space<vmem>>, vector<1x64x128xf32>
    %376 = vector.shape_cast %375 : vector<1x64x128xf32> to vector<64x128xf32>
    %cst_451 = arith.constant dense<0.000000e+00> : vector<64x128xf32>
    %377 = tpu.matmul %374, %376, %cst_451 {dimension_numbers = #tpu.dot_dimension_numbers<[1], [0], [0], [1], [0, 0, 1, 1], [], []>} : vector<64x64xf32>, vector<64x128xf32>, vector<64x128xf32> -> vector<64x128xf32>
    %378 = arith.addf %372, %377 : vector<64x128xf32>
    %c0_452 = arith.constant 0 : index
    %c0_453 = arith.constant 0 : index
    %379 = vector.load %arg7[%c0_452, %c0_453] : memref<1x128xf32, #tpu.memory_space<vmem>>, vector<1x128xf32>
    %380 = vector.broadcast %379 : vector<1x128xf32> to vector<64x128xf32>
    %381 = arith.addf %378, %380 : vector<64x128xf32>
    %cst_454 = arith.constant 0.000000e+00 : f32
    %382 = vector.broadcast %cst_454 : f32 to vector<64x128xf32>
    %383 = arith.cmpf ogt, %381, %382 : vector<64x128xf32>
    %cst_455 = arith.constant 2.000000e-01 : f32
    %384 = vector.broadcast %cst_455 : f32 to vector<64x128xf32>
    %385 = arith.mulf %384, %381 : vector<64x128xf32>
    %386 = arith.select %383, %381, %385 : vector<64x128xi1>, vector<64x128xf32>
    %c0_456 = arith.constant 0 : index
    %c0_457 = arith.constant 0 : index
    %387 = vector.load %arg8[%c0_456, %c0_457] : memref<64x128xf32, #tpu.memory_space<vmem>>, vector<64x128xf32>
    %388 = arith.mulf %386, %387 : vector<64x128xf32>
    %cst_458 = arith.constant dense<0.000000e+00> : vector<64xf32>
    %389 = vector.multi_reduction <add>, %388, %cst_458 [1] : vector<64x128xf32> to vector<64xf32>
    %390 = vector.shape_cast %389 : vector<64xf32> to vector<64x1xf32>
    %cst_459 = arith.constant dense<0.000000e+00> : vector<1xf32>
    %391 = vector.multi_reduction <add>, %390, %cst_459 [0] : vector<64x1xf32> to vector<1xf32>
    %392 = vector.shape_cast %391 : vector<1xf32> to vector<1x1xf32>
    %c0_460 = arith.constant 0 : index
    %c0_461 = arith.constant 0 : index
    %393 = vector.load %arg9[%c0_460, %c0_461] : memref<1x1xf32, #tpu.memory_space<vmem>>, vector<1x1xf32>
    %394 = arith.addf %392, %393 : vector<1x1xf32>
    %395 = arith.negf %394 : vector<1x1xf32>
    %396 = math.exp %395 : vector<1x1xf32>
    %cst_462 = arith.constant 1.000000e+00 : f32
    %397 = vector.broadcast %cst_462 : f32 to vector<1x1xf32>
    %398 = arith.addf %397, %396 : vector<1x1xf32>
    %399 = arith.divf %397, %398 : vector<1x1xf32>
    %c0_463 = arith.constant 0 : index
    %c0_464 = arith.constant 0 : index
    %c0_465 = arith.constant 0 : index
    %400 = vector.load %arg10[%c0_463, %c0_464, %c0_465] : memref<1x1x1xf32, #tpu.memory_space<vmem>>, vector<1x1x1xf32>
    %401 = vector.shape_cast %400 : vector<1x1x1xf32> to vector<1x1xf32>
    %402 = vector.shape_cast %399 : vector<1x1xf32> to vector<1x1x1xf32>
    tpu.vector_store %arg10[%c0_463, %c0_464, %c0_465], %402 {strides = array<i32>} : memref<1x1x1xf32, #tpu.memory_space<vmem>>, vector<1x1x1xf32>,
    return
  }
  func.func @transform_0(%arg0: i32) -> (i32, i32, i32) {
    %c0_i32 = arith.constant 0 : i32
    %c0_i32_0 = arith.constant 0 : i32
    %c0_i32_1 = arith.constant 0 : i32
    return %arg0, %c0_i32, %c0_i32_0 : i32, i32, i32
  }
  func.func @transform_1(%arg0: i32) -> (i32, i32) {
    %c0_i32 = arith.constant 0 : i32
    %c0_i32_0 = arith.constant 0 : i32
    %c0_i32_1 = arith.constant 0 : i32
    return %c0_i32, %c0_i32_0 : i32, i32
  }
  func.func @transform_2(%arg0: i32) -> (i32, i32) {
    %c0_i32 = arith.constant 0 : i32
    %c0_i32_0 = arith.constant 0 : i32
    %c0_i32_1 = arith.constant 0 : i32
    return %c0_i32, %c0_i32_0 : i32, i32
  }
  func.func @transform_3(%arg0: i32) -> (i32, i32, i32) {
    %c0_i32 = arith.constant 0 : i32
    %c0_i32_0 = arith.constant 0 : i32
    %c0_i32_1 = arith.constant 0 : i32
    %c0_i32_2 = arith.constant 0 : i32
    return %c0_i32, %c0_i32_0, %c0_i32_1 : i32, i32, i32
  }
  func.func @transform_4(%arg0: i32) -> (i32, i32) {
    %c0_i32 = arith.constant 0 : i32
    %c0_i32_0 = arith.constant 0 : i32
    %c0_i32_1 = arith.constant 0 : i32
    return %c0_i32, %c0_i32_0 : i32, i32
  }
  func.func @transform_5(%arg0: i32) -> (i32, i32, i32) {
    %c0_i32 = arith.constant 0 : i32
    %c0_i32_0 = arith.constant 0 : i32
    %c0_i32_1 = arith.constant 0 : i32
    %c0_i32_2 = arith.constant 0 : i32
    return %c0_i32, %c0_i32_0, %c0_i32_1 : i32, i32, i32
  }
  func.func @transform_6(%arg0: i32) -> (i32, i32) {
    %c0_i32 = arith.constant 0 : i32
    %c0_i32_0 = arith.constant 0 : i32
    %c0_i32_1 = arith.constant 0 : i32
    return %c0_i32, %c0_i32_0 : i32, i32
  }
  func.func @transform_7(%arg0: i32) -> (i32, i32) {
    %c0_i32 = arith.constant 0 : i32
    %c0_i32_0 = arith.constant 0 : i32
    %c0_i32_1 = arith.constant 0 : i32
    return %c0_i32, %c0_i32_0 : i32, i32
  }
  func.func @transform_8(%arg0: i32) -> (i32, i32) {
    %c0_i32 = arith.constant 0 : i32
    %c0_i32_0 = arith.constant 0 : i32
    %c0_i32_1 = arith.constant 0 : i32
    return %c0_i32, %c0_i32_0 : i32, i32
  }
  func.func @transform_9(%arg0: i32) -> (i32, i32, i32) {
    %c0_i32 = arith.constant 0 : i32
    %c0_i32_0 = arith.constant 0 : i32
    %c0_i32_1 = arith.constant 0 : i32
    return %arg0, %c0_i32, %c0_i32_0 : i32, i32, i32
  }
}

</mosaic_0001>

<llo_original>
// kernel: discriminator_forward.1
$region0: #{discriminator_forward.1}
  #allocation0 [shape = 'u32[]', space=smem, size = 0x4, offset = 0x4, fixed_abs, tag = 'smem constant byte address 0x4 - core index']
  #allocation1 [shape = 'u32[144,128]{1,0:T(1,128)}', space=vmem, size = 0x12000, scoped, tag = 'internal scratch']
  #allocation2 [shape = 'f32[9,4,9,128]{3,2,1,0:T(8,128)}', space=vmem, size = 0x48000, scoped, tag = 'scratch operand']
  #allocation3 [shape = 'f32[9,9,256]{2,1,0:T(8,128)}', space=vmem, size = 0x24000, scoped, tag = 'scratch operand']
  #allocation4 [shape = 'f32[1,1]{1,0:T(1,128)S(1)}', space=vmem, size = 0x200, scoped, tag = 'scoped memory for discriminator_forward.1']
  %s0 = inlined_call_operand.vmem [shape: f32[2,1024,9], index: 0, kind: input, shape index: {}]
  %s1 = inlined_call_operand.vmem [shape: f32[9,32], index: 1, kind: input, shape index: {}]
  %s2 = inlined_call_operand.vmem [shape: f32[1,32], index: 2, kind: input, shape index: {}]
  %s3 = inlined_call_operand.vmem [shape: f32[9,32,64], index: 3, kind: input, shape index: {}]
  %s4 = inlined_call_operand.vmem [shape: f32[1,64], index: 4, kind: input, shape index: {}]
  %s5 = inlined_call_operand.vmem [shape: f32[9,64,128], index: 5, kind: input, shape index: {}]
  %s6 = inlined_call_operand.vmem [shape: f32[1,128], index: 6, kind: input, shape index: {}]
  %s7 = inlined_call_operand.vmem [shape: f32[64,128], index: 7, kind: input, shape index: {}]
  %s8 = inlined_call_operand.<no memory space> [shape: f32[1,1], index: 8, kind: input, shape index: {}]
  %s9 = inlined_call_operand.vmem [shape: f32[2,1,1], index: 9, kind: output, shape index: {}]
  %s10 = sld [smem:[#allocation0]]
  $region69: #{discriminator_forward.1} parent=0
    _
  %s12 = ssub.s32 1, %s10
  %s13 = scalar_select 0, %s12, %s10
  %v14 = vstv %s8
  %15 = vst [vmem:[#allocation4] sm:$0x1] %v14
  loop: start=0, step=1, limit=4
  $region2: #{discriminator_forward.1} parent=0 // loop_pre_header
    _
  $region3: #{discriminator_forward.1} parent=0 // loop_header
    %s17 = sphi 0, %s21
    %p18 = scmp.ge.s32.totalorder %s17, 4
    %s27 = sphi 0, %s29
    %s30 = sphi 0, %s27
    %s31 = sphi 0, %s30
    %s47 = sphi 0, %s31
    %s51 = sphi 0, %s51
    %s53 = sphi 0, %s51
    %s54 = sphi 0, %s53
    %s68 = sphi 0, %s54
    %s72 = sphi 0, %s72
    %s74 = sphi 0, %s72
    %s75 = sphi 0, %s74
    %s89 = sphi 0, %s75
    %s93 = sphi 0, %s93
    %s95 = sphi 0, %s93
    %s96 = sphi 0, %s95
    %s110 = sphi 0, %s96
    %s114 = sphi 0, %s114
    %s116 = sphi 0, %s114
    %s117 = sphi 0, %s116
    %s131 = sphi 0, %s117
    %s135 = sphi 0, %s135
    %s137 = sphi 0, %s135
    %s138 = sphi 0, %s137
    %s152 = sphi 0, %s138
    %s156 = sphi 0, %s156
    %s158 = sphi 0, %s156
    %s159 = sphi 0, %s158
    %s173 = sphi 0, %s159
    %s177 = sphi 0, %s177
    %s179 = sphi 0, %s177
    %s180 = sphi 0, %s179
    %s194 = sphi 0, %s180
    %s198 = sphi 0, %s198
    %s200 = sphi 0, %s198
    %s201 = sphi 0, %s200
    %s215 = sphi 0, %s201
    %s221 = sphi 0, %s223
    %s224 = sphi 0, %s221
    %s225 = sphi 0, %s224
    %s241 = sphi 0, %s225
  $region4: #{discriminator_forward.1} parent=0 // loop_header_branch
    %20 = sbr.rel (%p18) target = $region8
  $region5: #{discriminator_forward.1} parent=0 // loop_body
    %s22 = ssub.s32 %s17, 1
    %s23 = ssub.s32 %s17, 2
    %s24 = sadd.s32 %s17, 1
    %s25 = ssub.s32 %s17, %s24
    %p26 = scmp.eq.s32.totalorder %s25, 0
    %s28 = sadd.s32 %s27, 1
    %s29 = scalar_select %p26, %s27, %s28
    %p32 = pneg %p26
    %p33 = scmp.eq.s32.totalorder %s17, 1
    %p34 = por %p32, %p33
    %p35 = scmp.ne.s32.totalorder %s27, %s30
    %p36 = scmp.eq.s32.totalorder %s17, 0
    %p37 = por %p35, %p36
    %p38 = scmp.ne.s32.totalorder %s27, %s30
    %p39 = scmp.eq.s32.totalorder %s22, 1
    %p40 = por %p38, %p39
    %p41 = scmp.ne.s32.totalorder %s30, %s31
    %p42 = scmp.eq.s32.totalorder %s22, 0
    %p43 = por %p41, %p42
    %p44 = scmp.ne.s32.totalorder %s30, %s31
    %p45 = scmp.eq.s32.totalorder %s23, 1
    %p46 = por %p44, %p45
    %p48 = scmp.ne.s32.totalorder %s31, %s47
    %p49 = scmp.eq.s32.totalorder %s23, 0
    %p50 = por %p48, %p49
    %s52 = sadd.s32 %s51, 1
    %p55 = scmp.eq.s32.totalorder %s17, 1
    %p56 = scmp.ne.s32.totalorder %s51, %s53
    %p57 = scmp.eq.s32.totalorder %s17, 0
    %p58 = por %p56, %p57
    %p59 = scmp.ne.s32.totalorder %s51, %s53
    %p60 = scmp.eq.s32.totalorder %s22, 1
    %p61 = por %p59, %p60
    %p62 = scmp.ne.s32.totalorder %s53, %s54
    %p63 = scmp.eq.s32.totalorder %s22, 0
    %p64 = por %p62, %p63
    %p65 = scmp.ne.s32.totalorder %s53, %s54
    %p66 = scmp.eq.s32.totalorder %s23, 1
    %p67 = por %p65, %p66
    %p69 = scmp.ne.s32.totalorder %s54, %s68
    %p70 = scmp.eq.s32.totalorder %s23, 0
    %p71 = por %p69, %p70
    %s73 = sadd.s32 %s72, 1
    %p76 = scmp.eq.s32.totalorder %s17, 1
    %p77 = scmp.ne.s32.totalorder %s72, %s74
    %p78 = scmp.eq.s32.totalorder %s17, 0
    %p79 = por %p77, %p78
    %p80 = scmp.ne.s32.totalorder %s72, %s74
    %p81 = scmp.eq.s32.totalorder %s22, 1
    %p82 = por %p80, %p81
    %p83 = scmp.ne.s32.totalorder %s74, %s75
    %p84 = scmp.eq.s32.totalorder %s22, 0
    %p85 = por %p83, %p84
    %p86 = scmp.ne.s32.totalorder %s74, %s75
    %p87 = scmp.eq.s32.totalorder %s23, 1
    %p88 = por %p86, %p87
    %p90 = scmp.ne.s32.totalorder %s75, %s89
    %p91 = scmp.eq.s32.totalorder %s23, 0
    %p92 = por %p90, %p91
    %s94 = sadd.s32 %s93, 1
    %p97 = scmp.eq.s32.totalorder %s17, 1
    %p98 = scmp.ne.s32.totalorder %s93, %s95
    %p99 = scmp.eq.s32.totalorder %s17, 0
    %p100 = por %p98, %p99
    %p101 = scmp.ne.s32.totalorder %s93, %s95
    %p102 = scmp.eq.s32.totalorder %s22, 1
    %p103 = por %p101, %p102
    %p104 = scmp.ne.s32.totalorder %s95, %s96
    %p105 = scmp.eq.s32.totalorder %s22, 0
    %p106 = por %p104, %p105
    %p107 = scmp.ne.s32.totalorder %s95, %s96
    %p108 = scmp.eq.s32.totalorder %s23, 1
    %p109 = por %p107, %p108
    %p111 = scmp.ne.s32.totalorder %s96, %s110
    %p112 = scmp.eq.s32.totalorder %s23, 0
    %p113 = por %p111, %p112
    %s115 = sadd.s32 %s114, 1
    %p118 = scmp.eq.s32.totalorder %s17, 1
    %p119 = scmp.ne.s32.totalorder %s114, %s116
    %p120 = scmp.eq.s32.totalorder %s17, 0
    %p121 = por %p119, %p120
    %p122 = scmp.ne.s32.totalorder %s114, %s116
    %p123 = scmp.eq.s32.totalorder %s22, 1
    %p124 = por %p122, %p123
    %p125 = scmp.ne.s32.totalorder %s116, %s117
    %p126 = scmp.eq.s32.totalorder %s22, 0
    %p127 = por %p125, %p126
    %p128 = scmp.ne.s32.totalorder %s116, %s117
    %p129 = scmp.eq.s32.totalorder %s23, 1
    %p130 = por %p128, %p129
    %p132 = scmp.ne.s32.totalorder %s117, %s131
    %p133 = scmp.eq.s32.totalorder %s23, 0
    %p134 = por %p132, %p133
    %s136 = sadd.s32 %s135, 1
    %p139 = scmp.eq.s32.totalorder %s17, 1
    %p140 = scmp.ne.s32.totalorder %s135, %s137
    %p141 = scmp.eq.s32.totalorder %s17, 0
    %p142 = por %p140, %p141
    %p143 = scmp.ne.s32.totalorder %s135, %s137
    %p144 = scmp.eq.s32.totalorder %s22, 1
    %p145 = por %p143, %p144
    %p146 = scmp.ne.s32.totalorder %s137, %s138
    %p147 = scmp.eq.s32.totalorder %s22, 0
    %p148 = por %p146, %p147
    %p149 = scmp.ne.s32.totalorder %s137, %s138
    %p150 = scmp.eq.s32.totalorder %s23, 1
    %p151 = por %p149, %p150
    %p153 = scmp.ne.s32.totalorder %s138, %s152
    %p154 = scmp.eq.s32.totalorder %s23, 0
    %p155 = por %p153, %p154
    %s157 = sadd.s32 %s156, 1
    %p160 = scmp.eq.s32.totalorder %s17, 1
    %p161 = scmp.ne.s32.totalorder %s156, %s158
    %p162 = scmp.eq.s32.totalorder %s17, 0
    %p163 = por %p161, %p162
    %p164 = scmp.ne.s32.totalorder %s156, %s158
    %p165 = scmp.eq.s32.totalorder %s22, 1
    %p166 = por %p164, %p165
    %p167 = scmp.ne.s32.totalorder %s158, %s159
    %p168 = scmp.eq.s32.totalorder %s22, 0
    %p169 = por %p167, %p168
    %p170 = scmp.ne.s32.totalorder %s158, %s159
    %p171 = scmp.eq.s32.totalorder %s23, 1
    %p172 = por %p170, %p171
    %p174 = scmp.ne.s32.totalorder %s159, %s173
    %p175 = scmp.eq.s32.totalorder %s23, 0
    %p176 = por %p174, %p175
    %s178 = sadd.s32 %s177, 1
    %p181 = scmp.eq.s32.totalorder %s17, 1
    %p182 = scmp.ne.s32.totalorder %s177, %s179
    %p183 = scmp.eq.s32.totalorder %s17, 0
    %p184 = por %p182, %p183
    %p185 = scmp.ne.s32.totalorder %s177, %s179
    %p186 = scmp.eq.s32.totalorder %s22, 1
    %p187 = por %p185, %p186
    %p188 = scmp.ne.s32.totalorder %s179, %s180
    %p189 = scmp.eq.s32.totalorder %s22, 0
    %p190 = por %p188, %p189
    %p191 = scmp.ne.s32.totalorder %s179, %s180
    %p192 = scmp.eq.s32.totalorder %s23, 1
    %p193 = por %p191, %p192
    %p195 = scmp.ne.s32.totalorder %s180, %s194
    %p196 = scmp.eq.s32.totalorder %s23, 0
    %p197 = por %p195, %p196
    %s199 = sadd.s32 %s198, 1
    %p202 = scmp.eq.s32.totalorder %s17, 1
    %p203 = scmp.ne.s32.totalorder %s198, %s200
    %p204 = scmp.eq.s32.totalorder %s17, 0
    %p205 = por %p203, %p204
    %p206 = scmp.ne.s32.totalorder %s198, %s200
    %p207 = scmp.eq.s32.totalorder %s22, 1
    %p208 = por %p206, %p207
    %p209 = scmp.ne.s32.totalorder %s200, %s201
    %p210 = scmp.eq.s32.totalorder %s22, 0
    %p211 = por %p209, %p210
    %p212 = scmp.ne.s32.totalorder %s200, %s201
    %p213 = scmp.eq.s32.totalorder %s23, 1
    %p214 = por %p212, %p213
    %p216 = scmp.ne.s32.totalorder %s201, %s215
    %p217 = scmp.eq.s32.totalorder %s23, 0
    %p218 = por %p216, %p217
    %s219 = ssub.s32 %s17, %s24
    %p220 = scmp.eq.s32.totalorder %s219, 0
    %s222 = sadd.s32 %s221, 1
    %s223 = scalar_select %p220, %s221, %s222
    %p226 = pneg %p220
    %p227 = scmp.eq.s32.totalorder %s17, 1
    %p228 = por %p226, %p227
    %p229 = scmp.ne.s32.totalorder %s221, %s224
    %p230 = scmp.eq.s32.totalorder %s17, 0
    %p231 = por %p229, %p230
    %p232 = scmp.ne.s32.totalorder %s221, %s224
    %p233 = scmp.eq.s32.totalorder %s22, 1
    %p234 = por %p232, %p233
    %p235 = scmp.ne.s32.totalorder %s224, %s225
    %p236 = scmp.eq.s32.totalorder %s22, 0
    %p237 = por %p235, %p236
    %p238 = scmp.ne.s32.totalorder %s224, %s225
    %p239 = scmp.eq.s32.totalorder %s23, 1
    %p240 = por %p238, %p239
    %p242 = scmp.ne.s32.totalorder %s225, %s241
    %p243 = scmp.eq.s32.totalorder %s23, 0
    %p244 = por %p242, %p243
    %p245 = scmp.le.s32.totalorder 1, %s17
    %p246 = scmp.lt.s32.totalorder %s17, 3
    %p247 = pnand %p245, %p246
    %p248 = pneg %p247
    // Predicated region
    $region9: #{discriminator_forward.1} parent=5 // pred_check
      _
    $region10: #{discriminator_forward.1} parent=5 // pred_check_branch
      %250 = sbr.rel (%p247) target = $region12
    $region11: #{discriminator_forward.1} parent=5 // pred_region
      %s251 = ssub.s32 %s17, 1
      // Predicated region
      $region13: #{discriminator_forward.1} parent=11 // pred_check
        %p252 = pneg %p64
      $region14: #{discriminator_forward.1} parent=11 // pred_check_branch
        %254 = sbr.rel (%p252) target = $region16
      $region15: #{discriminator_forward.1} parent=11 // pred_region
        _
      $region16: #{discriminator_forward.1} parent=11 // pred_fallthru
        _
      // Predicated region
      $region17: #{discriminator_forward.1} parent=11 // pred_check
        %p255 = pneg %p85
      $region18: #{discriminator_forward.1} parent=11 // pred_check_branch
        %257 = sbr.rel (%p255) target = $region20
      $region19: #{discriminator_forward.1} parent=11 // pred_region
        _
      $region20: #{discriminator_forward.1} parent=11 // pred_fallthru
        _
      // Predicated region
      $region21: #{discriminator_forward.1} parent=11 // pred_check
        %p258 = pneg %p106
      $region22: #{discriminator_forward.1} parent=11 // pred_check_branch
        %260 = sbr.rel (%p258) target = $region24
      $region23: #{discriminator_forward.1} parent=11 // pred_region
        _
      $region24: #{discriminator_forward.1} parent=11 // pred_fallthru
        _
      // Predicated region
      $region25: #{discriminator_forward.1} parent=11 // pred_check
        %p261 = pneg %p127
      $region26: #{discriminator_forward.1} parent=11 // pred_check_branch
        %263 = sbr.rel (%p261) target = $region28
      $region27: #{discriminator_forward.1} parent=11 // pred_region
        _
      $region28: #{discriminator_forward.1} parent=11 // pred_fallthru
        _
      // Predicated region
      $region29: #{discriminator_forward.1} parent=11 // pred_check
        %p264 = pneg %p148
      $region30: #{discriminator_forward.1} parent=11 // pred_check_branch
        %266 = sbr.rel (%p264) target = $region32
      $region31: #{discriminator_forward.1} parent=11 // pred_region
        _
      $region32: #{discriminator_forward.1} parent=11 // pred_fallthru
        _
      // Predicated region
      $region33: #{discriminator_forward.1} parent=11 // pred_check
        %p267 = pneg %p169
      $region34: #{discriminator_forward.1} parent=11 // pred_check_branch
        %269 = sbr.rel (%p267) target = $region36
      $region35: #{discriminator_forward.1} parent=11 // pred_region
        _
      $region36: #{discriminator_forward.1} parent=11 // pred_fallthru
        _
      // Predicated region
      $region37: #{discriminator_forward.1} parent=11 // pred_check
        %p270 = pneg %p190
      $region38: #{discriminator_forward.1} parent=11 // pred_check_branch
        %272 = sbr.rel (%p270) target = $region40
      $region39: #{discriminator_forward.1} parent=11 // pred_region
        _
      $region40: #{discriminator_forward.1} parent=11 // pred_fallthru
        _
      // Predicated region
      $region41: #{discriminator_forward.1} parent=11 // pred_check
        %p273 = pneg %p211
      $region42: #{discriminator_forward.1} parent=11 // pred_check_branch
        %275 = sbr.rel (%p273) target = $region44
      $region43: #{discriminator_forward.1} parent=11 // pred_region
        _
      $region44: #{discriminator_forward.1} parent=11 // pred_fallthru
        _
    $region12: #{discriminator_forward.1} parent=5 // pred_fallthru
      _
    %p276 = scmp.lt.s32.totalorder %s17, 2
    // Predicated region
    $region45: #{discriminator_forward.1} parent=5 // pred_check
      %p277 = pneg %p276
    $region46: #{discriminator_forward.1} parent=5 // pred_check_branch
      %279 = sbr.rel (%p277) target = $region48
    $region47: #{discriminator_forward.1} parent=5 // pred_region
      // Predicated region
      $region49: #{discriminator_forward.1} parent=47 // pred_check
        %p280 = pneg %p37
      $region50: #{discriminator_forward.1} parent=47 // pred_check_branch
        %282 = sbr.rel (%p280) target = $region52
      $region51: #{discriminator_forward.1} parent=47 // pred_region
        %p283 = scmp.lt.s32.totalorder %s17, 1
        %s284 = scalar_select %p283, %s17, 1
        %s285 = smul.addr %s284, 128
        %s286 = smul.addr %s285, 8
        %s287 = scalar_lea.vmem %s0, %s286
      $region52: #{discriminator_forward.1} parent=47 // pred_fallthru
        _
    $region48: #{discriminator_forward.1} parent=5 // pred_fallthru
      _
    %p288 = scmp.le.s32.totalorder 1, %s17
    %p289 = scmp.lt.s32.totalorder %s17, 3
    %p290 = pnand %p288, %p289
    %p291 = pneg %p290
    // Predicated region
    $region53: #{discriminator_forward.1} parent=5 // pred_check
      _
    $region54: #{discriminator_forward.1} parent=5 // pred_check_branch
      %293 = sbr.rel (%p290) target = $region56
    $region55: #{discriminator_forward.1} parent=5 // pred_region
      %s294 = ssub.s32 %s17, 1
      %p295 = scmp.lt.s32.totalorder %s22, 1
      %s296 = scalar_select %p295, %s22, 1
      %s297 = smul.addr %s296, 128
      %s298 = smul.addr %s297, 8
      %s299 = scalar_lea.vmem %s0, %s298
      %p300 = pneg %p43
      %p301 = pneg %p40
      %p302 = pneg %p64
      %p303 = pneg %p61
      %p304 = pneg %p85
      %p305 = pneg %p82
      %p306 = pneg %p106
      %p307 = pneg %p103
      %p308 = pneg %p127
      %p309 = pneg %p124
      %p310 = pneg %p148
      %p311 = pneg %p145
      %p312 = pneg %p169
      %p313 = pneg %p166
      %p314 = pneg %p190
      %p315 = pneg %p187
      %p316 = pneg %p211
      %p317 = pneg %p208
      %p318 = pneg %p237
      %p319 = pneg %p234
      %p320 = scmp.lt.s32.totalorder %s22, 1
      %s321 = scalar_select %p320, %s22, 1
      %s322 = scalar_lea.vmem %s9, %s321
      %p323 = scmp.lt.s32.totalorder %s22, 1
      %s324 = scalar_select %p323, %s22, 1
      %s325 = smul.addr %s324, 128
      %s326 = smul.addr %s325, 8
      %s327 = scalar_lea.vmem %s0, %s326
      %p328 = scmp.lt.s32.totalorder %s22, 1
      %s329 = scalar_select %p328, %s22, 1
      %s330 = scalar_lea.vmem %s9, %s329
      %331 = vst [vmem:[#allocation2] sm:$0xff] 0.0
      %332 = vst [vmem:[#allocation2 + $0x8] sm:$0x1] 0.0
      %333 = vst [vmem:[#allocation2 + $0x10] sm:$0xff] 0.0
      %334 = vst [vmem:[#allocation2 + $0x18] sm:$0x1] 0.0
      %335 = vst [vmem:[#allocation2 + $0x20] sm:$0xff] 0.0
      %336 = vst [vmem:[#allocation2 + $0x28] sm:$0x1] 0.0
      %337 = vst [vmem:[#allocation2 + $0x30] sm:$0xff] 0.0
      %338 = vst [vmem:[#allocation2 + $0x38] sm:$0x1] 0.0
      %339 = vst [vmem:[#allocation2 + $0x40] sm:$0xff] 0.0
      %340 = vst [vmem:[#allocation2 + $0x48] sm:$0x1] 0.0
      %341 = vst [vmem:[#allocation2 + $0x50] sm:$0xff] 0.0
      %342 = vst [vmem:[#allocation2 + $0x58] sm:$0x1] 0.0
      %343 = vst [vmem:[#allocation2 + $0x60] sm:$0xff] 0.0
      %344 = vst [vmem:[#allocation2 + $0x68] sm:$0x1] 0.0
      %345 = vst [vmem:[#allocation2 + $0x70] sm:$0xff] 0.0
      %346 = vst [vmem:[#allocation2 + $0x78] sm:$0x1] 0.0
      %347 = vst [vmem:[#allocation2 + $0x80] sm:$0xff] 0.0
      %348 = vst [vmem:[#allocation2 + $0x88] sm:$0x1] 0.0
      %349 = vst [vmem:[#allocation2 + $0x90] sm:$0xff] 0.0
      %350 = vst [vmem:[#allocation2 + $0x98] sm:$0x1] 0.0
      %351 = vst [vmem:[#allocation2 + $0xa0] sm:$0xff] 0.0
      %352 = vst [vmem:[#allocation2 + $0xa8] sm:$0x1] 0.0
      %353 = vst [vmem:[#allocation2 + $0xb0] sm:$0xff] 0.0
      %354 = vst [vmem:[#allocation2 + $0xb8] sm:$0x1] 0.0
      %355 = vst [vmem:[#allocation2 + $0xc0] sm:$0xff] 0.0
      %356 = vst [vmem:[#allocation2 + $0xc8] sm:$0x1] 0.0
      %357 = vst [vmem:[#allocation2 + $0xd0] sm:$0xff] 0.0
      %358 = vst [vmem:[#allocation2 + $0xd8] sm:$0x1] 0.0
      %359 = vst [vmem:[#allocation2 + $0xe0] sm:$0xff] 0.0
      %360 = vst [vmem:[#allocation2 + $0xe8] sm:$0x1] 0.0
      %361 = vst [vmem:[#allocation2 + $0xf0] sm:$0xff] 0.0
      %362 = vst [vmem:[#allocation2 + $0xf8] sm:$0x1] 0.0
      %363 = vst [vmem:[#allocation2 + $0x100] sm:$0xff] 0.0
      %364 = vst [vmem:[#allocation2 + $0x108] sm:$0x1] 0.0
      %365 = vst [vmem:[#allocation2 + $0x110] sm:$0xff] 0.0
      %366 = vst [vmem:[#allocation2 + $0x118] sm:$0x1] 0.0
      %367 = vst [vmem:[#allocation2 + $0x120] sm:$0xff] 0.0
      %368 = vst [vmem:[#allocation2 + $0x128] sm:$0x1] 0.0
      %369 = vst [vmem:[#allocation2 + $0x130] sm:$0xff] 0.0
      %370 = vst [vmem:[#allocation2 + $0x138] sm:$0x1] 0.0
      %371 = vst [vmem:[#allocation2 + $0x140] sm:$0xff] 0.0
      %372 = vst [vmem:[#allocation2 + $0x148] sm:$0x1] 0.0
      %373 = vst [vmem:[#allocation2 + $0x150] sm:$0xff] 0.0
      %374 = vst [vmem:[#allocation2 + $0x158] sm:$0x1] 0.0
      %375 = vst [vmem:[#allocation2 + $0x160] sm:$0xff] 0.0
      %376 = vst [vmem:[#allocation2 + $0x168] sm:$0x1] 0.0
      %377 = vst [vmem:[#allocation2 + $0x170] sm:$0xff] 0.0
      %378 = vst [vmem:[#allocation2 + $0x178] sm:$0x1] 0.0
      %379 = vst [vmem:[#allocation2 + $0x180] sm:$0xff] 0.0
      %380 = vst [vmem:[#allocation2 + $0x188] sm:$0x1] 0.0
      %381 = vst [vmem:[#allocation2 + $0x190] sm:$0xff] 0.0
      %382 = vst [vmem:[#allocation2 + $0x198] sm:$0x1] 0.0
      %383 = vst [vmem:[#allocation2 + $0x1a0] sm:$0xff] 0.0
      %384 = vst [vmem:[#allocation2 + $0x1a8] sm:$0x1] 0.0
      %385 = vst [vmem:[#allocation2 + $0x1b0] sm:$0xff] 0.0
      %386 = vst [vmem:[#allocation2 + $0x1b8] sm:$0x1] 0.0
      %387 = vst [vmem:[#allocation2 + $0x1c0] sm:$0xff] 0.0
      %388 = vst [vmem:[#allocation2 + $0x1c8] sm:$0x1] 0.0
      %389 = vst [vmem:[#allocation2 + $0x1d0] sm:$0xff] 0.0
      %390 = vst [vmem:[#allocation2 + $0x1d8] sm:$0x1] 0.0
      %391 = vst [vmem:[#allocation2 + $0x1e0] sm:$0xff] 0.0
      %392 = vst [vmem:[#allocation2 + $0x1e8] sm:$0x1] 0.0
      %393 = vst [vmem:[#allocation2 + $0x1f0] sm:$0xff] 0.0
      %394 = vst [vmem:[#allocation2 + $0x1f8] sm:$0x1] 0.0
      %395 = vst [vmem:[#allocation2 + $0x200] sm:$0xff] 0.0
      %396 = vst [vmem:[#allocation2 + $0x208] sm:$0x1] 0.0
      %397 = vst [vmem:[#allocation2 + $0x210] sm:$0xff] 0.0
      %398 = vst [vmem:[#allocation2 + $0x218] sm:$0x1] 0.0
      %399 = vst [vmem:[#allocation2 + $0x220] sm:$0xff] 0.0
      %400 = vst [vmem:[#allocation2 + $0x228] sm:$0x1] 0.0
      %401 = vst [vmem:[#allocation2 + $0x230] sm:$0xff] 0.0
      %402 = vst [vmem:[#allocation2 + $0x238] sm:$0x1] 0.0
      %403 = vst [vmem:[#allocation3] sm:$0xff] 0.0
      %404 = vst [vmem:[#allocation3 + $0x8] sm:$0xff] 0.0
      %405 = vst [vmem:[#allocation3 + $0x10] sm:$0x1] 0.0
      %406 = vst [vmem:[#allocation3 + $0x18] sm:$0x1] 0.0
      %407 = vst [vmem:[#allocation3 + $0x20] sm:$0xff] 0.0
      %408 = vst [vmem:[#allocation3 + $0x28] sm:$0xff] 0.0
      %409 = vst [vmem:[#allocation3 + $0x30] sm:$0x1] 0.0
      %410 = vst [vmem:[#allocation3 + $0x38] sm:$0x1] 0.0
      %411 = vst [vmem:[#allocation3 + $0x40] sm:$0xff] 0.0
      %412 = vst [vmem:[#allocation3 + $0x48] sm:$0xff] 0.0
      %413 = vst [vmem:[#allocation3 + $0x50] sm:$0x1] 0.0
      %414 = vst [vmem:[#allocation3 + $0x58] sm:$0x1] 0.0
      %415 = vst [vmem:[#allocation3 + $0x60] sm:$0xff] 0.0
      %416 = vst [vmem:[#allocation3 + $0x68] sm:$0xff] 0.0
      %417 = vst [vmem:[#allocation3 + $0x70] sm:$0x1] 0.0
      %418 = vst [vmem:[#allocation3 + $0x78] sm:$0x1] 0.0
      %419 = vst [vmem:[#allocation3 + $0x80] sm:$0xff] 0.0
      %420 = vst [vmem:[#allocation3 + $0x88] sm:$0xff] 0.0
      %421 = vst [vmem:[#allocation3 + $0x90] sm:$0x1] 0.0
      %422 = vst [vmem:[#allocation3 + $0x98] sm:$0x1] 0.0
      %423 = vst [vmem:[#allocation3 + $0xa0] sm:$0xff] 0.0
      %424 = vst [vmem:[#allocation3 + $0xa8] sm:$0xff] 0.0
      %425 = vst [vmem:[#allocation3 + $0xb0] sm:$0x1] 0.0
      %426 = vst [vmem:[#allocation3 + $0xb8] sm:$0x1] 0.0
      %427 = vst [vmem:[#allocation3 + $0xc0] sm:$0xff] 0.0
      %428 = vst [vmem:[#allocation3 + $0xc8] sm:$0xff] 0.0
      %429 = vst [vmem:[#allocation3 + $0xd0] sm:$0x1] 0.0
      %430 = vst [vmem:[#allocation3 + $0xd8] sm:$0x1] 0.0
      %431 = vst [vmem:[#allocation3 + $0xe0] sm:$0xff] 0.0
      %432 = vst [vmem:[#allocation3 + $0xe8] sm:$0xff] 0.0
      %433 = vst [vmem:[#allocation3 + $0xf0] sm:$0x1] 0.0
      %434 = vst [vmem:[#allocation3 + $0xf8] sm:$0x1] 0.0
      %435 = vst [vmem:[#allocation3 + $0x100] sm:$0xff] 0.0
      %436 = vst [vmem:[#allocation3 + $0x108] sm:$0xff] 0.0
      %437 = vst [vmem:[#allocation3 + $0x110] sm:$0x1] 0.0
      %438 = vst [vmem:[#allocation3 + $0x118] sm:$0x1] 0.0
      %v439 = vld [vmem:[%s327] sm:$0xff]
      %v440 = vld [vmem:[%s327 + $0x8] sm:$0xff]
      %v441 = vld [vmem:[%s327 + $0x10] sm:$0xff]
      %v442 = vld [vmem:[%s327 + $0x18] sm:$0xff]
      %v443 = vld [vmem:[%s327 + $0x20] sm:$0xff]
      %v444 = vld [vmem:[%s327 + $0x28] sm:$0xff]
      %v445 = vld [vmem:[%s327 + $0x30] sm:$0xff]
      %v446 = vld [vmem:[%s327 + $0x38] sm:$0xff]
      %v447 = vld [vmem:[%s327 + $0x40] sm:$0xff]
      %v448 = vld [vmem:[%s327 + $0x48] sm:$0xff]
      %v449 = vld [vmem:[%s327 + $0x50] sm:$0xff]
      %v450 = vld [vmem:[%s327 + $0x58] sm:$0xff]
      %v451 = vld [vmem:[%s327 + $0x60] sm:$0xff]
      %v452 = vld [vmem:[%s327 + $0x68] sm:$0xff]
      %v453 = vld [vmem:[%s327 + $0x70] sm:$0xff]
      %v454 = vld [vmem:[%s327 + $0x78] sm:$0xff]
      %v455 = vld [vmem:[%s327 + $0x80] sm:$0xff]
      %v456 = vld [vmem:[%s327 + $0x88] sm:$0xff]
      %v457 = vld [vmem:[%s327 + $0x90] sm:$0xff]
      %v458 = vld [vmem:[%s327 + $0x98] sm:$0xff]
      %v459 = vld [vmem:[%s327 + $0xa0] sm:$0xff]
      %v460 = vld [vmem:[%s327 + $0xa8] sm:$0xff]
      %v461 = vld [vmem:[%s327 + $0xb0] sm:$0xff]
      %v462 = vld [vmem:[%s327 + $0xb8] sm:$0xff]
      %v463 = vld [vmem:[%s327 + $0xc0] sm:$0xff]
      %v464 = vld [vmem:[%s327 + $0xc8] sm:$0xff]
      %v465 = vld [vmem:[%s327 + $0xd0] sm:$0xff]
      %v466 = vld [vmem:[%s327 + $0xd8] sm:$0xff]
      %v467 = vld [vmem:[%s327 + $0xe0] sm:$0xff]
      %v468 = vld [vmem:[%s327 + $0xe8] sm:$0xff]
      %v469 = vld [vmem:[%s327 + $0xf0] sm:$0xff]
      %v470 = vld [vmem:[%s327 + $0xf8] sm:$0xff]
      %v471 = vld [vmem:[%s327 + $0x100] sm:$0xff]
      %v472 = vld [vmem:[%s327 + $0x108] sm:$0xff]
      %v473 = vld [vmem:[%s327 + $0x110] sm:$0xff]
      %v474 = vld [vmem:[%s327 + $0x118] sm:$0xff]
      %v475 = vld [vmem:[%s327 + $0x120] sm:$0xff]
      %v476 = vld [vmem:[%s327 + $0x128] sm:$0xff]
      %v477 = vld [vmem:[%s327 + $0x130] sm:$0xff]
      %v478 = vld [vmem:[%s327 + $0x138] sm:$0xff]
      %v479 = vld [vmem:[%s327 + $0x140] sm:$0xff]
      %v480 = vld [vmem:[%s327 + $0x148] sm:$0xff]
      %v481 = vld [vmem:[%s327 + $0x150] sm:$0xff]
      %v482 = vld [vmem:[%s327 + $0x158] sm:$0xff]
      %v483 = vld [vmem:[%s327 + $0x160] sm:$0xff]
      %v484 = vld [vmem:[%s327 + $0x168] sm:$0xff]
      %v485 = vld [vmem:[%s327 + $0x170] sm:$0xff]
      %v486 = vld [vmem:[%s327 + $0x178] sm:$0xff]
      %v487 = vld [vmem:[%s327 + $0x180] sm:$0xff]
      %v488 = vld [vmem:[%s327 + $0x188] sm:$0xff]
      %v489 = vld [vmem:[%s327 + $0x190] sm:$0xff]
      %v490 = vld [vmem:[%s327 + $0x198] sm:$0xff]
      %v491 = vld [vmem:[%s327 + $0x1a0] sm:$0xff]
      %v492 = vld [vmem:[%s327 + $0x1a8] sm:$0xff]
      %v493 = vld [vmem:[%s327 + $0x1b0] sm:$0xff]
      %v494 = vld [vmem:[%s327 + $0x1b8] sm:$0xff]
      %v495 = vld [vmem:[%s327 + $0x1c0] sm:$0xff]
      %v496 = vld [vmem:[%s327 + $0x1c8] sm:$0xff]
      %v497 = vld [vmem:[%s327 + $0x1d0] sm:$0xff]
      %v498 = vld [vmem:[%s327 + $0x1d8] sm:$0xff]
      %v499 = vld [vmem:[%s327 + $0x1e0] sm:$0xff]
      %v500 = vld [vmem:[%s327 + $0x1e8] sm:$0xff]
      %v501 = vld [vmem:[%s327 + $0x1f0] sm:$0xff]
      %v502 = vld [vmem:[%s327 + $0x1f8] sm:$0xff]
      %v503 = vld [vmem:[%s327 + $0x200] sm:$0xff]
      %v504 = vld [vmem:[%s327 + $0x208] sm:$0xff]
      %v505 = vld [vmem:[%s327 + $0x210] sm:$0xff]
      %v506 = vld [vmem:[%s327 + $0x218] sm:$0xff]
      %v507 = vld [vmem:[%s327 + $0x220] sm:$0xff]
      %v508 = vld [vmem:[%s327 + $0x228] sm:$0xff]
      %v509 = vld [vmem:[%s327 + $0x230] sm:$0xff]
      %v510 = vld [vmem:[%s327 + $0x238] sm:$0xff]
      %v511 = vld [vmem:[%s327 + $0x240] sm:$0xff]
      %v512 = vld [vmem:[%s327 + $0x248] sm:$0xff]
      %v513 = vld [vmem:[%s327 + $0x250] sm:$0xff]
      %v514 = vld [vmem:[%s327 + $0x258] sm:$0xff]
      %v515 = vld [vmem:[%s327 + $0x260] sm:$0xff]
      %v516 = vld [vmem:[%s327 + $0x268] sm:$0xff]
      %v517 = vld [vmem:[%s327 + $0x270] sm:$0xff]
      %v518 = vld [vmem:[%s327 + $0x278] sm:$0xff]
      %v519 = vld [vmem:[%s327 + $0x280] sm:$0xff]
      %v520 = vld [vmem:[%s327 + $0x288] sm:$0xff]
      %v521 = vld [vmem:[%s327 + $0x290] sm:$0xff]
      %v522 = vld [vmem:[%s327 + $0x298] sm:$0xff]
      %v523 = vld [vmem:[%s327 + $0x2a0] sm:$0xff]
      %v524 = vld [vmem:[%s327 + $0x2a8] sm:$0xff]
      %v525 = vld [vmem:[%s327 + $0x2b0] sm:$0xff]
      %v526 = vld [vmem:[%s327 + $0x2b8] sm:$0xff]
      %v527 = vld [vmem:[%s327 + $0x2c0] sm:$0xff]
      %v528 = vld [vmem:[%s327 + $0x2c8] sm:$0xff]
      %v529 = vld [vmem:[%s327 + $0x2d0] sm:$0xff]
      %v530 = vld [vmem:[%s327 + $0x2d8] sm:$0xff]
      %v531 = vld [vmem:[%s327 + $0x2e0] sm:$0xff]
      %v532 = vld [vmem:[%s327 + $0x2e8] sm:$0xff]
      %v533 = vld [vmem:[%s327 + $0x2f0] sm:$0xff]
      %v534 = vld [vmem:[%s327 + $0x2f8] sm:$0xff]
      %v535 = vld [vmem:[%s327 + $0x300] sm:$0xff]
      %v536 = vld [vmem:[%s327 + $0x308] sm:$0xff]
      %v537 = vld [vmem:[%s327 + $0x310] sm:$0xff]
      %v538 = vld [vmem:[%s327 + $0x318] sm:$0xff]
      %v539 = vld [vmem:[%s327 + $0x320] sm:$0xff]
      %v540 = vld [vmem:[%s327 + $0x328] sm:$0xff]
      %v541 = vld [vmem:[%s327 + $0x330] sm:$0xff]
      %v542 = vld [vmem:[%s327 + $0x338] sm:$0xff]
      %v543 = vld [vmem:[%s327 + $0x340] sm:$0xff]
      %v544 = vld [vmem:[%s327 + $0x348] sm:$0xff]
      %v545 = vld [vmem:[%s327 + $0x350] sm:$0xff]
      %v546 = vld [vmem:[%s327 + $0x358] sm:$0xff]
      %v547 = vld [vmem:[%s327 + $0x360] sm:$0xff]
      %v548 = vld [vmem:[%s327 + $0x368] sm:$0xff]
      %v549 = vld [vmem:[%s327 + $0x370] sm:$0xff]
      %v550 = vld [vmem:[%s327 + $0x378] sm:$0xff]
      %v551 = vld [vmem:[%s327 + $0x380] sm:$0xff]
      %v552 = vld [vmem:[%s327 + $0x388] sm:$0xff]
      %v553 = vld [vmem:[%s327 + $0x390] sm:$0xff]
      %v554 = vld [vmem:[%s327 + $0x398] sm:$0xff]
      %v555 = vld [vmem:[%s327 + $0x3a0] sm:$0xff]
      %v556 = vld [vmem:[%s327 + $0x3a8] sm:$0xff]
      %v557 = vld [vmem:[%s327 + $0x3b0] sm:$0xff]
      %v558 = vld [vmem:[%s327 + $0x3b8] sm:$0xff]
      %v559 = vld [vmem:[%s327 + $0x3c0] sm:$0xff]
      %v560 = vld [vmem:[%s327 + $0x3c8] sm:$0xff]
      %v561 = vld [vmem:[%s327 + $0x3d0] sm:$0xff]
      %v562 = vld [vmem:[%s327 + $0x3d8] sm:$0xff]
      %v563 = vld [vmem:[%s327 + $0x3e0] sm:$0xff]
      %v564 = vld [vmem:[%s327 + $0x3e8] sm:$0xff]
      %v565 = vld [vmem:[%s327 + $0x3f0] sm:$0xff]
      %v566 = vld [vmem:[%s327 + $0x3f8] sm:$0xff]
      %v567 = vld [vmem:[%s1] sm:$0xff]
      %v568 = vld [vmem:[%s1 + $0x8] sm:$0x1]
      %v569 = vld [vmem:[%s2] sm:$0x1]
      %v571 = vlaneseq
      %v572 = vshrl.u32 %v571, 7
      %v573 = vsub.s32 0, %v572
      %v574 = vrot.slane %v569, %v573
      %vm576 = vcmask 72704
      %v578 = vsel %vm576, %v439, 0
      %v581 = vsel %vm576, %v440, 0
      %v584 = vsel %vm576, %v441, 0
      %v587 = vsel %vm576, %v442, 0
      %v590 = vsel %vm576, %v443, 0
      %v593 = vsel %vm576, %v444, 0
      %v596 = vsel %vm576, %v445, 0
      %v599 = vsel %vm576, %v446, 0
      %v602 = vsel %vm576, %v447, 0
      %v605 = vsel %vm576, %v448, 0
      %v608 = vsel %vm576, %v449, 0
      %v611 = vsel %vm576, %v450, 0
      %v614 = vsel %vm576, %v451, 0
      %v617 = vsel %vm576, %v452, 0
      %v620 = vsel %vm576, %v453, 0
      %v623 = vsel %vm576, %v454, 0
      %v626 = vsel %vm576, %v455, 0
      %v629 = vsel %vm576, %v456, 0
      %v632 = vsel %vm576, %v457, 0
      %v635 = vsel %vm576, %v458, 0
      %v638 = vsel %vm576, %v459, 0
      %v641 = vsel %vm576, %v460, 0
      %v644 = vsel %vm576, %v461, 0
      %v647 = vsel %vm576, %v462, 0
      %v650 = vsel %vm576, %v463, 0
      %v653 = vsel %vm576, %v464, 0
      %v656 = vsel %vm576, %v465, 0
      %v659 = vsel %vm576, %v466, 0
      %v662 = vsel %vm576, %v467, 0
      %v665 = vsel %vm576, %v468, 0
      %v668 = vsel %vm576, %v469, 0
      %v671 = vsel %vm576, %v470, 0
      %v674 = vsel %vm576, %v471, 0
      %v677 = vsel %vm576, %v472, 0
      %v680 = vsel %vm576, %v473, 0
      %v683 = vsel %vm576, %v474, 0
      %v686 = vsel %vm576, %v475, 0
      %v689 = vsel %vm576, %v476, 0
      %v692 = vsel %vm576, %v477, 0
      %v695 = vsel %vm576, %v478, 0
      %v698 = vsel %vm576, %v479, 0
      %v701 = vsel %vm576, %v480, 0
      %v704 = vsel %vm576, %v481, 0
      %v707 = vsel %vm576, %v482, 0
      %v710 = vsel %vm576, %v483, 0
      %v713 = vsel %vm576, %v484, 0
      %v716 = vsel %vm576, %v485, 0
      %v719 = vsel %vm576, %v486, 0
      %v722 = vsel %vm576, %v487, 0
      %v725 = vsel %vm576, %v488, 0
      %v728 = vsel %vm576, %v489, 0
      %v731 = vsel %vm576, %v490, 0
      %v734 = vsel %vm576, %v491, 0
      %v737 = vsel %vm576, %v492, 0
      %v740 = vsel %vm576, %v493, 0
      %v743 = vsel %vm576, %v494, 0
      %v746 = vsel %vm576, %v495, 0
      %v749 = vsel %vm576, %v496, 0
      %v752 = vsel %vm576, %v497, 0
      %v755 = vsel %vm576, %v498, 0
      %v758 = vsel %vm576, %v499, 0
      %v761 = vsel %vm576, %v500, 0
      %v764 = vsel %vm576, %v501, 0
      %v767 = vsel %vm576, %v502, 0
      %v770 = vsel %vm576, %v503, 0
      %v773 = vsel %vm576, %v504, 0
      %v776 = vsel %vm576, %v505, 0
      %v779 = vsel %vm576, %v506, 0
      %v782 = vsel %vm576, %v507, 0
      %v785 = vsel %vm576, %v508, 0
      %v788 = vsel %vm576, %v509, 0
      %v791 = vsel %vm576, %v510, 0
      %v794 = vsel %vm576, %v511, 0
      %v797 = vsel %vm576, %v512, 0
      %v800 = vsel %vm576, %v513, 0
      %v803 = vsel %vm576, %v514, 0
      %v806 = vsel %vm576, %v515, 0
      %v809 = vsel %vm576, %v516, 0
      %v812 = vsel %vm576, %v517, 0
      %v815 = vsel %vm576, %v518, 0
      %v818 = vsel %vm576, %v519, 0
      %v821 = vsel %vm576, %v520, 0
      %v824 = vsel %vm576, %v521, 0
      %v827 = vsel %vm576, %v522, 0
      %v830 = vsel %vm576, %v523, 0
      %v833 = vsel %vm576, %v524, 0
      %v836 = vsel %vm576, %v525, 0
      %v839 = vsel %vm576, %v526, 0
      %v842 = vsel %vm576, %v527, 0
      %v845 = vsel %vm576, %v528, 0
      %v848 = vsel %vm576, %v529, 0
      %v851 = vsel %vm576, %v530, 0
      %v854 = vsel %vm576, %v531, 0
      %v857 = vsel %vm576, %v532, 0
      %v860 = vsel %vm576, %v533, 0
      %v863 = vsel %vm576, %v534, 0
      %v866 = vsel %vm576, %v535, 0
      %v869 = vsel %vm576, %v536, 0
      %v872 = vsel %vm576, %v537, 0
      %v875 = vsel %vm576, %v538, 0
      %v878 = vsel %vm576, %v539, 0
      %v881 = vsel %vm576, %v540, 0
      %v884 = vsel %vm576, %v541, 0
      %v887 = vsel %vm576, %v542, 0
      %v890 = vsel %vm576, %v543, 0
      %v893 = vsel %vm576, %v544, 0
      %v896 = vsel %vm576, %v545, 0
      %v899 = vsel %vm576, %v546, 0
      %v902 = vsel %vm576, %v547, 0
      %v905 = vsel %vm576, %v548, 0
      %v908 = vsel %vm576, %v549, 0
      %v911 = vsel %vm576, %v550, 0
      %v914 = vsel %vm576, %v551, 0
      %v917 = vsel %vm576, %v552, 0
      %v920 = vsel %vm576, %v553, 0
      %v923 = vsel %vm576, %v554, 0
      %v926 = vsel %vm576, %v555, 0
      %v929 = vsel %vm576, %v556, 0
      %v932 = vsel %vm576, %v557, 0
      %v935 = vsel %vm576, %v558, 0
      %v938 = vsel %vm576, %v559, 0
      %v941 = vsel %vm576, %v560, 0
      %v944 = vsel %vm576, %v561, 0
      %v947 = vsel %vm576, %v562, 0
      %v950 = vsel %vm576, %v563, 0
      %v953 = vsel %vm576, %v564, 0
      %v956 = vsel %vm576, %v565, 0
      %v959 = vsel %vm576, %v566, 0
      %vm961 = vcmask 1040384
      %v963 = vsel %vm961, %v568, 0
      %965 = vmatprep.subr.mxu0 0.0
      %966 = vmatpush1.msra.mxu0 %v567
      %967 = vmatprep.subr.mxu0 0.0
      %968 = vmatpush1.msra.mxu0 %v963
      %969 = vmatprep.subr.mxu0 0.0
      %970 = vmatpush1.msra.mxu0 0.0
      %971 = vmatprep.subr.mxu0 0.0
      %972 = vmatpush1.msra.mxu0 0.0
      %973 = vmatprep.subr.mxu0 0.0
      %974 = vmatpush1.msra.mxu0 0.0
      %975 = vmatprep.subr.mxu0 0.0
      %976 = vmatpush1.msra.mxu0 0.0
      %977 = vmatprep.subr.mxu0 0.0
      %978 = vmatpush1.msra.mxu0 0.0
      %979 = vmatprep.subr.mxu0 0.0
      %980 = vmatpush1.msra.mxu0 0.0
      %981 = vmatprep.subr.mxu0 0.0
      %982 = vmatpush1.msra.mxu0 0.0
      %983 = vmatprep.subr.mxu0 0.0
      %984 = vmatpush1.msra.mxu0 0.0
      %985 = vmatprep.subr.mxu0 0.0
      %986 = vmatpush1.msra.mxu0 0.0
      %987 = vmatprep.subr.mxu0 0.0
      %988 = vmatpush1.msra.mxu0 0.0
      %989 = vmatprep.subr.mxu0 0.0
      %990 = vmatpush1.msra.mxu0 0.0
      %991 = vmatprep.subr.mxu0 0.0
      %992 = vmatpush1.msra.mxu0 0.0
      %993 = vmatprep.subr.mxu0 0.0
      %994 = vmatpush1.msra.mxu0 0.0
      %995 = vmatprep.subr.mxu0 0.0
      %996 = vmatpush1.msra.mxu0 0.0
      %997 = vmatprep.subr.mxu0 0.0
      %998 = vmatpush1.msra.mxu0 0.0
      %999 = vmatprep.subr.mxu0 0.0
      %1000 = vmatpush1.msra.mxu0 0.0
      %1001 = vmatprep.subr.mxu0 0.0
      %1002 = vmatpush1.msra.mxu0 0.0
      %1003 = vmatprep.subr.mxu0 0.0
      %1004 = vmatpush1.msra.mxu0 0.0
      %1005 = vmatprep.subr.mxu0 0.0
      %1006 = vmatpush1.msra.mxu0 0.0
      %1007 = vmatprep.subr.mxu0 0.0
      %1008 = vmatpush1.msra.mxu0 0.0
      %1009 = vmatprep.subr.mxu0 0.0
      %1010 = vmatpush1.msra.mxu0 0.0
      %1011 = vmatprep.subr.mxu0 0.0
      %1012 = vmatpush1.msra.mxu0 0.0
      %1013 = vmatprep.subr.mxu0 0.0
      %1014 = vmatpush1.msra.mxu0 0.0
      %1015 = vmatprep.subr.mxu0 0.0
      %1016 = vmatpush1.msra.mxu0 0.0
      %1017 = vmatprep.subr.mxu0 0.0
      %1018 = vmatpush1.msra.mxu0 0.0
      %1019 = vmatprep.subr.mxu0 0.0
      %1020 = vmatpush1.msra.mxu0 0.0
      %1021 = vmatprep.subr.mxu0 0.0
      %1022 = vmatpush1.msra.mxu0 0.0
      %1023 = vmatprep.subr.mxu0 0.0
      %1024 = vmatpush1.msra.mxu0 0.0
      %1025 = vmatprep.subr.mxu0 0.0
      %1026 = vmatpush1.msra.mxu0 0.0
      %1027 = vmatprep.subr.mxu0 0.0
      %1028 = vmatpush1.msra.mxu0 0.0
      %1029 = vmatprep.mubr.f32.mxu0 0.0
      %1030 = vmatmul.mubr.f32.gmra.mrb[0].mxu0 %v578
      %v1031 = vpop.f32.mrb[0].mxu0
      %v1032 = vadd.f32 %v574, %v1031
      %v1033 = vpop.f32.mrb[0].mxu0
      %1034 = vmatprep.mubr.f32.mxu0 0.0
      %1035 = vmatmul.mubr.f32.gmra.mrb[0].mxu0 %v581
      %v1036 = vpop.f32.mrb[0].mxu0
      %v1037 = vadd.f32 %v574, %v1036
      %v1038 = vpop.f32.mrb[0].mxu0
      %1039 = vmatprep.mubr.f32.mxu0 0.0
      %1040 = vmatmul.mubr.f32.gmra.mrb[0].mxu0 %v584
      %v1041 = vpop.f32.mrb[0].mxu0
      %v1042 = vadd.f32 %v574, %v1041
      %v1043 = vpop.f32.mrb[0].mxu0
      %1044 = vmatprep.mubr.f32.mxu0 0.0
      %1045 = vmatmul.mubr.f32.gmra.mrb[0].mxu0 %v587
      %v1046 = vpop.f32.mrb[0].mxu0
      %v1047 = vadd.f32 %v574, %v1046
      %v1048 = vpop.f32.mrb[0].mxu0
      %1049 = vmatprep.mubr.f32.mxu0 0.0
      %1050 = vmatmul.mubr.f32.gmra.mrb[0].mxu0 %v590
      %v1051 = vpop.f32.mrb[0].mxu0
      %v1052 = vadd.f32 %v574, %v1051
      %v1053 = vpop.f32.mrb[0].mxu0
      %1054 = vmatprep.mubr.f32.mxu0 0.0
      %1055 = vmatmul.mubr.f32.gmra.mrb[0].mxu0 %v593
      %v1056 = vpop.f32.mrb[0].mxu0
      %v1057 = vadd.f32 %v574, %v1056
      %v1058 = vpop.f32.mrb[0].mxu0
      %1059 = vmatprep.mubr.f32.mxu0 0.0
      %1060 = vmatmul.mubr.f32.gmra.mrb[0].mxu0 %v596
      %v1061 = vpop.f32.mrb[0].mxu0
      %v1062 = vadd.f32 %v574, %v1061
      %v1063 = vpop.f32.mrb[0].mxu0
      %1064 = vmatprep.mubr.f32.mxu0 0.0
      %1065 = vmatmul.mubr.f32.gmra.mrb[0].mxu0 %v599
      %v1066 = vpop.f32.mrb[0].mxu0
      %v1067 = vadd.f32 %v574, %v1066
      %v1068 = vpop.f32.mrb[0].mxu0
      %1069 = vmatprep.mubr.f32.mxu0 0.0
      %1070 = vmatmul.mubr.f32.gmra.mrb[0].mxu0 %v602
      %v1071 = vpop.f32.mrb[0].mxu0
      %v1072 = vadd.f32 %v574, %v1071
      %v1073 = vpop.f32.mrb[0].mxu0
      %1074 = vmatprep.mubr.f32.mxu0 0.0
      %1075 = vmatmul.mubr.f32.gmra.mrb[0].mxu0 %v605
      %v1076 = vpop.f32.mrb[0].mxu0
      %v1077 = vadd.f32 %v574, %v1076
      %v1078 = vpop.f32.mrb[0].mxu0
      %1079 = vmatprep.mubr.f32.mxu0 0.0
      %1080 = vmatmul.mubr.f32.gmra.mrb[0].mxu0 %v608
      %v1081 = vpop.f32.mrb[0].mxu0
      %v1082 = vadd.f32 %v574, %v1081
      %v1083 = vpop.f32.mrb[0].mxu0
      %1084 = vmatprep.mubr.f32.mxu0 0.0
      %1085 = vmatmul.mubr.f32.gmra.mrb[0].mxu0 %v611
      %v1086 = vpop.f32.mrb[0].mxu0
      %v1087 = vadd.f32 %v574, %v1086
      %v1088 = vpop.f32.mrb[0].mxu0
      %1089 = vmatprep.mubr.f32.mxu0 0.0
      %1090 = vmatmul.mubr.f32.gmra.mrb[0].mxu0 %v614
      %v1091 = vpop.f32.mrb[0].mxu0
      %v1092 = vadd.f32 %v574, %v1091
      %v1093 = vpop.f32.mrb[0].mxu0
      %1094 = vmatprep.mubr.f32.mxu0 0.0
      %1095 = vmatmul.mubr.f32.gmra.mrb[0].mxu0 %v617
      %v1096 = vpop.f32.mrb[0].mxu0
      %v1097 = vadd.f32 %v574, %v1096
      %v1098 = vpop.f32.mrb[0].mxu0
      %1099 = vmatprep.mubr.f32.mxu0 0.0
      %1100 = vmatmul.mubr.f32.gmra.mrb[0].mxu0 %v620
      %v1101 = vpop.f32.mrb[0].mxu0
      %v1102 = vadd.f32 %v574, %v1101
      %v1103 = vpop.f32.mrb[0].mxu0
      %1104 = vmatprep.mubr.f32.mxu0 0.0
      %1105 = vmatmul.mubr.f32.gmra.mrb[0].mxu0 %v623
      %v1106 = vpop.f32.mrb[0].mxu0
      %v1107 = vadd.f32 %v574, %v1106
      %v1108 = vpop.f32.mrb[0].mxu0
      %1109 = vmatprep.mubr.f32.mxu0 0.0
      %1110 = vmatmul.mubr.f32.gmra.mrb[0].mxu0 %v626
      %v1111 = vpop.f32.mrb[0].mxu0
      %v1112 = vadd.f32 %v574, %v1111
      %v1113 = vpop.f32.mrb[0].mxu0
      %1114 = vmatprep.mubr.f32.mxu0 0.0
      %1115 = vmatmul.mubr.f32.gmra.mrb[0].mxu0 %v629
      %v1116 = vpop.f32.mrb[0].mxu0
      %v1117 = vadd.f32 %v574, %v1116
      %v1118 = vpop.f32.mrb[0].mxu0
      %1119 = vmatprep.mubr.f32.mxu0 0.0
      %1120 = vmatmul.mubr.f32.gmra.mrb[0].mxu0 %v632
      %v1121 = vpop.f32.mrb[0].mxu0
      %v1122 = vadd.f32 %v574, %v1121
      %v1123 = vpop.f32.mrb[0].mxu0
      %1124 = vmatprep.mubr.f32.mxu0 0.0
      %1125 = vmatmul.mubr.f32.gmra.mrb[0].mxu0 %v635
      %v1126 = vpop.f32.mrb[0].mxu0
      %v1127 = vadd.f32 %v574, %v1126
      %v1128 = vpop.f32.mrb[0].mxu0
      %1129 = vmatprep.mubr.f32.mxu0 0.0
      %1130 = vmatmul.mubr.f32.gmra.mrb[0].mxu0 %v638
      %v1131 = vpop.f32.mrb[0].mxu0
      %v1132 = vadd.f32 %v574, %v1131
      %v1133 = vpop.f32.mrb[0].mxu0
      %1134 = vmatprep.mubr.f32.mxu0 0.0
      %1135 = vmatmul.mubr.f32.gmra.mrb[0].mxu0 %v641
      %v1136 = vpop.f32.mrb[0].mxu0
      %v1137 = vadd.f32 %v574, %v1136
      %v1138 = vpop.f32.mrb[0].mxu0
      %1139 = vmatprep.mubr.f32.mxu0 0.0
      %1140 = vmatmul.mubr.f32.gmra.mrb[0].mxu0 %v644
      %v1141 = vpop.f32.mrb[0].mxu0
      %v1142 = vadd.f32 %v574, %v1141
      %v1143 = vpop.f32.mrb[0].mxu0
      %1144 = vmatprep.mubr.f32.mxu0 0.0
      %1145 = vmatmul.mubr.f32.gmra.mrb[0].mxu0 %v647
      %v1146 = vpop.f32.mrb[0].mxu0
      %v1147 = vadd.f32 %v574, %v1146
      %v1148 = vpop.f32.mrb[0].mxu0
      %1149 = vmatprep.mubr.f32.mxu0 0.0
      %1150 = vmatmul.mubr.f32.gmra.mrb[0].mxu0 %v650
      %v1151 = vpop.f32.mrb[0].mxu0
      %v1152 = vadd.f32 %v574, %v1151
      %v1153 = vpop.f32.mrb[0].mxu0
      %1154 = vmatprep.mubr.f32.mxu0 0.0
      %1155 = vmatmul.mubr.f32.gmra.mrb[0].mxu0 %v653
      %v1156 = vpop.f32.mrb[0].mxu0
      %v1157 = vadd.f32 %v574, %v1156
      %v1158 = vpop.f32.mrb[0].mxu0
      %1159 = vmatprep.mubr.f32.mxu0 0.0
      %1160 = vmatmul.mubr.f32.gmra.mrb[0].mxu0 %v656
      %v1161 = vpop.f32.mrb[0].mxu0
      %v1162 = vadd.f32 %v574, %v1161
      %v1163 = vpop.f32.mrb[0].mxu0
      %1164 = vmatprep.mubr.f32.mxu0 0.0
      %1165 = vmatmul.mubr.f32.gmra.mrb[0].mxu0 %v659
      %v1166 = vpop.f32.mrb[0].mxu0
      %v1167 = vadd.f32 %v574, %v1166
      %v1168 = vpop.f32.mrb[0].mxu0
      %1169 = vmatprep.mubr.f32.mxu0 0.0
      %1170 = vmatmul.mubr.f32.gmra.mrb[0].mxu0 %v662
      %v1171 = vpop.f32.mrb[0].mxu0
      %v1172 = vadd.f32 %v574, %v1171
      %v1173 = vpop.f32.mrb[0].mxu0
      %1174 = vmatprep.mubr.f32.mxu0 0.0
      %1175 = vmatmul.mubr.f32.gmra.mrb[0].mxu0 %v665
      %v1176 = vpop.f32.mrb[0].mxu0
      %v1177 = vadd.f32 %v574, %v1176
      %v1178 = vpop.f32.mrb[0].mxu0
      %1179 = vmatprep.mubr.f32.mxu0 0.0
      %1180 = vmatmul.mubr.f32.gmra.mrb[0].mxu0 %v668
      %v1181 = vpop.f32.mrb[0].mxu0
      %v1182 = vadd.f32 %v574, %v1181
      %v1183 = vpop.f32.mrb[0].mxu0
      %1184 = vmatprep.mubr.f32.mxu0 0.0
      %1185 = vmatmul.mubr.f32.gmra.mrb[0].mxu0 %v671
      %v1186 = vpop.f32.mrb[0].mxu0
      %v1187 = vadd.f32 %v574, %v1186
      %v1188 = vpop.f32.mrb[0].mxu0
      %1189 = vmatprep.mubr.f32.mxu0 0.0
      %1190 = vmatmul.mubr.f32.gmra.mrb[0].mxu0 %v674
      %v1191 = vpop.f32.mrb[0].mxu0
      %v1192 = vadd.f32 %v574, %v1191
      %v1193 = vpop.f32.mrb[0].mxu0
      %1194 = vmatprep.mubr.f32.mxu0 0.0
      %1195 = vmatmul.mubr.f32.gmra.mrb[0].mxu0 %v677
      %v1196 = vpop.f32.mrb[0].mxu0
      %v1197 = vadd.f32 %v574, %v1196
      %v1198 = vpop.f32.mrb[0].mxu0
      %1199 = vmatprep.mubr.f32.mxu0 0.0
      %1200 = vmatmul.mubr.f32.gmra.mrb[0].mxu0 %v680
      %v1201 = vpop.f32.mrb[0].mxu0
      %v1202 = vadd.f32 %v574, %v1201
      %v1203 = vpop.f32.mrb[0].mxu0
      %1204 = vmatprep.mubr.f32.mxu0 0.0
      %1205 = vmatmul.mubr.f32.gmra.mrb[0].mxu0 %v683
      %v1206 = vpop.f32.mrb[0].mxu0
      %v1207 = vadd.f32 %v574, %v1206
      %v1208 = vpop.f32.mrb[0].mxu0
      %1209 = vmatprep.mubr.f32.mxu0 0.0
      %1210 = vmatmul.mubr.f32.gmra.mrb[0].mxu0 %v686
      %v1211 = vpop.f32.mrb[0].mxu0
      %v1212 = vadd.f32 %v574, %v1211
      %v1213 = vpop.f32.mrb[0].mxu0
      %1214 = vmatprep.mubr.f32.mxu0 0.0
      %1215 = vmatmul.mubr.f32.gmra.mrb[0].mxu0 %v689
      %v1216 = vpop.f32.mrb[0].mxu0
      %v1217 = vadd.f32 %v574, %v1216
      %v1218 = vpop.f32.mrb[0].mxu0
      %1219 = vmatprep.mubr.f32.mxu0 0.0
      %1220 = vmatmul.mubr.f32.gmra.mrb[0].mxu0 %v692
      %v1221 = vpop.f32.mrb[0].mxu0
      %v1222 = vadd.f32 %v574, %v1221
      %v1223 = vpop.f32.mrb[0].mxu0
      %1224 = vmatprep.mubr.f32.mxu0 0.0
      %1225 = vmatmul.mubr.f32.gmra.mrb[0].mxu0 %v695
      %v1226 = vpop.f32.mrb[0].mxu0
      %v1227 = vadd.f32 %v574, %v1226
      %v1228 = vpop.f32.mrb[0].mxu0
      %1229 = vmatprep.mubr.f32.mxu0 0.0
      %1230 = vmatmul.mubr.f32.gmra.mrb[0].mxu0 %v698
      %v1231 = vpop.f32.mrb[0].mxu0
      %v1232 = vadd.f32 %v574, %v1231
      %v1233 = vpop.f32.mrb[0].mxu0
      %1234 = vmatprep.mubr.f32.mxu0 0.0
      %1235 = vmatmul.mubr.f32.gmra.mrb[0].mxu0 %v701
      %v1236 = vpop.f32.mrb[0].mxu0
      %v1237 = vadd.f32 %v574, %v1236
      %v1238 = vpop.f32.mrb[0].mxu0
      %1239 = vmatprep.mubr.f32.mxu0 0.0
      %1240 = vmatmul.mubr.f32.gmra.mrb[0].mxu0 %v704
      %v1241 = vpop.f32.mrb[0].mxu0
      %v1242 = vadd.f32 %v574, %v1241
      %v1243 = vpop.f32.mrb[0].mxu0
      %1244 = vmatprep.mubr.f32.mxu0 0.0
      %1245 = vmatmul.mubr.f32.gmra.mrb[0].mxu0 %v707
      %v1246 = vpop.f32.mrb[0].mxu0
      %v1247 = vadd.f32 %v574, %v1246
      %v1248 = vpop.f32.mrb[0].mxu0
      %1249 = vmatprep.mubr.f32.mxu0 0.0
      %1250 = vmatmul.mubr.f32.gmra.mrb[0].mxu0 %v710
      %v1251 = vpop.f32.mrb[0].mxu0
      %v1252 = vadd.f32 %v574, %v1251
      %v1253 = vpop.f32.mrb[0].mxu0
      %1254 = vmatprep.mubr.f32.mxu0 0.0
      %1255 = vmatmul.mubr.f32.gmra.mrb[0].mxu0 %v713
      %v1256 = vpop.f32.mrb[0].mxu0
      %v1257 = vadd.f32 %v574, %v1256
      %v1258 = vpop.f32.mrb[0].mxu0
      %1259 = vmatprep.mubr.f32.mxu0 0.0
      %1260 = vmatmul.mubr.f32.gmra.mrb[0].mxu0 %v716
      %v1261 = vpop.f32.mrb[0].mxu0
      %v1262 = vadd.f32 %v574, %v1261
      %v1263 = vpop.f32.mrb[0].mxu0
      %1264 = vmatprep.mubr.f32.mxu0 0.0
      %1265 = vmatmul.mubr.f32.gmra.mrb[0].mxu0 %v719
      %v1266 = vpop.f32.mrb[0].mxu0
      %v1267 = vadd.f32 %v574, %v1266
      %v1268 = vpop.f32.mrb[0].mxu0
      %1269 = vmatprep.mubr.f32.mxu0 0.0
      %1270 = vmatmul.mubr.f32.gmra.mrb[0].mxu0 %v722
      %v1271 = vpop.f32.mrb[0].mxu0
      %v1272 = vadd.f32 %v574, %v1271
      %v1273 = vpop.f32.mrb[0].mxu0
      %1274 = vmatprep.mubr.f32.mxu0 0.0
      %1275 = vmatmul.mubr.f32.gmra.mrb[0].mxu0 %v725
      %v1276 = vpop.f32.mrb[0].mxu0
      %v1277 = vadd.f32 %v574, %v1276
      %v1278 = vpop.f32.mrb[0].mxu0
      %1279 = vmatprep.mubr.f32.mxu0 0.0
      %1280 = vmatmul.mubr.f32.gmra.mrb[0].mxu0 %v728
      %v1281 = vpop.f32.mrb[0].mxu0
      %v1282 = vadd.f32 %v574, %v1281
      %v1283 = vpop.f32.mrb[0].mxu0
      %1284 = vmatprep.mubr.f32.mxu0 0.0
      %1285 = vmatmul.mubr.f32.gmra.mrb[0].mxu0 %v731
      %v1286 = vpop.f32.mrb[0].mxu0
      %v1287 = vadd.f32 %v574, %v1286
      %v1288 = vpop.f32.mrb[0].mxu0
      %1289 = vmatprep.mubr.f32.mxu0 0.0
      %1290 = vmatmul.mubr.f32.gmra.mrb[0].mxu0 %v734
      %v1291 = vpop.f32.mrb[0].mxu0
      %v1292 = vadd.f32 %v574, %v1291
      %v1293 = vpop.f32.mrb[0].mxu0
      %1294 = vmatprep.mubr.f32.mxu0 0.0
      %1295 = vmatmul.mubr.f32.gmra.mrb[0].mxu0 %v737
      %v1296 = vpop.f32.mrb[0].mxu0
      %v1297 = vadd.f32 %v574, %v1296
      %v1298 = vpop.f32.mrb[0].mxu0
      %1299 = vmatprep.mubr.f32.mxu0 0.0
      %1300 = vmatmul.mubr.f32.gmra.mrb[0].mxu0 %v740
      %v1301 = vpop.f32.mrb[0].mxu0
      %v1302 = vadd.f32 %v574, %v1301
      %v1303 = vpop.f32.mrb[0].mxu0
      %1304 = vmatprep.mubr.f32.mxu0 0.0
      %1305 = vmatmul.mubr.f32.gmra.mrb[0].mxu0 %v743
      %v1306 = vpop.f32.mrb[0].mxu0
      %v1307 = vadd.f32 %v574, %v1306
      %v1308 = vpop.f32.mrb[0].mxu0
      %1309 = vmatprep.mubr.f32.mxu0 0.0
      %1310 = vmatmul.mubr.f32.gmra.mrb[0].mxu0 %v746
      %v1311 = vpop.f32.mrb[0].mxu0
      %v1312 = vadd.f32 %v574, %v1311
      %v1313 = vpop.f32.mrb[0].mxu0
      %1314 = vmatprep.mubr.f32.mxu0 0.0
      %1315 = vmatmul.mubr.f32.gmra.mrb[0].mxu0 %v749
      %v1316 = vpop.f32.mrb[0].mxu0
      %v1317 = vadd.f32 %v574, %v1316
      %v1318 = vpop.f32.mrb[0].mxu0
      %1319 = vmatprep.mubr.f32.mxu0 0.0
      %1320 = vmatmul.mubr.f32.gmra.mrb[0].mxu0 %v752
      %v1321 = vpop.f32.mrb[0].mxu0
      %v1322 = vadd.f32 %v574, %v1321
      %v1323 = vpop.f32.mrb[0].mxu0
      %1324 = vmatprep.mubr.f32.mxu0 0.0
      %1325 = vmatmul.mubr.f32.gmra.mrb[0].mxu0 %v755
      %v1326 = vpop.f32.mrb[0].mxu0
      %v1327 = vadd.f32 %v574, %v1326
      %v1328 = vpop.f32.mrb[0].mxu0
      %1329 = vmatprep.mubr.f32.mxu0 0.0
      %1330 = vmatmul.mubr.f32.gmra.mrb[0].mxu0 %v758
      %v1331 = vpop.f32.mrb[0].mxu0
      %v1332 = vadd.f32 %v574, %v1331
      %v1333 = vpop.f32.mrb[0].mxu0
      %1334 = vmatprep.mubr.f32.mxu0 0.0
      %1335 = vmatmul.mubr.f32.gmra.mrb[0].mxu0 %v761
      %v1336 = vpop.f32.mrb[0].mxu0
      %v1337 = vadd.f32 %v574, %v1336
      %v1338 = vpop.f32.mrb[0].mxu0
      %1339 = vmatprep.mubr.f32.mxu0 0.0
      %1340 = vmatmul.mubr.f32.gmra.mrb[0].mxu0 %v764
      %v1341 = vpop.f32.mrb[0].mxu0
      %v1342 = vadd.f32 %v574, %v1341
      %v1343 = vpop.f32.mrb[0].mxu0
      %1344 = vmatprep.mubr.f32.mxu0 0.0
      %1345 = vmatmul.mubr.f32.gmra.mrb[0].mxu0 %v767
      %v1346 = vpop.f32.mrb[0].mxu0
      %v1347 = vadd.f32 %v574, %v1346
      %v1348 = vpop.f32.mrb[0].mxu0
      %1349 = vmatprep.mubr.f32.mxu0 0.0
      %1350 = vmatmul.mubr.f32.gmra.mrb[0].mxu0 %v770
      %v1351 = vpop.f32.mrb[0].mxu0
      %v1352 = vadd.f32 %v574, %v1351
      %v1353 = vpop.f32.mrb[0].mxu0
      %1354 = vmatprep.mubr.f32.mxu0 0.0
      %1355 = vmatmul.mubr.f32.gmra.mrb[0].mxu0 %v773
      %v1356 = vpop.f32.mrb[0].mxu0
      %v1357 = vadd.f32 %v574, %v1356
      %v1358 = vpop.f32.mrb[0].mxu0
      %1359 = vmatprep.mubr.f32.mxu0 0.0
      %1360 = vmatmul.mubr.f32.gmra.mrb[0].mxu0 %v776
      %v1361 = vpop.f32.mrb[0].mxu0
      %v1362 = vadd.f32 %v574, %v1361
      %v1363 = vpop.f32.mrb[0].mxu0
      %1364 = vmatprep.mubr.f32.mxu0 0.0
      %1365 = vmatmul.mubr.f32.gmra.mrb[0].mxu0 %v779
      %v1366 = vpop.f32.mrb[0].mxu0
      %v1367 = vadd.f32 %v574, %v1366
      %v1368 = vpop.f32.mrb[0].mxu0
      %1369 = vmatprep.mubr.f32.mxu0 0.0
      %1370 = vmatmul.mubr.f32.gmra.mrb[0].mxu0 %v782
      %v1371 = vpop.f32.mrb[0].mxu0
      %v1372 = vadd.f32 %v574, %v1371
      %v1373 = vpop.f32.mrb[0].mxu0
      %1374 = vmatprep.mubr.f32.mxu0 0.0
      %1375 = vmatmul.mubr.f32.gmra.mrb[0].mxu0 %v785
      %v1376 = vpop.f32.mrb[0].mxu0
      %v1377 = vadd.f32 %v574, %v1376
      %v1378 = vpop.f32.mrb[0].mxu0
      %1379 = vmatprep.mubr.f32.mxu0 0.0
      %1380 = vmatmul.mubr.f32.gmra.mrb[0].mxu0 %v788
      %v1381 = vpop.f32.mrb[0].mxu0
      %v1382 = vadd.f32 %v574, %v1381
      %v1383 = vpop.f32.mrb[0].mxu0
      %1384 = vmatprep.mubr.f32.mxu0 0.0
      %1385 = vmatmul.mubr.f32.gmra.mrb[0].mxu0 %v791
      %v1386 = vpop.f32.mrb[0].mxu0
      %v1387 = vadd.f32 %v574, %v1386
      %v1388 = vpop.f32.mrb[0].mxu0
      %1389 = vmatprep.mubr.f32.mxu0 0.0
      %1390 = vmatmul.mubr.f32.gmra.mrb[0].mxu0 %v794
      %v1391 = vpop.f32.mrb[0].mxu0
      %v1392 = vadd.f32 %v574, %v1391
      %v1393 = vpop.f32.mrb[0].mxu0
      %1394 = vmatprep.mubr.f32.mxu0 0.0
      %1395 = vmatmul.mubr.f32.gmra.mrb[0].mxu0 %v797
      %v1396 = vpop.f32.mrb[0].mxu0
      %v1397 = vadd.f32 %v574, %v1396
      %v1398 = vpop.f32.mrb[0].mxu0
      %1399 = vmatprep.mubr.f32.mxu0 0.0
      %1400 = vmatmul.mubr.f32.gmra.mrb[0].mxu0 %v800
      %v1401 = vpop.f32.mrb[0].mxu0
      %v1402 = vadd.f32 %v574, %v1401
      %v1403 = vpop.f32.mrb[0].mxu0
      %1404 = vmatprep.mubr.f32.mxu0 0.0
      %1405 = vmatmul.mubr.f32.gmra.mrb[0].mxu0 %v803
      %v1406 = vpop.f32.mrb[0].mxu0
      %v1407 = vadd.f32 %v574, %v1406
      %v1408 = vpop.f32.mrb[0].mxu0
      %1409 = vmatprep.mubr.f32.mxu0 0.0
      %1410 = vmatmul.mubr.f32.gmra.mrb[0].mxu0 %v806
      %v1411 = vpop.f32.mrb[0].mxu0
      %v1412 = vadd.f32 %v574, %v1411
      %v1413 = vpop.f32.mrb[0].mxu0
      %1414 = vmatprep.mubr.f32.mxu0 0.0
      %1415 = vmatmul.mubr.f32.gmra.mrb[0].mxu0 %v809
      %v1416 = vpop.f32.mrb[0].mxu0
      %v1417 = vadd.f32 %v574, %v1416
      %v1418 = vpop.f32.mrb[0].mxu0
      %1419 = vmatprep.mubr.f32.mxu0 0.0
      %1420 = vmatmul.mubr.f32.gmra.mrb[0].mxu0 %v812
      %v1421 = vpop.f32.mrb[0].mxu0
      %v1422 = vadd.f32 %v574, %v1421
      %v1423 = vpop.f32.mrb[0].mxu0
      %1424 = vmatprep.mubr.f32.mxu0 0.0
      %1425 = vmatmul.mubr.f32.gmra.mrb[0].mxu0 %v815
      %v1426 = vpop.f32.mrb[0].mxu0
      %v1427 = vadd.f32 %v574, %v1426
      %v1428 = vpop.f32.mrb[0].mxu0
      %1429 = vmatprep.mubr.f32.mxu0 0.0
      %1430 = vmatmul.mubr.f32.gmra.mrb[0].mxu0 %v818
      %v1431 = vpop.f32.mrb[0].mxu0
      %v1432 = vadd.f32 %v574, %v1431
      %v1433 = vpop.f32.mrb[0].mxu0
      %1434 = vmatprep.mubr.f32.mxu0 0.0
      %1435 = vmatmul.mubr.f32.gmra.mrb[0].mxu0 %v821
      %v1436 = vpop.f32.mrb[0].mxu0
      %v1437 = vadd.f32 %v574, %v1436
      %v1438 = vpop.f32.mrb[0].mxu0
      %1439 = vmatprep.mubr.f32.mxu0 0.0
      %1440 = vmatmul.mubr.f32.gmra.mrb[0].mxu0 %v824
      %v1441 = vpop.f32.mrb[0].mxu0
      %v1442 = vadd.f32 %v574, %v1441
      %v1443 = vpop.f32.mrb[0].mxu0
      %1444 = vmatprep.mubr.f32.mxu0 0.0
      %1445 = vmatmul.mubr.f32.gmra.mrb[0].mxu0 %v827
      %v1446 = vpop.f32.mrb[0].mxu0
      %v1447 = vadd.f32 %v574, %v1446
      %v1448 = vpop.f32.mrb[0].mxu0
      %1449 = vmatprep.mubr.f32.mxu0 0.0
      %1450 = vmatmul.mubr.f32.gmra.mrb[0].mxu0 %v830
      %v1451 = vpop.f32.mrb[0].mxu0
      %v1452 = vadd.f32 %v574, %v1451
      %v1453 = vpop.f32.mrb[0].mxu0
      %1454 = vmatprep.mubr.f32.mxu0 0.0
      %1455 = vmatmul.mubr.f32.gmra.mrb[0].mxu0 %v833
      %v1456 = vpop.f32.mrb[0].mxu0
      %v1457 = vadd.f32 %v574, %v1456
      %v1458 = vpop.f32.mrb[0].mxu0
      %1459 = vmatprep.mubr.f32.mxu0 0.0
      %1460 = vmatmul.mubr.f32.gmra.mrb[0].mxu0 %v836
      %v1461 = vpop.f32.mrb[0].mxu0
      %v1462 = vadd.f32 %v574, %v1461
      %v1463 = vpop.f32.mrb[0].mxu0
      %1464 = vmatprep.mubr.f32.mxu0 0.0
      %1465 = vmatmul.mubr.f32.gmra.mrb[0].mxu0 %v839
      %v1466 = vpop.f32.mrb[0].mxu0
      %v1467 = vadd.f32 %v574, %v1466
      %v1468 = vpop.f32.mrb[0].mxu0
      %1469 = vmatprep.mubr.f32.mxu0 0.0
      %1470 = vmatmul.mubr.f32.gmra.mrb[0].mxu0 %v842
      %v1471 = vpop.f32.mrb[0].mxu0
      %v1472 = vadd.f32 %v574, %v1471
      %v1473 = vpop.f32.mrb[0].mxu0
      %1474 = vmatprep.mubr.f32.mxu0 0.0
      %1475 = vmatmul.mubr.f32.gmra.mrb[0].mxu0 %v845
      %v1476 = vpop.f32.mrb[0].mxu0
      %v1477 = vadd.f32 %v574, %v1476
      %v1478 = vpop.f32.mrb[0].mxu0
      %1479 = vmatprep.mubr.f32.mxu0 0.0
      %1480 = vmatmul.mubr.f32.gmra.mrb[0].mxu0 %v848
      %v1481 = vpop.f32.mrb[0].mxu0
      %v1482 = vadd.f32 %v574, %v1481
      %v1483 = vpop.f32.mrb[0].mxu0
      %1484 = vmatprep.mubr.f32.mxu0 0.0
      %1485 = vmatmul.mubr.f32.gmra.mrb[0].mxu0 %v851
      %v1486 = vpop.f32.mrb[0].mxu0
      %v1487 = vadd.f32 %v574, %v1486
      %v1488 = vpop.f32.mrb[0].mxu0
      %1489 = vmatprep.mubr.f32.mxu0 0.0
      %1490 = vmatmul.mubr.f32.gmra.mrb[0].mxu0 %v854
      %v1491 = vpop.f32.mrb[0].mxu0
      %v1492 = vadd.f32 %v574, %v1491
      %v1493 = vpop.f32.mrb[0].mxu0
      %1494 = vmatprep.mubr.f32.mxu0 0.0
      %1495 = vmatmul.mubr.f32.gmra.mrb[0].mxu0 %v857
      %v1496 = vpop.f32.mrb[0].mxu0
      %v1497 = vadd.f32 %v574, %v1496
      %v1498 = vpop.f32.mrb[0].mxu0
      %1499 = vmatprep.mubr.f32.mxu0 0.0
      %1500 = vmatmul.mubr.f32.gmra.mrb[0].mxu0 %v860
      %v1501 = vpop.f32.mrb[0].mxu0
      %v1502 = vadd.f32 %v574, %v1501
      %v1503 = vpop.f32.mrb[0].mxu0
      %1504 = vmatprep.mubr.f32.mxu0 0.0
      %1505 = vmatmul.mubr.f32.gmra.mrb[0].mxu0 %v863
      %v1506 = vpop.f32.mrb[0].mxu0
      %v1507 = vadd.f32 %v574, %v1506
      %v1508 = vpop.f32.mrb[0].mxu0
      %1509 = vmatprep.mubr.f32.mxu0 0.0
      %1510 = vmatmul.mubr.f32.gmra.mrb[0].mxu0 %v866
      %v1511 = vpop.f32.mrb[0].mxu0
      %v1512 = vadd.f32 %v574, %v1511
      %v1513 = vpop.f32.mrb[0].mxu0
      %1514 = vmatprep.mubr.f32.mxu0 0.0
      %1515 = vmatmul.mubr.f32.gmra.mrb[0].mxu0 %v869
      %v1516 = vpop.f32.mrb[0].mxu0
      %v1517 = vadd.f32 %v574, %v1516
      %v1518 = vpop.f32.mrb[0].mxu0
      %1519 = vmatprep.mubr.f32.mxu0 0.0
      %1520 = vmatmul.mubr.f32.gmra.mrb[0].mxu0 %v872
      %v1521 = vpop.f32.mrb[0].mxu0
      %v1522 = vadd.f32 %v574, %v1521
      %v1523 = vpop.f32.mrb[0].mxu0
      %1524 = vmatprep.mubr.f32.mxu0 0.0
      %1525 = vmatmul.mubr.f32.gmra.mrb[0].mxu0 %v875
      %v1526 = vpop.f32.mrb[0].mxu0
      %v1527 = vadd.f32 %v574, %v1526
      %v1528 = vpop.f32.mrb[0].mxu0
      %1529 = vmatprep.mubr.f32.mxu0 0.0
      %1530 = vmatmul.mubr.f32.gmra.mrb[0].mxu0 %v878
      %v1531 = vpop.f32.mrb[0].mxu0
      %v1532 = vadd.f32 %v574, %v1531
      %v1533 = vpop.f32.mrb[0].mxu0
      %1534 = vmatprep.mubr.f32.mxu0 0.0
      %1535 = vmatmul.mubr.f32.gmra.mrb[0].mxu0 %v881
      %v1536 = vpop.f32.mrb[0].mxu0
      %v1537 = vadd.f32 %v574, %v1536
      %v1538 = vpop.f32.mrb[0].mxu0
      %1539 = vmatprep.mubr.f32.mxu0 0.0
      %1540 = vmatmul.mubr.f32.gmra.mrb[0].mxu0 %v884
      %v1541 = vpop.f32.mrb[0].mxu0
      %v1542 = vadd.f32 %v574, %v1541
      %v1543 = vpop.f32.mrb[0].mxu0
      %1544 = vmatprep.mubr.f32.mxu0 0.0
      %1545 = vmatmul.mubr.f32.gmra.mrb[0].mxu0 %v887
      %v1546 = vpop.f32.mrb[0].mxu0
      %v1547 = vadd.f32 %v574, %v1546
      %v1548 = vpop.f32.mrb[0].mxu0
      %1549 = vmatprep.mubr.f32.mxu0 0.0
      %1550 = vmatmul.mubr.f32.gmra.mrb[0].mxu0 %v890
      %v1551 = vpop.f32.mrb[0].mxu0
      %v1552 = vadd.f32 %v574, %v1551
      %v1553 = vpop.f32.mrb[0].mxu0
      %1554 = vmatprep.mubr.f32.mxu0 0.0
      %1555 = vmatmul.mubr.f32.gmra.mrb[0].mxu0 %v893
      %v1556 = vpop.f32.mrb[0].mxu0
      %v1557 = vadd.f32 %v574, %v1556
      %v1558 = vpop.f32.mrb[0].mxu0
      %1559 = vmatprep.mubr.f32.mxu0 0.0
      %1560 = vmatmul.mubr.f32.gmra.mrb[0].mxu0 %v896
      %v1561 = vpop.f32.mrb[0].mxu0
      %v1562 = vadd.f32 %v574, %v1561
      %v1563 = vpop.f32.mrb[0].mxu0
      %1564 = vmatprep.mubr.f32.mxu0 0.0
      %1565 = vmatmul.mubr.f32.gmra.mrb[0].mxu0 %v899
      %v1566 = vpop.f32.mrb[0].mxu0
      %v1567 = vadd.f32 %v574, %v1566
      %v1568 = vpop.f32.mrb[0].mxu0
      %1569 = vmatprep.mubr.f32.mxu0 0.0
      %1570 = vmatmul.mubr.f32.gmra.mrb[0].mxu0 %v902
      %v1571 = vpop.f32.mrb[0].mxu0
      %v1572 = vadd.f32 %v574, %v1571
      %v1573 = vpop.f32.mrb[0].mxu0
      %1574 = vmatprep.mubr.f32.mxu0 0.0
      %1575 = vmatmul.mubr.f32.gmra.mrb[0].mxu0 %v905
      %v1576 = vpop.f32.mrb[0].mxu0
      %v1577 = vadd.f32 %v574, %v1576
      %v1578 = vpop.f32.mrb[0].mxu0
      %1579 = vmatprep.mubr.f32.mxu0 0.0
      %1580 = vmatmul.mubr.f32.gmra.mrb[0].mxu0 %v908
      %v1581 = vpop.f32.mrb[0].mxu0
      %v1582 = vadd.f32 %v574, %v1581
      %v1583 = vpop.f32.mrb[0].mxu0
      %1584 = vmatprep.mubr.f32.mxu0 0.0
      %1585 = vmatmul.mubr.f32.gmra.mrb[0].mxu0 %v911
      %v1586 = vpop.f32.mrb[0].mxu0
      %v1587 = vadd.f32 %v574, %v1586
      %v1588 = vpop.f32.mrb[0].mxu0
      %1589 = vmatprep.mubr.f32.mxu0 0.0
      %1590 = vmatmul.mubr.f32.gmra.mrb[0].mxu0 %v914
      %v1591 = vpop.f32.mrb[0].mxu0
      %v1592 = vadd.f32 %v574, %v1591
      %v1593 = vpop.f32.mrb[0].mxu0
      %1594 = vmatprep.mubr.f32.mxu0 0.0
      %1595 = vmatmul.mubr.f32.gmra.mrb[0].mxu0 %v917
      %v1596 = vpop.f32.mrb[0].mxu0
      %v1597 = vadd.f32 %v574, %v1596
      %v1598 = vpop.f32.mrb[0].mxu0
      %1599 = vmatprep.mubr.f32.mxu0 0.0
      %1600 = vmatmul.mubr.f32.gmra.mrb[0].mxu0 %v920
      %v1601 = vpop.f32.mrb[0].mxu0
      %v1602 = vadd.f32 %v574, %v1601
      %v1603 = vpop.f32.mrb[0].mxu0
      %1604 = vmatprep.mubr.f32.mxu0 0.0
      %1605 = vmatmul.mubr.f32.gmra.mrb[0].mxu0 %v923
      %v1606 = vpop.f32.mrb[0].mxu0
      %v1607 = vadd.f32 %v574, %v1606
      %v1608 = vpop.f32.mrb[0].mxu0
      %1609 = vmatprep.mubr.f32.mxu0 0.0
      %1610 = vmatmul.mubr.f32.gmra.mrb[0].mxu0 %v926
      %v1611 = vpop.f32.mrb[0].mxu0
      %v1612 = vadd.f32 %v574, %v1611
      %v1613 = vpop.f32.mrb[0].mxu0
      %1614 = vmatprep.mubr.f32.mxu0 0.0
      %1615 = vmatmul.mubr.f32.gmra.mrb[0].mxu0 %v929
      %v1616 = vpop.f32.mrb[0].mxu0
      %v1617 = vadd.f32 %v574, %v1616
      %v1618 = vpop.f32.mrb[0].mxu0
      %1619 = vmatprep.mubr.f32.mxu0 0.0
      %1620 = vmatmul.mubr.f32.gmra.mrb[0].mxu0 %v932
      %v1621 = vpop.f32.mrb[0].mxu0
      %v1622 = vadd.f32 %v574, %v1621
      %v1623 = vpop.f32.mrb[0].mxu0
      %1624 = vmatprep.mubr.f32.mxu0 0.0
      %1625 = vmatmul.mubr.f32.gmra.mrb[0].mxu0 %v935
      %v1626 = vpop.f32.mrb[0].mxu0
      %v1627 = vadd.f32 %v574, %v1626
      %v1628 = vpop.f32.mrb[0].mxu0
      %1629 = vmatprep.mubr.f32.mxu0 0.0
      %1630 = vmatmul.mubr.f32.gmra.mrb[0].mxu0 %v938
      %v1631 = vpop.f32.mrb[0].mxu0
      %v1632 = vadd.f32 %v574, %v1631
      %v1633 = vpop.f32.mrb[0].mxu0
      %1634 = vmatprep.mubr.f32.mxu0 0.0
      %1635 = vmatmul.mubr.f32.gmra.mrb[0].mxu0 %v941
      %v1636 = vpop.f32.mrb[0].mxu0
      %v1637 = vadd.f32 %v574, %v1636
      %v1638 = vpop.f32.mrb[0].mxu0
      %1639 = vmatprep.mubr.f32.mxu0 0.0
      %1640 = vmatmul.mubr.f32.gmra.mrb[0].mxu0 %v944
      %v1641 = vpop.f32.mrb[0].mxu0
      %v1642 = vadd.f32 %v574, %v1641
      %v1643 = vpop.f32.mrb[0].mxu0
      %1644 = vmatprep.mubr.f32.mxu0 0.0
      %1645 = vmatmul.mubr.f32.gmra.mrb[0].mxu0 %v947
      %v1646 = vpop.f32.mrb[0].mxu0
      %v1647 = vadd.f32 %v574, %v1646
      %v1648 = vpop.f32.mrb[0].mxu0
      %1649 = vmatprep.mubr.f32.mxu0 0.0
      %1650 = vmatmul.mubr.f32.gmra.mrb[0].mxu0 %v950
      %v1651 = vpop.f32.mrb[0].mxu0
      %v1652 = vadd.f32 %v574, %v1651
      %v1653 = vpop.f32.mrb[0].mxu0
      %1654 = vmatprep.mubr.f32.mxu0 0.0
      %1655 = vmatmul.mubr.f32.gmra.mrb[0].mxu0 %v953
      %v1656 = vpop.f32.mrb[0].mxu0
      %v1657 = vadd.f32 %v574, %v1656
      %v1658 = vpop.f32.mrb[0].mxu0
      %1659 = vmatprep.mubr.f32.mxu0 0.0
      %1660 = vmatmul.mubr.f32.gmra.mrb[0].mxu0 %v956
      %v1661 = vpop.f32.mrb[0].mxu0
      %v1662 = vadd.f32 %v574, %v1661
      %v1663 = vpop.f32.mrb[0].mxu0
      %1664 = vmatprep.mubr.f32.mxu0 0.0
      %1665 = vmatmul.mubr.f32.gmra.mrb[0].mxu0 %v959
      %v1666 = vpop.f32.mrb[0].mxu0
      %v1667 = vadd.f32 %v574, %v1666
      %v1668 = vpop.f32.mrb[0].mxu0
      %1669 = vdwg.mxu0
      %vm1670 = vcmp.gt.f32.partialorder %v1032, 0.0
      %vm1671 = vcmp.gt.f32.partialorder %v1037, 0.0
      %vm1672 = vcmp.gt.f32.partialorder %v1042, 0.0
      %vm1673 = vcmp.gt.f32.partialorder %v1047, 0.0
      %vm1674 = vcmp.gt.f32.partialorder %v1052, 0.0
      %vm1675 = vcmp.gt.f32.partialorder %v1057, 0.0
      %vm1676 = vcmp.gt.f32.partialorder %v1062, 0.0
      %vm1677 = vcmp.gt.f32.partialorder %v1067, 0.0
      %vm1678 = vcmp.gt.f32.partialorder %v1072, 0.0
      %vm1679 = vcmp.gt.f32.partialorder %v1077, 0.0
      %vm1680 = vcmp.gt.f32.partialorder %v1082, 0.0
      %vm1681 = vcmp.gt.f32.partialorder %v1087, 0.0
      %vm1682 = vcmp.gt.f32.partialorder %v1092, 0.0
      %vm1683 = vcmp.gt.f32.partialorder %v1097, 0.0
      %vm1684 = vcmp.gt.f32.partialorder %v1102, 0.0
      %vm1685 = vcmp.gt.f32.partialorder %v1107, 0.0
      %vm1686 = vcmp.gt.f32.partialorder %v1112, 0.0
      %vm1687 = vcmp.gt.f32.partialorder %v1117, 0.0
      %vm1688 = vcmp.gt.f32.partialorder %v1122, 0.0
      %vm1689 = vcmp.gt.f32.partialorder %v1127, 0.0
      %vm1690 = vcmp.gt.f32.partialorder %v1132, 0.0
      %vm1691 = vcmp.gt.f32.partialorder %v1137, 0.0
      %vm1692 = vcmp.gt.f32.partialorder %v1142, 0.0
      %vm1693 = vcmp.gt.f32.partialorder %v1147, 0.0
      %vm1694 = vcmp.gt.f32.partialorder %v1152, 0.0
      %vm1695 = vcmp.gt.f32.partialorder %v1157, 0.0
      %vm1696 = vcmp.gt.f32.partialorder %v1162, 0.0
      %vm1697 = vcmp.gt.f32.partialorder %v1167, 0.0
      %vm1698 = vcmp.gt.f32.partialorder %v1172, 0.0
      %vm1699 = vcmp.gt.f32.partialorder %v1177, 0.0
      %vm1700 = vcmp.gt.f32.partialorder %v1182, 0.0
      %vm1701 = vcmp.gt.f32.partialorder %v1187, 0.0
      %vm1702 = vcmp.gt.f32.partialorder %v1192, 0.0
      %vm1703 = vcmp.gt.f32.partialorder %v1197, 0.0
      %vm1704 = vcmp.gt.f32.partialorder %v1202, 0.0
      %vm1705 = vcmp.gt.f32.partialorder %v1207, 0.0
      %vm1706 = vcmp.gt.f32.partialorder %v1212, 0.0
      %vm1707 = vcmp.gt.f32.partialorder %v1217, 0.0
      %vm1708 = vcmp.gt.f32.partialorder %v1222, 0.0
      %vm1709 = vcmp.gt.f32.partialorder %v1227, 0.0
      %vm1710 = vcmp.gt.f32.partialorder %v1232, 0.0
      %vm1711 = vcmp.gt.f32.partialorder %v1237, 0.0
      %vm1712 = vcmp.gt.f32.partialorder %v1242, 0.0
      %vm1713 = vcmp.gt.f32.partialorder %v1247, 0.0
      %vm1714 = vcmp.gt.f32.partialorder %v1252, 0.0
      %vm1715 = vcmp.gt.f32.partialorder %v1257, 0.0
      %vm1716 = vcmp.gt.f32.partialorder %v1262, 0.0
      %vm1717 = vcmp.gt.f32.partialorder %v1267, 0.0
      %vm1718 = vcmp.gt.f32.partialorder %v1272, 0.0
      %vm1719 = vcmp.gt.f32.partialorder %v1277, 0.0
      %vm1720 = vcmp.gt.f32.partialorder %v1282, 0.0
      %vm1721 = vcmp.gt.f32.partialorder %v1287, 0.0
      %vm1722 = vcmp.gt.f32.partialorder %v1292, 0.0
      %vm1723 = vcmp.gt.f32.partialorder %v1297, 0.0
      %vm1724 = vcmp.gt.f32.partialorder %v1302, 0.0
      %vm1725 = vcmp.gt.f32.partialorder %v1307, 0.0
      %vm1726 = vcmp.gt.f32.partialorder %v1312, 0.0
      %vm1727 = vcmp.gt.f32.partialorder %v1317, 0.0
      %vm1728 = vcmp.gt.f32.partialorder %v1322, 0.0
      %vm1729 = vcmp.gt.f32.partialorder %v1327, 0.0
      %vm1730 = vcmp.gt.f32.partialorder %v1332, 0.0
      %vm1731 = vcmp.gt.f32.partialorder %v1337, 0.0
      %vm1732 = vcmp.gt.f32.partialorder %v1342, 0.0
      %vm1733 = vcmp.gt.f32.partialorder %v1347, 0.0
      %vm1734 = vcmp.gt.f32.partialorder %v1352, 0.0
      %vm1735 = vcmp.gt.f32.partialorder %v1357, 0.0
      %vm1736 = vcmp.gt.f32.partialorder %v1362, 0.0
      %vm1737 = vcmp.gt.f32.partialorder %v1367, 0.0
      %vm1738 = vcmp.gt.f32.partialorder %v1372, 0.0
      %vm1739 = vcmp.gt.f32.partialorder %v1377, 0.0
      %vm1740 = vcmp.gt.f32.partialorder %v1382, 0.0
      %vm1741 = vcmp.gt.f32.partialorder %v1387, 0.0
      %vm1742 = vcmp.gt.f32.partialorder %v1392, 0.0
      %vm1743 = vcmp.gt.f32.partialorder %v1397, 0.0
      %vm1744 = vcmp.gt.f32.partialorder %v1402, 0.0
      %vm1745 = vcmp.gt.f32.partialorder %v1407, 0.0
      %vm1746 = vcmp.gt.f32.partialorder %v1412, 0.0
      %vm1747 = vcmp.gt.f32.partialorder %v1417, 0.0
      %vm1748 = vcmp.gt.f32.partialorder %v1422, 0.0
      %vm1749 = vcmp.gt.f32.partialorder %v1427, 0.0
      %vm1750 = vcmp.gt.f32.partialorder %v1432, 0.0
      %vm1751 = vcmp.gt.f32.partialorder %v1437, 0.0
      %vm1752 = vcmp.gt.f32.partialorder %v1442, 0.0
      %vm1753 = vcmp.gt.f32.partialorder %v1447, 0.0
      %vm1754 = vcmp.gt.f32.partialorder %v1452, 0.0
      %vm1755 = vcmp.gt.f32.partialorder %v1457, 0.0
      %vm1756 = vcmp.gt.f32.partialorder %v1462, 0.0
      %vm1757 = vcmp.gt.f32.partialorder %v1467, 0.0
      %vm1758 = vcmp.gt.f32.partialorder %v1472, 0.0
      %vm1759 = vcmp.gt.f32.partialorder %v1477, 0.0
      %vm1760 = vcmp.gt.f32.partialorder %v1482, 0.0
      %vm1761 = vcmp.gt.f32.partialorder %v1487, 0.0
      %vm1762 = vcmp.gt.f32.partialorder %v1492, 0.0
      %vm1763 = vcmp.gt.f32.partialorder %v1497, 0.0
      %vm1764 = vcmp.gt.f32.partialorder %v1502, 0.0
      %vm1765 = vcmp.gt.f32.partialorder %v1507, 0.0
      %vm1766 = vcmp.gt.f32.partialorder %v1512, 0.0
      %vm1767 = vcmp.gt.f32.partialorder %v1517, 0.0
      %vm1768 = vcmp.gt.f32.partialorder %v1522, 0.0
      %vm1769 = vcmp.gt.f32.partialorder %v1527, 0.0
      %vm1770 = vcmp.gt.f32.partialorder %v1532, 0.0
      %vm1771 = vcmp.gt.f32.partialorder %v1537, 0.0
      %vm1772 = vcmp.gt.f32.partialorder %v1542, 0.0
      %vm1773 = vcmp.gt.f32.partialorder %v1547, 0.0
      %vm1774 = vcmp.gt.f32.partialorder %v1552, 0.0
      %vm1775 = vcmp.gt.f32.partialorder %v1557, 0.0
      %vm1776 = vcmp.gt.f32.partialorder %v1562, 0.0
      %vm1777 = vcmp.gt.f32.partialorder %v1567, 0.0
      %vm1778 = vcmp.gt.f32.partialorder %v1572, 0.0
      %vm1779 = vcmp.gt.f32.partialorder %v1577, 0.0
      %vm1780 = vcmp.gt.f32.partialorder %v1582, 0.0
      %vm1781 = vcmp.gt.f32.partialorder %v1587, 0.0
      %vm1782 = vcmp.gt.f32.partialorder %v1592, 0.0
      %vm1783 = vcmp.gt.f32.partialorder %v1597, 0.0
      %vm1784 = vcmp.gt.f32.partialorder %v1602, 0.0
      %vm1785 = vcmp.gt.f32.partialorder %v1607, 0.0
      %vm1786 = vcmp.gt.f32.partialorder %v1612, 0.0
      %vm1787 = vcmp.gt.f32.partialorder %v1617, 0.0
      %vm1788 = vcmp.gt.f32.partialorder %v1622, 0.0
      %vm1789 = vcmp.gt.f32.partialorder %v1627, 0.0
      %vm1790 = vcmp.gt.f32.partialorder %v1632, 0.0
      %vm1791 = vcmp.gt.f32.partialorder %v1637, 0.0
      %vm1792 = vcmp.gt.f32.partialorder %v1642, 0.0
      %vm1793 = vcmp.gt.f32.partialorder %v1647, 0.0
      %vm1794 = vcmp.gt.f32.partialorder %v1652, 0.0
      %vm1795 = vcmp.gt.f32.partialorder %v1657, 0.0
      %vm1796 = vcmp.gt.f32.partialorder %v1662, 0.0
      %vm1797 = vcmp.gt.f32.partialorder %v1667, 0.0
      %v1798 = vmul.f32 %v1032, 0.2
      %v1799 = vmul.f32 %v1037, 0.2
      %v1800 = vmul.f32 %v1042, 0.2
      %v1801 = vmul.f32 %v1047, 0.2
      %v1802 = vmul.f32 %v1052, 0.2
      %v1803 = vmul.f32 %v1057, 0.2
      %v1804 = vmul.f32 %v1062, 0.2
      %v1805 = vmul.f32 %v1067, 0.2
      %v1806 = vmul.f32 %v1072, 0.2
      %v1807 = vmul.f32 %v1077, 0.2
      %v1808 = vmul.f32 %v1082, 0.2
      %v1809 = vmul.f32 %v1087, 0.2
      %v1810 = vmul.f32 %v1092, 0.2
      %v1811 = vmul.f32 %v1097, 0.2
      %v1812 = vmul.f32 %v1102, 0.2
      %v1813 = vmul.f32 %v1107, 0.2
      %v1814 = vmul.f32 %v1112, 0.2
      %v1815 = vmul.f32 %v1117, 0.2
      %v1816 = vmul.f32 %v1122, 0.2
      %v1817 = vmul.f32 %v1127, 0.2
      %v1818 = vmul.f32 %v1132, 0.2
      %v1819 = vmul.f32 %v1137, 0.2
      %v1820 = vmul.f32 %v1142, 0.2
      %v1821 = vmul.f32 %v1147, 0.2
      %v1822 = vmul.f32 %v1152, 0.2
      %v1823 = vmul.f32 %v1157, 0.2
      %v1824 = vmul.f32 %v1162, 0.2
      %v1825 = vmul.f32 %v1167, 0.2
      %v1826 = vmul.f32 %v1172, 0.2
      %v1827 = vmul.f32 %v1177, 0.2
      %v1828 = vmul.f32 %v1182, 0.2
      %v1829 = vmul.f32 %v1187, 0.2
      %v1830 = vmul.f32 %v1192, 0.2
      %v1831 = vmul.f32 %v1197, 0.2
      %v1832 = vmul.f32 %v1202, 0.2
      %v1833 = vmul.f32 %v1207, 0.2
      %v1834 = vmul.f32 %v1212, 0.2
      %v1835 = vmul.f32 %v1217, 0.2
      %v1836 = vmul.f32 %v1222, 0.2
      %v1837 = vmul.f32 %v1227, 0.2
      %v1838 = vmul.f32 %v1232, 0.2
      %v1839 = vmul.f32 %v1237, 0.2
      %v1840 = vmul.f32 %v1242, 0.2
      %v1841 = vmul.f32 %v1247, 0.2
      %v1842 = vmul.f32 %v1252, 0.2
      %v1843 = vmul.f32 %v1257, 0.2
      %v1844 = vmul.f32 %v1262, 0.2
      %v1845 = vmul.f32 %v1267, 0.2
      %v1846 = vmul.f32 %v1272, 0.2
      %v1847 = vmul.f32 %v1277, 0.2
      %v1848 = vmul.f32 %v1282, 0.2
      %v1849 = vmul.f32 %v1287, 0.2
      %v1850 = vmul.f32 %v1292, 0.2
      %v1851 = vmul.f32 %v1297, 0.2
      %v1852 = vmul.f32 %v1302, 0.2
      %v1853 = vmul.f32 %v1307, 0.2
      %v1854 = vmul.f32 %v1312, 0.2
      %v1855 = vmul.f32 %v1317, 0.2
      %v1856 = vmul.f32 %v1322, 0.2
      %v1857 = vmul.f32 %v1327, 0.2
      %v1858 = vmul.f32 %v1332, 0.2
      %v1859 = vmul.f32 %v1337, 0.2
      %v1860 = vmul.f32 %v1342, 0.2
      %v1861 = vmul.f32 %v1347, 0.2
      %v1862 = vmul.f32 %v1352, 0.2
      %v1863 = vmul.f32 %v1357, 0.2
      %v1864 = vmul.f32 %v1362, 0.2
      %v1865 = vmul.f32 %v1367, 0.2
      %v1866 = vmul.f32 %v1372, 0.2
      %v1867 = vmul.f32 %v1377, 0.2
      %v1868 = vmul.f32 %v1382, 0.2
      %v1869 = vmul.f32 %v1387, 0.2
      %v1870 = vmul.f32 %v1392, 0.2
      %v1871 = vmul.f32 %v1397, 0.2
      %v1872 = vmul.f32 %v1402, 0.2
      %v1873 = vmul.f32 %v1407, 0.2
      %v1874 = vmul.f32 %v1412, 0.2
      %v1875 = vmul.f32 %v1417, 0.2
      %v1876 = vmul.f32 %v1422, 0.2
      %v1877 = vmul.f32 %v1427, 0.2
      %v1878 = vmul.f32 %v1432, 0.2
      %v1879 = vmul.f32 %v1437, 0.2
      %v1880 = vmul.f32 %v1442, 0.2
      %v1881 = vmul.f32 %v1447, 0.2
      %v1882 = vmul.f32 %v1452, 0.2
      %v1883 = vmul.f32 %v1457, 0.2
      %v1884 = vmul.f32 %v1462, 0.2
      %v1885 = vmul.f32 %v1467, 0.2
      %v1886 = vmul.f32 %v1472, 0.2
      %v1887 = vmul.f32 %v1477, 0.2
      %v1888 = vmul.f32 %v1482, 0.2
      %v1889 = vmul.f32 %v1487, 0.2
      %v1890 = vmul.f32 %v1492, 0.2
      %v1891 = vmul.f32 %v1497, 0.2
      %v1892 = vmul.f32 %v1502, 0.2
      %v1893 = vmul.f32 %v1507, 0.2
      %v1894 = vmul.f32 %v1512, 0.2
      %v1895 = vmul.f32 %v1517, 0.2
      %v1896 = vmul.f32 %v1522, 0.2
      %v1897 = vmul.f32 %v1527, 0.2
      %v1898 = vmul.f32 %v1532, 0.2
      %v1899 = vmul.f32 %v1537, 0.2
      %v1900 = vmul.f32 %v1542, 0.2
      %v1901 = vmul.f32 %v1547, 0.2
      %v1902 = vmul.f32 %v1552, 0.2
      %v1903 = vmul.f32 %v1557, 0.2
      %v1904 = vmul.f32 %v1562, 0.2
      %v1905 = vmul.f32 %v1567, 0.2
      %v1906 = vmul.f32 %v1572, 0.2
      %v1907 = vmul.f32 %v1577, 0.2
      %v1908 = vmul.f32 %v1582, 0.2
      %v1909 = vmul.f32 %v1587, 0.2
      %v1910 = vmul.f32 %v1592, 0.2
      %v1911 = vmul.f32 %v1597, 0.2
      %v1912 = vmul.f32 %v1602, 0.2
      %v1913 = vmul.f32 %v1607, 0.2
      %v1914 = vmul.f32 %v1612, 0.2
      %v1915 = vmul.f32 %v1617, 0.2
      %v1916 = vmul.f32 %v1622, 0.2
      %v1917 = vmul.f32 %v1627, 0.2
      %v1918 = vmul.f32 %v1632, 0.2
      %v1919 = vmul.f32 %v1637, 0.2
      %v1920 = vmul.f32 %v1642, 0.2
      %v1921 = vmul.f32 %v1647, 0.2
      %v1922 = vmul.f32 %v1652, 0.2
      %v1923 = vmul.f32 %v1657, 0.2
      %v1924 = vmul.f32 %v1662, 0.2
      %v1925 = vmul.f32 %v1667, 0.2
      %v1926 = vsel %vm1670, %v1032, %v1798
      %v1927 = vsel %vm1671, %v1037, %v1799
      %v1928 = vsel %vm1672, %v1042, %v1800
      %v1929 = vsel %vm1673, %v1047, %v1801
      %v1930 = vsel %vm1674, %v1052, %v1802
      %v1931 = vsel %vm1675, %v1057, %v1803
      %v1932 = vsel %vm1676, %v1062, %v1804
      %v1933 = vsel %vm1677, %v1067, %v1805
      %v1934 = vsel %vm1678, %v1072, %v1806
      %v1935 = vsel %vm1679, %v1077, %v1807
      %v1936 = vsel %vm1680, %v1082, %v1808
      %v1937 = vsel %vm1681, %v1087, %v1809
      %v1938 = vsel %vm1682, %v1092, %v1810
      %v1939 = vsel %vm1683, %v1097, %v1811
      %v1940 = vsel %vm1684, %v1102, %v1812
      %v1941 = vsel %vm1685, %v1107, %v1813
      %v1942 = vsel %vm1686, %v1112, %v1814
      %v1943 = vsel %vm1687, %v1117, %v1815
      %v1944 = vsel %vm1688, %v1122, %v1816
      %v1945 = vsel %vm1689, %v1127, %v1817
      %v1946 = vsel %vm1690, %v1132, %v1818
      %v1947 = vsel %vm1691, %v1137, %v1819
      %v1948 = vsel %vm1692, %v1142, %v1820
      %v1949 = vsel %vm1693, %v1147, %v1821
      %v1950 = vsel %vm1694, %v1152, %v1822
      %v1951 = vsel %vm1695, %v1157, %v1823
      %v1952 = vsel %vm1696, %v1162, %v1824
      %v1953 = vsel %vm1697, %v1167, %v1825
      %v1954 = vsel %vm1698, %v1172, %v1826
      %v1955 = vsel %vm1699, %v1177, %v1827
      %v1956 = vsel %vm1700, %v1182, %v1828
      %v1957 = vsel %vm1701, %v1187, %v1829
      %v1958 = vsel %vm1702, %v1192, %v1830
      %v1959 = vsel %vm1703, %v1197, %v1831
      %v1960 = vsel %vm1704, %v1202, %v1832
      %v1961 = vsel %vm1705, %v1207, %v1833
      %v1962 = vsel %vm1706, %v1212, %v1834
      %v1963 = vsel %vm1707, %v1217, %v1835
      %v1964 = vsel %vm1708, %v1222, %v1836
      %v1965 = vsel %vm1709, %v1227, %v1837
      %v1966 = vsel %vm1710, %v1232, %v1838
      %v1967 = vsel %vm1711, %v1237, %v1839
      %v1968 = vsel %vm1712, %v1242, %v1840
      %v1969 = vsel %vm1713, %v1247, %v1841
      %v1970 = vsel %vm1714, %v1252, %v1842
      %v1971 = vsel %vm1715, %v1257, %v1843
      %v1972 = vsel %vm1716, %v1262, %v1844
      %v1973 = vsel %vm1717, %v1267, %v1845
      %v1974 = vsel %vm1718, %v1272, %v1846
      %v1975 = vsel %vm1719, %v1277, %v1847
      %v1976 = vsel %vm1720, %v1282, %v1848
      %v1977 = vsel %vm1721, %v1287, %v1849
      %v1978 = vsel %vm1722, %v1292, %v1850
      %v1979 = vsel %vm1723, %v1297, %v1851
      %v1980 = vsel %vm1724, %v1302, %v1852
      %v1981 = vsel %vm1725, %v1307, %v1853
      %v1982 = vsel %vm1726, %v1312, %v1854
      %v1983 = vsel %vm1727, %v1317, %v1855
      %v1984 = vsel %vm1728, %v1322, %v1856
      %v1985 = vsel %vm1729, %v1327, %v1857
      %v1986 = vsel %vm1730, %v1332, %v1858
      %v1987 = vsel %vm1731, %v1337, %v1859
      %v1988 = vsel %vm1732, %v1342, %v1860
      %v1989 = vsel %vm1733, %v1347, %v1861
      %v1990 = vsel %vm1734, %v1352, %v1862
      %v1991 = vsel %vm1735, %v1357, %v1863
      %v1992 = vsel %vm1736, %v1362, %v1864
      %v1993 = vsel %vm1737, %v1367, %v1865
      %v1994 = vsel %vm1738, %v1372, %v1866
      %v1995 = vsel %vm1739, %v1377, %v1867
      %v1996 = vsel %vm1740, %v1382, %v1868
      %v1997 = vsel %vm1741, %v1387, %v1869
      %v1998 = vsel %vm1742, %v1392, %v1870
      %v1999 = vsel %vm1743, %v1397, %v1871
      %v2000 = vsel %vm1744, %v1402, %v1872
      %v2001 = vsel %vm1745, %v1407, %v1873
      %v2002 = vsel %vm1746, %v1412, %v1874
      %v2003 = vsel %vm1747, %v1417, %v1875
      %v2004 = vsel %vm1748, %v1422, %v1876
      %v2005 = vsel %vm1749, %v1427, %v1877
      %v2006 = vsel %vm1750, %v1432, %v1878
      %v2007 = vsel %vm1751, %v1437, %v1879
      %v2008 = vsel %vm1752, %v1442, %v1880
      %v2009 = vsel %vm1753, %v1447, %v1881
      %v2010 = vsel %vm1754, %v1452, %v1882
      %v2011 = vsel %vm1755, %v1457, %v1883
      %v2012 = vsel %vm1756, %v1462, %v1884
      %v2013 = vsel %vm1757, %v1467, %v1885
      %v2014 = vsel %vm1758, %v1472, %v1886
      %v2015 = vsel %vm1759, %v1477, %v1887
      %v2016 = vsel %vm1760, %v1482, %v1888
      %v2017 = vsel %vm1761, %v1487, %v1889
      %v2018 = vsel %vm1762, %v1492, %v1890
      %v2019 = vsel %vm1763, %v1497, %v1891
      %v2020 = vsel %vm1764, %v1502, %v1892
      %v2021 = vsel %vm1765, %v1507, %v1893
      %v2022 = vsel %vm1766, %v1512, %v1894
      %v2023 = vsel %vm1767, %v1517, %v1895
      %v2024 = vsel %vm1768, %v1522, %v1896
      %v2025 = vsel %vm1769, %v1527, %v1897
      %v2026 = vsel %vm1770, %v1532, %v1898
      %v2027 = vsel %vm1771, %v1537, %v1899
      %v2028 = vsel %vm1772, %v1542, %v1900
      %v2029 = vsel %vm1773, %v1547, %v1901
      %v2030 = vsel %vm1774, %v1552, %v1902
      %v2031 = vsel %vm1775, %v1557, %v1903
      %v2032 = vsel %vm1776, %v1562, %v1904
      %v2033 = vsel %vm1777, %v1567, %v1905
      %v2034 = vsel %vm1778, %v1572, %v1906
      %v2035 = vsel %vm1779, %v1577, %v1907
      %v2036 = vsel %vm1780, %v1582, %v1908
      %v2037 = vsel %vm1781, %v1587, %v1909
      %v2038 = vsel %vm1782, %v1592, %v1910
      %v2039 = vsel %vm1783, %v1597, %v1911
      %v2040 = vsel %vm1784, %v1602, %v1912
      %v2041 = vsel %vm1785, %v1607, %v1913
      %v2042 = vsel %vm1786, %v1612, %v1914
      %v2043 = vsel %vm1787, %v1617, %v1915
      %v2044 = vsel %vm1788, %v1622, %v1916
      %v2045 = vsel %vm1789, %v1627, %v1917
      %v2046 = vsel %vm1790, %v1632, %v1918
      %v2047 = vsel %vm1791, %v1637, %v1919
      %v2048 = vsel %vm1792, %v1642, %v1920
      %v2049 = vsel %vm1793, %v1647, %v1921
      %v2050 = vsel %vm1794, %v1652, %v1922
      %v2051 = vsel %vm1795, %v1657, %v1923
      %v2052 = vsel %vm1796, %v1662, %v1924
      %v2053 = vsel %vm1797, %v1667, %v1925
      %2062 = vrot.lane.b32.xlu0 %v1926, 32
      %v2063 = vpop.permute.xlu0 %2062
      %2064 = vrot.lane.b32.xlu0 %v1927, 32
      %v2065 = vpop.permute.xlu0 %2064
      %2066 = vrot.lane.b32.xlu0 %v1928, 32
      %v2067 = vpop.permute.xlu0 %2066
      %2068 = vrot.lane.b32.xlu0 %v1929, 32
      %v2069 = vpop.permute.xlu0 %2068
      %2070 = vrot.lane.b32.xlu0 %v1930, 32
      %v2071 = vpop.permute.xlu0 %2070
      %2072 = vrot.lane.b32.xlu0 %v1931, 32
      %v2073 = vpop.permute.xlu0 %2072
      %2074 = vrot.lane.b32.xlu0 %v1932, 32
      %v2075 = vpop.permute.xlu0 %2074
      %2076 = vrot.lane.b32.xlu0 %v1933, 32
      %v2077 = vpop.permute.xlu0 %2076
      %s2086 = scalar_lea.vmem [#allocation2], 16
      %vm2087 = vcmask 523520
      %2088 = vst.msk [vmem:[%s2086] sm:$0xff] %vm2087, %v2063
      %2089 = vst.msk [vmem:[%s2086 + $0x40] sm:$0xff] %vm2087, %v2065
      %2090 = vst.msk [vmem:[%s2086 + $0x80] sm:$0xff] %vm2087, %v2067
      %2091 = vst.msk [vmem:[%s2086 + $0xc0] sm:$0xff] %vm2087, %v2069
      %2092 = vst.msk [vmem:[%s2086 + $0x100] sm:$0xff] %vm2087, %v2071
      %2093 = vst.msk [vmem:[%s2086 + $0x140] sm:$0xff] %vm2087, %v2073
      %2094 = vst.msk [vmem:[%s2086 + $0x180] sm:$0xff] %vm2087, %v2075
      %2095 = vst.msk [vmem:[%s2086 + $0x1c0] sm:$0xff] %vm2087, %v2077
      %2104 = vrot.lane.b32.xlu0 %v1934, 64
      %v2105 = vpop.permute.xlu0 %2104
      %2106 = vrot.lane.b32.xlu0 %v1935, 64
      %v2107 = vpop.permute.xlu0 %2106
      %2108 = vrot.lane.b32.xlu0 %v1936, 64
      %v2109 = vpop.permute.xlu0 %2108
      %2110 = vrot.lane.b32.xlu0 %v1937, 64
      %v2111 = vpop.permute.xlu0 %2110
      %2112 = vrot.lane.b32.xlu0 %v1938, 64
      %v2113 = vpop.permute.xlu0 %2112
      %2114 = vrot.lane.b32.xlu0 %v1939, 64
      %v2115 = vpop.permute.xlu0 %2114
      %2116 = vrot.lane.b32.xlu0 %v1940, 64
      %v2117 = vpop.permute.xlu0 %2116
      %2118 = vrot.lane.b32.xlu0 %v1941, 64
      %v2119 = vpop.permute.xlu0 %2118
      %vm2128 = vcmask 785920
      %2129 = vst.msk [vmem:[%s2086] sm:$0xff] %vm2128, %v2105
      %2130 = vst.msk [vmem:[%s2086 + $0x40] sm:$0xff] %vm2128, %v2107
      %2131 = vst.msk [vmem:[%s2086 + $0x80] sm:$0xff] %vm2128, %v2109
      %2132 = vst.msk [vmem:[%s2086 + $0xc0] sm:$0xff] %vm2128, %v2111
      %2133 = vst.msk [vmem:[%s2086 + $0x100] sm:$0xff] %vm2128, %v2113
      %2134 = vst.msk [vmem:[%s2086 + $0x140] sm:$0xff] %vm2128, %v2115
      %2135 = vst.msk [vmem:[%s2086 + $0x180] sm:$0xff] %vm2128, %v2117
      %2136 = vst.msk [vmem:[%s2086 + $0x1c0] sm:$0xff] %vm2128, %v2119
      %2145 = vrot.lane.b32.xlu0 %v1942, 96
      %v2146 = vpop.permute.xlu0 %2145
      %2147 = vrot.lane.b32.xlu0 %v1943, 96
      %v2148 = vpop.permute.xlu0 %2147
      %2149 = vrot.lane.b32.xlu0 %v1944, 96
      %v2150 = vpop.permute.xlu0 %2149
      %2151 = vrot.lane.b32.xlu0 %v1945, 96
      %v2152 = vpop.permute.xlu0 %2151
      %2153 = vrot.lane.b32.xlu0 %v1946, 96
      %v2154 = vpop.permute.xlu0 %2153
      %2155 = vrot.lane.b32.xlu0 %v1947, 96
      %v2156 = vpop.permute.xlu0 %2155
      %2157 = vrot.lane.b32.xlu0 %v1948, 96
      %v2158 = vpop.permute.xlu0 %2157
      %2159 = vrot.lane.b32.xlu0 %v1949, 96
      %v2160 = vpop.permute.xlu0 %2159
      %vm2169 = vcmask 1048320
      %2170 = vst.msk [vmem:[%s2086] sm:$0xff] %vm2169, %v2146
      %2171 = vst.msk [vmem:[%s2086 + $0x40] sm:$0xff] %vm2169, %v2148
      %2172 = vst.msk [vmem:[%s2086 + $0x80] sm:$0xff] %vm2169, %v2150
      %2173 = vst.msk [vmem:[%s2086 + $0xc0] sm:$0xff] %vm2169, %v2152
      %2174 = vst.msk [vmem:[%s2086 + $0x100] sm:$0xff] %vm2169, %v2154
      %2175 = vst.msk [vmem:[%s2086 + $0x140] sm:$0xff] %vm2169, %v2156
      %2176 = vst.msk [vmem:[%s2086 + $0x180] sm:$0xff] %vm2169, %v2158
      %2177 = vst.msk [vmem:[%s2086 + $0x1c0] sm:$0xff] %vm2169, %v2160
      %vm2178 = vcmask 261120
      %2179 = vst.msk [vmem:[%s2086 + $0x1] sm:$0xff] %vm2178, %v1950
      %2180 = vst.msk [vmem:[%s2086 + $0x41] sm:$0xff] %vm2178, %v1951
      %2181 = vst.msk [vmem:[%s2086 + $0x81] sm:$0xff] %vm2178, %v1952
      %2182 = vst.msk [vmem:[%s2086 + $0xc1] sm:$0xff] %vm2178, %v1953
      %2183 = vst.msk [vmem:[%s2086 + $0x101] sm:$0xff] %vm2178, %v1954
      %2184 = vst.msk [vmem:[%s2086 + $0x141] sm:$0xff] %vm2178, %v1955
      %2185 = vst.msk [vmem:[%s2086 + $0x181] sm:$0xff] %vm2178, %v1956
      %2186 = vst.msk [vmem:[%s2086 + $0x1c1] sm:$0xff] %vm2178, %v1957
      %2195 = vrot.lane.b32.xlu0 %v1958, 32
      %v2196 = vpop.permute.xlu0 %2195
      %2197 = vrot.lane.b32.xlu0 %v1959, 32
      %v2198 = vpop.permute.xlu0 %2197
      %2199 = vrot.lane.b32.xlu0 %v1960, 32
      %v2200 = vpop.permute.xlu0 %2199
      %2201 = vrot.lane.b32.xlu0 %v1961, 32
      %v2202 = vpop.permute.xlu0 %2201
      %2203 = vrot.lane.b32.xlu0 %v1962, 32
      %v2204 = vpop.permute.xlu0 %2203
      %2205 = vrot.lane.b32.xlu0 %v1963, 32
      %v2206 = vpop.permute.xlu0 %2205
      %2207 = vrot.lane.b32.xlu0 %v1964, 32
      %v2208 = vpop.permute.xlu0 %2207
      %2209 = vrot.lane.b32.xlu0 %v1965, 32
      %v2210 = vpop.permute.xlu0 %2209
      %s2219 = scalar_lea.vmem [#allocation2], 32
      %2220 = vst.msk [vmem:[%s2219] sm:$0xff] %vm2087, %v2196
      %2221 = vst.msk [vmem:[%s2219 + $0x40] sm:$0xff] %vm2087, %v2198
      %2222 = vst.msk [vmem:[%s2219 + $0x80] sm:$0xff] %vm2087, %v2200
      %2223 = vst.msk [vmem:[%s2219 + $0xc0] sm:$0xff] %vm2087, %v2202
      %2224 = vst.msk [vmem:[%s2219 + $0x100] sm:$0xff] %vm2087, %v2204
      %2225 = vst.msk [vmem:[%s2219 + $0x140] sm:$0xff] %vm2087, %v2206
      %2226 = vst.msk [vmem:[%s2219 + $0x180] sm:$0xff] %vm2087, %v2208
      %2227 = vst.msk [vmem:[%s2219 + $0x1c0] sm:$0xff] %vm2087, %v2210
      %2236 = vrot.lane.b32.xlu0 %v1966, 64
      %v2237 = vpop.permute.xlu0 %2236
      %2238 = vrot.lane.b32.xlu0 %v1967, 64
      %v2239 = vpop.permute.xlu0 %2238
      %2240 = vrot.lane.b32.xlu0 %v1968, 64
      %v2241 = vpop.permute.xlu0 %2240
      %2242 = vrot.lane.b32.xlu0 %v1969, 64
      %v2243 = vpop.permute.xlu0 %2242
      %2244 = vrot.lane.b32.xlu0 %v1970, 64
      %v2245 = vpop.permute.xlu0 %2244
      %2246 = vrot.lane.b32.xlu0 %v1971, 64
      %v2247 = vpop.permute.xlu0 %2246
      %2248 = vrot.lane.b32.xlu0 %v1972, 64
      %v2249 = vpop.permute.xlu0 %2248
      %2250 = vrot.lane.b32.xlu0 %v1973, 64
      %v2251 = vpop.permute.xlu0 %2250
      %2260 = vst.msk [vmem:[%s2219] sm:$0xff] %vm2128, %v2237
      %2261 = vst.msk [vmem:[%s2219 + $0x40] sm:$0xff] %vm2128, %v2239
      %2262 = vst.msk [vmem:[%s2219 + $0x80] sm:$0xff] %vm2128, %v2241
      %2263 = vst.msk [vmem:[%s2219 + $0xc0] sm:$0xff] %vm2128, %v2243
      %2264 = vst.msk [vmem:[%s2219 + $0x100] sm:$0xff] %vm2128, %v2245
      %2265 = vst.msk [vmem:[%s2219 + $0x140] sm:$0xff] %vm2128, %v2247
      %2266 = vst.msk [vmem:[%s2219 + $0x180] sm:$0xff] %vm2128, %v2249
      %2267 = vst.msk [vmem:[%s2219 + $0x1c0] sm:$0xff] %vm2128, %v2251
      %2276 = vrot.lane.b32.xlu0 %v1974, 96
      %v2277 = vpop.permute.xlu0 %2276
      %2278 = vrot.lane.b32.xlu0 %v1975, 96
      %v2279 = vpop.permute.xlu0 %2278
      %2280 = vrot.lane.b32.xlu0 %v1976, 96
      %v2281 = vpop.permute.xlu0 %2280
      %2282 = vrot.lane.b32.xlu0 %v1977, 96
      %v2283 = vpop.permute.xlu0 %2282
      %2284 = vrot.lane.b32.xlu0 %v1978, 96
      %v2285 = vpop.permute.xlu0 %2284
      %2286 = vrot.lane.b32.xlu0 %v1979, 96
      %v2287 = vpop.permute.xlu0 %2286
      %2288 = vrot.lane.b32.xlu0 %v1980, 96
      %v2289 = vpop.permute.xlu0 %2288
      %2290 = vrot.lane.b32.xlu0 %v1981, 96
      %v2291 = vpop.permute.xlu0 %2290
      %2300 = vst.msk [vmem:[%s2219] sm:$0xff] %vm2169, %v2277
      %2301 = vst.msk [vmem:[%s2219 + $0x40] sm:$0xff] %vm2169, %v2279
      %2302 = vst.msk [vmem:[%s2219 + $0x80] sm:$0xff] %vm2169, %v2281
      %2303 = vst.msk [vmem:[%s2219 + $0xc0] sm:$0xff] %vm2169, %v2283
      %2304 = vst.msk [vmem:[%s2219 + $0x100] sm:$0xff] %vm2169, %v2285
      %2305 = vst.msk [vmem:[%s2219 + $0x140] sm:$0xff] %vm2169, %v2287
      %2306 = vst.msk [vmem:[%s2219 + $0x180] sm:$0xff] %vm2169, %v2289
      %2307 = vst.msk [vmem:[%s2219 + $0x1c0] sm:$0xff] %vm2169, %v2291
      %2308 = vst.msk [vmem:[%s2219 + $0x1] sm:$0xff] %vm2178, %v1982
      %2309 = vst.msk [vmem:[%s2219 + $0x41] sm:$0xff] %vm2178, %v1983
      %2310 = vst.msk [vmem:[%s2219 + $0x81] sm:$0xff] %vm2178, %v1984
      %2311 = vst.msk [vmem:[%s2219 + $0xc1] sm:$0xff] %vm2178, %v1985
      %2312 = vst.msk [vmem:[%s2219 + $0x101] sm:$0xff] %vm2178, %v1986
      %2313 = vst.msk [vmem:[%s2219 + $0x141] sm:$0xff] %vm2178, %v1987
      %2314 = vst.msk [vmem:[%s2219 + $0x181] sm:$0xff] %vm2178, %v1988
      %2315 = vst.msk [vmem:[%s2219 + $0x1c1] sm:$0xff] %vm2178, %v1989
      %2324 = vrot.lane.b32.xlu0 %v1990, 32
      %v2325 = vpop.permute.xlu0 %2324
      %2326 = vrot.lane.b32.xlu0 %v1991, 32
      %v2327 = vpop.permute.xlu0 %2326
      %2328 = vrot.lane.b32.xlu0 %v1992, 32
      %v2329 = vpop.permute.xlu0 %2328
      %2330 = vrot.lane.b32.xlu0 %v1993, 32
      %v2331 = vpop.permute.xlu0 %2330
      %2332 = vrot.lane.b32.xlu0 %v1994, 32
      %v2333 = vpop.permute.xlu0 %2332
      %2334 = vrot.lane.b32.xlu0 %v1995, 32
      %v2335 = vpop.permute.xlu0 %2334
      %2336 = vrot.lane.b32.xlu0 %v1996, 32
      %v2337 = vpop.permute.xlu0 %2336
      %2338 = vrot.lane.b32.xlu0 %v1997, 32
      %v2339 = vpop.permute.xlu0 %2338
      %s2348 = scalar_lea.vmem [#allocation2], 48
      %2349 = vst.msk [vmem:[%s2348] sm:$0xff] %vm2087, %v2325
      %2350 = vst.msk [vmem:[%s2348 + $0x40] sm:$0xff] %vm2087, %v2327
      %2351 = vst.msk [vmem:[%s2348 + $0x80] sm:$0xff] %vm2087, %v2329
      %2352 = vst.msk [vmem:[%s2348 + $0xc0] sm:$0xff] %vm2087, %v2331
      %2353 = vst.msk [vmem:[%s2348 + $0x100] sm:$0xff] %vm2087, %v2333
      %2354 = vst.msk [vmem:[%s2348 + $0x140] sm:$0xff] %vm2087, %v2335
      %2355 = vst.msk [vmem:[%s2348 + $0x180] sm:$0xff] %vm2087, %v2337
      %2356 = vst.msk [vmem:[%s2348 + $0x1c0] sm:$0xff] %vm2087, %v2339
      %2365 = vrot.lane.b32.xlu0 %v1998, 64
      %v2366 = vpop.permute.xlu0 %2365
      %2367 = vrot.lane.b32.xlu0 %v1999, 64
      %v2368 = vpop.permute.xlu0 %2367
      %2369 = vrot.lane.b32.xlu0 %v2000, 64
      %v2370 = vpop.permute.xlu0 %2369
      %2371 = vrot.lane.b32.xlu0 %v2001, 64
      %v2372 = vpop.permute.xlu0 %2371
      %2373 = vrot.lane.b32.xlu0 %v2002, 64
      %v2374 = vpop.permute.xlu0 %2373
      %2375 = vrot.lane.b32.xlu0 %v2003, 64
      %v2376 = vpop.permute.xlu0 %2375
      %2377 = vrot.lane.b32.xlu0 %v2004, 64
      %v2378 = vpop.permute.xlu0 %2377
      %2379 = vrot.lane.b32.xlu0 %v2005, 64
      %v2380 = vpop.permute.xlu0 %2379
      %2389 = vst.msk [vmem:[%s2348] sm:$0xff] %vm2128, %v2366
      %2390 = vst.msk [vmem:[%s2348 + $0x40] sm:$0xff] %vm2128, %v2368
      %2391 = vst.msk [vmem:[%s2348 + $0x80] sm:$0xff] %vm2128, %v2370
      %2392 = vst.msk [vmem:[%s2348 + $0xc0] sm:$0xff] %vm2128, %v2372
      %2393 = vst.msk [vmem:[%s2348 + $0x100] sm:$0xff] %vm2128, %v2374
      %2394 = vst.msk [vmem:[%s2348 + $0x140] sm:$0xff] %vm2128, %v2376
      %2395 = vst.msk [vmem:[%s2348 + $0x180] sm:$0xff] %vm2128, %v2378
      %2396 = vst.msk [vmem:[%s2348 + $0x1c0] sm:$0xff] %vm2128, %v2380
      %2405 = vrot.lane.b32.xlu0 %v2006, 96
      %v2406 = vpop.permute.xlu0 %2405
      %2407 = vrot.lane.b32.xlu0 %v2007, 96
      %v2408 = vpop.permute.xlu0 %2407
      %2409 = vrot.lane.b32.xlu0 %v2008, 96
      %v2410 = vpop.permute.xlu0 %2409
      %2411 = vrot.lane.b32.xlu0 %v2009, 96
      %v2412 = vpop.permute.xlu0 %2411
      %2413 = vrot.lane.b32.xlu0 %v2010, 96
      %v2414 = vpop.permute.xlu0 %2413
      %2415 = vrot.lane.b32.xlu0 %v2011, 96
      %v2416 = vpop.permute.xlu0 %2415
      %2417 = vrot.lane.b32.xlu0 %v2012, 96
      %v2418 = vpop.permute.xlu0 %2417
      %2419 = vrot.lane.b32.xlu0 %v2013, 96
      %v2420 = vpop.permute.xlu0 %2419
      %2429 = vst.msk [vmem:[%s2348] sm:$0xff] %vm2169, %v2406
      %2430 = vst.msk [vmem:[%s2348 + $0x40] sm:$0xff] %vm2169, %v2408
      %2431 = vst.msk [vmem:[%s2348 + $0x80] sm:$0xff] %vm2169, %v2410
      %2432 = vst.msk [vmem:[%s2348 + $0xc0] sm:$0xff] %vm2169, %v2412
      %2433 = vst.msk [vmem:[%s2348 + $0x100] sm:$0xff] %vm2169, %v2414
      %2434 = vst.msk [vmem:[%s2348 + $0x140] sm:$0xff] %vm2169, %v2416
      %2435 = vst.msk [vmem:[%s2348 + $0x180] sm:$0xff] %vm2169, %v2418
      %2436 = vst.msk [vmem:[%s2348 + $0x1c0] sm:$0xff] %vm2169, %v2420
      %2437 = vst.msk [vmem:[%s2348 + $0x1] sm:$0xff] %vm2178, %v2014
      %2438 = vst.msk [vmem:[%s2348 + $0x41] sm:$0xff] %vm2178, %v2015
      %2439 = vst.msk [vmem:[%s2348 + $0x81] sm:$0xff] %vm2178, %v2016
      %2440 = vst.msk [vmem:[%s2348 + $0xc1] sm:$0xff] %vm2178, %v2017
      %2441 = vst.msk [vmem:[%s2348 + $0x101] sm:$0xff] %vm2178, %v2018
      %2442 = vst.msk [vmem:[%s2348 + $0x141] sm:$0xff] %vm2178, %v2019
      %2443 = vst.msk [vmem:[%s2348 + $0x181] sm:$0xff] %vm2178, %v2020
      %2444 = vst.msk [vmem:[%s2348 + $0x1c1] sm:$0xff] %vm2178, %v2021
      %2453 = vrot.lane.b32.xlu0 %v2022, 32
      %v2454 = vpop.permute.xlu0 %2453
      %2455 = vrot.lane.b32.xlu0 %v2023, 32
      %v2456 = vpop.permute.xlu0 %2455
      %2457 = vrot.lane.b32.xlu0 %v2024, 32
      %v2458 = vpop.permute.xlu0 %2457
      %2459 = vrot.lane.b32.xlu0 %v2025, 32
      %v2460 = vpop.permute.xlu0 %2459
      %2461 = vrot.lane.b32.xlu0 %v2026, 32
      %v2462 = vpop.permute.xlu0 %2461
      %2463 = vrot.lane.b32.xlu0 %v2027, 32
      %v2464 = vpop.permute.xlu0 %2463
      %2465 = vrot.lane.b32.xlu0 %v2028, 32
      %v2466 = vpop.permute.xlu0 %2465
      %2467 = vrot.lane.b32.xlu0 %v2029, 32
      %v2468 = vpop.permute.xlu0 %2467
      %s2477 = scalar_lea.vmem [#allocation2], 64
      %2478 = vst.msk [vmem:[%s2477] sm:$0xff] %vm2087, %v2454
      %2479 = vst.msk [vmem:[%s2477 + $0x40] sm:$0xff] %vm2087, %v2456
      %2480 = vst.msk [vmem:[%s2477 + $0x80] sm:$0xff] %vm2087, %v2458
      %2481 = vst.msk [vmem:[%s2477 + $0xc0] sm:$0xff] %vm2087, %v2460
      %2482 = vst.msk [vmem:[%s2477 + $0x100] sm:$0xff] %vm2087, %v2462
      %2483 = vst.msk [vmem:[%s2477 + $0x140] sm:$0xff] %vm2087, %v2464
      %2484 = vst.msk [vmem:[%s2477 + $0x180] sm:$0xff] %vm2087, %v2466
      %2485 = vst.msk [vmem:[%s2477 + $0x1c0] sm:$0xff] %vm2087, %v2468
      %2494 = vrot.lane.b32.xlu0 %v2030, 64
      %v2495 = vpop.permute.xlu0 %2494
      %2496 = vrot.lane.b32.xlu0 %v2031, 64
      %v2497 = vpop.permute.xlu0 %2496
      %2498 = vrot.lane.b32.xlu0 %v2032, 64
      %v2499 = vpop.permute.xlu0 %2498
      %2500 = vrot.lane.b32.xlu0 %v2033, 64
      %v2501 = vpop.permute.xlu0 %2500
      %2502 = vrot.lane.b32.xlu0 %v2034, 64
      %v2503 = vpop.permute.xlu0 %2502
      %2504 = vrot.lane.b32.xlu0 %v2035, 64
      %v2505 = vpop.permute.xlu0 %2504
      %2506 = vrot.lane.b32.xlu0 %v2036, 64
      %v2507 = vpop.permute.xlu0 %2506
      %2508 = vrot.lane.b32.xlu0 %v2037, 64
      %v2509 = vpop.permute.xlu0 %2508
      %2518 = vst.msk [vmem:[%s2477] sm:$0xff] %vm2128, %v2495
      %2519 = vst.msk [vmem:[%s2477 + $0x40] sm:$0xff] %vm2128, %v2497
      %2520 = vst.msk [vmem:[%s2477 + $0x80] sm:$0xff] %vm2128, %v2499
      %2521 = vst.msk [vmem:[%s2477 + $0xc0] sm:$0xff] %vm2128, %v2501
      %2522 = vst.msk [vmem:[%s2477 + $0x100] sm:$0xff] %vm2128, %v2503
      %2523 = vst.msk [vmem:[%s2477 + $0x140] sm:$0xff] %vm2128, %v2505
      %2524 = vst.msk [vmem:[%s2477 + $0x180] sm:$0xff] %vm2128, %v2507
      %2525 = vst.msk [vmem:[%s2477 + $0x1c0] sm:$0xff] %vm2128, %v2509
      %2534 = vrot.lane.b32.xlu0 %v2038, 96
      %v2535 = vpop.permute.xlu0 %2534
      %2536 = vrot.lane.b32.xlu0 %v2039, 96
      %v2537 = vpop.permute.xlu0 %2536
      %2538 = vrot.lane.b32.xlu0 %v2040, 96
      %v2539 = vpop.permute.xlu0 %2538
      %2540 = vrot.lane.b32.xlu0 %v2041, 96
      %v2541 = vpop.permute.xlu0 %2540
      %2542 = vrot.lane.b32.xlu0 %v2042, 96
      %v2543 = vpop.permute.xlu0 %2542
      %2544 = vrot.lane.b32.xlu0 %v2043, 96
      %v2545 = vpop.permute.xlu0 %2544
      %2546 = vrot.lane.b32.xlu0 %v2044, 96
      %v2547 = vpop.permute.xlu0 %2546
      %2548 = vrot.lane.b32.xlu0 %v2045, 96
      %v2549 = vpop.permute.xlu0 %2548
      %2558 = vst.msk [vmem:[%s2477] sm:$0xff] %vm2169, %v2535
      %2559 = vst.msk [vmem:[%s2477 + $0x40] sm:$0xff] %vm2169, %v2537
      %2560 = vst.msk [vmem:[%s2477 + $0x80] sm:$0xff] %vm2169, %v2539
      %2561 = vst.msk [vmem:[%s2477 + $0xc0] sm:$0xff] %vm2169, %v2541
      %2562 = vst.msk [vmem:[%s2477 + $0x100] sm:$0xff] %vm2169, %v2543
      %2563 = vst.msk [vmem:[%s2477 + $0x140] sm:$0xff] %vm2169, %v2545
      %2564 = vst.msk [vmem:[%s2477 + $0x180] sm:$0xff] %vm2169, %v2547
      %2565 = vst.msk [vmem:[%s2477 + $0x1c0] sm:$0xff] %vm2169, %v2549
      %2566 = vst.msk [vmem:[%s2477 + $0x1] sm:$0xff] %vm2178, %v2046
      %2567 = vst.msk [vmem:[%s2477 + $0x41] sm:$0xff] %vm2178, %v2047
      %2568 = vst.msk [vmem:[%s2477 + $0x81] sm:$0xff] %vm2178, %v2048
      %2569 = vst.msk [vmem:[%s2477 + $0xc1] sm:$0xff] %vm2178, %v2049
      %2570 = vst.msk [vmem:[%s2477 + $0x101] sm:$0xff] %vm2178, %v2050
      %2571 = vst.msk [vmem:[%s2477 + $0x141] sm:$0xff] %vm2178, %v2051
      %2572 = vst.msk [vmem:[%s2477 + $0x181] sm:$0xff] %vm2178, %v2052
      %2573 = vst.msk [vmem:[%s2477 + $0x1c1] sm:$0xff] %vm2178, %v2053
      %v2574 = vld [vmem:[#allocation2] sm:$0xff]
      %v2575 = vld [vmem:[#allocation2 + $0x40] sm:$0xff]
      %v2576 = vld [vmem:[#allocation2 + $0x80] sm:$0xff]
      %v2577 = vld [vmem:[#allocation2 + $0xc0] sm:$0xff]
      %v2578 = vld [vmem:[#allocation2 + $0x100] sm:$0xff]
      %v2579 = vld [vmem:[#allocation2 + $0x140] sm:$0xff]
      %v2580 = vld [vmem:[#allocation2 + $0x180] sm:$0xff]
      %v2581 = vld [vmem:[#allocation2 + $0x1c0] sm:$0xff]
      %v2582 = vld [vmem:[%s3] sm:$0xff]
      %v2583 = vld [vmem:[%s3 + $0x8] sm:$0xff]
      %v2584 = vld [vmem:[%s3 + $0x10] sm:$0xff]
      %v2585 = vld [vmem:[%s3 + $0x18] sm:$0xff]
      %s2586 = scalar_lea.vmem %s3, 32
      %v2587 = vld [vmem:[%s2586] sm:$0xff]
      %v2588 = vld [vmem:[%s2586 + $0x8] sm:$0xff]
      %v2589 = vld [vmem:[%s2586 + $0x10] sm:$0xff]
      %v2590 = vld [vmem:[%s2586 + $0x18] sm:$0xff]
      %2599 = vrot.lane.b32.xlu0 %v2574, 96
      %v2600 = vpop.permute.xlu0 %2599
      %2601 = vrot.lane.b32.xlu0 %v2575, 96
      %v2602 = vpop.permute.xlu0 %2601
      %2603 = vrot.lane.b32.xlu0 %v2576, 96
      %v2604 = vpop.permute.xlu0 %2603
      %2605 = vrot.lane.b32.xlu0 %v2577, 96
      %v2606 = vpop.permute.xlu0 %2605
      %2607 = vrot.lane.b32.xlu0 %v2578, 96
      %v2608 = vpop.permute.xlu0 %2607
      %2609 = vrot.lane.b32.xlu0 %v2579, 96
      %v2610 = vpop.permute.xlu0 %2609
      %2611 = vrot.lane.b32.xlu0 %v2580, 96
      %v2612 = vpop.permute.xlu0 %2611
      %2613 = vrot.lane.b32.xlu0 %v2581, 96
      %v2614 = vpop.permute.xlu0 %2613
      %v2615 = vsel %vm2178, %v2600, 0
      %v2617 = vsel %vm2178, %v2602, 0
      %v2619 = vsel %vm2178, %v2604, 0
      %v2621 = vsel %vm2178, %v2606, 0
      %v2623 = vsel %vm2178, %v2608, 0
      %v2625 = vsel %vm2178, %v2610, 0
      %v2627 = vsel %vm2178, %v2612, 0
      %v2629 = vsel %vm2178, %v2614, 0
      %2631 = vmatprep.subr.mxu0 0.0
      %2632 = vmatpush1.msra.mxu0 %v2587
      %2633 = vmatprep.subr.mxu0 0.0
      %2634 = vmatpush1.msra.mxu0 %v2588
      %2635 = vmatprep.subr.mxu0 0.0
      %2636 = vmatpush1.msra.mxu0 %v2589
      %2637 = vmatprep.subr.mxu0 0.0
      %2638 = vmatpush1.msra.mxu0 %v2590
      %2639 = vmatprep.subr.mxu0 0.0
      %2640 = vmatpush1.msra.mxu0 0.0
      %2641 = vmatprep.subr.mxu0 0.0
      %2642 = vmatpush1.msra.mxu0 0.0
      %2643 = vmatprep.subr.mxu0 0.0
      %2644 = vmatpush1.msra.mxu0 0.0
      %2645 = vmatprep.subr.mxu0 0.0
      %2646 = vmatpush1.msra.mxu0 0.0
      %2647 = vmatprep.subr.mxu0 0.0
      %2648 = vmatpush1.msra.mxu0 0.0
      %2649 = vmatprep.subr.mxu0 0.0
      %2650 = vmatpush1.msra.mxu0 0.0
      %2651 = vmatprep.subr.mxu0 0.0
      %2652 = vmatpush1.msra.mxu0 0.0
      %2653 = vmatprep.subr.mxu0 0.0
      %2654 = vmatpush1.msra.mxu0 0.0
      %2655 = vmatprep.subr.mxu0 0.0
      %2656 = vmatpush1.msra.mxu0 0.0
      %2657 = vmatprep.subr.mxu0 0.0
      %2658 = vmatpush1.msra.mxu0 0.0
      %2659 = vmatprep.subr.mxu0 0.0
      %2660 = vmatpush1.msra.mxu0 0.0
      %2661 = vmatprep.subr.mxu0 0.0
      %2662 = vmatpush1.msra.mxu0 0.0
      %2663 = vmatprep.subr.mxu0 0.0
      %2664 = vmatpush1.msra.mxu0 0.0
      %2665 = vmatprep.subr.mxu0 0.0
      %2666 = vmatpush1.msra.mxu0 0.0
      %2667 = vmatprep.subr.mxu0 0.0
      %2668 = vmatpush1.msra.mxu0 0.0
      %2669 = vmatprep.subr.mxu0 0.0
      %2670 = vmatpush1.msra.mxu0 0.0
      %2671 = vmatprep.subr.mxu0 0.0
      %2672 = vmatpush1.msra.mxu0 0.0
      %2673 = vmatprep.subr.mxu0 0.0
      %2674 = vmatpush1.msra.mxu0 0.0
      %2675 = vmatprep.subr.mxu0 0.0
      %2676 = vmatpush1.msra.mxu0 0.0
      %2677 = vmatprep.subr.mxu0 0.0
      %2678 = vmatpush1.msra.mxu0 0.0
      %2679 = vmatprep.subr.mxu0 0.0
      %2680 = vmatpush1.msra.mxu0 0.0
      %2681 = vmatprep.subr.mxu0 0.0
      %2682 = vmatpush1.msra.mxu0 0.0
      %2683 = vmatprep.subr.mxu0 0.0
      %2684 = vmatpush1.msra.mxu0 0.0
      %2685 = vmatprep.subr.mxu0 0.0
      %2686 = vmatpush1.msra.mxu0 0.0
      %2687 = vmatprep.subr.mxu0 0.0
      %2688 = vmatpush1.msra.mxu0 0.0
      %2689 = vmatprep.subr.mxu0 0.0
      %2690 = vmatpush1.msra.mxu0 0.0
      %2691 = vmatprep.subr.mxu0 0.0
      %2692 = vmatpush1.msra.mxu0 0.0
      %2693 = vmatprep.subr.mxu0 0.0
      %2694 = vmatpush1.msra.mxu0 0.0
      %2695 = vmatprep.mubr.f32.mxu0 0.0
      %2696 = vmatmul.mubr.f32.gmra.mrb[0].mxu0 %v2615
      %v2697 = vpop.f32.mrb[0].mxu0
      %v2698 = vadd.f32 0.0, %v2697
      %v2699 = vpop.f32.mrb[0].mxu0
      %2700 = vmatprep.mubr.f32.mxu0 0.0
      %2701 = vmatmul.mubr.f32.gmra.mrb[0].mxu0 %v2617
      %v2702 = vpop.f32.mrb[0].mxu0
      %v2703 = vadd.f32 0.0, %v2702
      %v2704 = vpop.f32.mrb[0].mxu0
      %2705 = vmatprep.mubr.f32.mxu0 0.0
      %2706 = vmatmul.mubr.f32.gmra.mrb[0].mxu0 %v2619
      %v2707 = vpop.f32.mrb[0].mxu0
      %v2708 = vadd.f32 0.0, %v2707
      %v2709 = vpop.f32.mrb[0].mxu0
      %2710 = vmatprep.mubr.f32.mxu0 0.0
      %2711 = vmatmul.mubr.f32.gmra.mrb[0].mxu0 %v2621
      %v2712 = vpop.f32.mrb[0].mxu0
      %v2713 = vadd.f32 0.0, %v2712
      %v2714 = vpop.f32.mrb[0].mxu0
      %2715 = vmatprep.mubr.f32.mxu0 0.0
      %2716 = vmatmul.mubr.f32.gmra.mrb[0].mxu0 %v2623
      %v2717 = vpop.f32.mrb[0].mxu0
      %v2718 = vadd.f32 0.0, %v2717
      %v2719 = vpop.f32.mrb[0].mxu0
      %2720 = vmatprep.mubr.f32.mxu0 0.0
      %2721 = vmatmul.mubr.f32.gmra.mrb[0].mxu0 %v2625
      %v2722 = vpop.f32.mrb[0].mxu0
      %v2723 = vadd.f32 0.0, %v2722
      %v2724 = vpop.f32.mrb[0].mxu0
      %2725 = vmatprep.mubr.f32.mxu0 0.0
      %2726 = vmatmul.mubr.f32.gmra.mrb[0].mxu0 %v2627
      %v2727 = vpop.f32.mrb[0].mxu0
      %v2728 = vadd.f32 0.0, %v2727
      %v2729 = vpop.f32.mrb[0].mxu0
      %2730 = vmatprep.mubr.f32.mxu0 0.0
      %2731 = vmatmul.mubr.f32.gmra.mrb[0].mxu0 %v2629
      %v2732 = vpop.f32.mrb[0].mxu0
      %v2733 = vadd.f32 0.0, %v2732
      %v2734 = vpop.f32.mrb[0].mxu0
      %2735 = vdwg.mxu0
      %v2736 = vsel %vm2178, %v2574, 0
      %v2738 = vsel %vm2178, %v2575, 0
      %v2740 = vsel %vm2178, %v2576, 0
      %v2742 = vsel %vm2178, %v2577, 0
      %v2744 = vsel %vm2178, %v2578, 0
      %v2746 = vsel %vm2178, %v2579, 0
      %v2748 = vsel %vm2178, %v2580, 0
      %v2750 = vsel %vm2178, %v2581, 0
      %2752 = vmatprep.subr.mxu0 0.0
      %2753 = vmatpush1.msra.mxu0 %v2582
      %2754 = vmatprep.subr.mxu0 0.0
      %2755 = vmatpush1.msra.mxu0 %v2583
      %2756 = vmatprep.subr.mxu0 0.0
      %2757 = vmatpush1.msra.mxu0 %v2584
      %2758 = vmatprep.subr.mxu0 0.0
      %2759 = vmatpush1.msra.mxu0 %v2585
      %2760 = vmatprep.subr.mxu0 0.0
      %2761 = vmatpush1.msra.mxu0 0.0
      %2762 = vmatprep.subr.mxu0 0.0
      %2763 = vmatpush1.msra.mxu0 0.0
      %2764 = vmatprep.subr.mxu0 0.0
      %2765 = vmatpush1.msra.mxu0 0.0
      %2766 = vmatprep.subr.mxu0 0.0
      %2767 = vmatpush1.msra.mxu0 0.0
      %2768 = vmatprep.subr.mxu0 0.0
      %2769 = vmatpush1.msra.mxu0 0.0
      %2770 = vmatprep.subr.mxu0 0.0
      %2771 = vmatpush1.msra.mxu0 0.0
      %2772 = vmatprep.subr.mxu0 0.0
      %2773 = vmatpush1.msra.mxu0 0.0
      %2774 = vmatprep.subr.mxu0 0.0
      %2775 = vmatpush1.msra.mxu0 0.0
      %2776 = vmatprep.subr.mxu0 0.0
      %2777 = vmatpush1.msra.mxu0 0.0
      %2778 = vmatprep.subr.mxu0 0.0
      %2779 = vmatpush1.msra.mxu0 0.0
      %2780 = vmatprep.subr.mxu0 0.0
      %2781 = vmatpush1.msra.mxu0 0.0
      %2782 = vmatprep.subr.mxu0 0.0
      %2783 = vmatpush1.msra.mxu0 0.0
      %2784 = vmatprep.subr.mxu0 0.0
      %2785 = vmatpush1.msra.mxu0 0.0
      %2786 = vmatprep.subr.mxu0 0.0
      %2787 = vmatpush1.msra.mxu0 0.0
      %2788 = vmatprep.subr.mxu0 0.0
      %2789 = vmatpush1.msra.mxu0 0.0
      %2790 = vmatprep.subr.mxu0 0.0
      %2791 = vmatpush1.msra.mxu0 0.0
      %2792 = vmatprep.subr.mxu0 0.0
      %2793 = vmatpush1.msra.mxu0 0.0
      %2794 = vmatprep.subr.mxu0 0.0
      %2795 = vmatpush1.msra.mxu0 0.0
      %2796 = vmatprep.subr.mxu0 0.0
      %2797 = vmatpush1.msra.mxu0 0.0
      %2798 = vmatprep.subr.mxu0 0.0
      %2799 = vmatpush1.msra.mxu0 0.0
      %2800 = vmatprep.subr.mxu0 0.0
      %2801 = vmatpush1.msra.mxu0 0.0
      %2802 = vmatprep.subr.mxu0 0.0
      %2803 = vmatpush1.msra.mxu0 0.0
      %2804 = vmatprep.subr.mxu0 0.0
      %2805 = vmatpush1.msra.mxu0 0.0
      %2806 = vmatprep.subr.mxu0 0.0
      %2807 = vmatpush1.msra.mxu0 0.0
      %2808 = vmatprep.subr.mxu0 0.0
      %2809 = vmatpush1.msra.mxu0 0.0
      %2810 = vmatprep.subr.mxu0 0.0
      %2811 = vmatpush1.msra.mxu0 0.0
      %2812 = vmatprep.subr.mxu0 0.0
      %2813 = vmatpush1.msra.mxu0 0.0
      %2814 = vmatprep.subr.mxu0 0.0
      %2815 = vmatpush1.msra.mxu0 0.0
      %2816 = vmatprep.mubr.f32.mxu0 0.0
      %2817 = vmatmul.mubr.f32.gmra.mrb[0].mxu0 %v2736
      %v2818 = vpop.f32.mrb[0].mxu0
      %v2819 = vadd.f32 %v2698, %v2818
      %v2820 = vpop.f32.mrb[0].mxu0
      %2821 = vmatprep.mubr.f32.mxu0 0.0
      %2822 = vmatmul.mubr.f32.gmra.mrb[0].mxu0 %v2738
      %v2823 = vpop.f32.mrb[0].mxu0
      %v2824 = vadd.f32 %v2703, %v2823
      %v2825 = vpop.f32.mrb[0].mxu0
      %2826 = vmatprep.mubr.f32.mxu0 0.0
      %2827 = vmatmul.mubr.f32.gmra.mrb[0].mxu0 %v2740
      %v2828 = vpop.f32.mrb[0].mxu0
      %v2829 = vadd.f32 %v2708, %v2828
      %v2830 = vpop.f32.mrb[0].mxu0
      %2831 = vmatprep.mubr.f32.mxu0 0.0
      %2832 = vmatmul.mubr.f32.gmra.mrb[0].mxu0 %v2742
      %v2833 = vpop.f32.mrb[0].mxu0
      %v2834 = vadd.f32 %v2713, %v2833
      %v2835 = vpop.f32.mrb[0].mxu0
      %2836 = vmatprep.mubr.f32.mxu0 0.0
      %2837 = vmatmul.mubr.f32.gmra.mrb[0].mxu0 %v2744
      %v2838 = vpop.f32.mrb[0].mxu0
      %v2839 = vadd.f32 %v2718, %v2838
      %v2840 = vpop.f32.mrb[0].mxu0
      %2841 = vmatprep.mubr.f32.mxu0 0.0
      %2842 = vmatmul.mubr.f32.gmra.mrb[0].mxu0 %v2746
      %v2843 = vpop.f32.mrb[0].mxu0
      %v2844 = vadd.f32 %v2723, %v2843
      %v2845 = vpop.f32.mrb[0].mxu0
      %2846 = vmatprep.mubr.f32.mxu0 0.0
      %2847 = vmatmul.mubr.f32.gmra.mrb[0].mxu0 %v2748
      %v2848 = vpop.f32.mrb[0].mxu0
      %v2849 = vadd.f32 %v2728, %v2848
      %v2850 = vpop.f32.mrb[0].mxu0
      %2851 = vmatprep.mubr.f32.mxu0 0.0
      %2852 = vmatmul.mubr.f32.gmra.mrb[0].mxu0 %v2750
      %v2853 = vpop.f32.mrb[0].mxu0
      %v2854 = vadd.f32 %v2733, %v2853
      %v2855 = vpop.f32.mrb[0].mxu0
      %2856 = vdwg.mxu0
      %s2857 = scalar_lea.vmem %s3, 64
      %v2858 = vld [vmem:[%s2857] sm:$0xff]
      %v2859 = vld [vmem:[%s2857 + $0x8] sm:$0xff]
      %v2860 = vld [vmem:[%s2857 + $0x10] sm:$0xff]
      %v2861 = vld [vmem:[%s2857 + $0x18] sm:$0xff]
      %2862 = vrot.lane.b32.xlu0 %v2574, 64
      %v2863 = vpop.permute.xlu0 %2862
      %2864 = vrot.lane.b32.xlu0 %v2575, 64
      %v2865 = vpop.permute.xlu0 %2864
      %2866 = vrot.lane.b32.xlu0 %v2576, 64
      %v2867 = vpop.permute.xlu0 %2866
      %2868 = vrot.lane.b32.xlu0 %v2577, 64
      %v2869 = vpop.permute.xlu0 %2868
      %2870 = vrot.lane.b32.xlu0 %v2578, 64
      %v2871 = vpop.permute.xlu0 %2870
      %2872 = vrot.lane.b32.xlu0 %v2579, 64
      %v2873 = vpop.permute.xlu0 %2872
      %2874 = vrot.lane.b32.xlu0 %v2580, 64
      %v2875 = vpop.permute.xlu0 %2874
      %2876 = vrot.lane.b32.xlu0 %v2581, 64
      %v2877 = vpop.permute.xlu0 %2876
      %v2878 = vsel %vm2178, %v2863, 0
      %v2880 = vsel %vm2178, %v2865, 0
      %v2882 = vsel %vm2178, %v2867, 0
      %v2884 = vsel %vm2178, %v2869, 0
      %v2886 = vsel %vm2178, %v2871, 0
      %v2888 = vsel %vm2178, %v2873, 0
      %v2890 = vsel %vm2178, %v2875, 0
      %v2892 = vsel %vm2178, %v2877, 0
      %2894 = vmatprep.subr.mxu0 0.0
      %2895 = vmatpush1.msra.mxu0 %v2858
      %2896 = vmatprep.subr.mxu0 0.0
      %2897 = vmatpush1.msra.mxu0 %v2859
      %2898 = vmatprep.subr.mxu0 0.0
      %2899 = vmatpush1.msra.mxu0 %v2860
      %2900 = vmatprep.subr.mxu0 0.0
      %2901 = vmatpush1.msra.mxu0 %v2861
      %2902 = vmatprep.subr.mxu0 0.0
      %2903 = vmatpush1.msra.mxu0 0.0
      %2904 = vmatprep.subr.mxu0 0.0
      %2905 = vmatpush1.msra.mxu0 0.0
      %2906 = vmatprep.subr.mxu0 0.0
      %2907 = vmatpush1.msra.mxu0 0.0
      %2908 = vmatprep.subr.mxu0 0.0
      %2909 = vmatpush1.msra.mxu0 0.0
      %2910 = vmatprep.subr.mxu0 0.0
      %2911 = vmatpush1.msra.mxu0 0.0
      %2912 = vmatprep.subr.mxu0 0.0
      %2913 = vmatpush1.msra.mxu0 0.0
      %2914 = vmatprep.subr.mxu0 0.0
      %2915 = vmatpush1.msra.mxu0 0.0
      %2916 = vmatprep.subr.mxu0 0.0
      %2917 = vmatpush1.msra.mxu0 0.0
      %2918 = vmatprep.subr.mxu0 0.0
      %2919 = vmatpush1.msra.mxu0 0.0
      %2920 = vmatprep.subr.mxu0 0.0
      %2921 = vmatpush1.msra.mxu0 0.0
      %2922 = vmatprep.subr.mxu0 0.0
      %2923 = vmatpush1.msra.mxu0 0.0
      %2924 = vmatprep.subr.mxu0 0.0
      %2925 = vmatpush1.msra.mxu0 0.0
      %2926 = vmatprep.subr.mxu0 0.0
      %2927 = vmatpush1.msra.mxu0 0.0
      %2928 = vmatprep.subr.mxu0 0.0
      %2929 = vmatpush1.msra.mxu0 0.0
      %2930 = vmatprep.subr.mxu0 0.0
      %2931 = vmatpush1.msra.mxu0 0.0
      %2932 = vmatprep.subr.mxu0 0.0
      %2933 = vmatpush1.msra.mxu0 0.0
      %2934 = vmatprep.subr.mxu0 0.0
      %2935 = vmatpush1.msra.mxu0 0.0
      %2936 = vmatprep.subr.mxu0 0.0
      %2937 = vmatpush1.msra.mxu0 0.0
      %2938 = vmatprep.subr.mxu0 0.0
      %2939 = vmatpush1.msra.mxu0 0.0
      %2940 = vmatprep.subr.mxu0 0.0
      %2941 = vmatpush1.msra.mxu0 0.0
      %2942 = vmatprep.subr.mxu0 0.0
      %2943 = vmatpush1.msra.mxu0 0.0
      %2944 = vmatprep.subr.mxu0 0.0
      %2945 = vmatpush1.msra.mxu0 0.0
      %2946 = vmatprep.subr.mxu0 0.0
      %2947 = vmatpush1.msra.mxu0 0.0
      %2948 = vmatprep.subr.mxu0 0.0
      %2949 = vmatpush1.msra.mxu0 0.0
      %2950 = vmatprep.subr.mxu0 0.0
      %2951 = vmatpush1.msra.mxu0 0.0
      %2952 = vmatprep.subr.mxu0 0.0
      %2953 = vmatpush1.msra.mxu0 0.0
      %2954 = vmatprep.subr.mxu0 0.0
      %2955 = vmatpush1.msra.mxu0 0.0
      %2956 = vmatprep.subr.mxu0 0.0
      %2957 = vmatpush1.msra.mxu0 0.0
      %2958 = vmatprep.mubr.f32.mxu0 0.0
      %2959 = vmatmul.mubr.f32.gmra.mrb[0].mxu0 %v2878
      %v2960 = vpop.f32.mrb[0].mxu0
      %v2961 = vadd.f32 0.0, %v2960
      %v2962 = vpop.f32.mrb[0].mxu0
      %2963 = vmatprep.mubr.f32.mxu0 0.0
      %2964 = vmatmul.mubr.f32.gmra.mrb[0].mxu0 %v2880
      %v2965 = vpop.f32.mrb[0].mxu0
      %v2966 = vadd.f32 0.0, %v2965
      %v2967 = vpop.f32.mrb[0].mxu0
      %2968 = vmatprep.mubr.f32.mxu0 0.0
      %2969 = vmatmul.mubr.f32.gmra.mrb[0].mxu0 %v2882
      %v2970 = vpop.f32.mrb[0].mxu0
      %v2971 = vadd.f32 0.0, %v2970
      %v2972 = vpop.f32.mrb[0].mxu0
      %2973 = vmatprep.mubr.f32.mxu0 0.0
      %2974 = vmatmul.mubr.f32.gmra.mrb[0].mxu0 %v2884
      %v2975 = vpop.f32.mrb[0].mxu0
      %v2976 = vadd.f32 0.0, %v2975
      %v2977 = vpop.f32.mrb[0].mxu0
      %2978 = vmatprep.mubr.f32.mxu0 0.0
      %2979 = vmatmul.mubr.f32.gmra.mrb[0].mxu0 %v2886
      %v2980 = vpop.f32.mrb[0].mxu0
      %v2981 = vadd.f32 0.0, %v2980
      %v2982 = vpop.f32.mrb[0].mxu0
      %2983 = vmatprep.mubr.f32.mxu0 0.0
      %2984 = vmatmul.mubr.f32.gmra.mrb[0].mxu0 %v2888
      %v2985 = vpop.f32.mrb[0].mxu0
      %v2986 = vadd.f32 0.0, %v2985
      %v2987 = vpop.f32.mrb[0].mxu0
      %2988 = vmatprep.mubr.f32.mxu0 0.0
      %2989 = vmatmul.mubr.f32.gmra.mrb[0].mxu0 %v2890
      %v2990 = vpop.f32.mrb[0].mxu0
      %v2991 = vadd.f32 0.0, %v2990
      %v2992 = vpop.f32.mrb[0].mxu0
      %2993 = vmatprep.mubr.f32.mxu0 0.0
      %2994 = vmatmul.mubr.f32.gmra.mrb[0].mxu0 %v2892
      %v2995 = vpop.f32.mrb[0].mxu0
      %v2996 = vadd.f32 0.0, %v2995
      %v2997 = vpop.f32.mrb[0].mxu0
      %2998 = vdwg.mxu0
      %v2999 = vadd.f32 %v2819, %v2961
      %v3000 = vadd.f32 %v2824, %v2966
      %v3001 = vadd.f32 %v2829, %v2971
      %v3002 = vadd.f32 %v2834, %v2976
      %v3003 = vadd.f32 %v2839, %v2981
      %v3004 = vadd.f32 %v2844, %v2986
      %v3005 = vadd.f32 %v2849, %v2991
      %v3006 = vadd.f32 %v2854, %v2996
      %v3007 = vld [vmem:[%s2086] sm:$0xff]
      %v3008 = vld [vmem:[%s2086 + $0x40] sm:$0xff]
      %v3009 = vld [vmem:[%s2086 + $0x80] sm:$0xff]
      %v3010 = vld [vmem:[%s2086 + $0xc0] sm:$0xff]
      %v3011 = vld [vmem:[%s2086 + $0x100] sm:$0xff]
      %v3012 = vld [vmem:[%s2086 + $0x140] sm:$0xff]
      %v3013 = vld [vmem:[%s2086 + $0x180] sm:$0xff]
      %v3014 = vld [vmem:[%s2086 + $0x1c0] sm:$0xff]
      %s3015 = scalar_lea.vmem %s3, 96
      %v3016 = vld [vmem:[%s3015] sm:$0xff]
      %v3017 = vld [vmem:[%s3015 + $0x8] sm:$0xff]
      %v3018 = vld [vmem:[%s3015 + $0x10] sm:$0xff]
      %v3019 = vld [vmem:[%s3015 + $0x18] sm:$0xff]
      %v3021 = vsel %vm2178, %v3007, 0
      %v3024 = vsel %vm2178, %v3008, 0
      %v3027 = vsel %vm2178, %v3009, 0
      %v3030 = vsel %vm2178, %v3010, 0
      %v3033 = vsel %vm2178, %v3011, 0
      %v3036 = vsel %vm2178, %v3012, 0
      %v3039 = vsel %vm2178, %v3013, 0
      %v3042 = vsel %vm2178, %v3014, 0
      %3044 = vmatprep.subr.mxu0 0.0
      %3045 = vmatpush1.msra.mxu0 %v3016
      %3046 = vmatprep.subr.mxu0 0.0
      %3047 = vmatpush1.msra.mxu0 %v3017
      %3048 = vmatprep.subr.mxu0 0.0
      %3049 = vmatpush1.msra.mxu0 %v3018
      %3050 = vmatprep.subr.mxu0 0.0
      %3051 = vmatpush1.msra.mxu0 %v3019
      %3052 = vmatprep.subr.mxu0 0.0
      %3053 = vmatpush1.msra.mxu0 0.0
      %3054 = vmatprep.subr.mxu0 0.0
      %3055 = vmatpush1.msra.mxu0 0.0
      %3056 = vmatprep.subr.mxu0 0.0
      %3057 = vmatpush1.msra.mxu0 0.0
      %3058 = vmatprep.subr.mxu0 0.0
      %3059 = vmatpush1.msra.mxu0 0.0
      %3060 = vmatprep.subr.mxu0 0.0
      %3061 = vmatpush1.msra.mxu0 0.0
      %3062 = vmatprep.subr.mxu0 0.0
      %3063 = vmatpush1.msra.mxu0 0.0
      %3064 = vmatprep.subr.mxu0 0.0
      %3065 = vmatpush1.msra.mxu0 0.0
      %3066 = vmatprep.subr.mxu0 0.0
      %3067 = vmatpush1.msra.mxu0 0.0
      %3068 = vmatprep.subr.mxu0 0.0
      %3069 = vmatpush1.msra.mxu0 0.0
      %3070 = vmatprep.subr.mxu0 0.0
      %3071 = vmatpush1.msra.mxu0 0.0
      %3072 = vmatprep.subr.mxu0 0.0
      %3073 = vmatpush1.msra.mxu0 0.0
      %3074 = vmatprep.subr.mxu0 0.0
      %3075 = vmatpush1.msra.mxu0 0.0
      %3076 = vmatprep.subr.mxu0 0.0
      %3077 = vmatpush1.msra.mxu0 0.0
      %3078 = vmatprep.subr.mxu0 0.0
      %3079 = vmatpush1.msra.mxu0 0.0
      %3080 = vmatprep.subr.mxu0 0.0
      %3081 = vmatpush1.msra.mxu0 0.0
      %3082 = vmatprep.subr.mxu0 0.0
      %3083 = vmatpush1.msra.mxu0 0.0
      %3084 = vmatprep.subr.mxu0 0.0
      %3085 = vmatpush1.msra.mxu0 0.0
      %3086 = vmatprep.subr.mxu0 0.0
      %3087 = vmatpush1.msra.mxu0 0.0
      %3088 = vmatprep.subr.mxu0 0.0
      %3089 = vmatpush1.msra.mxu0 0.0
      %3090 = vmatprep.subr.mxu0 0.0
      %3091 = vmatpush1.msra.mxu0 0.0
      %3092 = vmatprep.subr.mxu0 0.0
      %3093 = vmatpush1.msra.mxu0 0.0
      %3094 = vmatprep.subr.mxu0 0.0
      %3095 = vmatpush1.msra.mxu0 0.0
      %3096 = vmatprep.subr.mxu0 0.0
      %3097 = vmatpush1.msra.mxu0 0.0
      %3098 = vmatprep.subr.mxu0 0.0
      %3099 = vmatpush1.msra.mxu0 0.0
      %3100 = vmatprep.subr.mxu0 0.0
      %3101 = vmatpush1.msra.mxu0 0.0
      %3102 = vmatprep.subr.mxu0 0.0
      %3103 = vmatpush1.msra.mxu0 0.0
      %3104 = vmatprep.subr.mxu0 0.0
      %3105 = vmatpush1.msra.mxu0 0.0
      %3106 = vmatprep.subr.mxu0 0.0
      %3107 = vmatpush1.msra.mxu0 0.0
      %3108 = vmatprep.mubr.f32.mxu0 0.0
      %3109 = vmatmul.mubr.f32.gmra.mrb[0].mxu0 %v3021
      %v3110 = vpop.f32.mrb[0].mxu0
      %v3111 = vadd.f32 0.0, %v3110
      %v3112 = vpop.f32.mrb[0].mxu0
      %3113 = vmatprep.mubr.f32.mxu0 0.0
      %3114 = vmatmul.mubr.f32.gmra.mrb[0].mxu0 %v3024
      %v3115 = vpop.f32.mrb[0].mxu0
      %v3116 = vadd.f32 0.0, %v3115
      %v3117 = vpop.f32.mrb[0].mxu0
      %3118 = vmatprep.mubr.f32.mxu0 0.0
      %3119 = vmatmul.mubr.f32.gmra.mrb[0].mxu0 %v3027
      %v3120 = vpop.f32.mrb[0].mxu0
      %v3121 = vadd.f32 0.0, %v3120
      %v3122 = vpop.f32.mrb[0].mxu0
      %3123 = vmatprep.mubr.f32.mxu0 0.0
      %3124 = vmatmul.mubr.f32.gmra.mrb[0].mxu0 %v3030
      %v3125 = vpop.f32.mrb[0].mxu0
      %v3126 = vadd.f32 0.0, %v3125
      %v3127 = vpop.f32.mrb[0].mxu0
      %3128 = vmatprep.mubr.f32.mxu0 0.0
      %3129 = vmatmul.mubr.f32.gmra.mrb[0].mxu0 %v3033
      %v3130 = vpop.f32.mrb[0].mxu0
      %v3131 = vadd.f32 0.0, %v3130
      %v3132 = vpop.f32.mrb[0].mxu0
      %3133 = vmatprep.mubr.f32.mxu0 0.0
      %3134 = vmatmul.mubr.f32.gmra.mrb[0].mxu0 %v3036
      %v3135 = vpop.f32.mrb[0].mxu0
      %v3136 = vadd.f32 0.0, %v3135
      %v3137 = vpop.f32.mrb[0].mxu0
      %3138 = vmatprep.mubr.f32.mxu0 0.0
      %3139 = vmatmul.mubr.f32.gmra.mrb[0].mxu0 %v3039
      %v3140 = vpop.f32.mrb[0].mxu0
      %v3141 = vadd.f32 0.0, %v3140
      %v3142 = vpop.f32.mrb[0].mxu0
      %3143 = vmatprep.mubr.f32.mxu0 0.0
      %3144 = vmatmul.mubr.f32.gmra.mrb[0].mxu0 %v3042
      %v3145 = vpop.f32.mrb[0].mxu0
      %v3146 = vadd.f32 0.0, %v3145
      %v3147 = vpop.f32.mrb[0].mxu0
      %3148 = vdwg.mxu0
      %v3149 = vadd.f32 %v2999, %v3111
      %v3150 = vadd.f32 %v3000, %v3116
      %v3151 = vadd.f32 %v3001, %v3121
      %v3152 = vadd.f32 %v3002, %v3126
      %v3153 = vadd.f32 %v3003, %v3131
      %v3154 = vadd.f32 %v3004, %v3136
      %v3155 = vadd.f32 %v3005, %v3141
      %v3156 = vadd.f32 %v3006, %v3146
      %s3157 = scalar_lea.vmem %s3, 128
      %v3158 = vld [vmem:[%s3157] sm:$0xff]
      %v3159 = vld [vmem:[%s3157 + $0x8] sm:$0xff]
      %v3160 = vld [vmem:[%s3157 + $0x10] sm:$0xff]
      %v3161 = vld [vmem:[%s3157 + $0x18] sm:$0xff]
      %3162 = vrot.lane.b32.xlu0 %v3007, 96
      %v3163 = vpop.permute.xlu0 %3162
      %3164 = vrot.lane.b32.xlu0 %v3008, 96
      %v3165 = vpop.permute.xlu0 %3164
      %3166 = vrot.lane.b32.xlu0 %v3009, 96
      %v3167 = vpop.permute.xlu0 %3166
      %3168 = vrot.lane.b32.xlu0 %v3010, 96
      %v3169 = vpop.permute.xlu0 %3168
      %3170 = vrot.lane.b32.xlu0 %v3011, 96
      %v3171 = vpop.permute.xlu0 %3170
      %3172 = vrot.lane.b32.xlu0 %v3012, 96
      %v3173 = vpop.permute.xlu0 %3172
      %3174 = vrot.lane.b32.xlu0 %v3013, 96
      %v3175 = vpop.permute.xlu0 %3174
      %3176 = vrot.lane.b32.xlu0 %v3014, 96
      %v3177 = vpop.permute.xlu0 %3176
      %v3178 = vsel %vm2178, %v3163, 0
      %v3180 = vsel %vm2178, %v3165, 0
      %v3182 = vsel %vm2178, %v3167, 0
      %v3184 = vsel %vm2178, %v3169, 0
      %v3186 = vsel %vm2178, %v3171, 0
      %v3188 = vsel %vm2178, %v3173, 0
      %v3190 = vsel %vm2178, %v3175, 0
      %v3192 = vsel %vm2178, %v3177, 0
      %3194 = vmatprep.subr.mxu0 0.0
      %3195 = vmatpush1.msra.mxu0 %v3158
      %3196 = vmatprep.subr.mxu0 0.0
      %3197 = vmatpush1.msra.mxu0 %v3159
      %3198 = vmatprep.subr.mxu0 0.0
      %3199 = vmatpush1.msra.mxu0 %v3160
      %3200 = vmatprep.subr.mxu0 0.0
      %3201 = vmatpush1.msra.mxu0 %v3161
      %3202 = vmatprep.subr.mxu0 0.0
      %3203 = vmatpush1.msra.mxu0 0.0
      %3204 = vmatprep.subr.mxu0 0.0
      %3205 = vmatpush1.msra.mxu0 0.0
      %3206 = vmatprep.subr.mxu0 0.0
      %3207 = vmatpush1.msra.mxu0 0.0
      %3208 = vmatprep.subr.mxu0 0.0
      %3209 = vmatpush1.msra.mxu0 0.0
      %3210 = vmatprep.subr.mxu0 0.0
      %3211 = vmatpush1.msra.mxu0 0.0
      %3212 = vmatprep.subr.mxu0 0.0
      %3213 = vmatpush1.msra.mxu0 0.0
      %3214 = vmatprep.subr.mxu0 0.0
      %3215 = vmatpush1.msra.mxu0 0.0
      %3216 = vmatprep.subr.mxu0 0.0
      %3217 = vmatpush1.msra.mxu0 0.0
      %3218 = vmatprep.subr.mxu0 0.0
      %3219 = vmatpush1.msra.mxu0 0.0
      %3220 = vmatprep.subr.mxu0 0.0
      %3221 = vmatpush1.msra.mxu0 0.0
      %3222 = vmatprep.subr.mxu0 0.0
      %3223 = vmatpush1.msra.mxu0 0.0
      %3224 = vmatprep.subr.mxu0 0.0
      %3225 = vmatpush1.msra.mxu0 0.0
      %3226 = vmatprep.subr.mxu0 0.0
      %3227 = vmatpush1.msra.mxu0 0.0
      %3228 = vmatprep.subr.mxu0 0.0
      %3229 = vmatpush1.msra.mxu0 0.0
      %3230 = vmatprep.subr.mxu0 0.0
      %3231 = vmatpush1.msra.mxu0 0.0
      %3232 = vmatprep.subr.mxu0 0.0
      %3233 = vmatpush1.msra.mxu0 0.0
      %3234 = vmatprep.subr.mxu0 0.0
      %3235 = vmatpush1.msra.mxu0 0.0
      %3236 = vmatprep.subr.mxu0 0.0
      %3237 = vmatpush1.msra.mxu0 0.0
      %3238 = vmatprep.subr.mxu0 0.0
      %3239 = vmatpush1.msra.mxu0 0.0
      %3240 = vmatprep.subr.mxu0 0.0
      %3241 = vmatpush1.msra.mxu0 0.0
      %3242 = vmatprep.subr.mxu0 0.0
      %3243 = vmatpush1.msra.mxu0 0.0
      %3244 = vmatprep.subr.mxu0 0.0
      %3245 = vmatpush1.msra.mxu0 0.0
      %3246 = vmatprep.subr.mxu0 0.0
      %3247 = vmatpush1.msra.mxu0 0.0
      %3248 = vmatprep.subr.mxu0 0.0
      %3249 = vmatpush1.msra.mxu0 0.0
      %3250 = vmatprep.subr.mxu0 0.0
      %3251 = vmatpush1.msra.mxu0 0.0
      %3252 = vmatprep.subr.mxu0 0.0
      %3253 = vmatpush1.msra.mxu0 0.0
      %3254 = vmatprep.subr.mxu0 0.0
      %3255 = vmatpush1.msra.mxu0 0.0
      %3256 = vmatprep.subr.mxu0 0.0
      %3257 = vmatpush1.msra.mxu0 0.0
      %3258 = vmatprep.mubr.f32.mxu0 0.0
      %3259 = vmatmul.mubr.f32.gmra.mrb[0].mxu0 %v3178
      %v3260 = vpop.f32.mrb[0].mxu0
      %v3261 = vadd.f32 0.0, %v3260
      %v3262 = vpop.f32.mrb[0].mxu0
      %3263 = vmatprep.mubr.f32.mxu0 0.0
      %3264 = vmatmul.mubr.f32.gmra.mrb[0].mxu0 %v3180
      %v3265 = vpop.f32.mrb[0].mxu0
      %v3266 = vadd.f32 0.0, %v3265
      %v3267 = vpop.f32.mrb[0].mxu0
      %3268 = vmatprep.mubr.f32.mxu0 0.0
      %3269 = vmatmul.mubr.f32.gmra.mrb[0].mxu0 %v3182
      %v3270 = vpop.f32.mrb[0].mxu0
      %v3271 = vadd.f32 0.0, %v3270
      %v3272 = vpop.f32.mrb[0].mxu0
      %3273 = vmatprep.mubr.f32.mxu0 0.0
      %3274 = vmatmul.mubr.f32.gmra.mrb[0].mxu0 %v3184
      %v3275 = vpop.f32.mrb[0].mxu0
      %v3276 = vadd.f32 0.0, %v3275
      %v3277 = vpop.f32.mrb[0].mxu0
      %3278 = vmatprep.mubr.f32.mxu0 0.0
      %3279 = vmatmul.mubr.f32.gmra.mrb[0].mxu0 %v3186
      %v3280 = vpop.f32.mrb[0].mxu0
      %v3281 = vadd.f32 0.0, %v3280
      %v3282 = vpop.f32.mrb[0].mxu0
      %3283 = vmatprep.mubr.f32.mxu0 0.0
      %3284 = vmatmul.mubr.f32.gmra.mrb[0].mxu0 %v3188
      %v3285 = vpop.f32.mrb[0].mxu0
      %v3286 = vadd.f32 0.0, %v3285
      %v3287 = vpop.f32.mrb[0].mxu0
      %3288 = vmatprep.mubr.f32.mxu0 0.0
      %3289 = vmatmul.mubr.f32.gmra.mrb[0].mxu0 %v3190
      %v3290 = vpop.f32.mrb[0].mxu0
      %v3291 = vadd.f32 0.0, %v3290
      %v3292 = vpop.f32.mrb[0].mxu0
      %3293 = vmatprep.mubr.f32.mxu0 0.0
      %3294 = vmatmul.mubr.f32.gmra.mrb[0].mxu0 %v3192
      %v3295 = vpop.f32.mrb[0].mxu0
      %v3296 = vadd.f32 0.0, %v3295
      %v3297 = vpop.f32.mrb[0].mxu0
      %3298 = vdwg.mxu0
      %v3299 = vadd.f32 %v3149, %v3261
      %v3300 = vadd.f32 %v3150, %v3266
      %v3301 = vadd.f32 %v3151, %v3271
      %v3302 = vadd.f32 %v3152, %v3276
      %v3303 = vadd.f32 %v3153, %v3281
      %v3304 = vadd.f32 %v3154, %v3286
      %v3305 = vadd.f32 %v3155, %v3291
      %v3306 = vadd.f32 %v3156, %v3296
      %s3307 = scalar_lea.vmem %s3, 160
      %v3308 = vld [vmem:[%s3307] sm:$0xff]
      %v3309 = vld [vmem:[%s3307 + $0x8] sm:$0xff]
      %v3310 = vld [vmem:[%s3307 + $0x10] sm:$0xff]
      %v3311 = vld [vmem:[%s3307 + $0x18] sm:$0xff]
      %3312 = vrot.lane.b32.xlu0 %v3007, 64
      %v3313 = vpop.permute.xlu0 %3312
      %3314 = vrot.lane.b32.xlu0 %v3008, 64
      %v3315 = vpop.permute.xlu0 %3314
      %3316 = vrot.lane.b32.xlu0 %v3009, 64
      %v3317 = vpop.permute.xlu0 %3316
      %3318 = vrot.lane.b32.xlu0 %v3010, 64
      %v3319 = vpop.permute.xlu0 %3318
      %3320 = vrot.lane.b32.xlu0 %v3011, 64
      %v3321 = vpop.permute.xlu0 %3320
      %3322 = vrot.lane.b32.xlu0 %v3012, 64
      %v3323 = vpop.permute.xlu0 %3322
      %3324 = vrot.lane.b32.xlu0 %v3013, 64
      %v3325 = vpop.permute.xlu0 %3324
      %3326 = vrot.lane.b32.xlu0 %v3014, 64
      %v3327 = vpop.permute.xlu0 %3326
      %v3328 = vsel %vm2178, %v3313, 0
      %v3330 = vsel %vm2178, %v3315, 0
      %v3332 = vsel %vm2178, %v3317, 0
      %v3334 = vsel %vm2178, %v3319, 0
      %v3336 = vsel %vm2178, %v3321, 0
      %v3338 = vsel %vm2178, %v3323, 0
      %v3340 = vsel %vm2178, %v3325, 0
      %v3342 = vsel %vm2178, %v3327, 0
      %3344 = vmatprep.subr.mxu0 0.0
      %3345 = vmatpush1.msra.mxu0 %v3308
      %3346 = vmatprep.subr.mxu0 0.0
      %3347 = vmatpush1.msra.mxu0 %v3309
      %3348 = vmatprep.subr.mxu0 0.0
      %3349 = vmatpush1.msra.mxu0 %v3310
      %3350 = vmatprep.subr.mxu0 0.0
      %3351 = vmatpush1.msra.mxu0 %v3311
      %3352 = vmatprep.subr.mxu0 0.0
      %3353 = vmatpush1.msra.mxu0 0.0
      %3354 = vmatprep.subr.mxu0 0.0
      %3355 = vmatpush1.msra.mxu0 0.0
      %3356 = vmatprep.subr.mxu0 0.0
      %3357 = vmatpush1.msra.mxu0 0.0
      %3358 = vmatprep.subr.mxu0 0.0
      %3359 = vmatpush1.msra.mxu0 0.0
      %3360 = vmatprep.subr.mxu0 0.0
      %3361 = vmatpush1.msra.mxu0 0.0
      %3362 = vmatprep.subr.mxu0 0.0
      %3363 = vmatpush1.msra.mxu0 0.0
      %3364 = vmatprep.subr.mxu0 0.0
      %3365 = vmatpush1.msra.mxu0 0.0
      %3366 = vmatprep.subr.mxu0 0.0
      %3367 = vmatpush1.msra.mxu0 0.0
      %3368 = vmatprep.subr.mxu0 0.0
      %3369 = vmatpush1.msra.mxu0 0.0
      %3370 = vmatprep.subr.mxu0 0.0
      %3371 = vmatpush1.msra.mxu0 0.0
      %3372 = vmatprep.subr.mxu0 0.0
      %3373 = vmatpush1.msra.mxu0 0.0
      %3374 = vmatprep.subr.mxu0 0.0
      %3375 = vmatpush1.msra.mxu0 0.0
      %3376 = vmatprep.subr.mxu0 0.0
      %3377 = vmatpush1.msra.mxu0 0.0
      %3378 = vmatprep.subr.mxu0 0.0
      %3379 = vmatpush1.msra.mxu0 0.0
      %3380 = vmatprep.subr.mxu0 0.0
      %3381 = vmatpush1.msra.mxu0 0.0
      %3382 = vmatprep.subr.mxu0 0.0
      %3383 = vmatpush1.msra.mxu0 0.0
      %3384 = vmatprep.subr.mxu0 0.0
      %3385 = vmatpush1.msra.mxu0 0.0
      %3386 = vmatprep.subr.mxu0 0.0
      %3387 = vmatpush1.msra.mxu0 0.0
      %3388 = vmatprep.subr.mxu0 0.0
      %3389 = vmatpush1.msra.mxu0 0.0
      %3390 = vmatprep.subr.mxu0 0.0
      %3391 = vmatpush1.msra.mxu0 0.0
      %3392 = vmatprep.subr.mxu0 0.0
      %3393 = vmatpush1.msra.mxu0 0.0
      %3394 = vmatprep.subr.mxu0 0.0
      %3395 = vmatpush1.msra.mxu0 0.0
      %3396 = vmatprep.subr.mxu0 0.0
      %3397 = vmatpush1.msra.mxu0 0.0
      %3398 = vmatprep.subr.mxu0 0.0
      %3399 = vmatpush1.msra.mxu0 0.0
      %3400 = vmatprep.subr.mxu0 0.0
      %3401 = vmatpush1.msra.mxu0 0.0
      %3402 = vmatprep.subr.mxu0 0.0
      %3403 = vmatpush1.msra.mxu0 0.0
      %3404 = vmatprep.subr.mxu0 0.0
      %3405 = vmatpush1.msra.mxu0 0.0
      %3406 = vmatprep.subr.mxu0 0.0
      %3407 = vmatpush1.msra.mxu0 0.0
      %3408 = vmatprep.mubr.f32.mxu0 0.0
      %3409 = vmatmul.mubr.f32.gmra.mrb[0].mxu0 %v3328
      %v3410 = vpop.f32.mrb[0].mxu0
      %v3411 = vadd.f32 0.0, %v3410
      %v3412 = vpop.f32.mrb[0].mxu0
      %3413 = vmatprep.mubr.f32.mxu0 0.0
      %3414 = vmatmul.mubr.f32.gmra.mrb[0].mxu0 %v3330
      %v3415 = vpop.f32.mrb[0].mxu0
      %v3416 = vadd.f32 0.0, %v3415
      %v3417 = vpop.f32.mrb[0].mxu0
      %3418 = vmatprep.mubr.f32.mxu0 0.0
      %3419 = vmatmul.mubr.f32.gmra.mrb[0].mxu0 %v3332
      %v3420 = vpop.f32.mrb[0].mxu0
      %v3421 = vadd.f32 0.0, %v3420
      %v3422 = vpop.f32.mrb[0].mxu0
      %3423 = vmatprep.mubr.f32.mxu0 0.0
      %3424 = vmatmul.mubr.f32.gmra.mrb[0].mxu0 %v3334
      %v3425 = vpop.f32.mrb[0].mxu0
      %v3426 = vadd.f32 0.0, %v3425
      %v3427 = vpop.f32.mrb[0].mxu0
      %3428 = vmatprep.mubr.f32.mxu0 0.0
      %3429 = vmatmul.mubr.f32.gmra.mrb[0].mxu0 %v3336
      %v3430 = vpop.f32.mrb[0].mxu0
      %v3431 = vadd.f32 0.0, %v3430
      %v3432 = vpop.f32.mrb[0].mxu0
      %3433 = vmatprep.mubr.f32.mxu0 0.0
      %3434 = vmatmul.mubr.f32.gmra.mrb[0].mxu0 %v3338
      %v3435 = vpop.f32.mrb[0].mxu0
      %v3436 = vadd.f32 0.0, %v3435
      %v3437 = vpop.f32.mrb[0].mxu0
      %3438 = vmatprep.mubr.f32.mxu0 0.0
      %3439 = vmatmul.mubr.f32.gmra.mrb[0].mxu0 %v3340
      %v3440 = vpop.f32.mrb[0].mxu0
      %v3441 = vadd.f32 0.0, %v3440
      %v3442 = vpop.f32.mrb[0].mxu0
      %3443 = vmatprep.mubr.f32.mxu0 0.0
      %3444 = vmatmul.mubr.f32.gmra.mrb[0].mxu0 %v3342
      %v3445 = vpop.f32.mrb[0].mxu0
      %v3446 = vadd.f32 0.0, %v3445
      %v3447 = vpop.f32.mrb[0].mxu0
      %3448 = vdwg.mxu0
      %v3449 = vadd.f32 %v3299, %v3411
      %v3450 = vadd.f32 %v3300, %v3416
      %v3451 = vadd.f32 %v3301, %v3421
      %v3452 = vadd.f32 %v3302, %v3426
      %v3453 = vadd.f32 %v3303, %v3431
      %v3454 = vadd.f32 %v3304, %v3436
      %v3455 = vadd.f32 %v3305, %v3441
      %v3456 = vadd.f32 %v3306, %v3446
      %v3457 = vld [vmem:[%s2219] sm:$0xff]
      %v3458 = vld [vmem:[%s2219 + $0x40] sm:$0xff]
      %v3459 = vld [vmem:[%s2219 + $0x80] sm:$0xff]
      %v3460 = vld [vmem:[%s2219 + $0xc0] sm:$0xff]
      %v3461 = vld [vmem:[%s2219 + $0x100] sm:$0xff]
      %v3462 = vld [vmem:[%s2219 + $0x140] sm:$0xff]
      %v3463 = vld [vmem:[%s2219 + $0x180] sm:$0xff]
      %v3464 = vld [vmem:[%s2219 + $0x1c0] sm:$0xff]
      %s3465 = scalar_lea.vmem %s3, 192
      %v3466 = vld [vmem:[%s3465] sm:$0xff]
      %v3467 = vld [vmem:[%s3465 + $0x8] sm:$0xff]
      %v3468 = vld [vmem:[%s3465 + $0x10] sm:$0xff]
      %v3469 = vld [vmem:[%s3465 + $0x18] sm:$0xff]
      %v3471 = vsel %vm2178, %v3457, 0
      %v3474 = vsel %vm2178, %v3458, 0
      %v3477 = vsel %vm2178, %v3459, 0
      %v3480 = vsel %vm2178, %v3460, 0
      %v3483 = vsel %vm2178, %v3461, 0
      %v3486 = vsel %vm2178, %v3462, 0
      %v3489 = vsel %vm2178, %v3463, 0
      %v3492 = vsel %vm2178, %v3464, 0
      %3494 = vmatprep.subr.mxu0 0.0
      %3495 = vmatpush1.msra.mxu0 %v3466
      %3496 = vmatprep.subr.mxu0 0.0
      %3497 = vmatpush1.msra.mxu0 %v3467
      %3498 = vmatprep.subr.mxu0 0.0
      %3499 = vmatpush1.msra.mxu0 %v3468
      %3500 = vmatprep.subr.mxu0 0.0
      %3501 = vmatpush1.msra.mxu0 %v3469
      %3502 = vmatprep.subr.mxu0 0.0
      %3503 = vmatpush1.msra.mxu0 0.0
      %3504 = vmatprep.subr.mxu0 0.0
      %3505 = vmatpush1.msra.mxu0 0.0
      %3506 = vmatprep.subr.mxu0 0.0
      %3507 = vmatpush1.msra.mxu0 0.0
      %3508 = vmatprep.subr.mxu0 0.0
      %3509 = vmatpush1.msra.mxu0 0.0
      %3510 = vmatprep.subr.mxu0 0.0
      %3511 = vmatpush1.msra.mxu0 0.0
      %3512 = vmatprep.subr.mxu0 0.0
      %3513 = vmatpush1.msra.mxu0 0.0
      %3514 = vmatprep.subr.mxu0 0.0
      %3515 = vmatpush1.msra.mxu0 0.0
      %3516 = vmatprep.subr.mxu0 0.0
      %3517 = vmatpush1.msra.mxu0 0.0
      %3518 = vmatprep.subr.mxu0 0.0
      %3519 = vmatpush1.msra.mxu0 0.0
      %3520 = vmatprep.subr.mxu0 0.0
      %3521 = vmatpush1.msra.mxu0 0.0
      %3522 = vmatprep.subr.mxu0 0.0
      %3523 = vmatpush1.msra.mxu0 0.0
      %3524 = vmatprep.subr.mxu0 0.0
      %3525 = vmatpush1.msra.mxu0 0.0
      %3526 = vmatprep.subr.mxu0 0.0
      %3527 = vmatpush1.msra.mxu0 0.0
      %3528 = vmatprep.subr.mxu0 0.0
      %3529 = vmatpush1.msra.mxu0 0.0
      %3530 = vmatprep.subr.mxu0 0.0
      %3531 = vmatpush1.msra.mxu0 0.0
      %3532 = vmatprep.subr.mxu0 0.0
      %3533 = vmatpush1.msra.mxu0 0.0
      %3534 = vmatprep.subr.mxu0 0.0
      %3535 = vmatpush1.msra.mxu0 0.0
      %3536 = vmatprep.subr.mxu0 0.0
      %3537 = vmatpush1.msra.mxu0 0.0
      %3538 = vmatprep.subr.mxu0 0.0
      %3539 = vmatpush1.msra.mxu0 0.0
      %3540 = vmatprep.subr.mxu0 0.0
      %3541 = vmatpush1.msra.mxu0 0.0
      %3542 = vmatprep.subr.mxu0 0.0
      %3543 = vmatpush1.msra.mxu0 0.0
      %3544 = vmatprep.subr.mxu0 0.0
      %3545 = vmatpush1.msra.mxu0 0.0
      %3546 = vmatprep.subr.mxu0 0.0
      %3547 = vmatpush1.msra.mxu0 0.0
      %3548 = vmatprep.subr.mxu0 0.0
      %3549 = vmatpush1.msra.mxu0 0.0
      %3550 = vmatprep.subr.mxu0 0.0
      %3551 = vmatpush1.msra.mxu0 0.0
      %3552 = vmatprep.subr.mxu0 0.0
      %3553 = vmatpush1.msra.mxu0 0.0
      %3554 = vmatprep.subr.mxu0 0.0
      %3555 = vmatpush1.msra.mxu0 0.0
      %3556 = vmatprep.subr.mxu0 0.0
      %3557 = vmatpush1.msra.mxu0 0.0
      %3558 = vmatprep.mubr.f32.mxu0 0.0
      %3559 = vmatmul.mubr.f32.gmra.mrb[0].mxu0 %v3471
      %v3560 = vpop.f32.mrb[0].mxu0
      %v3561 = vadd.f32 0.0, %v3560
      %v3562 = vpop.f32.mrb[0].mxu0
      %3563 = vmatprep.mubr.f32.mxu0 0.0
      %3564 = vmatmul.mubr.f32.gmra.mrb[0].mxu0 %v3474
      %v3565 = vpop.f32.mrb[0].mxu0
      %v3566 = vadd.f32 0.0, %v3565
      %v3567 = vpop.f32.mrb[0].mxu0
      %3568 = vmatprep.mubr.f32.mxu0 0.0
      %3569 = vmatmul.mubr.f32.gmra.mrb[0].mxu0 %v3477
      %v3570 = vpop.f32.mrb[0].mxu0
      %v3571 = vadd.f32 0.0, %v3570
      %v3572 = vpop.f32.mrb[0].mxu0
      %3573 = vmatprep.mubr.f32.mxu0 0.0
      %3574 = vmatmul.mubr.f32.gmra.mrb[0].mxu0 %v3480
      %v3575 = vpop.f32.mrb[0].mxu0
      %v3576 = vadd.f32 0.0, %v3575
      %v3577 = vpop.f32.mrb[0].mxu0
      %3578 = vmatprep.mubr.f32.mxu0 0.0
      %3579 = vmatmul.mubr.f32.gmra.mrb[0].mxu0 %v3483
      %v3580 = vpop.f32.mrb[0].mxu0
      %v3581 = vadd.f32 0.0, %v3580
      %v3582 = vpop.f32.mrb[0].mxu0
      %3583 = vmatprep.mubr.f32.mxu0 0.0
      %3584 = vmatmul.mubr.f32.gmra.mrb[0].mxu0 %v3486
      %v3585 = vpop.f32.mrb[0].mxu0
      %v3586 = vadd.f32 0.0, %v3585
      %v3587 = vpop.f32.mrb[0].mxu0
      %3588 = vmatprep.mubr.f32.mxu0 0.0
      %3589 = vmatmul.mubr.f32.gmra.mrb[0].mxu0 %v3489
      %v3590 = vpop.f32.mrb[0].mxu0
      %v3591 = vadd.f32 0.0, %v3590
      %v3592 = vpop.f32.mrb[0].mxu0
      %3593 = vmatprep.mubr.f32.mxu0 0.0
      %3594 = vmatmul.mubr.f32.gmra.mrb[0].mxu0 %v3492
      %v3595 = vpop.f32.mrb[0].mxu0
      %v3596 = vadd.f32 0.0, %v3595
      %v3597 = vpop.f32.mrb[0].mxu0
      %3598 = vdwg.mxu0
      %v3599 = vadd.f32 %v3449, %v3561
      %v3600 = vadd.f32 %v3450, %v3566
      %v3601 = vadd.f32 %v3451, %v3571
      %v3602 = vadd.f32 %v3452, %v3576
      %v3603 = vadd.f32 %v3453, %v3581
      %v3604 = vadd.f32 %v3454, %v3586
      %v3605 = vadd.f32 %v3455, %v3591
      %v3606 = vadd.f32 %v3456, %v3596
      %s3607 = scalar_lea.vmem %s3, 224
      %v3608 = vld [vmem:[%s3607] sm:$0xff]
      %v3609 = vld [vmem:[%s3607 + $0x8] sm:$0xff]
      %v3610 = vld [vmem:[%s3607 + $0x10] sm:$0xff]
      %v3611 = vld [vmem:[%s3607 + $0x18] sm:$0xff]
      %3612 = vrot.lane.b32.xlu0 %v3457, 96
      %v3613 = vpop.permute.xlu0 %3612
      %3614 = vrot.lane.b32.xlu0 %v3458, 96
      %v3615 = vpop.permute.xlu0 %3614
      %3616 = vrot.lane.b32.xlu0 %v3459, 96
      %v3617 = vpop.permute.xlu0 %3616
      %3618 = vrot.lane.b32.xlu0 %v3460, 96
      %v3619 = vpop.permute.xlu0 %3618
      %3620 = vrot.lane.b32.xlu0 %v3461, 96
      %v3621 = vpop.permute.xlu0 %3620
      %3622 = vrot.lane.b32.xlu0 %v3462, 96
      %v3623 = vpop.permute.xlu0 %3622
      %3624 = vrot.lane.b32.xlu0 %v3463, 96
      %v3625 = vpop.permute.xlu0 %3624
      %3626 = vrot.lane.b32.xlu0 %v3464, 96
      %v3627 = vpop.permute.xlu0 %3626
      %v3628 = vsel %vm2178, %v3613, 0
      %v3630 = vsel %vm2178, %v3615, 0
      %v3632 = vsel %vm2178, %v3617, 0
      %v3634 = vsel %vm2178, %v3619, 0
      %v3636 = vsel %vm2178, %v3621, 0
      %v3638 = vsel %vm2178, %v3623, 0
      %v3640 = vsel %vm2178, %v3625, 0
      %v3642 = vsel %vm2178, %v3627, 0
      %3644 = vmatprep.subr.mxu0 0.0
      %3645 = vmatpush1.msra.mxu0 %v3608
      %3646 = vmatprep.subr.mxu0 0.0
      %3647 = vmatpush1.msra.mxu0 %v3609
      %3648 = vmatprep.subr.mxu0 0.0
      %3649 = vmatpush1.msra.mxu0 %v3610
      %3650 = vmatprep.subr.mxu0 0.0
      %3651 = vmatpush1.msra.mxu0 %v3611
      %3652 = vmatprep.subr.mxu0 0.0
      %3653 = vmatpush1.msra.mxu0 0.0
      %3654 = vmatprep.subr.mxu0 0.0
      %3655 = vmatpush1.msra.mxu0 0.0
      %3656 = vmatprep.subr.mxu0 0.0
      %3657 = vmatpush1.msra.mxu0 0.0
      %3658 = vmatprep.subr.mxu0 0.0
      %3659 = vmatpush1.msra.mxu0 0.0
      %3660 = vmatprep.subr.mxu0 0.0
      %3661 = vmatpush1.msra.mxu0 0.0
      %3662 = vmatprep.subr.mxu0 0.0
      %3663 = vmatpush1.msra.mxu0 0.0
      %3664 = vmatprep.subr.mxu0 0.0
      %3665 = vmatpush1.msra.mxu0 0.0
      %3666 = vmatprep.subr.mxu0 0.0
      %3667 = vmatpush1.msra.mxu0 0.0
      %3668 = vmatprep.subr.mxu0 0.0
      %3669 = vmatpush1.msra.mxu0 0.0
      %3670 = vmatprep.subr.mxu0 0.0
      %3671 = vmatpush1.msra.mxu0 0.0
      %3672 = vmatprep.subr.mxu0 0.0
      %3673 = vmatpush1.msra.mxu0 0.0
      %3674 = vmatprep.subr.mxu0 0.0
      %3675 = vmatpush1.msra.mxu0 0.0
      %3676 = vmatprep.subr.mxu0 0.0
      %3677 = vmatpush1.msra.mxu0 0.0
      %3678 = vmatprep.subr.mxu0 0.0
      %3679 = vmatpush1.msra.mxu0 0.0
      %3680 = vmatprep.subr.mxu0 0.0
      %3681 = vmatpush1.msra.mxu0 0.0
      %3682 = vmatprep.subr.mxu0 0.0
      %3683 = vmatpush1.msra.mxu0 0.0
      %3684 = vmatprep.subr.mxu0 0.0
      %3685 = vmatpush1.msra.mxu0 0.0
      %3686 = vmatprep.subr.mxu0 0.0
      %3687 = vmatpush1.msra.mxu0 0.0
      %3688 = vmatprep.subr.mxu0 0.0
      %3689 = vmatpush1.msra.mxu0 0.0
      %3690 = vmatprep.subr.mxu0 0.0
      %3691 = vmatpush1.msra.mxu0 0.0
      %3692 = vmatprep.subr.mxu0 0.0
      %3693 = vmatpush1.msra.mxu0 0.0
      %3694 = vmatprep.subr.mxu0 0.0
      %3695 = vmatpush1.msra.mxu0 0.0
      %3696 = vmatprep.subr.mxu0 0.0
      %3697 = vmatpush1.msra.mxu0 0.0
      %3698 = vmatprep.subr.mxu0 0.0
      %3699 = vmatpush1.msra.mxu0 0.0
      %3700 = vmatprep.subr.mxu0 0.0
      %3701 = vmatpush1.msra.mxu0 0.0
      %3702 = vmatprep.subr.mxu0 0.0
      %3703 = vmatpush1.msra.mxu0 0.0
      %3704 = vmatprep.subr.mxu0 0.0
      %3705 = vmatpush1.msra.mxu0 0.0
      %3706 = vmatprep.subr.mxu0 0.0
      %3707 = vmatpush1.msra.mxu0 0.0
      %3708 = vmatprep.mubr.f32.mxu0 0.0
      %3709 = vmatmul.mubr.f32.gmra.mrb[0].mxu0 %v3628
      %v3710 = vpop.f32.mrb[0].mxu0
      %v3711 = vadd.f32 0.0, %v3710
      %v3712 = vpop.f32.mrb[0].mxu0
      %3713 = vmatprep.mubr.f32.mxu0 0.0
      %3714 = vmatmul.mubr.f32.gmra.mrb[0].mxu0 %v3630
      %v3715 = vpop.f32.mrb[0].mxu0
      %v3716 = vadd.f32 0.0, %v3715
      %v3717 = vpop.f32.mrb[0].mxu0
      %3718 = vmatprep.mubr.f32.mxu0 0.0
      %3719 = vmatmul.mubr.f32.gmra.mrb[0].mxu0 %v3632
      %v3720 = vpop.f32.mrb[0].mxu0
      %v3721 = vadd.f32 0.0, %v3720
      %v3722 = vpop.f32.mrb[0].mxu0
      %3723 = vmatprep.mubr.f32.mxu0 0.0
      %3724 = vmatmul.mubr.f32.gmra.mrb[0].mxu0 %v3634
      %v3725 = vpop.f32.mrb[0].mxu0
      %v3726 = vadd.f32 0.0, %v3725
      %v3727 = vpop.f32.mrb[0].mxu0
      %3728 = vmatprep.mubr.f32.mxu0 0.0
      %3729 = vmatmul.mubr.f32.gmra.mrb[0].mxu0 %v3636
      %v3730 = vpop.f32.mrb[0].mxu0
      %v3731 = vadd.f32 0.0, %v3730
      %v3732 = vpop.f32.mrb[0].mxu0
      %3733 = vmatprep.mubr.f32.mxu0 0.0
      %3734 = vmatmul.mubr.f32.gmra.mrb[0].mxu0 %v3638
      %v3735 = vpop.f32.mrb[0].mxu0
      %v3736 = vadd.f32 0.0, %v3735
      %v3737 = vpop.f32.mrb[0].mxu0
      %3738 = vmatprep.mubr.f32.mxu0 0.0
      %3739 = vmatmul.mubr.f32.gmra.mrb[0].mxu0 %v3640
      %v3740 = vpop.f32.mrb[0].mxu0
      %v3741 = vadd.f32 0.0, %v3740
      %v3742 = vpop.f32.mrb[0].mxu0
      %3743 = vmatprep.mubr.f32.mxu0 0.0
      %3744 = vmatmul.mubr.f32.gmra.mrb[0].mxu0 %v3642
      %v3745 = vpop.f32.mrb[0].mxu0
      %v3746 = vadd.f32 0.0, %v3745
      %v3747 = vpop.f32.mrb[0].mxu0
      %3748 = vdwg.mxu0
      %v3749 = vadd.f32 %v3599, %v3711
      %v3750 = vadd.f32 %v3600, %v3716
      %v3751 = vadd.f32 %v3601, %v3721
      %v3752 = vadd.f32 %v3602, %v3726
      %v3753 = vadd.f32 %v3603, %v3731
      %v3754 = vadd.f32 %v3604, %v3736
      %v3755 = vadd.f32 %v3605, %v3741
      %v3756 = vadd.f32 %v3606, %v3746
      %s3757 = scalar_lea.vmem %s3, 256
      %v3758 = vld [vmem:[%s3757] sm:$0xff]
      %v3759 = vld [vmem:[%s3757 + $0x8] sm:$0xff]
      %v3760 = vld [vmem:[%s3757 + $0x10] sm:$0xff]
      %v3761 = vld [vmem:[%s3757 + $0x18] sm:$0xff]
      %3762 = vrot.lane.b32.xlu0 %v3457, 64
      %v3763 = vpop.permute.xlu0 %3762
      %3764 = vrot.lane.b32.xlu0 %v3458, 64
      %v3765 = vpop.permute.xlu0 %3764
      %3766 = vrot.lane.b32.xlu0 %v3459, 64
      %v3767 = vpop.permute.xlu0 %3766
      %3768 = vrot.lane.b32.xlu0 %v3460, 64
      %v3769 = vpop.permute.xlu0 %3768
      %3770 = vrot.lane.b32.xlu0 %v3461, 64
      %v3771 = vpop.permute.xlu0 %3770
      %3772 = vrot.lane.b32.xlu0 %v3462, 64
      %v3773 = vpop.permute.xlu0 %3772
      %3774 = vrot.lane.b32.xlu0 %v3463, 64
      %v3775 = vpop.permute.xlu0 %3774
      %3776 = vrot.lane.b32.xlu0 %v3464, 64
      %v3777 = vpop.permute.xlu0 %3776
      %v3778 = vsel %vm2178, %v3763, 0
      %v3780 = vsel %vm2178, %v3765, 0
      %v3782 = vsel %vm2178, %v3767, 0
      %v3784 = vsel %vm2178, %v3769, 0
      %v3786 = vsel %vm2178, %v3771, 0
      %v3788 = vsel %vm2178, %v3773, 0
      %v3790 = vsel %vm2178, %v3775, 0
      %v3792 = vsel %vm2178, %v3777, 0
      %3794 = vmatprep.subr.mxu0 0.0
      %3795 = vmatpush1.msra.mxu0 %v3758
      %3796 = vmatprep.subr.mxu0 0.0
      %3797 = vmatpush1.msra.mxu0 %v3759
      %3798 = vmatprep.subr.mxu0 0.0
      %3799 = vmatpush1.msra.mxu0 %v3760
      %3800 = vmatprep.subr.mxu0 0.0
      %3801 = vmatpush1.msra.mxu0 %v3761
      %3802 = vmatprep.subr.mxu0 0.0
      %3803 = vmatpush1.msra.mxu0 0.0
      %3804 = vmatprep.subr.mxu0 0.0
      %3805 = vmatpush1.msra.mxu0 0.0
      %3806 = vmatprep.subr.mxu0 0.0
      %3807 = vmatpush1.msra.mxu0 0.0
      %3808 = vmatprep.subr.mxu0 0.0
      %3809 = vmatpush1.msra.mxu0 0.0
      %3810 = vmatprep.subr.mxu0 0.0
      %3811 = vmatpush1.msra.mxu0 0.0
      %3812 = vmatprep.subr.mxu0 0.0
      %3813 = vmatpush1.msra.mxu0 0.0
      %3814 = vmatprep.subr.mxu0 0.0
      %3815 = vmatpush1.msra.mxu0 0.0
      %3816 = vmatprep.subr.mxu0 0.0
      %3817 = vmatpush1.msra.mxu0 0.0
      %3818 = vmatprep.subr.mxu0 0.0
      %3819 = vmatpush1.msra.mxu0 0.0
      %3820 = vmatprep.subr.mxu0 0.0
      %3821 = vmatpush1.msra.mxu0 0.0
      %3822 = vmatprep.subr.mxu0 0.0
      %3823 = vmatpush1.msra.mxu0 0.0
      %3824 = vmatprep.subr.mxu0 0.0
      %3825 = vmatpush1.msra.mxu0 0.0
      %3826 = vmatprep.subr.mxu0 0.0
      %3827 = vmatpush1.msra.mxu0 0.0
      %3828 = vmatprep.subr.mxu0 0.0
      %3829 = vmatpush1.msra.mxu0 0.0
      %3830 = vmatprep.subr.mxu0 0.0
      %3831 = vmatpush1.msra.mxu0 0.0
      %3832 = vmatprep.subr.mxu0 0.0
      %3833 = vmatpush1.msra.mxu0 0.0
      %3834 = vmatprep.subr.mxu0 0.0
      %3835 = vmatpush1.msra.mxu0 0.0
      %3836 = vmatprep.subr.mxu0 0.0
      %3837 = vmatpush1.msra.mxu0 0.0
      %3838 = vmatprep.subr.mxu0 0.0
      %3839 = vmatpush1.msra.mxu0 0.0
      %3840 = vmatprep.subr.mxu0 0.0
      %3841 = vmatpush1.msra.mxu0 0.0
      %3842 = vmatprep.subr.mxu0 0.0
      %3843 = vmatpush1.msra.mxu0 0.0
      %3844 = vmatprep.subr.mxu0 0.0
      %3845 = vmatpush1.msra.mxu0 0.0
      %3846 = vmatprep.subr.mxu0 0.0
      %3847 = vmatpush1.msra.mxu0 0.0
      %3848 = vmatprep.subr.mxu0 0.0
      %3849 = vmatpush1.msra.mxu0 0.0
      %3850 = vmatprep.subr.mxu0 0.0
      %3851 = vmatpush1.msra.mxu0 0.0
      %3852 = vmatprep.subr.mxu0 0.0
      %3853 = vmatpush1.msra.mxu0 0.0
      %3854 = vmatprep.subr.mxu0 0.0
      %3855 = vmatpush1.msra.mxu0 0.0
      %3856 = vmatprep.subr.mxu0 0.0
      %3857 = vmatpush1.msra.mxu0 0.0
      %3858 = vmatprep.mubr.f32.mxu0 0.0
      %3859 = vmatmul.mubr.f32.gmra.mrb[0].mxu0 %v3778
      %v3860 = vpop.f32.mrb[0].mxu0
      %v3861 = vadd.f32 0.0, %v3860
      %v3862 = vpop.f32.mrb[0].mxu0
      %3863 = vmatprep.mubr.f32.mxu0 0.0
      %3864 = vmatmul.mubr.f32.gmra.mrb[0].mxu0 %v3780
      %v3865 = vpop.f32.mrb[0].mxu0
      %v3866 = vadd.f32 0.0, %v3865
      %v3867 = vpop.f32.mrb[0].mxu0
      %3868 = vmatprep.mubr.f32.mxu0 0.0
      %3869 = vmatmul.mubr.f32.gmra.mrb[0].mxu0 %v3782
      %v3870 = vpop.f32.mrb[0].mxu0
      %v3871 = vadd.f32 0.0, %v3870
      %v3872 = vpop.f32.mrb[0].mxu0
      %3873 = vmatprep.mubr.f32.mxu0 0.0
      %3874 = vmatmul.mubr.f32.gmra.mrb[0].mxu0 %v3784
      %v3875 = vpop.f32.mrb[0].mxu0
      %v3876 = vadd.f32 0.0, %v3875
      %v3877 = vpop.f32.mrb[0].mxu0
      %3878 = vmatprep.mubr.f32.mxu0 0.0
      %3879 = vmatmul.mubr.f32.gmra.mrb[0].mxu0 %v3786
      %v3880 = vpop.f32.mrb[0].mxu0
      %v3881 = vadd.f32 0.0, %v3880
      %v3882 = vpop.f32.mrb[0].mxu0
      %3883 = vmatprep.mubr.f32.mxu0 0.0
      %3884 = vmatmul.mubr.f32.gmra.mrb[0].mxu0 %v3788
      %v3885 = vpop.f32.mrb[0].mxu0
      %v3886 = vadd.f32 0.0, %v3885
      %v3887 = vpop.f32.mrb[0].mxu0
      %3888 = vmatprep.mubr.f32.mxu0 0.0
      %3889 = vmatmul.mubr.f32.gmra.mrb[0].mxu0 %v3790
      %v3890 = vpop.f32.mrb[0].mxu0
      %v3891 = vadd.f32 0.0, %v3890
      %v3892 = vpop.f32.mrb[0].mxu0
      %3893 = vmatprep.mubr.f32.mxu0 0.0
      %3894 = vmatmul.mubr.f32.gmra.mrb[0].mxu0 %v3792
      %v3895 = vpop.f32.mrb[0].mxu0
      %v3896 = vadd.f32 0.0, %v3895
      %v3897 = vpop.f32.mrb[0].mxu0
      %3898 = vdwg.mxu0
      %v3899 = vadd.f32 %v3749, %v3861
      %v3900 = vadd.f32 %v3750, %v3866
      %v3901 = vadd.f32 %v3751, %v3871
      %v3902 = vadd.f32 %v3752, %v3876
      %v3903 = vadd.f32 %v3753, %v3881
      %v3904 = vadd.f32 %v3754, %v3886
      %v3905 = vadd.f32 %v3755, %v3891
      %v3906 = vadd.f32 %v3756, %v3896
      %v3907 = vld [vmem:[%s4] sm:$0x1]
      %v3909 = vlaneseq
      %v3910 = vshrl.u32 %v3909, 7
      %v3911 = vsub.s32 0, %v3910
      %v3912 = vrot.slane %v3907, %v3911
      %v3914 = vadd.f32 %v3899, %v3912
      %v3915 = vadd.f32 %v3900, %v3912
      %v3916 = vadd.f32 %v3901, %v3912
      %v3917 = vadd.f32 %v3902, %v3912
      %v3918 = vadd.f32 %v3903, %v3912
      %v3919 = vadd.f32 %v3904, %v3912
      %v3920 = vadd.f32 %v3905, %v3912
      %v3921 = vadd.f32 %v3906, %v3912
      %vm3922 = vcmp.gt.f32.partialorder %v3914, 0.0
      %vm3923 = vcmp.gt.f32.partialorder %v3915, 0.0
      %vm3924 = vcmp.gt.f32.partialorder %v3916, 0.0
      %vm3925 = vcmp.gt.f32.partialorder %v3917, 0.0
      %vm3926 = vcmp.gt.f32.partialorder %v3918, 0.0
      %vm3927 = vcmp.gt.f32.partialorder %v3919, 0.0
      %vm3928 = vcmp.gt.f32.partialorder %v3920, 0.0
      %vm3929 = vcmp.gt.f32.partialorder %v3921, 0.0
      %v3930 = vmul.f32 %v3914, 0.2
      %v3931 = vmul.f32 %v3915, 0.2
      %v3932 = vmul.f32 %v3916, 0.2
      %v3933 = vmul.f32 %v3917, 0.2
      %v3934 = vmul.f32 %v3918, 0.2
      %v3935 = vmul.f32 %v3919, 0.2
      %v3936 = vmul.f32 %v3920, 0.2
      %v3937 = vmul.f32 %v3921, 0.2
      %v3938 = vsel %vm3922, %v3914, %v3930
      %v3939 = vsel %vm3923, %v3915, %v3931
      %v3940 = vsel %vm3924, %v3916, %v3932
      %v3941 = vsel %vm3925, %v3917, %v3933
      %v3942 = vsel %vm3926, %v3918, %v3934
      %v3943 = vsel %vm3927, %v3919, %v3935
      %v3944 = vsel %vm3928, %v3920, %v3936
      %v3945 = vsel %vm3929, %v3921, %v3937
      %3954 = vrot.lane.b32.xlu0 %v3938, 64
      %v3955 = vpop.permute.xlu0 %3954
      %3956 = vrot.lane.b32.xlu0 %v3939, 64
      %v3957 = vpop.permute.xlu0 %3956
      %3958 = vrot.lane.b32.xlu0 %v3940, 64
      %v3959 = vpop.permute.xlu0 %3958
      %3960 = vrot.lane.b32.xlu0 %v3941, 64
      %v3961 = vpop.permute.xlu0 %3960
      %3962 = vrot.lane.b32.xlu0 %v3942, 64
      %v3963 = vpop.permute.xlu0 %3962
      %3964 = vrot.lane.b32.xlu0 %v3943, 64
      %v3965 = vpop.permute.xlu0 %3964
      %3966 = vrot.lane.b32.xlu0 %v3944, 64
      %v3967 = vpop.permute.xlu0 %3966
      %3968 = vrot.lane.b32.xlu0 %v3945, 64
      %v3969 = vpop.permute.xlu0 %3968
      %vm3978 = vcmask 1048064
      %3979 = vst.msk [vmem:[#allocation3 + $0x8] sm:$0xff] %vm3978, %v3955
      %3980 = vst.msk [vmem:[#allocation3 + $0x28] sm:$0xff] %vm3978, %v3957
      %3981 = vst.msk [vmem:[#allocation3 + $0x48] sm:$0xff] %vm3978, %v3959
      %3982 = vst.msk [vmem:[#allocation3 + $0x68] sm:$0xff] %vm3978, %v3961
      %3983 = vst.msk [vmem:[#allocation3 + $0x88] sm:$0xff] %vm3978, %v3963
      %3984 = vst.msk [vmem:[#allocation3 + $0xa8] sm:$0xff] %vm3978, %v3965
      %3985 = vst.msk [vmem:[#allocation3 + $0xc8] sm:$0xff] %vm3978, %v3967
      %3986 = vst.msk [vmem:[#allocation3 + $0xe8] sm:$0xff] %vm3978, %v3969
      %v3987 = vld [vmem:[#allocation2] sm:$0xff]
      %v3988 = vld [vmem:[#allocation2 + $0x40] sm:$0xff]
      %v3989 = vld [vmem:[#allocation2 + $0x80] sm:$0xff]
      %v3990 = vld [vmem:[#allocation2 + $0xc0] sm:$0xff]
      %v3991 = vld [vmem:[#allocation2 + $0x100] sm:$0xff]
      %v3992 = vld [vmem:[#allocation2 + $0x140] sm:$0xff]
      %v3993 = vld [vmem:[#allocation2 + $0x180] sm:$0xff]
      %v3994 = vld [vmem:[#allocation2 + $0x1c0] sm:$0xff]
      %v3995 = vld [vmem:[%s3] sm:$0xff]
      %v3996 = vld [vmem:[%s3 + $0x8] sm:$0xff]
      %v3997 = vld [vmem:[%s3 + $0x10] sm:$0xff]
      %v3998 = vld [vmem:[%s3 + $0x18] sm:$0xff]
      %v3999 = vld [vmem:[%s2586] sm:$0xff]
      %v4000 = vld [vmem:[%s2586 + $0x8] sm:$0xff]
      %v4001 = vld [vmem:[%s2586 + $0x10] sm:$0xff]
      %v4002 = vld [vmem:[%s2586 + $0x18] sm:$0xff]
      %4011 = vrot.lane.b32.xlu0 %v3987, 32
      %v4012 = vpop.permute.xlu0 %4011
      %4013 = vrot.lane.b32.xlu0 %v3988, 32
      %v4014 = vpop.permute.xlu0 %4013
      %4015 = vrot.lane.b32.xlu0 %v3989, 32
      %v4016 = vpop.permute.xlu0 %4015
      %4017 = vrot.lane.b32.xlu0 %v3990, 32
      %v4018 = vpop.permute.xlu0 %4017
      %4019 = vrot.lane.b32.xlu0 %v3991, 32
      %v4020 = vpop.permute.xlu0 %4019
      %4021 = vrot.lane.b32.xlu0 %v3992, 32
      %v4022 = vpop.permute.xlu0 %4021
      %4023 = vrot.lane.b32.xlu0 %v3993, 32
      %v4024 = vpop.permute.xlu0 %4023
      %4025 = vrot.lane.b32.xlu0 %v3994, 32
      %v4026 = vpop.permute.xlu0 %4025
      %v4027 = vsel %vm2178, %v4012, 0
      %v4029 = vsel %vm2178, %v4014, 0
      %v4031 = vsel %vm2178, %v4016, 0
      %v4033 = vsel %vm2178, %v4018, 0
      %v4035 = vsel %vm2178, %v4020, 0
      %v4037 = vsel %vm2178, %v4022, 0
      %v4039 = vsel %vm2178, %v4024, 0
      %v4041 = vsel %vm2178, %v4026, 0
      %4043 = vmatprep.subr.mxu0 0.0
      %4044 = vmatpush1.msra.mxu0 %v3999
      %4045 = vmatprep.subr.mxu0 0.0
      %4046 = vmatpush1.msra.mxu0 %v4000
      %4047 = vmatprep.subr.mxu0 0.0
      %4048 = vmatpush1.msra.mxu0 %v4001
      %4049 = vmatprep.subr.mxu0 0.0
      %4050 = vmatpush1.msra.mxu0 %v4002
      %4051 = vmatprep.subr.mxu0 0.0
      %4052 = vmatpush1.msra.mxu0 0.0
      %4053 = vmatprep.subr.mxu0 0.0
      %4054 = vmatpush1.msra.mxu0 0.0
      %4055 = vmatprep.subr.mxu0 0.0
      %4056 = vmatpush1.msra.mxu0 0.0
      %4057 = vmatprep.subr.mxu0 0.0
      %4058 = vmatpush1.msra.mxu0 0.0
      %4059 = vmatprep.subr.mxu0 0.0
      %4060 = vmatpush1.msra.mxu0 0.0
      %4061 = vmatprep.subr.mxu0 0.0
      %4062 = vmatpush1.msra.mxu0 0.0
      %4063 = vmatprep.subr.mxu0 0.0
      %4064 = vmatpush1.msra.mxu0 0.0
      %4065 = vmatprep.subr.mxu0 0.0
      %4066 = vmatpush1.msra.mxu0 0.0
      %4067 = vmatprep.subr.mxu0 0.0
      %4068 = vmatpush1.msra.mxu0 0.0
      %4069 = vmatprep.subr.mxu0 0.0
      %4070 = vmatpush1.msra.mxu0 0.0
      %4071 = vmatprep.subr.mxu0 0.0
      %4072 = vmatpush1.msra.mxu0 0.0
      %4073 = vmatprep.subr.mxu0 0.0
      %4074 = vmatpush1.msra.mxu0 0.0
      %4075 = vmatprep.subr.mxu0 0.0
      %4076 = vmatpush1.msra.mxu0 0.0
      %4077 = vmatprep.subr.mxu0 0.0
      %4078 = vmatpush1.msra.mxu0 0.0
      %4079 = vmatprep.subr.mxu0 0.0
      %4080 = vmatpush1.msra.mxu0 0.0
      %4081 = vmatprep.subr.mxu0 0.0
      %4082 = vmatpush1.msra.mxu0 0.0
      %4083 = vmatprep.subr.mxu0 0.0
      %4084 = vmatpush1.msra.mxu0 0.0
      %4085 = vmatprep.subr.mxu0 0.0
      %4086 = vmatpush1.msra.mxu0 0.0
      %4087 = vmatprep.subr.mxu0 0.0
      %4088 = vmatpush1.msra.mxu0 0.0
      %4089 = vmatprep.subr.mxu0 0.0
      %4090 = vmatpush1.msra.mxu0 0.0
      %4091 = vmatprep.subr.mxu0 0.0
      %4092 = vmatpush1.msra.mxu0 0.0
      %4093 = vmatprep.subr.mxu0 0.0
      %4094 = vmatpush1.msra.mxu0 0.0
      %4095 = vmatprep.subr.mxu0 0.0
      %4096 = vmatpush1.msra.mxu0 0.0
      %4097 = vmatprep.subr.mxu0 0.0
      %4098 = vmatpush1.msra.mxu0 0.0
      %4099 = vmatprep.subr.mxu0 0.0
      %4100 = vmatpush1.msra.mxu0 0.0
      %4101 = vmatprep.subr.mxu0 0.0
      %4102 = vmatpush1.msra.mxu0 0.0
      %4103 = vmatprep.subr.mxu0 0.0
      %4104 = vmatpush1.msra.mxu0 0.0
      %4105 = vmatprep.subr.mxu0 0.0
      %4106 = vmatpush1.msra.mxu0 0.0
      %4107 = vmatprep.mubr.f32.mxu0 0.0
      %4108 = vmatmul.mubr.f32.gmra.mrb[0].mxu0 %v4027
      %v4109 = vpop.f32.mrb[0].mxu0
      %v4110 = vadd.f32 0.0, %v4109
      %v4111 = vpop.f32.mrb[0].mxu0
      %4112 = vmatprep.mubr.f32.mxu0 0.0
      %4113 = vmatmul.mubr.f32.gmra.mrb[0].mxu0 %v4029
      %v4114 = vpop.f32.mrb[0].mxu0
      %v4115 = vadd.f32 0.0, %v4114
      %v4116 = vpop.f32.mrb[0].mxu0
      %4117 = vmatprep.mubr.f32.mxu0 0.0
      %4118 = vmatmul.mubr.f32.gmra.mrb[0].mxu0 %v4031
      %v4119 = vpop.f32.mrb[0].mxu0
      %v4120 = vadd.f32 0.0, %v4119
      %v4121 = vpop.f32.mrb[0].mxu0
      %4122 = vmatprep.mubr.f32.mxu0 0.0
      %4123 = vmatmul.mubr.f32.gmra.mrb[0].mxu0 %v4033
      %v4124 = vpop.f32.mrb[0].mxu0
      %v4125 = vadd.f32 0.0, %v4124
      %v4126 = vpop.f32.mrb[0].mxu0
      %4127 = vmatprep.mubr.f32.mxu0 0.0
      %4128 = vmatmul.mubr.f32.gmra.mrb[0].mxu0 %v4035
      %v4129 = vpop.f32.mrb[0].mxu0
      %v4130 = vadd.f32 0.0, %v4129
      %v4131 = vpop.f32.mrb[0].mxu0
      %4132 = vmatprep.mubr.f32.mxu0 0.0
      %4133 = vmatmul.mubr.f32.gmra.mrb[0].mxu0 %v4037
      %v4134 = vpop.f32.mrb[0].mxu0
      %v4135 = vadd.f32 0.0, %v4134
      %v4136 = vpop.f32.mrb[0].mxu0
      %4137 = vmatprep.mubr.f32.mxu0 0.0
      %4138 = vmatmul.mubr.f32.gmra.mrb[0].mxu0 %v4039
      %v4139 = vpop.f32.mrb[0].mxu0
      %v4140 = vadd.f32 0.0, %v4139
      %v4141 = vpop.f32.mrb[0].mxu0
      %4142 = vmatprep.mubr.f32.mxu0 0.0
      %4143 = vmatmul.mubr.f32.gmra.mrb[0].mxu0 %v4041
      %v4144 = vpop.f32.mrb[0].mxu0
      %v4145 = vadd.f32 0.0, %v4144
      %v4146 = vpop.f32.mrb[0].mxu0
      %4147 = vdwg.mxu0
      %4148 = vrot.lane.b32.xlu0 %v3987, 64
      %v4149 = vpop.permute.xlu0 %4148
      %4150 = vrot.lane.b32.xlu0 %v3988, 64
      %v4151 = vpop.permute.xlu0 %4150
      %4152 = vrot.lane.b32.xlu0 %v3989, 64
      %v4153 = vpop.permute.xlu0 %4152
      %4154 = vrot.lane.b32.xlu0 %v3990, 64
      %v4155 = vpop.permute.xlu0 %4154
      %4156 = vrot.lane.b32.xlu0 %v3991, 64
      %v4157 = vpop.permute.xlu0 %4156
      %4158 = vrot.lane.b32.xlu0 %v3992, 64
      %v4159 = vpop.permute.xlu0 %4158
      %4160 = vrot.lane.b32.xlu0 %v3993, 64
      %v4161 = vpop.permute.xlu0 %4160
      %4162 = vrot.lane.b32.xlu0 %v3994, 64
      %v4163 = vpop.permute.xlu0 %4162
      %v4164 = vsel %vm2178, %v4149, 0
      %v4166 = vsel %vm2178, %v4151, 0
      %v4168 = vsel %vm2178, %v4153, 0
      %v4170 = vsel %vm2178, %v4155, 0
      %v4172 = vsel %vm2178, %v4157, 0
      %v4174 = vsel %vm2178, %v4159, 0
      %v4176 = vsel %vm2178, %v4161, 0
      %v4178 = vsel %vm2178, %v4163, 0
      %4180 = vmatprep.subr.mxu0 0.0
      %4181 = vmatpush1.msra.mxu0 %v3995
      %4182 = vmatprep.subr.mxu0 0.0
      %4183 = vmatpush1.msra.mxu0 %v3996
      %4184 = vmatprep.subr.mxu0 0.0
      %4185 = vmatpush1.msra.mxu0 %v3997
      %4186 = vmatprep.subr.mxu0 0.0
      %4187 = vmatpush1.msra.mxu0 %v3998
      %4188 = vmatprep.subr.mxu0 0.0
      %4189 = vmatpush1.msra.mxu0 0.0
      %4190 = vmatprep.subr.mxu0 0.0
      %4191 = vmatpush1.msra.mxu0 0.0
      %4192 = vmatprep.subr.mxu0 0.0
      %4193 = vmatpush1.msra.mxu0 0.0
      %4194 = vmatprep.subr.mxu0 0.0
      %4195 = vmatpush1.msra.mxu0 0.0
      %4196 = vmatprep.subr.mxu0 0.0
      %4197 = vmatpush1.msra.mxu0 0.0
      %4198 = vmatprep.subr.mxu0 0.0
      %4199 = vmatpush1.msra.mxu0 0.0
      %4200 = vmatprep.subr.mxu0 0.0
      %4201 = vmatpush1.msra.mxu0 0.0
      %4202 = vmatprep.subr.mxu0 0.0
      %4203 = vmatpush1.msra.mxu0 0.0
      %4204 = vmatprep.subr.mxu0 0.0
      %4205 = vmatpush1.msra.mxu0 0.0
      %4206 = vmatprep.subr.mxu0 0.0
      %4207 = vmatpush1.msra.mxu0 0.0
      %4208 = vmatprep.subr.mxu0 0.0
      %4209 = vmatpush1.msra.mxu0 0.0
      %4210 = vmatprep.subr.mxu0 0.0
      %4211 = vmatpush1.msra.mxu0 0.0
      %4212 = vmatprep.subr.mxu0 0.0
      %4213 = vmatpush1.msra.mxu0 0.0
      %4214 = vmatprep.subr.mxu0 0.0
      %4215 = vmatpush1.msra.mxu0 0.0
      %4216 = vmatprep.subr.mxu0 0.0
      %4217 = vmatpush1.msra.mxu0 0.0
      %4218 = vmatprep.subr.mxu0 0.0
      %4219 = vmatpush1.msra.mxu0 0.0
      %4220 = vmatprep.subr.mxu0 0.0
      %4221 = vmatpush1.msra.mxu0 0.0
      %4222 = vmatprep.subr.mxu0 0.0
      %4223 = vmatpush1.msra.mxu0 0.0
      %4224 = vmatprep.subr.mxu0 0.0
      %4225 = vmatpush1.msra.mxu0 0.0
      %4226 = vmatprep.subr.mxu0 0.0
      %4227 = vmatpush1.msra.mxu0 0.0
      %4228 = vmatprep.subr.mxu0 0.0
      %4229 = vmatpush1.msra.mxu0 0.0
      %4230 = vmatprep.subr.mxu0 0.0
      %4231 = vmatpush1.msra.mxu0 0.0
      %4232 = vmatprep.subr.mxu0 0.0
      %4233 = vmatpush1.msra.mxu0 0.0
      %4234 = vmatprep.subr.mxu0 0.0
      %4235 = vmatpush1.msra.mxu0 0.0
      %4236 = vmatprep.subr.mxu0 0.0
      %4237 = vmatpush1.msra.mxu0 0.0
      %4238 = vmatprep.subr.mxu0 0.0
      %4239 = vmatpush1.msra.mxu0 0.0
      %4240 = vmatprep.subr.mxu0 0.0
      %4241 = vmatpush1.msra.mxu0 0.0
      %4242 = vmatprep.subr.mxu0 0.0
      %4243 = vmatpush1.msra.mxu0 0.0
      %4244 = vmatprep.mubr.f32.mxu0 0.0
      %4245 = vmatmul.mubr.f32.gmra.mrb[0].mxu0 %v4164
      %v4246 = vpop.f32.mrb[0].mxu0
      %v4247 = vadd.f32 %v4110, %v4246
      %v4248 = vpop.f32.mrb[0].mxu0
      %4249 = vmatprep.mubr.f32.mxu0 0.0
      %4250 = vmatmul.mubr.f32.gmra.mrb[0].mxu0 %v4166
      %v4251 = vpop.f32.mrb[0].mxu0
      %v4252 = vadd.f32 %v4115, %v4251
      %v4253 = vpop.f32.mrb[0].mxu0
      %4254 = vmatprep.mubr.f32.mxu0 0.0
      %4255 = vmatmul.mubr.f32.gmra.mrb[0].mxu0 %v4168
      %v4256 = vpop.f32.mrb[0].mxu0
      %v4257 = vadd.f32 %v4120, %v4256
      %v4258 = vpop.f32.mrb[0].mxu0
      %4259 = vmatprep.mubr.f32.mxu0 0.0
      %4260 = vmatmul.mubr.f32.gmra.mrb[0].mxu0 %v4170
      %v4261 = vpop.f32.mrb[0].mxu0
      %v4262 = vadd.f32 %v4125, %v4261
      %v4263 = vpop.f32.mrb[0].mxu0
      %4264 = vmatprep.mubr.f32.mxu0 0.0
      %4265 = vmatmul.mubr.f32.gmra.mrb[0].mxu0 %v4172
      %v4266 = vpop.f32.mrb[0].mxu0
      %v4267 = vadd.f32 %v4130, %v4266
      %v4268 = vpop.f32.mrb[0].mxu0
      %4269 = vmatprep.mubr.f32.mxu0 0.0
      %4270 = vmatmul.mubr.f32.gmra.mrb[0].mxu0 %v4174
      %v4271 = vpop.f32.mrb[0].mxu0
      %v4272 = vadd.f32 %v4135, %v4271
      %v4273 = vpop.f32.mrb[0].mxu0
      %4274 = vmatprep.mubr.f32.mxu0 0.0
      %4275 = vmatmul.mubr.f32.gmra.mrb[0].mxu0 %v4176
      %v4276 = vpop.f32.mrb[0].mxu0
      %v4277 = vadd.f32 %v4140, %v4276
      %v4278 = vpop.f32.mrb[0].mxu0
      %4279 = vmatprep.mubr.f32.mxu0 0.0
      %4280 = vmatmul.mubr.f32.gmra.mrb[0].mxu0 %v4178
      %v4281 = vpop.f32.mrb[0].mxu0
      %v4282 = vadd.f32 %v4145, %v4281
      %v4283 = vpop.f32.mrb[0].mxu0
      %4284 = vdwg.mxu0
      %v4285 = vld [vmem:[#allocation2 + $0x1] sm:$0xff]
      %v4286 = vld [vmem:[#allocation2 + $0x41] sm:$0xff]
      %v4287 = vld [vmem:[#allocation2 + $0x81] sm:$0xff]
      %v4288 = vld [vmem:[#allocation2 + $0xc1] sm:$0xff]
      %v4289 = vld [vmem:[#allocation2 + $0x101] sm:$0xff]
      %v4290 = vld [vmem:[#allocation2 + $0x141] sm:$0xff]
      %v4291 = vld [vmem:[#allocation2 + $0x181] sm:$0xff]
      %v4292 = vld [vmem:[#allocation2 + $0x1c1] sm:$0xff]
      %v4293 = vld [vmem:[%s2857] sm:$0xff]
      %v4294 = vld [vmem:[%s2857 + $0x8] sm:$0xff]
      %v4295 = vld [vmem:[%s2857 + $0x10] sm:$0xff]
      %v4296 = vld [vmem:[%s2857 + $0x18] sm:$0xff]
      %v4298 = vsel %vm2178, %v4285, 0
      %v4301 = vsel %vm2178, %v4286, 0
      %v4304 = vsel %vm2178, %v4287, 0
      %v4307 = vsel %vm2178, %v4288, 0
      %v4310 = vsel %vm2178, %v4289, 0
      %v4313 = vsel %vm2178, %v4290, 0
      %v4316 = vsel %vm2178, %v4291, 0
      %v4319 = vsel %vm2178, %v4292, 0
      %4321 = vmatprep.subr.mxu0 0.0
      %4322 = vmatpush1.msra.mxu0 %v4293
      %4323 = vmatprep.subr.mxu0 0.0
      %4324 = vmatpush1.msra.mxu0 %v4294
      %4325 = vmatprep.subr.mxu0 0.0
      %4326 = vmatpush1.msra.mxu0 %v4295
      %4327 = vmatprep.subr.mxu0 0.0
      %4328 = vmatpush1.msra.mxu0 %v4296
      %4329 = vmatprep.subr.mxu0 0.0
      %4330 = vmatpush1.msra.mxu0 0.0
      %4331 = vmatprep.subr.mxu0 0.0
      %4332 = vmatpush1.msra.mxu0 0.0
      %4333 = vmatprep.subr.mxu0 0.0
      %4334 = vmatpush1.msra.mxu0 0.0
      %4335 = vmatprep.subr.mxu0 0.0
      %4336 = vmatpush1.msra.mxu0 0.0
      %4337 = vmatprep.subr.mxu0 0.0
      %4338 = vmatpush1.msra.mxu0 0.0
      %4339 = vmatprep.subr.mxu0 0.0
      %4340 = vmatpush1.msra.mxu0 0.0
      %4341 = vmatprep.subr.mxu0 0.0
      %4342 = vmatpush1.msra.mxu0 0.0
      %4343 = vmatprep.subr.mxu0 0.0
      %4344 = vmatpush1.msra.mxu0 0.0
      %4345 = vmatprep.subr.mxu0 0.0
      %4346 = vmatpush1.msra.mxu0 0.0
      %4347 = vmatprep.subr.mxu0 0.0
      %4348 = vmatpush1.msra.mxu0 0.0
      %4349 = vmatprep.subr.mxu0 0.0
      %4350 = vmatpush1.msra.mxu0 0.0
      %4351 = vmatprep.subr.mxu0 0.0
      %4352 = vmatpush1.msra.mxu0 0.0
      %4353 = vmatprep.subr.mxu0 0.0
      %4354 = vmatpush1.msra.mxu0 0.0
      %4355 = vmatprep.subr.mxu0 0.0
      %4356 = vmatpush1.msra.mxu0 0.0
      %4357 = vmatprep.subr.mxu0 0.0
      %4358 = vmatpush1.msra.mxu0 0.0
      %4359 = vmatprep.subr.mxu0 0.0
      %4360 = vmatpush1.msra.mxu0 0.0
      %4361 = vmatprep.subr.mxu0 0.0
      %4362 = vmatpush1.msra.mxu0 0.0
      %4363 = vmatprep.subr.mxu0 0.0
      %4364 = vmatpush1.msra.mxu0 0.0
      %4365 = vmatprep.subr.mxu0 0.0
      %4366 = vmatpush1.msra.mxu0 0.0
      %4367 = vmatprep.subr.mxu0 0.0
      %4368 = vmatpush1.msra.mxu0 0.0
      %4369 = vmatprep.subr.mxu0 0.0
      %4370 = vmatpush1.msra.mxu0 0.0
      %4371 = vmatprep.subr.mxu0 0.0
      %4372 = vmatpush1.msra.mxu0 0.0
      %4373 = vmatprep.subr.mxu0 0.0
      %4374 = vmatpush1.msra.mxu0 0.0
      %4375 = vmatprep.subr.mxu0 0.0
      %4376 = vmatpush1.msra.mxu0 0.0
      %4377 = vmatprep.subr.mxu0 0.0
      %4378 = vmatpush1.msra.mxu0 0.0
      %4379 = vmatprep.subr.mxu0 0.0
      %4380 = vmatpush1.msra.mxu0 0.0
      %4381 = vmatprep.subr.mxu0 0.0
      %4382 = vmatpush1.msra.mxu0 0.0
      %4383 = vmatprep.subr.mxu0 0.0
      %4384 = vmatpush1.msra.mxu0 0.0
      %4385 = vmatprep.mubr.f32.mxu0 0.0
      %4386 = vmatmul.mubr.f32.gmra.mrb[0].mxu0 %v4298
      %v4387 = vpop.f32.mrb[0].mxu0
      %v4388 = vadd.f32 0.0, %v4387
      %v4389 = vpop.f32.mrb[0].mxu0
      %4390 = vmatprep.mubr.f32.mxu0 0.0
      %4391 = vmatmul.mubr.f32.gmra.mrb[0].mxu0 %v4301
      %v4392 = vpop.f32.mrb[0].mxu0
      %v4393 = vadd.f32 0.0, %v4392
      %v4394 = vpop.f32.mrb[0].mxu0
      %4395 = vmatprep.mubr.f32.mxu0 0.0
      %4396 = vmatmul.mubr.f32.gmra.mrb[0].mxu0 %v4304
      %v4397 = vpop.f32.mrb[0].mxu0
      %v4398 = vadd.f32 0.0, %v4397
      %v4399 = vpop.f32.mrb[0].mxu0
      %4400 = vmatprep.mubr.f32.mxu0 0.0
      %4401 = vmatmul.mubr.f32.gmra.mrb[0].mxu0 %v4307
      %v4402 = vpop.f32.mrb[0].mxu0
      %v4403 = vadd.f32 0.0, %v4402
      %v4404 = vpop.f32.mrb[0].mxu0
      %4405 = vmatprep.mubr.f32.mxu0 0.0
      %4406 = vmatmul.mubr.f32.gmra.mrb[0].mxu0 %v4310
      %v4407 = vpop.f32.mrb[0].mxu0
      %v4408 = vadd.f32 0.0, %v4407
      %v4409 = vpop.f32.mrb[0].mxu0
      %4410 = vmatprep.mubr.f32.mxu0 0.0
      %4411 = vmatmul.mubr.f32.gmra.mrb[0].mxu0 %v4313
      %v4412 = vpop.f32.mrb[0].mxu0
      %v4413 = vadd.f32 0.0, %v4412
      %v4414 = vpop.f32.mrb[0].mxu0
      %4415 = vmatprep.mubr.f32.mxu0 0.0
      %4416 = vmatmul.mubr.f32.gmra.mrb[0].mxu0 %v4316
      %v4417 = vpop.f32.mrb[0].mxu0
      %v4418 = vadd.f32 0.0, %v4417
      %v4419 = vpop.f32.mrb[0].mxu0
      %4420 = vmatprep.mubr.f32.mxu0 0.0
      %4421 = vmatmul.mubr.f32.gmra.mrb[0].mxu0 %v4319
      %v4422 = vpop.f32.mrb[0].mxu0
      %v4423 = vadd.f32 0.0, %v4422
      %v4424 = vpop.f32.mrb[0].mxu0
      %4425 = vdwg.mxu0
      %v4426 = vadd.f32 %v4247, %v4388
      %v4427 = vadd.f32 %v4252, %v4393
      %v4428 = vadd.f32 %v4257, %v4398
      %v4429 = vadd.f32 %v4262, %v4403
      %v4430 = vadd.f32 %v4267, %v4408
      %v4431 = vadd.f32 %v4272, %v4413
      %v4432 = vadd.f32 %v4277, %v4418
      %v4433 = vadd.f32 %v4282, %v4423
      %v4434 = vld [vmem:[%s2086] sm:$0xff]
      %v4435 = vld [vmem:[%s2086 + $0x40] sm:$0xff]
      %v4436 = vld [vmem:[%s2086 + $0x80] sm:$0xff]
      %v4437 = vld [vmem:[%s2086 + $0xc0] sm:$0xff]
      %v4438 = vld [vmem:[%s2086 + $0x100] sm:$0xff]
      %v4439 = vld [vmem:[%s2086 + $0x140] sm:$0xff]
      %v4440 = vld [vmem:[%s2086 + $0x180] sm:$0xff]
      %v4441 = vld [vmem:[%s2086 + $0x1c0] sm:$0xff]
      %v4442 = vld [vmem:[%s3015] sm:$0xff]
      %v4443 = vld [vmem:[%s3015 + $0x8] sm:$0xff]
      %v4444 = vld [vmem:[%s3015 + $0x10] sm:$0xff]
      %v4445 = vld [vmem:[%s3015 + $0x18] sm:$0xff]
      %4454 = vrot.lane.b32.xlu0 %v4434, 64
      %v4455 = vpop.permute.xlu0 %4454
      %4456 = vrot.lane.b32.xlu0 %v4435, 64
      %v4457 = vpop.permute.xlu0 %4456
      %4458 = vrot.lane.b32.xlu0 %v4436, 64
      %v4459 = vpop.permute.xlu0 %4458
      %4460 = vrot.lane.b32.xlu0 %v4437, 64
      %v4461 = vpop.permute.xlu0 %4460
      %4462 = vrot.lane.b32.xlu0 %v4438, 64
      %v4463 = vpop.permute.xlu0 %4462
      %4464 = vrot.lane.b32.xlu0 %v4439, 64
      %v4465 = vpop.permute.xlu0 %4464
      %4466 = vrot.lane.b32.xlu0 %v4440, 64
      %v4467 = vpop.permute.xlu0 %4466
      %4468 = vrot.lane.b32.xlu0 %v4441, 64
      %v4469 = vpop.permute.xlu0 %4468
      %v4470 = vsel %vm2178, %v4455, 0
      %v4472 = vsel %vm2178, %v4457, 0
      %v4474 = vsel %vm2178, %v4459, 0
      %v4476 = vsel %vm2178, %v4461, 0
      %v4478 = vsel %vm2178, %v4463, 0
      %v4480 = vsel %vm2178, %v4465, 0
      %v4482 = vsel %vm2178, %v4467, 0
      %v4484 = vsel %vm2178, %v4469, 0
      %4486 = vmatprep.subr.mxu0 0.0
      %4487 = vmatpush1.msra.mxu0 %v4442
      %4488 = vmatprep.subr.mxu0 0.0
      %4489 = vmatpush1.msra.mxu0 %v4443
      %4490 = vmatprep.subr.mxu0 0.0
      %4491 = vmatpush1.msra.mxu0 %v4444
      %4492 = vmatprep.subr.mxu0 0.0
      %4493 = vmatpush1.msra.mxu0 %v4445
      %4494 = vmatprep.subr.mxu0 0.0
      %4495 = vmatpush1.msra.mxu0 0.0
      %4496 = vmatprep.subr.mxu0 0.0
      %4497 = vmatpush1.msra.mxu0 0.0
      %4498 = vmatprep.subr.mxu0 0.0
      %4499 = vmatpush1.msra.mxu0 0.0
      %4500 = vmatprep.subr.mxu0 0.0
      %4501 = vmatpush1.msra.mxu0 0.0
      %4502 = vmatprep.subr.mxu0 0.0
      %4503 = vmatpush1.msra.mxu0 0.0
      %4504 = vmatprep.subr.mxu0 0.0
      %4505 = vmatpush1.msra.mxu0 0.0
      %4506 = vmatprep.subr.mxu0 0.0
      %4507 = vmatpush1.msra.mxu0 0.0
      %4508 = vmatprep.subr.mxu0 0.0
      %4509 = vmatpush1.msra.mxu0 0.0
      %4510 = vmatprep.subr.mxu0 0.0
      %4511 = vmatpush1.msra.mxu0 0.0
      %4512 = vmatprep.subr.mxu0 0.0
      %4513 = vmatpush1.msra.mxu0 0.0
      %4514 = vmatprep.subr.mxu0 0.0
      %4515 = vmatpush1.msra.mxu0 0.0
      %4516 = vmatprep.subr.mxu0 0.0
      %4517 = vmatpush1.msra.mxu0 0.0
      %4518 = vmatprep.subr.mxu0 0.0
      %4519 = vmatpush1.msra.mxu0 0.0
      %4520 = vmatprep.subr.mxu0 0.0
      %4521 = vmatpush1.msra.mxu0 0.0
      %4522 = vmatprep.subr.mxu0 0.0
      %4523 = vmatpush1.msra.mxu0 0.0
      %4524 = vmatprep.subr.mxu0 0.0
      %4525 = vmatpush1.msra.mxu0 0.0
      %4526 = vmatprep.subr.mxu0 0.0
      %4527 = vmatpush1.msra.mxu0 0.0
      %4528 = vmatprep.subr.mxu0 0.0
      %4529 = vmatpush1.msra.mxu0 0.0
      %4530 = vmatprep.subr.mxu0 0.0
      %4531 = vmatpush1.msra.mxu0 0.0
      %4532 = vmatprep.subr.mxu0 0.0
      %4533 = vmatpush1.msra.mxu0 0.0
      %4534 = vmatprep.subr.mxu0 0.0
      %4535 = vmatpush1.msra.mxu0 0.0
      %4536 = vmatprep.subr.mxu0 0.0
      %4537 = vmatpush1.msra.mxu0 0.0
      %4538 = vmatprep.subr.mxu0 0.0
      %4539 = vmatpush1.msra.mxu0 0.0
      %4540 = vmatprep.subr.mxu0 0.0
      %4541 = vmatpush1.msra.mxu0 0.0
      %4542 = vmatprep.subr.mxu0 0.0
      %4543 = vmatpush1.msra.mxu0 0.0
      %4544 = vmatprep.subr.mxu0 0.0
      %4545 = vmatpush1.msra.mxu0 0.0
      %4546 = vmatprep.subr.mxu0 0.0
      %4547 = vmatpush1.msra.mxu0 0.0
      %4548 = vmatprep.subr.mxu0 0.0
      %4549 = vmatpush1.msra.mxu0 0.0
      %4550 = vmatprep.mubr.f32.mxu0 0.0
      %4551 = vmatmul.mubr.f32.gmra.mrb[0].mxu0 %v4470
      %v4552 = vpop.f32.mrb[0].mxu0
      %v4553 = vadd.f32 0.0, %v4552
      %v4554 = vpop.f32.mrb[0].mxu0
      %4555 = vmatprep.mubr.f32.mxu0 0.0
      %4556 = vmatmul.mubr.f32.gmra.mrb[0].mxu0 %v4472
      %v4557 = vpop.f32.mrb[0].mxu0
      %v4558 = vadd.f32 0.0, %v4557
      %v4559 = vpop.f32.mrb[0].mxu0
      %4560 = vmatprep.mubr.f32.mxu0 0.0
      %4561 = vmatmul.mubr.f32.gmra.mrb[0].mxu0 %v4474
      %v4562 = vpop.f32.mrb[0].mxu0
      %v4563 = vadd.f32 0.0, %v4562
      %v4564 = vpop.f32.mrb[0].mxu0
      %4565 = vmatprep.mubr.f32.mxu0 0.0
      %4566 = vmatmul.mubr.f32.gmra.mrb[0].mxu0 %v4476
      %v4567 = vpop.f32.mrb[0].mxu0
      %v4568 = vadd.f32 0.0, %v4567
      %v4569 = vpop.f32.mrb[0].mxu0
      %4570 = vmatprep.mubr.f32.mxu0 0.0
      %4571 = vmatmul.mubr.f32.gmra.mrb[0].mxu0 %v4478
      %v4572 = vpop.f32.mrb[0].mxu0
      %v4573 = vadd.f32 0.0, %v4572
      %v4574 = vpop.f32.mrb[0].mxu0
      %4575 = vmatprep.mubr.f32.mxu0 0.0
      %4576 = vmatmul.mubr.f32.gmra.mrb[0].mxu0 %v4480
      %v4577 = vpop.f32.mrb[0].mxu0
      %v4578 = vadd.f32 0.0, %v4577
      %v4579 = vpop.f32.mrb[0].mxu0
      %4580 = vmatprep.mubr.f32.mxu0 0.0
      %4581 = vmatmul.mubr.f32.gmra.mrb[0].mxu0 %v4482
      %v4582 = vpop.f32.mrb[0].mxu0
      %v4583 = vadd.f32 0.0, %v4582
      %v4584 = vpop.f32.mrb[0].mxu0
      %4585 = vmatprep.mubr.f32.mxu0 0.0
      %4586 = vmatmul.mubr.f32.gmra.mrb[0].mxu0 %v4484
      %v4587 = vpop.f32.mrb[0].mxu0
      %v4588 = vadd.f32 0.0, %v4587
      %v4589 = vpop.f32.mrb[0].mxu0
      %4590 = vdwg.mxu0
      %v4591 = vadd.f32 %v4426, %v4553
      %v4592 = vadd.f32 %v4427, %v4558
      %v4593 = vadd.f32 %v4428, %v4563
      %v4594 = vadd.f32 %v4429, %v4568
      %v4595 = vadd.f32 %v4430, %v4573
      %v4596 = vadd.f32 %v4431, %v4578
      %v4597 = vadd.f32 %v4432, %v4583
      %v4598 = vadd.f32 %v4433, %v4588
      %v4599 = vld [vmem:[%s3157] sm:$0xff]
      %v4600 = vld [vmem:[%s3157 + $0x8] sm:$0xff]
      %v4601 = vld [vmem:[%s3157 + $0x10] sm:$0xff]
      %v4602 = vld [vmem:[%s3157 + $0x18] sm:$0xff]
      %4603 = vrot.lane.b32.xlu0 %v4434, 32
      %v4604 = vpop.permute.xlu0 %4603
      %4605 = vrot.lane.b32.xlu0 %v4435, 32
      %v4606 = vpop.permute.xlu0 %4605
      %4607 = vrot.lane.b32.xlu0 %v4436, 32
      %v4608 = vpop.permute.xlu0 %4607
      %4609 = vrot.lane.b32.xlu0 %v4437, 32
      %v4610 = vpop.permute.xlu0 %4609
      %4611 = vrot.lane.b32.xlu0 %v4438, 32
      %v4612 = vpop.permute.xlu0 %4611
      %4613 = vrot.lane.b32.xlu0 %v4439, 32
      %v4614 = vpop.permute.xlu0 %4613
      %4615 = vrot.lane.b32.xlu0 %v4440, 32
      %v4616 = vpop.permute.xlu0 %4615
      %4617 = vrot.lane.b32.xlu0 %v4441, 32
      %v4618 = vpop.permute.xlu0 %4617
      %v4619 = vsel %vm2178, %v4604, 0
      %v4621 = vsel %vm2178, %v4606, 0
      %v4623 = vsel %vm2178, %v4608, 0
      %v4625 = vsel %vm2178, %v4610, 0
      %v4627 = vsel %vm2178, %v4612, 0
      %v4629 = vsel %vm2178, %v4614, 0
      %v4631 = vsel %vm2178, %v4616, 0
      %v4633 = vsel %vm2178, %v4618, 0
      %4635 = vmatprep.subr.mxu0 0.0
      %4636 = vmatpush1.msra.mxu0 %v4599
      %4637 = vmatprep.subr.mxu0 0.0
      %4638 = vmatpush1.msra.mxu0 %v4600
      %4639 = vmatprep.subr.mxu0 0.0
      %4640 = vmatpush1.msra.mxu0 %v4601
      %4641 = vmatprep.subr.mxu0 0.0
      %4642 = vmatpush1.msra.mxu0 %v4602
      %4643 = vmatprep.subr.mxu0 0.0
      %4644 = vmatpush1.msra.mxu0 0.0
      %4645 = vmatprep.subr.mxu0 0.0
      %4646 = vmatpush1.msra.mxu0 0.0
      %4647 = vmatprep.subr.mxu0 0.0
      %4648 = vmatpush1.msra.mxu0 0.0
      %4649 = vmatprep.subr.mxu0 0.0
      %4650 = vmatpush1.msra.mxu0 0.0
      %4651 = vmatprep.subr.mxu0 0.0
      %4652 = vmatpush1.msra.mxu0 0.0
      %4653 = vmatprep.subr.mxu0 0.0
      %4654 = vmatpush1.msra.mxu0 0.0
      %4655 = vmatprep.subr.mxu0 0.0
      %4656 = vmatpush1.msra.mxu0 0.0
      %4657 = vmatprep.subr.mxu0 0.0
      %4658 = vmatpush1.msra.mxu0 0.0
      %4659 = vmatprep.subr.mxu0 0.0
      %4660 = vmatpush1.msra.mxu0 0.0
      %4661 = vmatprep.subr.mxu0 0.0
      %4662 = vmatpush1.msra.mxu0 0.0
      %4663 = vmatprep.subr.mxu0 0.0
      %4664 = vmatpush1.msra.mxu0 0.0
      %4665 = vmatprep.subr.mxu0 0.0
      %4666 = vmatpush1.msra.mxu0 0.0
      %4667 = vmatprep.subr.mxu0 0.0
      %4668 = vmatpush1.msra.mxu0 0.0
      %4669 = vmatprep.subr.mxu0 0.0
      %4670 = vmatpush1.msra.mxu0 0.0
      %4671 = vmatprep.subr.mxu0 0.0
      %4672 = vmatpush1.msra.mxu0 0.0
      %4673 = vmatprep.subr.mxu0 0.0
      %4674 = vmatpush1.msra.mxu0 0.0
      %4675 = vmatprep.subr.mxu0 0.0
      %4676 = vmatpush1.msra.mxu0 0.0
      %4677 = vmatprep.subr.mxu0 0.0
      %4678 = vmatpush1.msra.mxu0 0.0
      %4679 = vmatprep.subr.mxu0 0.0
      %4680 = vmatpush1.msra.mxu0 0.0
      %4681 = vmatprep.subr.mxu0 0.0
      %4682 = vmatpush1.msra.mxu0 0.0
      %4683 = vmatprep.subr.mxu0 0.0
      %4684 = vmatpush1.msra.mxu0 0.0
      %4685 = vmatprep.subr.mxu0 0.0
      %4686 = vmatpush1.msra.mxu0 0.0
      %4687 = vmatprep.subr.mxu0 0.0
      %4688 = vmatpush1.msra.mxu0 0.0
      %4689 = vmatprep.subr.mxu0 0.0
      %4690 = vmatpush1.msra.mxu0 0.0
      %4691 = vmatprep.subr.mxu0 0.0
      %4692 = vmatpush1.msra.mxu0 0.0
      %4693 = vmatprep.subr.mxu0 0.0
      %4694 = vmatpush1.msra.mxu0 0.0
      %4695 = vmatprep.subr.mxu0 0.0
      %4696 = vmatpush1.msra.mxu0 0.0
      %4697 = vmatprep.subr.mxu0 0.0
      %4698 = vmatpush1.msra.mxu0 0.0
      %4699 = vmatprep.mubr.f32.mxu0 0.0
      %4700 = vmatmul.mubr.f32.gmra.mrb[0].mxu0 %v4619
      %v4701 = vpop.f32.mrb[0].mxu0
      %v4702 = vadd.f32 0.0, %v4701
      %v4703 = vpop.f32.mrb[0].mxu0
      %4704 = vmatprep.mubr.f32.mxu0 0.0
      %4705 = vmatmul.mubr.f32.gmra.mrb[0].mxu0 %v4621
      %v4706 = vpop.f32.mrb[0].mxu0
      %v4707 = vadd.f32 0.0, %v4706
      %v4708 = vpop.f32.mrb[0].mxu0
      %4709 = vmatprep.mubr.f32.mxu0 0.0
      %4710 = vmatmul.mubr.f32.gmra.mrb[0].mxu0 %v4623
      %v4711 = vpop.f32.mrb[0].mxu0
      %v4712 = vadd.f32 0.0, %v4711
      %v4713 = vpop.f32.mrb[0].mxu0
      %4714 = vmatprep.mubr.f32.mxu0 0.0
      %4715 = vmatmul.mubr.f32.gmra.mrb[0].mxu0 %v4625
      %v4716 = vpop.f32.mrb[0].mxu0
      %v4717 = vadd.f32 0.0, %v4716
      %v4718 = vpop.f32.mrb[0].mxu0
      %4719 = vmatprep.mubr.f32.mxu0 0.0
      %4720 = vmatmul.mubr.f32.gmra.mrb[0].mxu0 %v4627
      %v4721 = vpop.f32.mrb[0].mxu0
      %v4722 = vadd.f32 0.0, %v4721
      %v4723 = vpop.f32.mrb[0].mxu0
      %4724 = vmatprep.mubr.f32.mxu0 0.0
      %4725 = vmatmul.mubr.f32.gmra.mrb[0].mxu0 %v4629
      %v4726 = vpop.f32.mrb[0].mxu0
      %v4727 = vadd.f32 0.0, %v4726
      %v4728 = vpop.f32.mrb[0].mxu0
      %4729 = vmatprep.mubr.f32.mxu0 0.0
      %4730 = vmatmul.mubr.f32.gmra.mrb[0].mxu0 %v4631
      %v4731 = vpop.f32.mrb[0].mxu0
      %v4732 = vadd.f32 0.0, %v4731
      %v4733 = vpop.f32.mrb[0].mxu0
      %4734 = vmatprep.mubr.f32.mxu0 0.0
      %4735 = vmatmul.mubr.f32.gmra.mrb[0].mxu0 %v4633
      %v4736 = vpop.f32.mrb[0].mxu0
      %v4737 = vadd.f32 0.0, %v4736
      %v4738 = vpop.f32.mrb[0].mxu0
      %4739 = vdwg.mxu0
      %v4740 = vadd.f32 %v4591, %v4702
      %v4741 = vadd.f32 %v4592, %v4707
      %v4742 = vadd.f32 %v4593, %v4712
      %v4743 = vadd.f32 %v4594, %v4717
      %v4744 = vadd.f32 %v4595, %v4722
      %v4745 = vadd.f32 %v4596, %v4727
      %v4746 = vadd.f32 %v4597, %v4732
      %v4747 = vadd.f32 %v4598, %v4737
      %v4748 = vld [vmem:[%s2086 + $0x1] sm:$0xff]
      %v4749 = vld [vmem:[%s2086 + $0x41] sm:$0xff]
      %v4750 = vld [vmem:[%s2086 + $0x81] sm:$0xff]
      %v4751 = vld [vmem:[%s2086 + $0xc1] sm:$0xff]
      %v4752 = vld [vmem:[%s2086 + $0x101] sm:$0xff]
      %v4753 = vld [vmem:[%s2086 + $0x141] sm:$0xff]
      %v4754 = vld [vmem:[%s2086 + $0x181] sm:$0xff]
      %v4755 = vld [vmem:[%s2086 + $0x1c1] sm:$0xff]
      %v4756 = vld [vmem:[%s3307] sm:$0xff]
      %v4757 = vld [vmem:[%s3307 + $0x8] sm:$0xff]
      %v4758 = vld [vmem:[%s3307 + $0x10] sm:$0xff]
      %v4759 = vld [vmem:[%s3307 + $0x18] sm:$0xff]
      %v4761 = vsel %vm2178, %v4748, 0
      %v4764 = vsel %vm2178, %v4749, 0
      %v4767 = vsel %vm2178, %v4750, 0
      %v4770 = vsel %vm2178, %v4751, 0
      %v4773 = vsel %vm2178, %v4752, 0
      %v4776 = vsel %vm2178, %v4753, 0
      %v4779 = vsel %vm2178, %v4754, 0
      %v4782 = vsel %vm2178, %v4755, 0
      %4784 = vmatprep.subr.mxu0 0.0
      %4785 = vmatpush1.msra.mxu0 %v4756
      %4786 = vmatprep.subr.mxu0 0.0
      %4787 = vmatpush1.msra.mxu0 %v4757
      %4788 = vmatprep.subr.mxu0 0.0
      %4789 = vmatpush1.msra.mxu0 %v4758
      %4790 = vmatprep.subr.mxu0 0.0
      %4791 = vmatpush1.msra.mxu0 %v4759
      %4792 = vmatprep.subr.mxu0 0.0
      %4793 = vmatpush1.msra.mxu0 0.0
      %4794 = vmatprep.subr.mxu0 0.0
      %4795 = vmatpush1.msra.mxu0 0.0
      %4796 = vmatprep.subr.mxu0 0.0
      %4797 = vmatpush1.msra.mxu0 0.0
      %4798 = vmatprep.subr.mxu0 0.0
      %4799 = vmatpush1.msra.mxu0 0.0
      %4800 = vmatprep.subr.mxu0 0.0
      %4801 = vmatpush1.msra.mxu0 0.0
      %4802 = vmatprep.subr.mxu0 0.0
      %4803 = vmatpush1.msra.mxu0 0.0
      %4804 = vmatprep.subr.mxu0 0.0
      %4805 = vmatpush1.msra.mxu0 0.0
      %4806 = vmatprep.subr.mxu0 0.0
      %4807 = vmatpush1.msra.mxu0 0.0
      %4808 = vmatprep.subr.mxu0 0.0
      %4809 = vmatpush1.msra.mxu0 0.0
      %4810 = vmatprep.subr.mxu0 0.0
      %4811 = vmatpush1.msra.mxu0 0.0
      %4812 = vmatprep.subr.mxu0 0.0
      %4813 = vmatpush1.msra.mxu0 0.0
      %4814 = vmatprep.subr.mxu0 0.0
      %4815 = vmatpush1.msra.mxu0 0.0
      %4816 = vmatprep.subr.mxu0 0.0
      %4817 = vmatpush1.msra.mxu0 0.0
      %4818 = vmatprep.subr.mxu0 0.0
      %4819 = vmatpush1.msra.mxu0 0.0
      %4820 = vmatprep.subr.mxu0 0.0
      %4821 = vmatpush1.msra.mxu0 0.0
      %4822 = vmatprep.subr.mxu0 0.0
      %4823 = vmatpush1.msra.mxu0 0.0
      %4824 = vmatprep.subr.mxu0 0.0
      %4825 = vmatpush1.msra.mxu0 0.0
      %4826 = vmatprep.subr.mxu0 0.0
      %4827 = vmatpush1.msra.mxu0 0.0
      %4828 = vmatprep.subr.mxu0 0.0
      %4829 = vmatpush1.msra.mxu0 0.0
      %4830 = vmatprep.subr.mxu0 0.0
      %4831 = vmatpush1.msra.mxu0 0.0
      %4832 = vmatprep.subr.mxu0 0.0
      %4833 = vmatpush1.msra.mxu0 0.0
      %4834 = vmatprep.subr.mxu0 0.0
      %4835 = vmatpush1.msra.mxu0 0.0
      %4836 = vmatprep.subr.mxu0 0.0
      %4837 = vmatpush1.msra.mxu0 0.0
      %4838 = vmatprep.subr.mxu0 0.0
      %4839 = vmatpush1.msra.mxu0 0.0
      %4840 = vmatprep.subr.mxu0 0.0
      %4841 = vmatpush1.msra.mxu0 0.0
      %4842 = vmatprep.subr.mxu0 0.0
      %4843 = vmatpush1.msra.mxu0 0.0
      %4844 = vmatprep.subr.mxu0 0.0
      %4845 = vmatpush1.msra.mxu0 0.0
      %4846 = vmatprep.subr.mxu0 0.0
      %4847 = vmatpush1.msra.mxu0 0.0
      %4848 = vmatprep.mubr.f32.mxu0 0.0
      %4849 = vmatmul.mubr.f32.gmra.mrb[0].mxu0 %v4761
      %v4850 = vpop.f32.mrb[0].mxu0
      %v4851 = vadd.f32 0.0, %v4850
      %v4852 = vpop.f32.mrb[0].mxu0
      %4853 = vmatprep.mubr.f32.mxu0 0.0
      %4854 = vmatmul.mubr.f32.gmra.mrb[0].mxu0 %v4764
      %v4855 = vpop.f32.mrb[0].mxu0
      %v4856 = vadd.f32 0.0, %v4855
      %v4857 = vpop.f32.mrb[0].mxu0
      %4858 = vmatprep.mubr.f32.mxu0 0.0
      %4859 = vmatmul.mubr.f32.gmra.mrb[0].mxu0 %v4767
      %v4860 = vpop.f32.mrb[0].mxu0
      %v4861 = vadd.f32 0.0, %v4860
      %v4862 = vpop.f32.mrb[0].mxu0
      %4863 = vmatprep.mubr.f32.mxu0 0.0
      %4864 = vmatmul.mubr.f32.gmra.mrb[0].mxu0 %v4770
      %v4865 = vpop.f32.mrb[0].mxu0
      %v4866 = vadd.f32 0.0, %v4865
      %v4867 = vpop.f32.mrb[0].mxu0
      %4868 = vmatprep.mubr.f32.mxu0 0.0
      %4869 = vmatmul.mubr.f32.gmra.mrb[0].mxu0 %v4773
      %v4870 = vpop.f32.mrb[0].mxu0
      %v4871 = vadd.f32 0.0, %v4870
      %v4872 = vpop.f32.mrb[0].mxu0
      %4873 = vmatprep.mubr.f32.mxu0 0.0
      %4874 = vmatmul.mubr.f32.gmra.mrb[0].mxu0 %v4776
      %v4875 = vpop.f32.mrb[0].mxu0
      %v4876 = vadd.f32 0.0, %v4875
      %v4877 = vpop.f32.mrb[0].mxu0
      %4878 = vmatprep.mubr.f32.mxu0 0.0
      %4879 = vmatmul.mubr.f32.gmra.mrb[0].mxu0 %v4779
      %v4880 = vpop.f32.mrb[0].mxu0
      %v4881 = vadd.f32 0.0, %v4880
      %v4882 = vpop.f32.mrb[0].mxu0
      %4883 = vmatprep.mubr.f32.mxu0 0.0
      %4884 = vmatmul.mubr.f32.gmra.mrb[0].mxu0 %v4782
      %v4885 = vpop.f32.mrb[0].mxu0
      %v4886 = vadd.f32 0.0, %v4885
      %v4887 = vpop.f32.mrb[0].mxu0
      %4888 = vdwg.mxu0
      %v4889 = vadd.f32 %v4740, %v4851
      %v4890 = vadd.f32 %v4741, %v4856
      %v4891 = vadd.f32 %v4742, %v4861
      %v4892 = vadd.f32 %v4743, %v4866
      %v4893 = vadd.f32 %v4744, %v4871
      %v4894 = vadd.f32 %v4745, %v4876
      %v4895 = vadd.f32 %v4746, %v4881
      %v4896 = vadd.f32 %v4747, %v4886
      %v4897 = vld [vmem:[%s2219] sm:$0xff]
      %v4898 = vld [vmem:[%s2219 + $0x40] sm:$0xff]
      %v4899 = vld [vmem:[%s2219 + $0x80] sm:$0xff]
      %v4900 = vld [vmem:[%s2219 + $0xc0] sm:$0xff]
      %v4901 = vld [vmem:[%s2219 + $0x100] sm:$0xff]
      %v4902 = vld [vmem:[%s2219 + $0x140] sm:$0xff]
      %v4903 = vld [vmem:[%s2219 + $0x180] sm:$0xff]
      %v4904 = vld [vmem:[%s2219 + $0x1c0] sm:$0xff]
      %v4905 = vld [vmem:[%s3465] sm:$0xff]
      %v4906 = vld [vmem:[%s3465 + $0x8] sm:$0xff]
      %v4907 = vld [vmem:[%s3465 + $0x10] sm:$0xff]
      %v4908 = vld [vmem:[%s3465 + $0x18] sm:$0xff]
      %4917 = vrot.lane.b32.xlu0 %v4897, 64
      %v4918 = vpop.permute.xlu0 %4917
      %4919 = vrot.lane.b32.xlu0 %v4898, 64
      %v4920 = vpop.permute.xlu0 %4919
      %4921 = vrot.lane.b32.xlu0 %v4899, 64
      %v4922 = vpop.permute.xlu0 %4921
      %4923 = vrot.lane.b32.xlu0 %v4900, 64
      %v4924 = vpop.permute.xlu0 %4923
      %4925 = vrot.lane.b32.xlu0 %v4901, 64
      %v4926 = vpop.permute.xlu0 %4925
      %4927 = vrot.lane.b32.xlu0 %v4902, 64
      %v4928 = vpop.permute.xlu0 %4927
      %4929 = vrot.lane.b32.xlu0 %v4903, 64
      %v4930 = vpop.permute.xlu0 %4929
      %4931 = vrot.lane.b32.xlu0 %v4904, 64
      %v4932 = vpop.permute.xlu0 %4931
      %v4933 = vsel %vm2178, %v4918, 0
      %v4935 = vsel %vm2178, %v4920, 0
      %v4937 = vsel %vm2178, %v4922, 0
      %v4939 = vsel %vm2178, %v4924, 0
      %v4941 = vsel %vm2178, %v4926, 0
      %v4943 = vsel %vm2178, %v4928, 0
      %v4945 = vsel %vm2178, %v4930, 0
      %v4947 = vsel %vm2178, %v4932, 0
      %4949 = vmatprep.subr.mxu0 0.0
      %4950 = vmatpush1.msra.mxu0 %v4905
      %4951 = vmatprep.subr.mxu0 0.0
      %4952 = vmatpush1.msra.mxu0 %v4906
      %4953 = vmatprep.subr.mxu0 0.0
      %4954 = vmatpush1.msra.mxu0 %v4907
      %4955 = vmatprep.subr.mxu0 0.0
      %4956 = vmatpush1.msra.mxu0 %v4908
      %4957 = vmatprep.subr.mxu0 0.0
      %4958 = vmatpush1.msra.mxu0 0.0
      %4959 = vmatprep.subr.mxu0 0.0
      %4960 = vmatpush1.msra.mxu0 0.0
      %4961 = vmatprep.subr.mxu0 0.0
      %4962 = vmatpush1.msra.mxu0 0.0
      %4963 = vmatprep.subr.mxu0 0.0
      %4964 = vmatpush1.msra.mxu0 0.0
      %4965 = vmatprep.subr.mxu0 0.0
      %4966 = vmatpush1.msra.mxu0 0.0
      %4967 = vmatprep.subr.mxu0 0.0
      %4968 = vmatpush1.msra.mxu0 0.0
      %4969 = vmatprep.subr.mxu0 0.0
      %4970 = vmatpush1.msra.mxu0 0.0
      %4971 = vmatprep.subr.mxu0 0.0
      %4972 = vmatpush1.msra.mxu0 0.0
      %4973 = vmatprep.subr.mxu0 0.0
      %4974 = vmatpush1.msra.mxu0 0.0
      %4975 = vmatprep.subr.mxu0 0.0
      %4976 = vmatpush1.msra.mxu0 0.0
      %4977 = vmatprep.subr.mxu0 0.0
      %4978 = vmatpush1.msra.mxu0 0.0
      %4979 = vmatprep.subr.mxu0 0.0
      %4980 = vmatpush1.msra.mxu0 0.0
      %4981 = vmatprep.subr.mxu0 0.0
      %4982 = vmatpush1.msra.mxu0 0.0
      %4983 = vmatprep.subr.mxu0 0.0
      %4984 = vmatpush1.msra.mxu0 0.0
      %4985 = vmatprep.subr.mxu0 0.0
      %4986 = vmatpush1.msra.mxu0 0.0
      %4987 = vmatprep.subr.mxu0 0.0
      %4988 = vmatpush1.msra.mxu0 0.0
      %4989 = vmatprep.subr.mxu0 0.0
      %4990 = vmatpush1.msra.mxu0 0.0
      %4991 = vmatprep.subr.mxu0 0.0
      %4992 = vmatpush1.msra.mxu0 0.0
      %4993 = vmatprep.subr.mxu0 0.0
      %4994 = vmatpush1.msra.mxu0 0.0
      %4995 = vmatprep.subr.mxu0 0.0
      %4996 = vmatpush1.msra.mxu0 0.0
      %4997 = vmatprep.subr.mxu0 0.0
      %4998 = vmatpush1.msra.mxu0 0.0
      %4999 = vmatprep.subr.mxu0 0.0
      %5000 = vmatpush1.msra.mxu0 0.0
      %5001 = vmatprep.subr.mxu0 0.0
      %5002 = vmatpush1.msra.mxu0 0.0
      %5003 = vmatprep.subr.mxu0 0.0
      %5004 = vmatpush1.msra.mxu0 0.0
      %5005 = vmatprep.subr.mxu0 0.0
      %5006 = vmatpush1.msra.mxu0 0.0
      %5007 = vmatprep.subr.mxu0 0.0
      %5008 = vmatpush1.msra.mxu0 0.0
      %5009 = vmatprep.subr.mxu0 0.0
      %5010 = vmatpush1.msra.mxu0 0.0
      %5011 = vmatprep.subr.mxu0 0.0
      %5012 = vmatpush1.msra.mxu0 0.0
      %5013 = vmatprep.mubr.f32.mxu0 0.0
      %5014 = vmatmul.mubr.f32.gmra.mrb[0].mxu0 %v4933
      %v5015 = vpop.f32.mrb[0].mxu0
      %v5016 = vadd.f32 0.0, %v5015
      %v5017 = vpop.f32.mrb[0].mxu0
      %5018 = vmatprep.mubr.f32.mxu0 0.0
      %5019 = vmatmul.mubr.f32.gmra.mrb[0].mxu0 %v4935
      %v5020 = vpop.f32.mrb[0].mxu0
      %v5021 = vadd.f32 0.0, %v5020
      %v5022 = vpop.f32.mrb[0].mxu0
      %5023 = vmatprep.mubr.f32.mxu0 0.0
      %5024 = vmatmul.mubr.f32.gmra.mrb[0].mxu0 %v4937
      %v5025 = vpop.f32.mrb[0].mxu0
      %v5026 = vadd.f32 0.0, %v5025
      %v5027 = vpop.f32.mrb[0].mxu0
      %5028 = vmatprep.mubr.f32.mxu0 0.0
      %5029 = vmatmul.mubr.f32.gmra.mrb[0].mxu0 %v4939
      %v5030 = vpop.f32.mrb[0].mxu0
      %v5031 = vadd.f32 0.0, %v5030
      %v5032 = vpop.f32.mrb[0].mxu0
      %5033 = vmatprep.mubr.f32.mxu0 0.0
      %5034 = vmatmul.mubr.f32.gmra.mrb[0].mxu0 %v4941
      %v5035 = vpop.f32.mrb[0].mxu0
      %v5036 = vadd.f32 0.0, %v5035
      %v5037 = vpop.f32.mrb[0].mxu0
      %5038 = vmatprep.mubr.f32.mxu0 0.0
      %5039 = vmatmul.mubr.f32.gmra.mrb[0].mxu0 %v4943
      %v5040 = vpop.f32.mrb[0].mxu0
      %v5041 = vadd.f32 0.0, %v5040
      %v5042 = vpop.f32.mrb[0].mxu0
      %5043 = vmatprep.mubr.f32.mxu0 0.0
      %5044 = vmatmul.mubr.f32.gmra.mrb[0].mxu0 %v4945
      %v5045 = vpop.f32.mrb[0].mxu0
      %v5046 = vadd.f32 0.0, %v5045
      %v5047 = vpop.f32.mrb[0].mxu0
      %5048 = vmatprep.mubr.f32.mxu0 0.0
      %5049 = vmatmul.mubr.f32.gmra.mrb[0].mxu0 %v4947
      %v5050 = vpop.f32.mrb[0].mxu0
      %v5051 = vadd.f32 0.0, %v5050
      %v5052 = vpop.f32.mrb[0].mxu0
      %5053 = vdwg.mxu0
      %v5054 = vadd.f32 %v4889, %v5016
      %v5055 = vadd.f32 %v4890, %v5021
      %v5056 = vadd.f32 %v4891, %v5026
      %v5057 = vadd.f32 %v4892, %v5031
      %v5058 = vadd.f32 %v4893, %v5036
      %v5059 = vadd.f32 %v4894, %v5041
      %v5060 = vadd.f32 %v4895, %v5046
      %v5061 = vadd.f32 %v4896, %v5051
      %v5062 = vld [vmem:[%s3607] sm:$0xff]
      %v5063 = vld [vmem:[%s3607 + $0x8] sm:$0xff]
      %v5064 = vld [vmem:[%s3607 + $0x10] sm:$0xff]
      %v5065 = vld [vmem:[%s3607 + $0x18] sm:$0xff]
      %5066 = vrot.lane.b32.xlu0 %v4897, 32
      %v5067 = vpop.permute.xlu0 %5066
      %5068 = vrot.lane.b32.xlu0 %v4898, 32
      %v5069 = vpop.permute.xlu0 %5068
      %5070 = vrot.lane.b32.xlu0 %v4899, 32
      %v5071 = vpop.permute.xlu0 %5070
      %5072 = vrot.lane.b32.xlu0 %v4900, 32
      %v5073 = vpop.permute.xlu0 %5072
      %5074 = vrot.lane.b32.xlu0 %v4901, 32
      %v5075 = vpop.permute.xlu0 %5074
      %5076 = vrot.lane.b32.xlu0 %v4902, 32
      %v5077 = vpop.permute.xlu0 %5076
      %5078 = vrot.lane.b32.xlu0 %v4903, 32
      %v5079 = vpop.permute.xlu0 %5078
      %5080 = vrot.lane.b32.xlu0 %v4904, 32
      %v5081 = vpop.permute.xlu0 %5080
      %v5082 = vsel %vm2178, %v5067, 0
      %v5084 = vsel %vm2178, %v5069, 0
      %v5086 = vsel %vm2178, %v5071, 0
      %v5088 = vsel %vm2178, %v5073, 0
      %v5090 = vsel %vm2178, %v5075, 0
      %v5092 = vsel %vm2178, %v5077, 0
      %v5094 = vsel %vm2178, %v5079, 0
      %v5096 = vsel %vm2178, %v5081, 0
      %5098 = vmatprep.subr.mxu0 0.0
      %5099 = vmatpush1.msra.mxu0 %v5062
      %5100 = vmatprep.subr.mxu0 0.0
      %5101 = vmatpush1.msra.mxu0 %v5063
      %5102 = vmatprep.subr.mxu0 0.0
      %5103 = vmatpush1.msra.mxu0 %v5064
      %5104 = vmatprep.subr.mxu0 0.0
      %5105 = vmatpush1.msra.mxu0 %v5065
      %5106 = vmatprep.subr.mxu0 0.0
      %5107 = vmatpush1.msra.mxu0 0.0
      %5108 = vmatprep.subr.mxu0 0.0
      %5109 = vmatpush1.msra.mxu0 0.0
      %5110 = vmatprep.subr.mxu0 0.0
      %5111 = vmatpush1.msra.mxu0 0.0
      %5112 = vmatprep.subr.mxu0 0.0
      %5113 = vmatpush1.msra.mxu0 0.0
      %5114 = vmatprep.subr.mxu0 0.0
      %5115 = vmatpush1.msra.mxu0 0.0
      %5116 = vmatprep.subr.mxu0 0.0
      %5117 = vmatpush1.msra.mxu0 0.0
      %5118 = vmatprep.subr.mxu0 0.0
      %5119 = vmatpush1.msra.mxu0 0.0
      %5120 = vmatprep.subr.mxu0 0.0
      %5121 = vmatpush1.msra.mxu0 0.0
      %5122 = vmatprep.subr.mxu0 0.0
      %5123 = vmatpush1.msra.mxu0 0.0
      %5124 = vmatprep.subr.mxu0 0.0
      %5125 = vmatpush1.msra.mxu0 0.0
      %5126 = vmatprep.subr.mxu0 0.0
      %5127 = vmatpush1.msra.mxu0 0.0
      %5128 = vmatprep.subr.mxu0 0.0
      %5129 = vmatpush1.msra.mxu0 0.0
      %5130 = vmatprep.subr.mxu0 0.0
      %5131 = vmatpush1.msra.mxu0 0.0
      %5132 = vmatprep.subr.mxu0 0.0
      %5133 = vmatpush1.msra.mxu0 0.0
      %5134 = vmatprep.subr.mxu0 0.0
      %5135 = vmatpush1.msra.mxu0 0.0
      %5136 = vmatprep.subr.mxu0 0.0
      %5137 = vmatpush1.msra.mxu0 0.0
      %5138 = vmatprep.subr.mxu0 0.0
      %5139 = vmatpush1.msra.mxu0 0.0
      %5140 = vmatprep.subr.mxu0 0.0
      %5141 = vmatpush1.msra.mxu0 0.0
      %5142 = vmatprep.subr.mxu0 0.0
      %5143 = vmatpush1.msra.mxu0 0.0
      %5144 = vmatprep.subr.mxu0 0.0
      %5145 = vmatpush1.msra.mxu0 0.0
      %5146 = vmatprep.subr.mxu0 0.0
      %5147 = vmatpush1.msra.mxu0 0.0
      %5148 = vmatprep.subr.mxu0 0.0
      %5149 = vmatpush1.msra.mxu0 0.0
      %5150 = vmatprep.subr.mxu0 0.0
      %5151 = vmatpush1.msra.mxu0 0.0
      %5152 = vmatprep.subr.mxu0 0.0
      %5153 = vmatpush1.msra.mxu0 0.0
      %5154 = vmatprep.subr.mxu0 0.0
      %5155 = vmatpush1.msra.mxu0 0.0
      %5156 = vmatprep.subr.mxu0 0.0
      %5157 = vmatpush1.msra.mxu0 0.0
      %5158 = vmatprep.subr.mxu0 0.0
      %5159 = vmatpush1.msra.mxu0 0.0
      %5160 = vmatprep.subr.mxu0 0.0
      %5161 = vmatpush1.msra.mxu0 0.0
      %5162 = vmatprep.mubr.f32.mxu0 0.0
      %5163 = vmatmul.mubr.f32.gmra.mrb[0].mxu0 %v5082
      %v5164 = vpop.f32.mrb[0].mxu0
      %v5165 = vadd.f32 0.0, %v5164
      %v5166 = vpop.f32.mrb[0].mxu0
      %5167 = vmatprep.mubr.f32.mxu0 0.0
      %5168 = vmatmul.mubr.f32.gmra.mrb[0].mxu0 %v5084
      %v5169 = vpop.f32.mrb[0].mxu0
      %v5170 = vadd.f32 0.0, %v5169
      %v5171 = vpop.f32.mrb[0].mxu0
      %5172 = vmatprep.mubr.f32.mxu0 0.0
      %5173 = vmatmul.mubr.f32.gmra.mrb[0].mxu0 %v5086
      %v5174 = vpop.f32.mrb[0].mxu0
      %v5175 = vadd.f32 0.0, %v5174
      %v5176 = vpop.f32.mrb[0].mxu0
      %5177 = vmatprep.mubr.f32.mxu0 0.0
      %5178 = vmatmul.mubr.f32.gmra.mrb[0].mxu0 %v5088
      %v5179 = vpop.f32.mrb[0].mxu0
      %v5180 = vadd.f32 0.0, %v5179
      %v5181 = vpop.f32.mrb[0].mxu0
      %5182 = vmatprep.mubr.f32.mxu0 0.0
      %5183 = vmatmul.mubr.f32.gmra.mrb[0].mxu0 %v5090
      %v5184 = vpop.f32.mrb[0].mxu0
      %v5185 = vadd.f32 0.0, %v5184
      %v5186 = vpop.f32.mrb[0].mxu0
      %5187 = vmatprep.mubr.f32.mxu0 0.0
      %5188 = vmatmul.mubr.f32.gmra.mrb[0].mxu0 %v5092
      %v5189 = vpop.f32.mrb[0].mxu0
      %v5190 = vadd.f32 0.0, %v5189
      %v5191 = vpop.f32.mrb[0].mxu0
      %5192 = vmatprep.mubr.f32.mxu0 0.0
      %5193 = vmatmul.mubr.f32.gmra.mrb[0].mxu0 %v5094
      %v5194 = vpop.f32.mrb[0].mxu0
      %v5195 = vadd.f32 0.0, %v5194
      %v5196 = vpop.f32.mrb[0].mxu0
      %5197 = vmatprep.mubr.f32.mxu0 0.0
      %5198 = vmatmul.mubr.f32.gmra.mrb[0].mxu0 %v5096
      %v5199 = vpop.f32.mrb[0].mxu0
      %v5200 = vadd.f32 0.0, %v5199
      %v5201 = vpop.f32.mrb[0].mxu0
      %5202 = vdwg.mxu0
      %v5203 = vadd.f32 %v5054, %v5165
      %v5204 = vadd.f32 %v5055, %v5170
      %v5205 = vadd.f32 %v5056, %v5175
      %v5206 = vadd.f32 %v5057, %v5180
      %v5207 = vadd.f32 %v5058, %v5185
      %v5208 = vadd.f32 %v5059, %v5190
      %v5209 = vadd.f32 %v5060, %v5195
      %v5210 = vadd.f32 %v5061, %v5200
      %v5211 = vld [vmem:[%s2219 + $0x1] sm:$0xff]
      %v5212 = vld [vmem:[%s2219 + $0x41] sm:$0xff]
      %v5213 = vld [vmem:[%s2219 + $0x81] sm:$0xff]
      %v5214 = vld [vmem:[%s2219 + $0xc1] sm:$0xff]
      %v5215 = vld [vmem:[%s2219 + $0x101] sm:$0xff]
      %v5216 = vld [vmem:[%s2219 + $0x141] sm:$0xff]
      %v5217 = vld [vmem:[%s2219 + $0x181] sm:$0xff]
      %v5218 = vld [vmem:[%s2219 + $0x1c1] sm:$0xff]
      %v5219 = vld [vmem:[%s3757] sm:$0xff]
      %v5220 = vld [vmem:[%s3757 + $0x8] sm:$0xff]
      %v5221 = vld [vmem:[%s3757 + $0x10] sm:$0xff]
      %v5222 = vld [vmem:[%s3757 + $0x18] sm:$0xff]
      %v5224 = vsel %vm2178, %v5211, 0
      %v5227 = vsel %vm2178, %v5212, 0
      %v5230 = vsel %vm2178, %v5213, 0
      %v5233 = vsel %vm2178, %v5214, 0
      %v5236 = vsel %vm2178, %v5215, 0
      %v5239 = vsel %vm2178, %v5216, 0
      %v5242 = vsel %vm2178, %v5217, 0
      %v5245 = vsel %vm2178, %v5218, 0
      %5247 = vmatprep.subr.mxu0 0.0
      %5248 = vmatpush1.msra.mxu0 %v5219
      %5249 = vmatprep.subr.mxu0 0.0
      %5250 = vmatpush1.msra.mxu0 %v5220
      %5251 = vmatprep.subr.mxu0 0.0
      %5252 = vmatpush1.msra.mxu0 %v5221
      %5253 = vmatprep.subr.mxu0 0.0
      %5254 = vmatpush1.msra.mxu0 %v5222
      %5255 = vmatprep.subr.mxu0 0.0
      %5256 = vmatpush1.msra.mxu0 0.0
      %5257 = vmatprep.subr.mxu0 0.0
      %5258 = vmatpush1.msra.mxu0 0.0
      %5259 = vmatprep.subr.mxu0 0.0
      %5260 = vmatpush1.msra.mxu0 0.0
      %5261 = vmatprep.subr.mxu0 0.0
      %5262 = vmatpush1.msra.mxu0 0.0
      %5263 = vmatprep.subr.mxu0 0.0
      %5264 = vmatpush1.msra.mxu0 0.0
      %5265 = vmatprep.subr.mxu0 0.0
      %5266 = vmatpush1.msra.mxu0 0.0
      %5267 = vmatprep.subr.mxu0 0.0
      %5268 = vmatpush1.msra.mxu0 0.0
      %5269 = vmatprep.subr.mxu0 0.0
      %5270 = vmatpush1.msra.mxu0 0.0
      %5271 = vmatprep.subr.mxu0 0.0
      %5272 = vmatpush1.msra.mxu0 0.0
      %5273 = vmatprep.subr.mxu0 0.0
      %5274 = vmatpush1.msra.mxu0 0.0
      %5275 = vmatprep.subr.mxu0 0.0
      %5276 = vmatpush1.msra.mxu0 0.0
      %5277 = vmatprep.subr.mxu0 0.0
      %5278 = vmatpush1.msra.mxu0 0.0
      %5279 = vmatprep.subr.mxu0 0.0
      %5280 = vmatpush1.msra.mxu0 0.0
      %5281 = vmatprep.subr.mxu0 0.0
      %5282 = vmatpush1.msra.mxu0 0.0
      %5283 = vmatprep.subr.mxu0 0.0
      %5284 = vmatpush1.msra.mxu0 0.0
      %5285 = vmatprep.subr.mxu0 0.0
      %5286 = vmatpush1.msra.mxu0 0.0
      %5287 = vmatprep.subr.mxu0 0.0
      %5288 = vmatpush1.msra.mxu0 0.0
      %5289 = vmatprep.subr.mxu0 0.0
      %5290 = vmatpush1.msra.mxu0 0.0
      %5291 = vmatprep.subr.mxu0 0.0
      %5292 = vmatpush1.msra.mxu0 0.0
      %5293 = vmatprep.subr.mxu0 0.0
      %5294 = vmatpush1.msra.mxu0 0.0
      %5295 = vmatprep.subr.mxu0 0.0
      %5296 = vmatpush1.msra.mxu0 0.0
      %5297 = vmatprep.subr.mxu0 0.0
      %5298 = vmatpush1.msra.mxu0 0.0
      %5299 = vmatprep.subr.mxu0 0.0
      %5300 = vmatpush1.msra.mxu0 0.0
      %5301 = vmatprep.subr.mxu0 0.0
      %5302 = vmatpush1.msra.mxu0 0.0
      %5303 = vmatprep.subr.mxu0 0.0
      %5304 = vmatpush1.msra.mxu0 0.0
      %5305 = vmatprep.subr.mxu0 0.0
      %5306 = vmatpush1.msra.mxu0 0.0
      %5307 = vmatprep.subr.mxu0 0.0
      %5308 = vmatpush1.msra.mxu0 0.0
      %5309 = vmatprep.subr.mxu0 0.0
      %5310 = vmatpush1.msra.mxu0 0.0
      %5311 = vmatprep.mubr.f32.mxu0 0.0
      %5312 = vmatmul.mubr.f32.gmra.mrb[0].mxu0 %v5224
      %v5313 = vpop.f32.mrb[0].mxu0
      %v5314 = vadd.f32 0.0, %v5313
      %v5315 = vpop.f32.mrb[0].mxu0
      %5316 = vmatprep.mubr.f32.mxu0 0.0
      %5317 = vmatmul.mubr.f32.gmra.mrb[0].mxu0 %v5227
      %v5318 = vpop.f32.mrb[0].mxu0
      %v5319 = vadd.f32 0.0, %v5318
      %v5320 = vpop.f32.mrb[0].mxu0
      %5321 = vmatprep.mubr.f32.mxu0 0.0
      %5322 = vmatmul.mubr.f32.gmra.mrb[0].mxu0 %v5230
      %v5323 = vpop.f32.mrb[0].mxu0
      %v5324 = vadd.f32 0.0, %v5323
      %v5325 = vpop.f32.mrb[0].mxu0
      %5326 = vmatprep.mubr.f32.mxu0 0.0
      %5327 = vmatmul.mubr.f32.gmra.mrb[0].mxu0 %v5233
      %v5328 = vpop.f32.mrb[0].mxu0
      %v5329 = vadd.f32 0.0, %v5328
      %v5330 = vpop.f32.mrb[0].mxu0
      %5331 = vmatprep.mubr.f32.mxu0 0.0
      %5332 = vmatmul.mubr.f32.gmra.mrb[0].mxu0 %v5236
      %v5333 = vpop.f32.mrb[0].mxu0
      %v5334 = vadd.f32 0.0, %v5333
      %v5335 = vpop.f32.mrb[0].mxu0
      %5336 = vmatprep.mubr.f32.mxu0 0.0
      %5337 = vmatmul.mubr.f32.gmra.mrb[0].mxu0 %v5239
      %v5338 = vpop.f32.mrb[0].mxu0
      %v5339 = vadd.f32 0.0, %v5338
      %v5340 = vpop.f32.mrb[0].mxu0
      %5341 = vmatprep.mubr.f32.mxu0 0.0
      %5342 = vmatmul.mubr.f32.gmra.mrb[0].mxu0 %v5242
      %v5343 = vpop.f32.mrb[0].mxu0
      %v5344 = vadd.f32 0.0, %v5343
      %v5345 = vpop.f32.mrb[0].mxu0
      %5346 = vmatprep.mubr.f32.mxu0 0.0
      %5347 = vmatmul.mubr.f32.gmra.mrb[0].mxu0 %v5245
      %v5348 = vpop.f32.mrb[0].mxu0
      %v5349 = vadd.f32 0.0, %v5348
      %v5350 = vpop.f32.mrb[0].mxu0
      %5351 = vdwg.mxu0
      %v5352 = vadd.f32 %v5203, %v5314
      %v5353 = vadd.f32 %v5204, %v5319
      %v5354 = vadd.f32 %v5205, %v5324
      %v5355 = vadd.f32 %v5206, %v5329
      %v5356 = vadd.f32 %v5207, %v5334
      %v5357 = vadd.f32 %v5208, %v5339
      %v5358 = vadd.f32 %v5209, %v5344
      %v5359 = vadd.f32 %v5210, %v5349
      %v5360 = vld [vmem:[%s4] sm:$0x1]
      %v5362 = vlaneseq
      %v5363 = vshrl.u32 %v5362, 7
      %v5364 = vsub.s32 0, %v5363
      %v5365 = vrot.slane %v5360, %v5364
      %v5367 = vadd.f32 %v5352, %v5365
      %v5368 = vadd.f32 %v5353, %v5365
      %v5369 = vadd.f32 %v5354, %v5365
      %v5370 = vadd.f32 %v5355, %v5365
      %v5371 = vadd.f32 %v5356, %v5365
      %v5372 = vadd.f32 %v5357, %v5365
      %v5373 = vadd.f32 %v5358, %v5365
      %v5374 = vadd.f32 %v5359, %v5365
      %vm5375 = vcmp.gt.f32.partialorder %v5367, 0.0
      %vm5376 = vcmp.gt.f32.partialorder %v5368, 0.0
      %vm5377 = vcmp.gt.f32.partialorder %v5369, 0.0
      %vm5378 = vcmp.gt.f32.partialorder %v5370, 0.0
      %vm5379 = vcmp.gt.f32.partialorder %v5371, 0.0
      %vm5380 = vcmp.gt.f32.partialorder %v5372, 0.0
      %vm5381 = vcmp.gt.f32.partialorder %v5373, 0.0
      %vm5382 = vcmp.gt.f32.partialorder %v5374, 0.0
      %v5383 = vmul.f32 %v5367, 0.2
      %v5384 = vmul.f32 %v5368, 0.2
      %v5385 = vmul.f32 %v5369, 0.2
      %v5386 = vmul.f32 %v5370, 0.2
      %v5387 = vmul.f32 %v5371, 0.2
      %v5388 = vmul.f32 %v5372, 0.2
      %v5389 = vmul.f32 %v5373, 0.2
      %v5390 = vmul.f32 %v5374, 0.2
      %v5391 = vsel %vm5375, %v5367, %v5383
      %v5392 = vsel %vm5376, %v5368, %v5384
      %v5393 = vsel %vm5377, %v5369, %v5385
      %v5394 = vsel %vm5378, %v5370, %v5386
      %v5395 = vsel %vm5379, %v5371, %v5387
      %v5396 = vsel %vm5380, %v5372, %v5388
      %v5397 = vsel %vm5381, %v5373, %v5389
      %v5398 = vsel %vm5382, %v5374, %v5390
      %v5407 = vrot.slane %v5391, 7
      %v5408 = vrot.slane %v5392, 7
      %v5409 = vrot.slane %v5393, 7
      %v5410 = vrot.slane %v5394, 7
      %v5411 = vrot.slane %v5395, 7
      %v5412 = vrot.slane %v5396, 7
      %v5413 = vrot.slane %v5397, 7
      %v5414 = vrot.slane %v5398, 7
      %vm5423 = vcmask 523265
      %5424 = vst.msk [vmem:[#allocation3 + $0x8] sm:$0xfe] %vm5423, %v5407
      %vm5425 = vcmask 516096
      %5426 = vst.msk [vmem:[#allocation3 + $0x18] sm:$0x1] %vm5425, %v5407
      %5427 = vst.msk [vmem:[#allocation3 + $0x28] sm:$0xfe] %vm5423, %v5408
      %5428 = vst.msk [vmem:[#allocation3 + $0x38] sm:$0x1] %vm5425, %v5408
      %5429 = vst.msk [vmem:[#allocation3 + $0x48] sm:$0xfe] %vm5423, %v5409
      %5430 = vst.msk [vmem:[#allocation3 + $0x58] sm:$0x1] %vm5425, %v5409
      %5431 = vst.msk [vmem:[#allocation3 + $0x68] sm:$0xfe] %vm5423, %v5410
      %5432 = vst.msk [vmem:[#allocation3 + $0x78] sm:$0x1] %vm5425, %v5410
      %5433 = vst.msk [vmem:[#allocation3 + $0x88] sm:$0xfe] %vm5423, %v5411
      %5434 = vst.msk [vmem:[#allocation3 + $0x98] sm:$0x1] %vm5425, %v5411
      %5435 = vst.msk [vmem:[#allocation3 + $0xa8] sm:$0xfe] %vm5423, %v5412
      %5436 = vst.msk [vmem:[#allocation3 + $0xb8] sm:$0x1] %vm5425, %v5412
      %5437 = vst.msk [vmem:[#allocation3 + $0xc8] sm:$0xfe] %vm5423, %v5413
      %5438 = vst.msk [vmem:[#allocation3 + $0xd8] sm:$0x1] %vm5425, %v5413
      %5439 = vst.msk [vmem:[#allocation3 + $0xe8] sm:$0xfe] %vm5423, %v5414
      %5440 = vst.msk [vmem:[#allocation3 + $0xf8] sm:$0x1] %vm5425, %v5414
      %v5441 = vld [vmem:[%s2219] sm:$0xff]
      %v5442 = vld [vmem:[%s2219 + $0x40] sm:$0xff]
      %v5443 = vld [vmem:[%s2219 + $0x80] sm:$0xff]
      %v5444 = vld [vmem:[%s2219 + $0xc0] sm:$0xff]
      %v5445 = vld [vmem:[%s2219 + $0x100] sm:$0xff]
      %v5446 = vld [vmem:[%s2219 + $0x140] sm:$0xff]
      %v5447 = vld [vmem:[%s2219 + $0x180] sm:$0xff]
      %v5448 = vld [vmem:[%s2219 + $0x1c0] sm:$0xff]
      %v5449 = vld [vmem:[%s3] sm:$0xff]
      %v5450 = vld [vmem:[%s3 + $0x8] sm:$0xff]
      %v5451 = vld [vmem:[%s3 + $0x10] sm:$0xff]
      %v5452 = vld [vmem:[%s3 + $0x18] sm:$0xff]
      %v5453 = vld [vmem:[%s2586] sm:$0xff]
      %v5454 = vld [vmem:[%s2586 + $0x8] sm:$0xff]
      %v5455 = vld [vmem:[%s2586 + $0x10] sm:$0xff]
      %v5456 = vld [vmem:[%s2586 + $0x18] sm:$0xff]
      %5465 = vrot.lane.b32.xlu0 %v5441, 96
      %v5466 = vpop.permute.xlu0 %5465
      %5467 = vrot.lane.b32.xlu0 %v5442, 96
      %v5468 = vpop.permute.xlu0 %5467
      %5469 = vrot.lane.b32.xlu0 %v5443, 96
      %v5470 = vpop.permute.xlu0 %5469
      %5471 = vrot.lane.b32.xlu0 %v5444, 96
      %v5472 = vpop.permute.xlu0 %5471
      %5473 = vrot.lane.b32.xlu0 %v5445, 96
      %v5474 = vpop.permute.xlu0 %5473
      %5475 = vrot.lane.b32.xlu0 %v5446, 96
      %v5476 = vpop.permute.xlu0 %5475
      %5477 = vrot.lane.b32.xlu0 %v5447, 96
      %v5478 = vpop.permute.xlu0 %5477
      %5479 = vrot.lane.b32.xlu0 %v5448, 96
      %v5480 = vpop.permute.xlu0 %5479
      %v5481 = vsel %vm2178, %v5466, 0
      %v5483 = vsel %vm2178, %v5468, 0
      %v5485 = vsel %vm2178, %v5470, 0
      %v5487 = vsel %vm2178, %v5472, 0
      %v5489 = vsel %vm2178, %v5474, 0
      %v5491 = vsel %vm2178, %v5476, 0
      %v5493 = vsel %vm2178, %v5478, 0
      %v5495 = vsel %vm2178, %v5480, 0
      %5497 = vmatprep.subr.mxu0 0.0
      %5498 = vmatpush1.msra.mxu0 %v5453
      %5499 = vmatprep.subr.mxu0 0.0
      %5500 = vmatpush1.msra.mxu0 %v5454
      %5501 = vmatprep.subr.mxu0 0.0
      %5502 = vmatpush1.msra.mxu0 %v5455
      %5503 = vmatprep.subr.mxu0 0.0
      %5504 = vmatpush1.msra.mxu0 %v5456
      %5505 = vmatprep.subr.mxu0 0.0
      %5506 = vmatpush1.msra.mxu0 0.0
      %5507 = vmatprep.subr.mxu0 0.0
      %5508 = vmatpush1.msra.mxu0 0.0
      %5509 = vmatprep.subr.mxu0 0.0
      %5510 = vmatpush1.msra.mxu0 0.0
      %5511 = vmatprep.subr.mxu0 0.0
      %5512 = vmatpush1.msra.mxu0 0.0
      %5513 = vmatprep.subr.mxu0 0.0
      %5514 = vmatpush1.msra.mxu0 0.0
      %5515 = vmatprep.subr.mxu0 0.0
      %5516 = vmatpush1.msra.mxu0 0.0
      %5517 = vmatprep.subr.mxu0 0.0
      %5518 = vmatpush1.msra.mxu0 0.0
      %5519 = vmatprep.subr.mxu0 0.0
      %5520 = vmatpush1.msra.mxu0 0.0
      %5521 = vmatprep.subr.mxu0 0.0
      %5522 = vmatpush1.msra.mxu0 0.0
      %5523 = vmatprep.subr.mxu0 0.0
      %5524 = vmatpush1.msra.mxu0 0.0
      %5525 = vmatprep.subr.mxu0 0.0
      %5526 = vmatpush1.msra.mxu0 0.0
      %5527 = vmatprep.subr.mxu0 0.0
      %5528 = vmatpush1.msra.mxu0 0.0
      %5529 = vmatprep.subr.mxu0 0.0
      %5530 = vmatpush1.msra.mxu0 0.0
      %5531 = vmatprep.subr.mxu0 0.0
      %5532 = vmatpush1.msra.mxu0 0.0
      %5533 = vmatprep.subr.mxu0 0.0
      %5534 = vmatpush1.msra.mxu0 0.0
      %5535 = vmatprep.subr.mxu0 0.0
      %5536 = vmatpush1.msra.mxu0 0.0
      %5537 = vmatprep.subr.mxu0 0.0
      %5538 = vmatpush1.msra.mxu0 0.0
      %5539 = vmatprep.subr.mxu0 0.0
      %5540 = vmatpush1.msra.mxu0 0.0
      %5541 = vmatprep.subr.mxu0 0.0
      %5542 = vmatpush1.msra.mxu0 0.0
      %5543 = vmatprep.subr.mxu0 0.0
      %5544 = vmatpush1.msra.mxu0 0.0
      %5545 = vmatprep.subr.mxu0 0.0
      %5546 = vmatpush1.msra.mxu0 0.0
      %5547 = vmatprep.subr.mxu0 0.0
      %5548 = vmatpush1.msra.mxu0 0.0
      %5549 = vmatprep.subr.mxu0 0.0
      %5550 = vmatpush1.msra.mxu0 0.0
      %5551 = vmatprep.subr.mxu0 0.0
      %5552 = vmatpush1.msra.mxu0 0.0
      %5553 = vmatprep.subr.mxu0 0.0
      %5554 = vmatpush1.msra.mxu0 0.0
      %5555 = vmatprep.subr.mxu0 0.0
      %5556 = vmatpush1.msra.mxu0 0.0
      %5557 = vmatprep.subr.mxu0 0.0
      %5558 = vmatpush1.msra.mxu0 0.0
      %5559 = vmatprep.subr.mxu0 0.0
      %5560 = vmatpush1.msra.mxu0 0.0
      %5561 = vmatprep.mubr.f32.mxu0 0.0
      %5562 = vmatmul.mubr.f32.gmra.mrb[0].mxu0 %v5481
      %v5563 = vpop.f32.mrb[0].mxu0
      %v5564 = vadd.f32 0.0, %v5563
      %v5565 = vpop.f32.mrb[0].mxu0
      %5566 = vmatprep.mubr.f32.mxu0 0.0
      %5567 = vmatmul.mubr.f32.gmra.mrb[0].mxu0 %v5483
      %v5568 = vpop.f32.mrb[0].mxu0
      %v5569 = vadd.f32 0.0, %v5568
      %v5570 = vpop.f32.mrb[0].mxu0
      %5571 = vmatprep.mubr.f32.mxu0 0.0
      %5572 = vmatmul.mubr.f32.gmra.mrb[0].mxu0 %v5485
      %v5573 = vpop.f32.mrb[0].mxu0
      %v5574 = vadd.f32 0.0, %v5573
      %v5575 = vpop.f32.mrb[0].mxu0
      %5576 = vmatprep.mubr.f32.mxu0 0.0
      %5577 = vmatmul.mubr.f32.gmra.mrb[0].mxu0 %v5487
      %v5578 = vpop.f32.mrb[0].mxu0
      %v5579 = vadd.f32 0.0, %v5578
      %v5580 = vpop.f32.mrb[0].mxu0
      %5581 = vmatprep.mubr.f32.mxu0 0.0
      %5582 = vmatmul.mubr.f32.gmra.mrb[0].mxu0 %v5489
      %v5583 = vpop.f32.mrb[0].mxu0
      %v5584 = vadd.f32 0.0, %v5583
      %v5585 = vpop.f32.mrb[0].mxu0
      %5586 = vmatprep.mubr.f32.mxu0 0.0
      %5587 = vmatmul.mubr.f32.gmra.mrb[0].mxu0 %v5491
      %v5588 = vpop.f32.mrb[0].mxu0
      %v5589 = vadd.f32 0.0, %v5588
      %v5590 = vpop.f32.mrb[0].mxu0
      %5591 = vmatprep.mubr.f32.mxu0 0.0
      %5592 = vmatmul.mubr.f32.gmra.mrb[0].mxu0 %v5493
      %v5593 = vpop.f32.mrb[0].mxu0
      %v5594 = vadd.f32 0.0, %v5593
      %v5595 = vpop.f32.mrb[0].mxu0
      %5596 = vmatprep.mubr.f32.mxu0 0.0
      %5597 = vmatmul.mubr.f32.gmra.mrb[0].mxu0 %v5495
      %v5598 = vpop.f32.mrb[0].mxu0
      %v5599 = vadd.f32 0.0, %v5598
      %v5600 = vpop.f32.mrb[0].mxu0
      %5601 = vdwg.mxu0
      %v5602 = vsel %vm2178, %v5441, 0
      %v5604 = vsel %vm2178, %v5442, 0
      %v5606 = vsel %vm2178, %v5443, 0
      %v5608 = vsel %vm2178, %v5444, 0
      %v5610 = vsel %vm2178, %v5445, 0
      %v5612 = vsel %vm2178, %v5446, 0
      %v5614 = vsel %vm2178, %v5447, 0
      %v5616 = vsel %vm2178, %v5448, 0
      %5618 = vmatprep.subr.mxu0 0.0
      %5619 = vmatpush1.msra.mxu0 %v5449
      %5620 = vmatprep.subr.mxu0 0.0
      %5621 = vmatpush1.msra.mxu0 %v5450
      %5622 = vmatprep.subr.mxu0 0.0
      %5623 = vmatpush1.msra.mxu0 %v5451
      %5624 = vmatprep.subr.mxu0 0.0
      %5625 = vmatpush1.msra.mxu0 %v5452
      %5626 = vmatprep.subr.mxu0 0.0
      %5627 = vmatpush1.msra.mxu0 0.0
      %5628 = vmatprep.subr.mxu0 0.0
      %5629 = vmatpush1.msra.mxu0 0.0
      %5630 = vmatprep.subr.mxu0 0.0
      %5631 = vmatpush1.msra.mxu0 0.0
      %5632 = vmatprep.subr.mxu0 0.0
      %5633 = vmatpush1.msra.mxu0 0.0
      %5634 = vmatprep.subr.mxu0 0.0
      %5635 = vmatpush1.msra.mxu0 0.0
      %5636 = vmatprep.subr.mxu0 0.0
      %5637 = vmatpush1.msra.mxu0 0.0
      %5638 = vmatprep.subr.mxu0 0.0
      %5639 = vmatpush1.msra.mxu0 0.0
      %5640 = vmatprep.subr.mxu0 0.0
      %5641 = vmatpush1.msra.mxu0 0.0
      %5642 = vmatprep.subr.mxu0 0.0
      %5643 = vmatpush1.msra.mxu0 0.0
      %5644 = vmatprep.subr.mxu0 0.0
      %5645 = vmatpush1.msra.mxu0 0.0
      %5646 = vmatprep.subr.mxu0 0.0
      %5647 = vmatpush1.msra.mxu0 0.0
      %5648 = vmatprep.subr.mxu0 0.0
      %5649 = vmatpush1.msra.mxu0 0.0
      %5650 = vmatprep.subr.mxu0 0.0
      %5651 = vmatpush1.msra.mxu0 0.0
      %5652 = vmatprep.subr.mxu0 0.0
      %5653 = vmatpush1.msra.mxu0 0.0
      %5654 = vmatprep.subr.mxu0 0.0
      %5655 = vmatpush1.msra.mxu0 0.0
      %5656 = vmatprep.subr.mxu0 0.0
      %5657 = vmatpush1.msra.mxu0 0.0
      %5658 = vmatprep.subr.mxu0 0.0
      %5659 = vmatpush1.msra.mxu0 0.0
      %5660 = vmatprep.subr.mxu0 0.0
      %5661 = vmatpush1.msra.mxu0 0.0
      %5662 = vmatprep.subr.mxu0 0.0
      %5663 = vmatpush1.msra.mxu0 0.0
      %5664 = vmatprep.subr.mxu0 0.0
      %5665 = vmatpush1.msra.mxu0 0.0
      %5666 = vmatprep.subr.mxu0 0.0
      %5667 = vmatpush1.msra.mxu0 0.0
      %5668 = vmatprep.subr.mxu0 0.0
      %5669 = vmatpush1.msra.mxu0 0.0
      %5670 = vmatprep.subr.mxu0 0.0
      %5671 = vmatpush1.msra.mxu0 0.0
      %5672 = vmatprep.subr.mxu0 0.0
      %5673 = vmatpush1.msra.mxu0 0.0
      %5674 = vmatprep.subr.mxu0 0.0
      %5675 = vmatpush1.msra.mxu0 0.0
      %5676 = vmatprep.subr.mxu0 0.0
      %5677 = vmatpush1.msra.mxu0 0.0
      %5678 = vmatprep.subr.mxu0 0.0
      %5679 = vmatpush1.msra.mxu0 0.0
      %5680 = vmatprep.subr.mxu0 0.0
      %5681 = vmatpush1.msra.mxu0 0.0
      %5682 = vmatprep.mubr.f32.mxu0 0.0
      %5683 = vmatmul.mubr.f32.gmra.mrb[0].mxu0 %v5602
      %v5684 = vpop.f32.mrb[0].mxu0
      %v5685 = vadd.f32 %v5564, %v5684
      %v5686 = vpop.f32.mrb[0].mxu0
      %5687 = vmatprep.mubr.f32.mxu0 0.0
      %5688 = vmatmul.mubr.f32.gmra.mrb[0].mxu0 %v5604
      %v5689 = vpop.f32.mrb[0].mxu0
      %v5690 = vadd.f32 %v5569, %v5689
      %v5691 = vpop.f32.mrb[0].mxu0
      %5692 = vmatprep.mubr.f32.mxu0 0.0
      %5693 = vmatmul.mubr.f32.gmra.mrb[0].mxu0 %v5606
      %v5694 = vpop.f32.mrb[0].mxu0
      %v5695 = vadd.f32 %v5574, %v5694
      %v5696 = vpop.f32.mrb[0].mxu0
      %5697 = vmatprep.mubr.f32.mxu0 0.0
      %5698 = vmatmul.mubr.f32.gmra.mrb[0].mxu0 %v5608
      %v5699 = vpop.f32.mrb[0].mxu0
      %v5700 = vadd.f32 %v5579, %v5699
      %v5701 = vpop.f32.mrb[0].mxu0
      %5702 = vmatprep.mubr.f32.mxu0 0.0
      %5703 = vmatmul.mubr.f32.gmra.mrb[0].mxu0 %v5610
      %v5704 = vpop.f32.mrb[0].mxu0
      %v5705 = vadd.f32 %v5584, %v5704
      %v5706 = vpop.f32.mrb[0].mxu0
      %5707 = vmatprep.mubr.f32.mxu0 0.0
      %5708 = vmatmul.mubr.f32.gmra.mrb[0].mxu0 %v5612
      %v5709 = vpop.f32.mrb[0].mxu0
      %v5710 = vadd.f32 %v5589, %v5709
      %v5711 = vpop.f32.mrb[0].mxu0
      %5712 = vmatprep.mubr.f32.mxu0 0.0
      %5713 = vmatmul.mubr.f32.gmra.mrb[0].mxu0 %v5614
      %v5714 = vpop.f32.mrb[0].mxu0
      %v5715 = vadd.f32 %v5594, %v5714
      %v5716 = vpop.f32.mrb[0].mxu0
      %5717 = vmatprep.mubr.f32.mxu0 0.0
      %5718 = vmatmul.mubr.f32.gmra.mrb[0].mxu0 %v5616
      %v5719 = vpop.f32.mrb[0].mxu0
      %v5720 = vadd.f32 %v5599, %v5719
      %v5721 = vpop.f32.mrb[0].mxu0
      %5722 = vdwg.mxu0
      %v5723 = vld [vmem:[%s2857] sm:$0xff]
      %v5724 = vld [vmem:[%s2857 + $0x8] sm:$0xff]
      %v5725 = vld [vmem:[%s2857 + $0x10] sm:$0xff]
      %v5726 = vld [vmem:[%s2857 + $0x18] sm:$0xff]
      %5727 = vrot.lane.b32.xlu0 %v5441, 64
      %v5728 = vpop.permute.xlu0 %5727
      %5729 = vrot.lane.b32.xlu0 %v5442, 64
      %v5730 = vpop.permute.xlu0 %5729
      %5731 = vrot.lane.b32.xlu0 %v5443, 64
      %v5732 = vpop.permute.xlu0 %5731
      %5733 = vrot.lane.b32.xlu0 %v5444, 64
      %v5734 = vpop.permute.xlu0 %5733
      %5735 = vrot.lane.b32.xlu0 %v5445, 64
      %v5736 = vpop.permute.xlu0 %5735
      %5737 = vrot.lane.b32.xlu0 %v5446, 64
      %v5738 = vpop.permute.xlu0 %5737
      %5739 = vrot.lane.b32.xlu0 %v5447, 64
      %v5740 = vpop.permute.xlu0 %5739
      %5741 = vrot.lane.b32.xlu0 %v5448, 64
      %v5742 = vpop.permute.xlu0 %5741
      %v5743 = vsel %vm2178, %v5728, 0
      %v5745 = vsel %vm2178, %v5730, 0
      %v5747 = vsel %vm2178, %v5732, 0
      %v5749 = vsel %vm2178, %v5734, 0
      %v5751 = vsel %vm2178, %v5736, 0
      %v5753 = vsel %vm2178, %v5738, 0
      %v5755 = vsel %vm2178, %v5740, 0
      %v5757 = vsel %vm2178, %v5742, 0
      %5759 = vmatprep.subr.mxu0 0.0
      %5760 = vmatpush1.msra.mxu0 %v5723
      %5761 = vmatprep.subr.mxu0 0.0
      %5762 = vmatpush1.msra.mxu0 %v5724
      %5763 = vmatprep.subr.mxu0 0.0
      %5764 = vmatpush1.msra.mxu0 %v5725
      %5765 = vmatprep.subr.mxu0 0.0
      %5766 = vmatpush1.msra.mxu0 %v5726
      %5767 = vmatprep.subr.mxu0 0.0
      %5768 = vmatpush1.msra.mxu0 0.0
      %5769 = vmatprep.subr.mxu0 0.0
      %5770 = vmatpush1.msra.mxu0 0.0
      %5771 = vmatprep.subr.mxu0 0.0
      %5772 = vmatpush1.msra.mxu0 0.0
      %5773 = vmatprep.subr.mxu0 0.0
      %5774 = vmatpush1.msra.mxu0 0.0
      %5775 = vmatprep.subr.mxu0 0.0
      %5776 = vmatpush1.msra.mxu0 0.0
      %5777 = vmatprep.subr.mxu0 0.0
      %5778 = vmatpush1.msra.mxu0 0.0
      %5779 = vmatprep.subr.mxu0 0.0
      %5780 = vmatpush1.msra.mxu0 0.0
      %5781 = vmatprep.subr.mxu0 0.0
      %5782 = vmatpush1.msra.mxu0 0.0
      %5783 = vmatprep.subr.mxu0 0.0
      %5784 = vmatpush1.msra.mxu0 0.0
      %5785 = vmatprep.subr.mxu0 0.0
      %5786 = vmatpush1.msra.mxu0 0.0
      %5787 = vmatprep.subr.mxu0 0.0
      %5788 = vmatpush1.msra.mxu0 0.0
      %5789 = vmatprep.subr.mxu0 0.0
      %5790 = vmatpush1.msra.mxu0 0.0
      %5791 = vmatprep.subr.mxu0 0.0
      %5792 = vmatpush1.msra.mxu0 0.0
      %5793 = vmatprep.subr.mxu0 0.0
      %5794 = vmatpush1.msra.mxu0 0.0
      %5795 = vmatprep.subr.mxu0 0.0
      %5796 = vmatpush1.msra.mxu0 0.0
      %5797 = vmatprep.subr.mxu0 0.0
      %5798 = vmatpush1.msra.mxu0 0.0
      %5799 = vmatprep.subr.mxu0 0.0
      %5800 = vmatpush1.msra.mxu0 0.0
      %5801 = vmatprep.subr.mxu0 0.0
      %5802 = vmatpush1.msra.mxu0 0.0
      %5803 = vmatprep.subr.mxu0 0.0
      %5804 = vmatpush1.msra.mxu0 0.0
      %5805 = vmatprep.subr.mxu0 0.0
      %5806 = vmatpush1.msra.mxu0 0.0
      %5807 = vmatprep.subr.mxu0 0.0
      %5808 = vmatpush1.msra.mxu0 0.0
      %5809 = vmatprep.subr.mxu0 0.0
      %5810 = vmatpush1.msra.mxu0 0.0
      %5811 = vmatprep.subr.mxu0 0.0
      %5812 = vmatpush1.msra.mxu0 0.0
      %5813 = vmatprep.subr.mxu0 0.0
      %5814 = vmatpush1.msra.mxu0 0.0
      %5815 = vmatprep.subr.mxu0 0.0
      %5816 = vmatpush1.msra.mxu0 0.0
      %5817 = vmatprep.subr.mxu0 0.0
      %5818 = vmatpush1.msra.mxu0 0.0
      %5819 = vmatprep.subr.mxu0 0.0
      %5820 = vmatpush1.msra.mxu0 0.0
      %5821 = vmatprep.subr.mxu0 0.0
      %5822 = vmatpush1.msra.mxu0 0.0
      %5823 = vmatprep.mubr.f32.mxu0 0.0
      %5824 = vmatmul.mubr.f32.gmra.mrb[0].mxu0 %v5743
      %v5825 = vpop.f32.mrb[0].mxu0
      %v5826 = vadd.f32 0.0, %v5825
      %v5827 = vpop.f32.mrb[0].mxu0
      %5828 = vmatprep.mubr.f32.mxu0 0.0
      %5829 = vmatmul.mubr.f32.gmra.mrb[0].mxu0 %v5745
      %v5830 = vpop.f32.mrb[0].mxu0
      %v5831 = vadd.f32 0.0, %v5830
      %v5832 = vpop.f32.mrb[0].mxu0
      %5833 = vmatprep.mubr.f32.mxu0 0.0
      %5834 = vmatmul.mubr.f32.gmra.mrb[0].mxu0 %v5747
      %v5835 = vpop.f32.mrb[0].mxu0
      %v5836 = vadd.f32 0.0, %v5835
      %v5837 = vpop.f32.mrb[0].mxu0
      %5838 = vmatprep.mubr.f32.mxu0 0.0
      %5839 = vmatmul.mubr.f32.gmra.mrb[0].mxu0 %v5749
      %v5840 = vpop.f32.mrb[0].mxu0
      %v5841 = vadd.f32 0.0, %v5840
      %v5842 = vpop.f32.mrb[0].mxu0
      %5843 = vmatprep.mubr.f32.mxu0 0.0
      %5844 = vmatmul.mubr.f32.gmra.mrb[0].mxu0 %v5751
      %v5845 = vpop.f32.mrb[0].mxu0
      %v5846 = vadd.f32 0.0, %v5845
      %v5847 = vpop.f32.mrb[0].mxu0
      %5848 = vmatprep.mubr.f32.mxu0 0.0
      %5849 = vmatmul.mubr.f32.gmra.mrb[0].mxu0 %v5753
      %v5850 = vpop.f32.mrb[0].mxu0
      %v5851 = vadd.f32 0.0, %v5850
      %v5852 = vpop.f32.mrb[0].mxu0
      %5853 = vmatprep.mubr.f32.mxu0 0.0
      %5854 = vmatmul.mubr.f32.gmra.mrb[0].mxu0 %v5755
      %v5855 = vpop.f32.mrb[0].mxu0
      %v5856 = vadd.f32 0.0, %v5855
      %v5857 = vpop.f32.mrb[0].mxu0
      %5858 = vmatprep.mubr.f32.mxu0 0.0
      %5859 = vmatmul.mubr.f32.gmra.mrb[0].mxu0 %v5757
      %v5860 = vpop.f32.mrb[0].mxu0
      %v5861 = vadd.f32 0.0, %v5860
      %v5862 = vpop.f32.mrb[0].mxu0
      %5863 = vdwg.mxu0
      %v5864 = vadd.f32 %v5685, %v5826
      %v5865 = vadd.f32 %v5690, %v5831
      %v5866 = vadd.f32 %v5695, %v5836
      %v5867 = vadd.f32 %v5700, %v5841
      %v5868 = vadd.f32 %v5705, %v5846
      %v5869 = vadd.f32 %v5710, %v5851
      %v5870 = vadd.f32 %v5715, %v5856
      %v5871 = vadd.f32 %v5720, %v5861
      %v5872 = vld [vmem:[%s2348] sm:$0xff]
      %v5873 = vld [vmem:[%s2348 + $0x40] sm:$0xff]
      %v5874 = vld [vmem:[%s2348 + $0x80] sm:$0xff]
      %v5875 = vld [vmem:[%s2348 + $0xc0] sm:$0xff]
      %v5876 = vld [vmem:[%s2348 + $0x100] sm:$0xff]
      %v5877 = vld [vmem:[%s2348 + $0x140] sm:$0xff]
      %v5878 = vld [vmem:[%s2348 + $0x180] sm:$0xff]
      %v5879 = vld [vmem:[%s2348 + $0x1c0] sm:$0xff]
      %v5880 = vld [vmem:[%s3015] sm:$0xff]
      %v5881 = vld [vmem:[%s3015 + $0x8] sm:$0xff]
      %v5882 = vld [vmem:[%s3015 + $0x10] sm:$0xff]
      %v5883 = vld [vmem:[%s3015 + $0x18] sm:$0xff]
      %v5885 = vsel %vm2178, %v5872, 0
      %v5888 = vsel %vm2178, %v5873, 0
      %v5891 = vsel %vm2178, %v5874, 0
      %v5894 = vsel %vm2178, %v5875, 0
      %v5897 = vsel %vm2178, %v5876, 0
      %v5900 = vsel %vm2178, %v5877, 0
      %v5903 = vsel %vm2178, %v5878, 0
      %v5906 = vsel %vm2178, %v5879, 0
      %5908 = vmatprep.subr.mxu0 0.0
      %5909 = vmatpush1.msra.mxu0 %v5880
      %5910 = vmatprep.subr.mxu0 0.0
      %5911 = vmatpush1.msra.mxu0 %v5881
      %5912 = vmatprep.subr.mxu0 0.0
      %5913 = vmatpush1.msra.mxu0 %v5882
      %5914 = vmatprep.subr.mxu0 0.0
      %5915 = vmatpush1.msra.mxu0 %v5883
      %5916 = vmatprep.subr.mxu0 0.0
      %5917 = vmatpush1.msra.mxu0 0.0
      %5918 = vmatprep.subr.mxu0 0.0
      %5919 = vmatpush1.msra.mxu0 0.0
      %5920 = vmatprep.subr.mxu0 0.0
      %5921 = vmatpush1.msra.mxu0 0.0
      %5922 = vmatprep.subr.mxu0 0.0
      %5923 = vmatpush1.msra.mxu0 0.0
      %5924 = vmatprep.subr.mxu0 0.0
      %5925 = vmatpush1.msra.mxu0 0.0
      %5926 = vmatprep.subr.mxu0 0.0
      %5927 = vmatpush1.msra.mxu0 0.0
      %5928 = vmatprep.subr.mxu0 0.0
      %5929 = vmatpush1.msra.mxu0 0.0
      %5930 = vmatprep.subr.mxu0 0.0
      %5931 = vmatpush1.msra.mxu0 0.0
      %5932 = vmatprep.subr.mxu0 0.0
      %5933 = vmatpush1.msra.mxu0 0.0
      %5934 = vmatprep.subr.mxu0 0.0
      %5935 = vmatpush1.msra.mxu0 0.0
      %5936 = vmatprep.subr.mxu0 0.0
      %5937 = vmatpush1.msra.mxu0 0.0
      %5938 = vmatprep.subr.mxu0 0.0
      %5939 = vmatpush1.msra.mxu0 0.0
      %5940 = vmatprep.subr.mxu0 0.0
      %5941 = vmatpush1.msra.mxu0 0.0
      %5942 = vmatprep.subr.mxu0 0.0
      %5943 = vmatpush1.msra.mxu0 0.0
      %5944 = vmatprep.subr.mxu0 0.0
      %5945 = vmatpush1.msra.mxu0 0.0
      %5946 = vmatprep.subr.mxu0 0.0
      %5947 = vmatpush1.msra.mxu0 0.0
      %5948 = vmatprep.subr.mxu0 0.0
      %5949 = vmatpush1.msra.mxu0 0.0
      %5950 = vmatprep.subr.mxu0 0.0
      %5951 = vmatpush1.msra.mxu0 0.0
      %5952 = vmatprep.subr.mxu0 0.0
      %5953 = vmatpush1.msra.mxu0 0.0
      %5954 = vmatprep.subr.mxu0 0.0
      %5955 = vmatpush1.msra.mxu0 0.0
      %5956 = vmatprep.subr.mxu0 0.0
      %5957 = vmatpush1.msra.mxu0 0.0
      %5958 = vmatprep.subr.mxu0 0.0
      %5959 = vmatpush1.msra.mxu0 0.0
      %5960 = vmatprep.subr.mxu0 0.0
      %5961 = vmatpush1.msra.mxu0 0.0
      %5962 = vmatprep.subr.mxu0 0.0
      %5963 = vmatpush1.msra.mxu0 0.0
      %5964 = vmatprep.subr.mxu0 0.0
      %5965 = vmatpush1.msra.mxu0 0.0
      %5966 = vmatprep.subr.mxu0 0.0
      %5967 = vmatpush1.msra.mxu0 0.0
      %5968 = vmatprep.subr.mxu0 0.0
      %5969 = vmatpush1.msra.mxu0 0.0
      %5970 = vmatprep.subr.mxu0 0.0
      %5971 = vmatpush1.msra.mxu0 0.0
      %5972 = vmatprep.mubr.f32.mxu0 0.0
      %5973 = vmatmul.mubr.f32.gmra.mrb[0].mxu0 %v5885
      %v5974 = vpop.f32.mrb[0].mxu0
      %v5975 = vadd.f32 0.0, %v5974
      %v5976 = vpop.f32.mrb[0].mxu0
      %5977 = vmatprep.mubr.f32.mxu0 0.0
      %5978 = vmatmul.mubr.f32.gmra.mrb[0].mxu0 %v5888
      %v5979 = vpop.f32.mrb[0].mxu0
      %v5980 = vadd.f32 0.0, %v5979
      %v5981 = vpop.f32.mrb[0].mxu0
      %5982 = vmatprep.mubr.f32.mxu0 0.0
      %5983 = vmatmul.mubr.f32.gmra.mrb[0].mxu0 %v5891
      %v5984 = vpop.f32.mrb[0].mxu0
      %v5985 = vadd.f32 0.0, %v5984
      %v5986 = vpop.f32.mrb[0].mxu0
      %5987 = vmatprep.mubr.f32.mxu0 0.0
      %5988 = vmatmul.mubr.f32.gmra.mrb[0].mxu0 %v5894
      %v5989 = vpop.f32.mrb[0].mxu0
      %v5990 = vadd.f32 0.0, %v5989
      %v5991 = vpop.f32.mrb[0].mxu0
      %5992 = vmatprep.mubr.f32.mxu0 0.0
      %5993 = vmatmul.mubr.f32.gmra.mrb[0].mxu0 %v5897
      %v5994 = vpop.f32.mrb[0].mxu0
      %v5995 = vadd.f32 0.0, %v5994
      %v5996 = vpop.f32.mrb[0].mxu0
      %5997 = vmatprep.mubr.f32.mxu0 0.0
      %5998 = vmatmul.mubr.f32.gmra.mrb[0].mxu0 %v5900
      %v5999 = vpop.f32.mrb[0].mxu0
      %v6000 = vadd.f32 0.0, %v5999
      %v6001 = vpop.f32.mrb[0].mxu0
      %6002 = vmatprep.mubr.f32.mxu0 0.0
      %6003 = vmatmul.mubr.f32.gmra.mrb[0].mxu0 %v5903
      %v6004 = vpop.f32.mrb[0].mxu0
      %v6005 = vadd.f32 0.0, %v6004
      %v6006 = vpop.f32.mrb[0].mxu0
      %6007 = vmatprep.mubr.f32.mxu0 0.0
      %6008 = vmatmul.mubr.f32.gmra.mrb[0].mxu0 %v5906
      %v6009 = vpop.f32.mrb[0].mxu0
      %v6010 = vadd.f32 0.0, %v6009
      %v6011 = vpop.f32.mrb[0].mxu0
      %6012 = vdwg.mxu0
      %v6013 = vadd.f32 %v5864, %v5975
      %v6014 = vadd.f32 %v5865, %v5980
      %v6015 = vadd.f32 %v5866, %v5985
      %v6016 = vadd.f32 %v5867, %v5990
      %v6017 = vadd.f32 %v5868, %v5995
      %v6018 = vadd.f32 %v5869, %v6000
      %v6019 = vadd.f32 %v5870, %v6005
      %v6020 = vadd.f32 %v5871, %v6010
      %v6021 = vld [vmem:[%s3157] sm:$0xff]
      %v6022 = vld [vmem:[%s3157 + $0x8] sm:$0xff]
      %v6023 = vld [vmem:[%s3157 + $0x10] sm:$0xff]
      %v6024 = vld [vmem:[%s3157 + $0x18] sm:$0xff]
      %6025 = vrot.lane.b32.xlu0 %v5872, 96
      %v6026 = vpop.permute.xlu0 %6025
      %6027 = vrot.lane.b32.xlu0 %v5873, 96
      %v6028 = vpop.permute.xlu0 %6027
      %6029 = vrot.lane.b32.xlu0 %v5874, 96
      %v6030 = vpop.permute.xlu0 %6029
      %6031 = vrot.lane.b32.xlu0 %v5875, 96
      %v6032 = vpop.permute.xlu0 %6031
      %6033 = vrot.lane.b32.xlu0 %v5876, 96
      %v6034 = vpop.permute.xlu0 %6033
      %6035 = vrot.lane.b32.xlu0 %v5877, 96
      %v6036 = vpop.permute.xlu0 %6035
      %6037 = vrot.lane.b32.xlu0 %v5878, 96
      %v6038 = vpop.permute.xlu0 %6037
      %6039 = vrot.lane.b32.xlu0 %v5879, 96
      %v6040 = vpop.permute.xlu0 %6039
      %v6041 = vsel %vm2178, %v6026, 0
      %v6043 = vsel %vm2178, %v6028, 0
      %v6045 = vsel %vm2178, %v6030, 0
      %v6047 = vsel %vm2178, %v6032, 0
      %v6049 = vsel %vm2178, %v6034, 0
      %v6051 = vsel %vm2178, %v6036, 0
      %v6053 = vsel %vm2178, %v6038, 0
      %v6055 = vsel %vm2178, %v6040, 0
      %6057 = vmatprep.subr.mxu0 0.0
      %6058 = vmatpush1.msra.mxu0 %v6021
      %6059 = vmatprep.subr.mxu0 0.0
      %6060 = vmatpush1.msra.mxu0 %v6022
      %6061 = vmatprep.subr.mxu0 0.0
      %6062 = vmatpush1.msra.mxu0 %v6023
      %6063 = vmatprep.subr.mxu0 0.0
      %6064 = vmatpush1.msra.mxu0 %v6024
      %6065 = vmatprep.subr.mxu0 0.0
      %6066 = vmatpush1.msra.mxu0 0.0
      %6067 = vmatprep.subr.mxu0 0.0
      %6068 = vmatpush1.msra.mxu0 0.0
      %6069 = vmatprep.subr.mxu0 0.0
      %6070 = vmatpush1.msra.mxu0 0.0
      %6071 = vmatprep.subr.mxu0 0.0
      %6072 = vmatpush1.msra.mxu0 0.0
      %6073 = vmatprep.subr.mxu0 0.0
      %6074 = vmatpush1.msra.mxu0 0.0
      %6075 = vmatprep.subr.mxu0 0.0
      %6076 = vmatpush1.msra.mxu0 0.0
      %6077 = vmatprep.subr.mxu0 0.0
      %6078 = vmatpush1.msra.mxu0 0.0
      %6079 = vmatprep.subr.mxu0 0.0
      %6080 = vmatpush1.msra.mxu0 0.0
      %6081 = vmatprep.subr.mxu0 0.0
      %6082 = vmatpush1.msra.mxu0 0.0
      %6083 = vmatprep.subr.mxu0 0.0
      %6084 = vmatpush1.msra.mxu0 0.0
      %6085 = vmatprep.subr.mxu0 0.0
      %6086 = vmatpush1.msra.mxu0 0.0
      %6087 = vmatprep.subr.mxu0 0.0
      %6088 = vmatpush1.msra.mxu0 0.0
      %6089 = vmatprep.subr.mxu0 0.0
      %6090 = vmatpush1.msra.mxu0 0.0
      %6091 = vmatprep.subr.mxu0 0.0
      %6092 = vmatpush1.msra.mxu0 0.0
      %6093 = vmatprep.subr.mxu0 0.0
      %6094 = vmatpush1.msra.mxu0 0.0
      %6095 = vmatprep.subr.mxu0 0.0
      %6096 = vmatpush1.msra.mxu0 0.0
      %6097 = vmatprep.subr.mxu0 0.0
      %6098 = vmatpush1.msra.mxu0 0.0
      %6099 = vmatprep.subr.mxu0 0.0
      %6100 = vmatpush1.msra.mxu0 0.0
      %6101 = vmatprep.subr.mxu0 0.0
      %6102 = vmatpush1.msra.mxu0 0.0
      %6103 = vmatprep.subr.mxu0 0.0
      %6104 = vmatpush1.msra.mxu0 0.0
      %6105 = vmatprep.subr.mxu0 0.0
      %6106 = vmatpush1.msra.mxu0 0.0
      %6107 = vmatprep.subr.mxu0 0.0
      %6108 = vmatpush1.msra.mxu0 0.0
      %6109 = vmatprep.subr.mxu0 0.0
      %6110 = vmatpush1.msra.mxu0 0.0
      %6111 = vmatprep.subr.mxu0 0.0
      %6112 = vmatpush1.msra.mxu0 0.0
      %6113 = vmatprep.subr.mxu0 0.0
      %6114 = vmatpush1.msra.mxu0 0.0
      %6115 = vmatprep.subr.mxu0 0.0
      %6116 = vmatpush1.msra.mxu0 0.0
      %6117 = vmatprep.subr.mxu0 0.0
      %6118 = vmatpush1.msra.mxu0 0.0
      %6119 = vmatprep.subr.mxu0 0.0
      %6120 = vmatpush1.msra.mxu0 0.0
      %6121 = vmatprep.mubr.f32.mxu0 0.0
      %6122 = vmatmul.mubr.f32.gmra.mrb[0].mxu0 %v6041
      %v6123 = vpop.f32.mrb[0].mxu0
      %v6124 = vadd.f32 0.0, %v6123
      %v6125 = vpop.f32.mrb[0].mxu0
      %6126 = vmatprep.mubr.f32.mxu0 0.0
      %6127 = vmatmul.mubr.f32.gmra.mrb[0].mxu0 %v6043
      %v6128 = vpop.f32.mrb[0].mxu0
      %v6129 = vadd.f32 0.0, %v6128
      %v6130 = vpop.f32.mrb[0].mxu0
      %6131 = vmatprep.mubr.f32.mxu0 0.0
      %6132 = vmatmul.mubr.f32.gmra.mrb[0].mxu0 %v6045
      %v6133 = vpop.f32.mrb[0].mxu0
      %v6134 = vadd.f32 0.0, %v6133
      %v6135 = vpop.f32.mrb[0].mxu0
      %6136 = vmatprep.mubr.f32.mxu0 0.0
      %6137 = vmatmul.mubr.f32.gmra.mrb[0].mxu0 %v6047
      %v6138 = vpop.f32.mrb[0].mxu0
      %v6139 = vadd.f32 0.0, %v6138
      %v6140 = vpop.f32.mrb[0].mxu0
      %6141 = vmatprep.mubr.f32.mxu0 0.0
      %6142 = vmatmul.mubr.f32.gmra.mrb[0].mxu0 %v6049
      %v6143 = vpop.f32.mrb[0].mxu0
      %v6144 = vadd.f32 0.0, %v6143
      %v6145 = vpop.f32.mrb[0].mxu0
      %6146 = vmatprep.mubr.f32.mxu0 0.0
      %6147 = vmatmul.mubr.f32.gmra.mrb[0].mxu0 %v6051
      %v6148 = vpop.f32.mrb[0].mxu0
      %v6149 = vadd.f32 0.0, %v6148
      %v6150 = vpop.f32.mrb[0].mxu0
      %6151 = vmatprep.mubr.f32.mxu0 0.0
      %6152 = vmatmul.mubr.f32.gmra.mrb[0].mxu0 %v6053
      %v6153 = vpop.f32.mrb[0].mxu0
      %v6154 = vadd.f32 0.0, %v6153
      %v6155 = vpop.f32.mrb[0].mxu0
      %6156 = vmatprep.mubr.f32.mxu0 0.0
      %6157 = vmatmul.mubr.f32.gmra.mrb[0].mxu0 %v6055
      %v6158 = vpop.f32.mrb[0].mxu0
      %v6159 = vadd.f32 0.0, %v6158
      %v6160 = vpop.f32.mrb[0].mxu0
      %6161 = vdwg.mxu0
      %v6162 = vadd.f32 %v6013, %v6124
      %v6163 = vadd.f32 %v6014, %v6129
      %v6164 = vadd.f32 %v6015, %v6134
      %v6165 = vadd.f32 %v6016, %v6139
      %v6166 = vadd.f32 %v6017, %v6144
      %v6167 = vadd.f32 %v6018, %v6149
      %v6168 = vadd.f32 %v6019, %v6154
      %v6169 = vadd.f32 %v6020, %v6159
      %v6170 = vld [vmem:[%s3307] sm:$0xff]
      %v6171 = vld [vmem:[%s3307 + $0x8] sm:$0xff]
      %v6172 = vld [vmem:[%s3307 + $0x10] sm:$0xff]
      %v6173 = vld [vmem:[%s3307 + $0x18] sm:$0xff]
      %6174 = vrot.lane.b32.xlu0 %v5872, 64
      %v6175 = vpop.permute.xlu0 %6174
      %6176 = vrot.lane.b32.xlu0 %v5873, 64
      %v6177 = vpop.permute.xlu0 %6176
      %6178 = vrot.lane.b32.xlu0 %v5874, 64
      %v6179 = vpop.permute.xlu0 %6178
      %6180 = vrot.lane.b32.xlu0 %v5875, 64
      %v6181 = vpop.permute.xlu0 %6180
      %6182 = vrot.lane.b32.xlu0 %v5876, 64
      %v6183 = vpop.permute.xlu0 %6182
      %6184 = vrot.lane.b32.xlu0 %v5877, 64
      %v6185 = vpop.permute.xlu0 %6184
      %6186 = vrot.lane.b32.xlu0 %v5878, 64
      %v6187 = vpop.permute.xlu0 %6186
      %6188 = vrot.lane.b32.xlu0 %v5879, 64
      %v6189 = vpop.permute.xlu0 %6188
      %v6190 = vsel %vm2178, %v6175, 0
      %v6192 = vsel %vm2178, %v6177, 0
      %v6194 = vsel %vm2178, %v6179, 0
      %v6196 = vsel %vm2178, %v6181, 0
      %v6198 = vsel %vm2178, %v6183, 0
      %v6200 = vsel %vm2178, %v6185, 0
      %v6202 = vsel %vm2178, %v6187, 0
      %v6204 = vsel %vm2178, %v6189, 0
      %6206 = vmatprep.subr.mxu0 0.0
      %6207 = vmatpush1.msra.mxu0 %v6170
      %6208 = vmatprep.subr.mxu0 0.0
      %6209 = vmatpush1.msra.mxu0 %v6171
      %6210 = vmatprep.subr.mxu0 0.0
      %6211 = vmatpush1.msra.mxu0 %v6172
      %6212 = vmatprep.subr.mxu0 0.0
      %6213 = vmatpush1.msra.mxu0 %v6173
      %6214 = vmatprep.subr.mxu0 0.0
      %6215 = vmatpush1.msra.mxu0 0.0
      %6216 = vmatprep.subr.mxu0 0.0
      %6217 = vmatpush1.msra.mxu0 0.0
      %6218 = vmatprep.subr.mxu0 0.0
      %6219 = vmatpush1.msra.mxu0 0.0
      %6220 = vmatprep.subr.mxu0 0.0
      %6221 = vmatpush1.msra.mxu0 0.0
      %6222 = vmatprep.subr.mxu0 0.0
      %6223 = vmatpush1.msra.mxu0 0.0
      %6224 = vmatprep.subr.mxu0 0.0
      %6225 = vmatpush1.msra.mxu0 0.0
      %6226 = vmatprep.subr.mxu0 0.0
      %6227 = vmatpush1.msra.mxu0 0.0
      %6228 = vmatprep.subr.mxu0 0.0
      %6229 = vmatpush1.msra.mxu0 0.0
      %6230 = vmatprep.subr.mxu0 0.0
      %6231 = vmatpush1.msra.mxu0 0.0
      %6232 = vmatprep.subr.mxu0 0.0
      %6233 = vmatpush1.msra.mxu0 0.0
      %6234 = vmatprep.subr.mxu0 0.0
      %6235 = vmatpush1.msra.mxu0 0.0
      %6236 = vmatprep.subr.mxu0 0.0
      %6237 = vmatpush1.msra.mxu0 0.0
      %6238 = vmatprep.subr.mxu0 0.0
      %6239 = vmatpush1.msra.mxu0 0.0
      %6240 = vmatprep.subr.mxu0 0.0
      %6241 = vmatpush1.msra.mxu0 0.0
      %6242 = vmatprep.subr.mxu0 0.0
      %6243 = vmatpush1.msra.mxu0 0.0
      %6244 = vmatprep.subr.mxu0 0.0
      %6245 = vmatpush1.msra.mxu0 0.0
      %6246 = vmatprep.subr.mxu0 0.0
      %6247 = vmatpush1.msra.mxu0 0.0
      %6248 = vmatprep.subr.mxu0 0.0
      %6249 = vmatpush1.msra.mxu0 0.0
      %6250 = vmatprep.subr.mxu0 0.0
      %6251 = vmatpush1.msra.mxu0 0.0
      %6252 = vmatprep.subr.mxu0 0.0
      %6253 = vmatpush1.msra.mxu0 0.0
      %6254 = vmatprep.subr.mxu0 0.0
      %6255 = vmatpush1.msra.mxu0 0.0
      %6256 = vmatprep.subr.mxu0 0.0
      %6257 = vmatpush1.msra.mxu0 0.0
      %6258 = vmatprep.subr.mxu0 0.0
      %6259 = vmatpush1.msra.mxu0 0.0
      %6260 = vmatprep.subr.mxu0 0.0
      %6261 = vmatpush1.msra.mxu0 0.0
      %6262 = vmatprep.subr.mxu0 0.0
      %6263 = vmatpush1.msra.mxu0 0.0
      %6264 = vmatprep.subr.mxu0 0.0
      %6265 = vmatpush1.msra.mxu0 0.0
      %6266 = vmatprep.subr.mxu0 0.0
      %6267 = vmatpush1.msra.mxu0 0.0
      %6268 = vmatprep.subr.mxu0 0.0
      %6269 = vmatpush1.msra.mxu0 0.0
      %6270 = vmatprep.mubr.f32.mxu0 0.0
      %6271 = vmatmul.mubr.f32.gmra.mrb[0].mxu0 %v6190
      %v6272 = vpop.f32.mrb[0].mxu0
      %v6273 = vadd.f32 0.0, %v6272
      %v6274 = vpop.f32.mrb[0].mxu0
      %6275 = vmatprep.mubr.f32.mxu0 0.0
      %6276 = vmatmul.mubr.f32.gmra.mrb[0].mxu0 %v6192
      %v6277 = vpop.f32.mrb[0].mxu0
      %v6278 = vadd.f32 0.0, %v6277
      %v6279 = vpop.f32.mrb[0].mxu0
      %6280 = vmatprep.mubr.f32.mxu0 0.0
      %6281 = vmatmul.mubr.f32.gmra.mrb[0].mxu0 %v6194
      %v6282 = vpop.f32.mrb[0].mxu0
      %v6283 = vadd.f32 0.0, %v6282
      %v6284 = vpop.f32.mrb[0].mxu0
      %6285 = vmatprep.mubr.f32.mxu0 0.0
      %6286 = vmatmul.mubr.f32.gmra.mrb[0].mxu0 %v6196
      %v6287 = vpop.f32.mrb[0].mxu0
      %v6288 = vadd.f32 0.0, %v6287
      %v6289 = vpop.f32.mrb[0].mxu0
      %6290 = vmatprep.mubr.f32.mxu0 0.0
      %6291 = vmatmul.mubr.f32.gmra.mrb[0].mxu0 %v6198
      %v6292 = vpop.f32.mrb[0].mxu0
      %v6293 = vadd.f32 0.0, %v6292
      %v6294 = vpop.f32.mrb[0].mxu0
      %6295 = vmatprep.mubr.f32.mxu0 0.0
      %6296 = vmatmul.mubr.f32.gmra.mrb[0].mxu0 %v6200
      %v6297 = vpop.f32.mrb[0].mxu0
      %v6298 = vadd.f32 0.0, %v6297
      %v6299 = vpop.f32.mrb[0].mxu0
      %6300 = vmatprep.mubr.f32.mxu0 0.0
      %6301 = vmatmul.mubr.f32.gmra.mrb[0].mxu0 %v6202
      %v6302 = vpop.f32.mrb[0].mxu0
      %v6303 = vadd.f32 0.0, %v6302
      %v6304 = vpop.f32.mrb[0].mxu0
      %6305 = vmatprep.mubr.f32.mxu0 0.0
      %6306 = vmatmul.mubr.f32.gmra.mrb[0].mxu0 %v6204
      %v6307 = vpop.f32.mrb[0].mxu0
      %v6308 = vadd.f32 0.0, %v6307
      %v6309 = vpop.f32.mrb[0].mxu0
      %6310 = vdwg.mxu0
      %v6311 = vadd.f32 %v6162, %v6273
      %v6312 = vadd.f32 %v6163, %v6278
      %v6313 = vadd.f32 %v6164, %v6283
      %v6314 = vadd.f32 %v6165, %v6288
      %v6315 = vadd.f32 %v6166, %v6293
      %v6316 = vadd.f32 %v6167, %v6298
      %v6317 = vadd.f32 %v6168, %v6303
      %v6318 = vadd.f32 %v6169, %v6308
      %v6319 = vld [vmem:[%s2477] sm:$0xff]
      %v6320 = vld [vmem:[%s2477 + $0x40] sm:$0xff]
      %v6321 = vld [vmem:[%s2477 + $0x80] sm:$0xff]
      %v6322 = vld [vmem:[%s2477 + $0xc0] sm:$0xff]
      %v6323 = vld [vmem:[%s2477 + $0x100] sm:$0xff]
      %v6324 = vld [vmem:[%s2477 + $0x140] sm:$0xff]
      %v6325 = vld [vmem:[%s2477 + $0x180] sm:$0xff]
      %v6326 = vld [vmem:[%s2477 + $0x1c0] sm:$0xff]
      %v6327 = vld [vmem:[%s3465] sm:$0xff]
      %v6328 = vld [vmem:[%s3465 + $0x8] sm:$0xff]
      %v6329 = vld [vmem:[%s3465 + $0x10] sm:$0xff]
      %v6330 = vld [vmem:[%s3465 + $0x18] sm:$0xff]
      %v6332 = vsel %vm2178, %v6319, 0
      %v6335 = vsel %vm2178, %v6320, 0
      %v6338 = vsel %vm2178, %v6321, 0
      %v6341 = vsel %vm2178, %v6322, 0
      %v6344 = vsel %vm2178, %v6323, 0
      %v6347 = vsel %vm2178, %v6324, 0
      %v6350 = vsel %vm2178, %v6325, 0
      %v6353 = vsel %vm2178, %v6326, 0
      %6355 = vmatprep.subr.mxu0 0.0
      %6356 = vmatpush1.msra.mxu0 %v6327
      %6357 = vmatprep.subr.mxu0 0.0
      %6358 = vmatpush1.msra.mxu0 %v6328
      %6359 = vmatprep.subr.mxu0 0.0
      %6360 = vmatpush1.msra.mxu0 %v6329
      %6361 = vmatprep.subr.mxu0 0.0
      %6362 = vmatpush1.msra.mxu0 %v6330
      %6363 = vmatprep.subr.mxu0 0.0
      %6364 = vmatpush1.msra.mxu0 0.0
      %6365 = vmatprep.subr.mxu0 0.0
      %6366 = vmatpush1.msra.mxu0 0.0
      %6367 = vmatprep.subr.mxu0 0.0
      %6368 = vmatpush1.msra.mxu0 0.0
      %6369 = vmatprep.subr.mxu0 0.0
      %6370 = vmatpush1.msra.mxu0 0.0
      %6371 = vmatprep.subr.mxu0 0.0
      %6372 = vmatpush1.msra.mxu0 0.0
      %6373 = vmatprep.subr.mxu0 0.0
      %6374 = vmatpush1.msra.mxu0 0.0
      %6375 = vmatprep.subr.mxu0 0.0
      %6376 = vmatpush1.msra.mxu0 0.0
      %6377 = vmatprep.subr.mxu0 0.0
      %6378 = vmatpush1.msra.mxu0 0.0
      %6379 = vmatprep.subr.mxu0 0.0
      %6380 = vmatpush1.msra.mxu0 0.0
      %6381 = vmatprep.subr.mxu0 0.0
      %6382 = vmatpush1.msra.mxu0 0.0
      %6383 = vmatprep.subr.mxu0 0.0
      %6384 = vmatpush1.msra.mxu0 0.0
      %6385 = vmatprep.subr.mxu0 0.0
      %6386 = vmatpush1.msra.mxu0 0.0
      %6387 = vmatprep.subr.mxu0 0.0
      %6388 = vmatpush1.msra.mxu0 0.0
      %6389 = vmatprep.subr.mxu0 0.0
      %6390 = vmatpush1.msra.mxu0 0.0
      %6391 = vmatprep.subr.mxu0 0.0
      %6392 = vmatpush1.msra.mxu0 0.0
      %6393 = vmatprep.subr.mxu0 0.0
      %6394 = vmatpush1.msra.mxu0 0.0
      %6395 = vmatprep.subr.mxu0 0.0
      %6396 = vmatpush1.msra.mxu0 0.0
      %6397 = vmatprep.subr.mxu0 0.0
      %6398 = vmatpush1.msra.mxu0 0.0
      %6399 = vmatprep.subr.mxu0 0.0
      %6400 = vmatpush1.msra.mxu0 0.0
      %6401 = vmatprep.subr.mxu0 0.0
      %6402 = vmatpush1.msra.mxu0 0.0
      %6403 = vmatprep.subr.mxu0 0.0
      %6404 = vmatpush1.msra.mxu0 0.0
      %6405 = vmatprep.subr.mxu0 0.0
      %6406 = vmatpush1.msra.mxu0 0.0
      %6407 = vmatprep.subr.mxu0 0.0
      %6408 = vmatpush1.msra.mxu0 0.0
      %6409 = vmatprep.subr.mxu0 0.0
      %6410 = vmatpush1.msra.mxu0 0.0
      %6411 = vmatprep.subr.mxu0 0.0
      %6412 = vmatpush1.msra.mxu0 0.0
      %6413 = vmatprep.subr.mxu0 0.0
      %6414 = vmatpush1.msra.mxu0 0.0
      %6415 = vmatprep.subr.mxu0 0.0
      %6416 = vmatpush1.msra.mxu0 0.0
      %6417 = vmatprep.subr.mxu0 0.0
      %6418 = vmatpush1.msra.mxu0 0.0
      %6419 = vmatprep.mubr.f32.mxu0 0.0
      %6420 = vmatmul.mubr.f32.gmra.mrb[0].mxu0 %v6332
      %v6421 = vpop.f32.mrb[0].mxu0
      %v6422 = vadd.f32 0.0, %v6421
      %v6423 = vpop.f32.mrb[0].mxu0
      %6424 = vmatprep.mubr.f32.mxu0 0.0
      %6425 = vmatmul.mubr.f32.gmra.mrb[0].mxu0 %v6335
      %v6426 = vpop.f32.mrb[0].mxu0
      %v6427 = vadd.f32 0.0, %v6426
      %v6428 = vpop.f32.mrb[0].mxu0
      %6429 = vmatprep.mubr.f32.mxu0 0.0
      %6430 = vmatmul.mubr.f32.gmra.mrb[0].mxu0 %v6338
      %v6431 = vpop.f32.mrb[0].mxu0
      %v6432 = vadd.f32 0.0, %v6431
      %v6433 = vpop.f32.mrb[0].mxu0
      %6434 = vmatprep.mubr.f32.mxu0 0.0
      %6435 = vmatmul.mubr.f32.gmra.mrb[0].mxu0 %v6341
      %v6436 = vpop.f32.mrb[0].mxu0
      %v6437 = vadd.f32 0.0, %v6436
      %v6438 = vpop.f32.mrb[0].mxu0
      %6439 = vmatprep.mubr.f32.mxu0 0.0
      %6440 = vmatmul.mubr.f32.gmra.mrb[0].mxu0 %v6344
      %v6441 = vpop.f32.mrb[0].mxu0
      %v6442 = vadd.f32 0.0, %v6441
      %v6443 = vpop.f32.mrb[0].mxu0
      %6444 = vmatprep.mubr.f32.mxu0 0.0
      %6445 = vmatmul.mubr.f32.gmra.mrb[0].mxu0 %v6347
      %v6446 = vpop.f32.mrb[0].mxu0
      %v6447 = vadd.f32 0.0, %v6446
      %v6448 = vpop.f32.mrb[0].mxu0
      %6449 = vmatprep.mubr.f32.mxu0 0.0
      %6450 = vmatmul.mubr.f32.gmra.mrb[0].mxu0 %v6350
      %v6451 = vpop.f32.mrb[0].mxu0
      %v6452 = vadd.f32 0.0, %v6451
      %v6453 = vpop.f32.mrb[0].mxu0
      %6454 = vmatprep.mubr.f32.mxu0 0.0
      %6455 = vmatmul.mubr.f32.gmra.mrb[0].mxu0 %v6353
      %v6456 = vpop.f32.mrb[0].mxu0
      %v6457 = vadd.f32 0.0, %v6456
      %v6458 = vpop.f32.mrb[0].mxu0
      %6459 = vdwg.mxu0
      %v6460 = vadd.f32 %v6311, %v6422
      %v6461 = vadd.f32 %v6312, %v6427
      %v6462 = vadd.f32 %v6313, %v6432
      %v6463 = vadd.f32 %v6314, %v6437
      %v6464 = vadd.f32 %v6315, %v6442
      %v6465 = vadd.f32 %v6316, %v6447
      %v6466 = vadd.f32 %v6317, %v6452
      %v6467 = vadd.f32 %v6318, %v6457
      %v6468 = vld [vmem:[%s3607] sm:$0xff]
      %v6469 = vld [vmem:[%s3607 + $0x8] sm:$0xff]
      %v6470 = vld [vmem:[%s3607 + $0x10] sm:$0xff]
      %v6471 = vld [vmem:[%s3607 + $0x18] sm:$0xff]
      %6472 = vrot.lane.b32.xlu0 %v6319, 96
      %v6473 = vpop.permute.xlu0 %6472
      %6474 = vrot.lane.b32.xlu0 %v6320, 96
      %v6475 = vpop.permute.xlu0 %6474
      %6476 = vrot.lane.b32.xlu0 %v6321, 96
      %v6477 = vpop.permute.xlu0 %6476
      %6478 = vrot.lane.b32.xlu0 %v6322, 96
      %v6479 = vpop.permute.xlu0 %6478
      %6480 = vrot.lane.b32.xlu0 %v6323, 96
      %v6481 = vpop.permute.xlu0 %6480
      %6482 = vrot.lane.b32.xlu0 %v6324, 96
      %v6483 = vpop.permute.xlu0 %6482
      %6484 = vrot.lane.b32.xlu0 %v6325, 96
      %v6485 = vpop.permute.xlu0 %6484
      %6486 = vrot.lane.b32.xlu0 %v6326, 96
      %v6487 = vpop.permute.xlu0 %6486
      %v6488 = vsel %vm2178, %v6473, 0
      %v6490 = vsel %vm2178, %v6475, 0
      %v6492 = vsel %vm2178, %v6477, 0
      %v6494 = vsel %vm2178, %v6479, 0
      %v6496 = vsel %vm2178, %v6481, 0
      %v6498 = vsel %vm2178, %v6483, 0
      %v6500 = vsel %vm2178, %v6485, 0
      %v6502 = vsel %vm2178, %v6487, 0
      %6504 = vmatprep.subr.mxu0 0.0
      %6505 = vmatpush1.msra.mxu0 %v6468
      %6506 = vmatprep.subr.mxu0 0.0
      %6507 = vmatpush1.msra.mxu0 %v6469
      %6508 = vmatprep.subr.mxu0 0.0
      %6509 = vmatpush1.msra.mxu0 %v6470
      %6510 = vmatprep.subr.mxu0 0.0
      %6511 = vmatpush1.msra.mxu0 %v6471
      %6512 = vmatprep.subr.mxu0 0.0
      %6513 = vmatpush1.msra.mxu0 0.0
      %6514 = vmatprep.subr.mxu0 0.0
      %6515 = vmatpush1.msra.mxu0 0.0
      %6516 = vmatprep.subr.mxu0 0.0
      %6517 = vmatpush1.msra.mxu0 0.0
      %6518 = vmatprep.subr.mxu0 0.0
      %6519 = vmatpush1.msra.mxu0 0.0
      %6520 = vmatprep.subr.mxu0 0.0
      %6521 = vmatpush1.msra.mxu0 0.0
      %6522 = vmatprep.subr.mxu0 0.0
      %6523 = vmatpush1.msra.mxu0 0.0
      %6524 = vmatprep.subr.mxu0 0.0
      %6525 = vmatpush1.msra.mxu0 0.0
      %6526 = vmatprep.subr.mxu0 0.0
      %6527 = vmatpush1.msra.mxu0 0.0
      %6528 = vmatprep.subr.mxu0 0.0
      %6529 = vmatpush1.msra.mxu0 0.0
      %6530 = vmatprep.subr.mxu0 0.0
      %6531 = vmatpush1.msra.mxu0 0.0
      %6532 = vmatprep.subr.mxu0 0.0
      %6533 = vmatpush1.msra.mxu0 0.0
      %6534 = vmatprep.subr.mxu0 0.0
      %6535 = vmatpush1.msra.mxu0 0.0
      %6536 = vmatprep.subr.mxu0 0.0
      %6537 = vmatpush1.msra.mxu0 0.0
      %6538 = vmatprep.subr.mxu0 0.0
      %6539 = vmatpush1.msra.mxu0 0.0
      %6540 = vmatprep.subr.mxu0 0.0
      %6541 = vmatpush1.msra.mxu0 0.0
      %6542 = vmatprep.subr.mxu0 0.0
      %6543 = vmatpush1.msra.mxu0 0.0
      %6544 = vmatprep.subr.mxu0 0.0
      %6545 = vmatpush1.msra.mxu0 0.0
      %6546 = vmatprep.subr.mxu0 0.0
      %6547 = vmatpush1.msra.mxu0 0.0
      %6548 = vmatprep.subr.mxu0 0.0
      %6549 = vmatpush1.msra.mxu0 0.0
      %6550 = vmatprep.subr.mxu0 0.0
      %6551 = vmatpush1.msra.mxu0 0.0
      %6552 = vmatprep.subr.mxu0 0.0
      %6553 = vmatpush1.msra.mxu0 0.0
      %6554 = vmatprep.subr.mxu0 0.0
      %6555 = vmatpush1.msra.mxu0 0.0
      %6556 = vmatprep.subr.mxu0 0.0
      %6557 = vmatpush1.msra.mxu0 0.0
      %6558 = vmatprep.subr.mxu0 0.0
      %6559 = vmatpush1.msra.mxu0 0.0
      %6560 = vmatprep.subr.mxu0 0.0
      %6561 = vmatpush1.msra.mxu0 0.0
      %6562 = vmatprep.subr.mxu0 0.0
      %6563 = vmatpush1.msra.mxu0 0.0
      %6564 = vmatprep.subr.mxu0 0.0
      %6565 = vmatpush1.msra.mxu0 0.0
      %6566 = vmatprep.subr.mxu0 0.0
      %6567 = vmatpush1.msra.mxu0 0.0
      %6568 = vmatprep.mubr.f32.mxu0 0.0
      %6569 = vmatmul.mubr.f32.gmra.mrb[0].mxu0 %v6488
      %v6570 = vpop.f32.mrb[0].mxu0
      %v6571 = vadd.f32 0.0, %v6570
      %v6572 = vpop.f32.mrb[0].mxu0
      %6573 = vmatprep.mubr.f32.mxu0 0.0
      %6574 = vmatmul.mubr.f32.gmra.mrb[0].mxu0 %v6490
      %v6575 = vpop.f32.mrb[0].mxu0
      %v6576 = vadd.f32 0.0, %v6575
      %v6577 = vpop.f32.mrb[0].mxu0
      %6578 = vmatprep.mubr.f32.mxu0 0.0
      %6579 = vmatmul.mubr.f32.gmra.mrb[0].mxu0 %v6492
      %v6580 = vpop.f32.mrb[0].mxu0
      %v6581 = vadd.f32 0.0, %v6580
      %v6582 = vpop.f32.mrb[0].mxu0
      %6583 = vmatprep.mubr.f32.mxu0 0.0
      %6584 = vmatmul.mubr.f32.gmra.mrb[0].mxu0 %v6494
      %v6585 = vpop.f32.mrb[0].mxu0
      %v6586 = vadd.f32 0.0, %v6585
      %v6587 = vpop.f32.mrb[0].mxu0
      %6588 = vmatprep.mubr.f32.mxu0 0.0
      %6589 = vmatmul.mubr.f32.gmra.mrb[0].mxu0 %v6496
      %v6590 = vpop.f32.mrb[0].mxu0
      %v6591 = vadd.f32 0.0, %v6590
      %v6592 = vpop.f32.mrb[0].mxu0
      %6593 = vmatprep.mubr.f32.mxu0 0.0
      %6594 = vmatmul.mubr.f32.gmra.mrb[0].mxu0 %v6498
      %v6595 = vpop.f32.mrb[0].mxu0
      %v6596 = vadd.f32 0.0, %v6595
      %v6597 = vpop.f32.mrb[0].mxu0
      %6598 = vmatprep.mubr.f32.mxu0 0.0
      %6599 = vmatmul.mubr.f32.gmra.mrb[0].mxu0 %v6500
      %v6600 = vpop.f32.mrb[0].mxu0
      %v6601 = vadd.f32 0.0, %v6600
      %v6602 = vpop.f32.mrb[0].mxu0
      %6603 = vmatprep.mubr.f32.mxu0 0.0
      %6604 = vmatmul.mubr.f32.gmra.mrb[0].mxu0 %v6502
      %v6605 = vpop.f32.mrb[0].mxu0
      %v6606 = vadd.f32 0.0, %v6605
      %v6607 = vpop.f32.mrb[0].mxu0
      %6608 = vdwg.mxu0
      %v6609 = vadd.f32 %v6460, %v6571
      %v6610 = vadd.f32 %v6461, %v6576
      %v6611 = vadd.f32 %v6462, %v6581
      %v6612 = vadd.f32 %v6463, %v6586
      %v6613 = vadd.f32 %v6464, %v6591
      %v6614 = vadd.f32 %v6465, %v6596
      %v6615 = vadd.f32 %v6466, %v6601
      %v6616 = vadd.f32 %v6467, %v6606
      %v6617 = vld [vmem:[%s3757] sm:$0xff]
      %v6618 = vld [vmem:[%s3757 + $0x8] sm:$0xff]
      %v6619 = vld [vmem:[%s3757 + $0x10] sm:$0xff]
      %v6620 = vld [vmem:[%s3757 + $0x18] sm:$0xff]
      %6621 = vrot.lane.b32.xlu0 %v6319, 64
      %v6622 = vpop.permute.xlu0 %6621
      %6623 = vrot.lane.b32.xlu0 %v6320, 64
      %v6624 = vpop.permute.xlu0 %6623
      %6625 = vrot.lane.b32.xlu0 %v6321, 64
      %v6626 = vpop.permute.xlu0 %6625
      %6627 = vrot.lane.b32.xlu0 %v6322, 64
      %v6628 = vpop.permute.xlu0 %6627
      %6629 = vrot.lane.b32.xlu0 %v6323, 64
      %v6630 = vpop.permute.xlu0 %6629
      %6631 = vrot.lane.b32.xlu0 %v6324, 64
      %v6632 = vpop.permute.xlu0 %6631
      %6633 = vrot.lane.b32.xlu0 %v6325, 64
      %v6634 = vpop.permute.xlu0 %6633
      %6635 = vrot.lane.b32.xlu0 %v6326, 64
      %v6636 = vpop.permute.xlu0 %6635
      %v6637 = vsel %vm2178, %v6622, 0
      %v6639 = vsel %vm2178, %v6624, 0
      %v6641 = vsel %vm2178, %v6626, 0
      %v6643 = vsel %vm2178, %v6628, 0
      %v6645 = vsel %vm2178, %v6630, 0
      %v6647 = vsel %vm2178, %v6632, 0
      %v6649 = vsel %vm2178, %v6634, 0
      %v6651 = vsel %vm2178, %v6636, 0
      %6653 = vmatprep.subr.mxu0 0.0
      %6654 = vmatpush1.msra.mxu0 %v6617
      %6655 = vmatprep.subr.mxu0 0.0
      %6656 = vmatpush1.msra.mxu0 %v6618
      %6657 = vmatprep.subr.mxu0 0.0
      %6658 = vmatpush1.msra.mxu0 %v6619
      %6659 = vmatprep.subr.mxu0 0.0
      %6660 = vmatpush1.msra.mxu0 %v6620
      %6661 = vmatprep.subr.mxu0 0.0
      %6662 = vmatpush1.msra.mxu0 0.0
      %6663 = vmatprep.subr.mxu0 0.0
      %6664 = vmatpush1.msra.mxu0 0.0
      %6665 = vmatprep.subr.mxu0 0.0
      %6666 = vmatpush1.msra.mxu0 0.0
      %6667 = vmatprep.subr.mxu0 0.0
      %6668 = vmatpush1.msra.mxu0 0.0
      %6669 = vmatprep.subr.mxu0 0.0
      %6670 = vmatpush1.msra.mxu0 0.0
      %6671 = vmatprep.subr.mxu0 0.0
      %6672 = vmatpush1.msra.mxu0 0.0
      %6673 = vmatprep.subr.mxu0 0.0
      %6674 = vmatpush1.msra.mxu0 0.0
      %6675 = vmatprep.subr.mxu0 0.0
      %6676 = vmatpush1.msra.mxu0 0.0
      %6677 = vmatprep.subr.mxu0 0.0
      %6678 = vmatpush1.msra.mxu0 0.0
      %6679 = vmatprep.subr.mxu0 0.0
      %6680 = vmatpush1.msra.mxu0 0.0
      %6681 = vmatprep.subr.mxu0 0.0
      %6682 = vmatpush1.msra.mxu0 0.0
      %6683 = vmatprep.subr.mxu0 0.0
      %6684 = vmatpush1.msra.mxu0 0.0
      %6685 = vmatprep.subr.mxu0 0.0
      %6686 = vmatpush1.msra.mxu0 0.0
      %6687 = vmatprep.subr.mxu0 0.0
      %6688 = vmatpush1.msra.mxu0 0.0
      %6689 = vmatprep.subr.mxu0 0.0
      %6690 = vmatpush1.msra.mxu0 0.0
      %6691 = vmatprep.subr.mxu0 0.0
      %6692 = vmatpush1.msra.mxu0 0.0
      %6693 = vmatprep.subr.mxu0 0.0
      %6694 = vmatpush1.msra.mxu0 0.0
      %6695 = vmatprep.subr.mxu0 0.0
      %6696 = vmatpush1.msra.mxu0 0.0
      %6697 = vmatprep.subr.mxu0 0.0
      %6698 = vmatpush1.msra.mxu0 0.0
      %6699 = vmatprep.subr.mxu0 0.0
      %6700 = vmatpush1.msra.mxu0 0.0
      %6701 = vmatprep.subr.mxu0 0.0
      %6702 = vmatpush1.msra.mxu0 0.0
      %6703 = vmatprep.subr.mxu0 0.0
      %6704 = vmatpush1.msra.mxu0 0.0
      %6705 = vmatprep.subr.mxu0 0.0
      %6706 = vmatpush1.msra.mxu0 0.0
      %6707 = vmatprep.subr.mxu0 0.0
      %6708 = vmatpush1.msra.mxu0 0.0
      %6709 = vmatprep.subr.mxu0 0.0
      %6710 = vmatpush1.msra.mxu0 0.0
      %6711 = vmatprep.subr.mxu0 0.0
      %6712 = vmatpush1.msra.mxu0 0.0
      %6713 = vmatprep.subr.mxu0 0.0
      %6714 = vmatpush1.msra.mxu0 0.0
      %6715 = vmatprep.subr.mxu0 0.0
      %6716 = vmatpush1.msra.mxu0 0.0
      %6717 = vmatprep.mubr.f32.mxu0 0.0
      %6718 = vmatmul.mubr.f32.gmra.mrb[0].mxu0 %v6637
      %v6719 = vpop.f32.mrb[0].mxu0
      %v6720 = vadd.f32 0.0, %v6719
      %v6721 = vpop.f32.mrb[0].mxu0
      %6722 = vmatprep.mubr.f32.mxu0 0.0
      %6723 = vmatmul.mubr.f32.gmra.mrb[0].mxu0 %v6639
      %v6724 = vpop.f32.mrb[0].mxu0
      %v6725 = vadd.f32 0.0, %v6724
      %v6726 = vpop.f32.mrb[0].mxu0
      %6727 = vmatprep.mubr.f32.mxu0 0.0
      %6728 = vmatmul.mubr.f32.gmra.mrb[0].mxu0 %v6641
      %v6729 = vpop.f32.mrb[0].mxu0
      %v6730 = vadd.f32 0.0, %v6729
      %v6731 = vpop.f32.mrb[0].mxu0
      %6732 = vmatprep.mubr.f32.mxu0 0.0
      %6733 = vmatmul.mubr.f32.gmra.mrb[0].mxu0 %v6643
      %v6734 = vpop.f32.mrb[0].mxu0
      %v6735 = vadd.f32 0.0, %v6734
      %v6736 = vpop.f32.mrb[0].mxu0
      %6737 = vmatprep.mubr.f32.mxu0 0.0
      %6738 = vmatmul.mubr.f32.gmra.mrb[0].mxu0 %v6645
      %v6739 = vpop.f32.mrb[0].mxu0
      %v6740 = vadd.f32 0.0, %v6739
      %v6741 = vpop.f32.mrb[0].mxu0
      %6742 = vmatprep.mubr.f32.mxu0 0.0
      %6743 = vmatmul.mubr.f32.gmra.mrb[0].mxu0 %v6647
      %v6744 = vpop.f32.mrb[0].mxu0
      %v6745 = vadd.f32 0.0, %v6744
      %v6746 = vpop.f32.mrb[0].mxu0
      %6747 = vmatprep.mubr.f32.mxu0 0.0
      %6748 = vmatmul.mubr.f32.gmra.mrb[0].mxu0 %v6649
      %v6749 = vpop.f32.mrb[0].mxu0
      %v6750 = vadd.f32 0.0, %v6749
      %v6751 = vpop.f32.mrb[0].mxu0
      %6752 = vmatprep.mubr.f32.mxu0 0.0
      %6753 = vmatmul.mubr.f32.gmra.mrb[0].mxu0 %v6651
      %v6754 = vpop.f32.mrb[0].mxu0
      %v6755 = vadd.f32 0.0, %v6754
      %v6756 = vpop.f32.mrb[0].mxu0
      %6757 = vdwg.mxu0
      %v6758 = vadd.f32 %v6609, %v6720
      %v6759 = vadd.f32 %v6610, %v6725
      %v6760 = vadd.f32 %v6611, %v6730
      %v6761 = vadd.f32 %v6612, %v6735
      %v6762 = vadd.f32 %v6613, %v6740
      %v6763 = vadd.f32 %v6614, %v6745
      %v6764 = vadd.f32 %v6615, %v6750
      %v6765 = vadd.f32 %v6616, %v6755
      %v6766 = vld [vmem:[%s4] sm:$0x1]
      %v6768 = vlaneseq
      %v6769 = vshrl.u32 %v6768, 7
      %v6770 = vsub.s32 0, %v6769
      %v6771 = vrot.slane %v6766, %v6770
      %v6773 = vadd.f32 %v6758, %v6771
      %v6774 = vadd.f32 %v6759, %v6771
      %v6775 = vadd.f32 %v6760, %v6771
      %v6776 = vadd.f32 %v6761, %v6771
      %v6777 = vadd.f32 %v6762, %v6771
      %v6778 = vadd.f32 %v6763, %v6771
      %v6779 = vadd.f32 %v6764, %v6771
      %v6780 = vadd.f32 %v6765, %v6771
      %vm6781 = vcmp.gt.f32.partialorder %v6773, 0.0
      %vm6782 = vcmp.gt.f32.partialorder %v6774, 0.0
      %vm6783 = vcmp.gt.f32.partialorder %v6775, 0.0
      %vm6784 = vcmp.gt.f32.partialorder %v6776, 0.0
      %vm6785 = vcmp.gt.f32.partialorder %v6777, 0.0
      %vm6786 = vcmp.gt.f32.partialorder %v6778, 0.0
      %vm6787 = vcmp.gt.f32.partialorder %v6779, 0.0
      %vm6788 = vcmp.gt.f32.partialorder %v6780, 0.0
      %v6789 = vmul.f32 %v6773, 0.2
      %v6790 = vmul.f32 %v6774, 0.2
      %v6791 = vmul.f32 %v6775, 0.2
      %v6792 = vmul.f32 %v6776, 0.2
      %v6793 = vmul.f32 %v6777, 0.2
      %v6794 = vmul.f32 %v6778, 0.2
      %v6795 = vmul.f32 %v6779, 0.2
      %v6796 = vmul.f32 %v6780, 0.2
      %v6797 = vsel %vm6781, %v6773, %v6789
      %v6798 = vsel %vm6782, %v6774, %v6790
      %v6799 = vsel %vm6783, %v6775, %v6791
      %v6800 = vsel %vm6784, %v6776, %v6792
      %v6801 = vsel %vm6785, %v6777, %v6793
      %v6802 = vsel %vm6786, %v6778, %v6794
      %v6803 = vsel %vm6787, %v6779, %v6795
      %v6804 = vsel %vm6788, %v6780, %v6796
      %6813 = vrot.lane.b32.xlu0 %v6797, 64
      %v6814 = vpop.permute.xlu0 %6813
      %6815 = vrot.lane.b32.xlu0 %v6798, 64
      %v6816 = vpop.permute.xlu0 %6815
      %6817 = vrot.lane.b32.xlu0 %v6799, 64
      %v6818 = vpop.permute.xlu0 %6817
      %6819 = vrot.lane.b32.xlu0 %v6800, 64
      %v6820 = vpop.permute.xlu0 %6819
      %6821 = vrot.lane.b32.xlu0 %v6801, 64
      %v6822 = vpop.permute.xlu0 %6821
      %6823 = vrot.lane.b32.xlu0 %v6802, 64
      %v6824 = vpop.permute.xlu0 %6823
      %6825 = vrot.lane.b32.xlu0 %v6803, 64
      %v6826 = vpop.permute.xlu0 %6825
      %6827 = vrot.lane.b32.xlu0 %v6804, 64
      %v6828 = vpop.permute.xlu0 %6827
      %s6837 = scalar_lea.vmem [#allocation3], 32
      %6838 = vst.msk [vmem:[%s6837] sm:$0xff] %vm3978, %v6814
      %6839 = vst.msk [vmem:[%s6837 + $0x20] sm:$0xff] %vm3978, %v6816
      %6840 = vst.msk [vmem:[%s6837 + $0x40] sm:$0xff] %vm3978, %v6818
      %6841 = vst.msk [vmem:[%s6837 + $0x60] sm:$0xff] %vm3978, %v6820
      %6842 = vst.msk [vmem:[%s6837 + $0x80] sm:$0xff] %vm3978, %v6822
      %6843 = vst.msk [vmem:[%s6837 + $0xa0] sm:$0xff] %vm3978, %v6824
      %6844 = vst.msk [vmem:[%s6837 + $0xc0] sm:$0xff] %vm3978, %v6826
      %6845 = vst.msk [vmem:[%s6837 + $0xe0] sm:$0xff] %vm3978, %v6828
      %v6846 = vld [vmem:[%s2219] sm:$0xff]
      %v6847 = vld [vmem:[%s2219 + $0x40] sm:$0xff]
      %v6848 = vld [vmem:[%s2219 + $0x80] sm:$0xff]
      %v6849 = vld [vmem:[%s2219 + $0xc0] sm:$0xff]
      %v6850 = vld [vmem:[%s2219 + $0x100] sm:$0xff]
      %v6851 = vld [vmem:[%s2219 + $0x140] sm:$0xff]
      %v6852 = vld [vmem:[%s2219 + $0x180] sm:$0xff]
      %v6853 = vld [vmem:[%s2219 + $0x1c0] sm:$0xff]
      %v6854 = vld [vmem:[%s3] sm:$0xff]
      %v6855 = vld [vmem:[%s3 + $0x8] sm:$0xff]
      %v6856 = vld [vmem:[%s3 + $0x10] sm:$0xff]
      %v6857 = vld [vmem:[%s3 + $0x18] sm:$0xff]
      %v6858 = vld [vmem:[%s2586] sm:$0xff]
      %v6859 = vld [vmem:[%s2586 + $0x8] sm:$0xff]
      %v6860 = vld [vmem:[%s2586 + $0x10] sm:$0xff]
      %v6861 = vld [vmem:[%s2586 + $0x18] sm:$0xff]
      %6870 = vrot.lane.b32.xlu0 %v6846, 32
      %v6871 = vpop.permute.xlu0 %6870
      %6872 = vrot.lane.b32.xlu0 %v6847, 32
      %v6873 = vpop.permute.xlu0 %6872
      %6874 = vrot.lane.b32.xlu0 %v6848, 32
      %v6875 = vpop.permute.xlu0 %6874
      %6876 = vrot.lane.b32.xlu0 %v6849, 32
      %v6877 = vpop.permute.xlu0 %6876
      %6878 = vrot.lane.b32.xlu0 %v6850, 32
      %v6879 = vpop.permute.xlu0 %6878
      %6880 = vrot.lane.b32.xlu0 %v6851, 32
      %v6881 = vpop.permute.xlu0 %6880
      %6882 = vrot.lane.b32.xlu0 %v6852, 32
      %v6883 = vpop.permute.xlu0 %6882
      %6884 = vrot.lane.b32.xlu0 %v6853, 32
      %v6885 = vpop.permute.xlu0 %6884
      %v6886 = vsel %vm2178, %v6871, 0
      %v6888 = vsel %vm2178, %v6873, 0
      %v6890 = vsel %vm2178, %v6875, 0
      %v6892 = vsel %vm2178, %v6877, 0
      %v6894 = vsel %vm2178, %v6879, 0
      %v6896 = vsel %vm2178, %v6881, 0
      %v6898 = vsel %vm2178, %v6883, 0
      %v6900 = vsel %vm2178, %v6885, 0
      %6902 = vmatprep.subr.mxu0 0.0
      %6903 = vmatpush1.msra.mxu0 %v6858
      %6904 = vmatprep.subr.mxu0 0.0
      %6905 = vmatpush1.msra.mxu0 %v6859
      %6906 = vmatprep.subr.mxu0 0.0
      %6907 = vmatpush1.msra.mxu0 %v6860
      %6908 = vmatprep.subr.mxu0 0.0
      %6909 = vmatpush1.msra.mxu0 %v6861
      %6910 = vmatprep.subr.mxu0 0.0
      %6911 = vmatpush1.msra.mxu0 0.0
      %6912 = vmatprep.subr.mxu0 0.0
      %6913 = vmatpush1.msra.mxu0 0.0
      %6914 = vmatprep.subr.mxu0 0.0
      %6915 = vmatpush1.msra.mxu0 0.0
      %6916 = vmatprep.subr.mxu0 0.0
      %6917 = vmatpush1.msra.mxu0 0.0
      %6918 = vmatprep.subr.mxu0 0.0
      %6919 = vmatpush1.msra.mxu0 0.0
      %6920 = vmatprep.subr.mxu0 0.0
      %6921 = vmatpush1.msra.mxu0 0.0
      %6922 = vmatprep.subr.mxu0 0.0
      %6923 = vmatpush1.msra.mxu0 0.0
      %6924 = vmatprep.subr.mxu0 0.0
      %6925 = vmatpush1.msra.mxu0 0.0
      %6926 = vmatprep.subr.mxu0 0.0
      %6927 = vmatpush1.msra.mxu0 0.0
      %6928 = vmatprep.subr.mxu0 0.0
      %6929 = vmatpush1.msra.mxu0 0.0
      %6930 = vmatprep.subr.mxu0 0.0
      %6931 = vmatpush1.msra.mxu0 0.0
      %6932 = vmatprep.subr.mxu0 0.0
      %6933 = vmatpush1.msra.mxu0 0.0
      %6934 = vmatprep.subr.mxu0 0.0
      %6935 = vmatpush1.msra.mxu0 0.0
      %6936 = vmatprep.subr.mxu0 0.0
      %6937 = vmatpush1.msra.mxu0 0.0
      %6938 = vmatprep.subr.mxu0 0.0
      %6939 = vmatpush1.msra.mxu0 0.0
      %6940 = vmatprep.subr.mxu0 0.0
      %6941 = vmatpush1.msra.mxu0 0.0
      %6942 = vmatprep.subr.mxu0 0.0
      %6943 = vmatpush1.msra.mxu0 0.0
      %6944 = vmatprep.subr.mxu0 0.0
      %6945 = vmatpush1.msra.mxu0 0.0
      %6946 = vmatprep.subr.mxu0 0.0
      %6947 = vmatpush1.msra.mxu0 0.0
      %6948 = vmatprep.subr.mxu0 0.0
      %6949 = vmatpush1.msra.mxu0 0.0
      %6950 = vmatprep.subr.mxu0 0.0
      %6951 = vmatpush1.msra.mxu0 0.0
      %6952 = vmatprep.subr.mxu0 0.0
      %6953 = vmatpush1.msra.mxu0 0.0
      %6954 = vmatprep.subr.mxu0 0.0
      %6955 = vmatpush1.msra.mxu0 0.0
      %6956 = vmatprep.subr.mxu0 0.0
      %6957 = vmatpush1.msra.mxu0 0.0
      %6958 = vmatprep.subr.mxu0 0.0
      %6959 = vmatpush1.msra.mxu0 0.0
      %6960 = vmatprep.subr.mxu0 0.0
      %6961 = vmatpush1.msra.mxu0 0.0
      %6962 = vmatprep.subr.mxu0 0.0
      %6963 = vmatpush1.msra.mxu0 0.0
      %6964 = vmatprep.subr.mxu0 0.0
      %6965 = vmatpush1.msra.mxu0 0.0
      %6966 = vmatprep.mubr.f32.mxu0 0.0
      %6967 = vmatmul.mubr.f32.gmra.mrb[0].mxu0 %v6886
      %v6968 = vpop.f32.mrb[0].mxu0
      %v6969 = vadd.f32 0.0, %v6968
      %v6970 = vpop.f32.mrb[0].mxu0
      %6971 = vmatprep.mubr.f32.mxu0 0.0
      %6972 = vmatmul.mubr.f32.gmra.mrb[0].mxu0 %v6888
      %v6973 = vpop.f32.mrb[0].mxu0
      %v6974 = vadd.f32 0.0, %v6973
      %v6975 = vpop.f32.mrb[0].mxu0
      %6976 = vmatprep.mubr.f32.mxu0 0.0
      %6977 = vmatmul.mubr.f32.gmra.mrb[0].mxu0 %v6890
      %v6978 = vpop.f32.mrb[0].mxu0
      %v6979 = vadd.f32 0.0, %v6978
      %v6980 = vpop.f32.mrb[0].mxu0
      %6981 = vmatprep.mubr.f32.mxu0 0.0
      %6982 = vmatmul.mubr.f32.gmra.mrb[0].mxu0 %v6892
      %v6983 = vpop.f32.mrb[0].mxu0
      %v6984 = vadd.f32 0.0, %v6983
      %v6985 = vpop.f32.mrb[0].mxu0
      %6986 = vmatprep.mubr.f32.mxu0 0.0
      %6987 = vmatmul.mubr.f32.gmra.mrb[0].mxu0 %v6894
      %v6988 = vpop.f32.mrb[0].mxu0
      %v6989 = vadd.f32 0.0, %v6988
      %v6990 = vpop.f32.mrb[0].mxu0
      %6991 = vmatprep.mubr.f32.mxu0 0.0
      %6992 = vmatmul.mubr.f32.gmra.mrb[0].mxu0 %v6896
      %v6993 = vpop.f32.mrb[0].mxu0
      %v6994 = vadd.f32 0.0, %v6993
      %v6995 = vpop.f32.mrb[0].mxu0
      %6996 = vmatprep.mubr.f32.mxu0 0.0
      %6997 = vmatmul.mubr.f32.gmra.mrb[0].mxu0 %v6898
      %v6998 = vpop.f32.mrb[0].mxu0
      %v6999 = vadd.f32 0.0, %v6998
      %v7000 = vpop.f32.mrb[0].mxu0
      %7001 = vmatprep.mubr.f32.mxu0 0.0
      %7002 = vmatmul.mubr.f32.gmra.mrb[0].mxu0 %v6900
      %v7003 = vpop.f32.mrb[0].mxu0
      %v7004 = vadd.f32 0.0, %v7003
      %v7005 = vpop.f32.mrb[0].mxu0
      %7006 = vdwg.mxu0
      %7007 = vrot.lane.b32.xlu0 %v6846, 64
      %v7008 = vpop.permute.xlu0 %7007
      %7009 = vrot.lane.b32.xlu0 %v6847, 64
      %v7010 = vpop.permute.xlu0 %7009
      %7011 = vrot.lane.b32.xlu0 %v6848, 64
      %v7012 = vpop.permute.xlu0 %7011
      %7013 = vrot.lane.b32.xlu0 %v6849, 64
      %v7014 = vpop.permute.xlu0 %7013
      %7015 = vrot.lane.b32.xlu0 %v6850, 64
      %v7016 = vpop.permute.xlu0 %7015
      %7017 = vrot.lane.b32.xlu0 %v6851, 64
      %v7018 = vpop.permute.xlu0 %7017
      %7019 = vrot.lane.b32.xlu0 %v6852, 64
      %v7020 = vpop.permute.xlu0 %7019
      %7021 = vrot.lane.b32.xlu0 %v6853, 64
      %v7022 = vpop.permute.xlu0 %7021
      %v7023 = vsel %vm2178, %v7008, 0
      %v7025 = vsel %vm2178, %v7010, 0
      %v7027 = vsel %vm2178, %v7012, 0
      %v7029 = vsel %vm2178, %v7014, 0
      %v7031 = vsel %vm2178, %v7016, 0
      %v7033 = vsel %vm2178, %v7018, 0
      %v7035 = vsel %vm2178, %v7020, 0
      %v7037 = vsel %vm2178, %v7022, 0
      %7039 = vmatprep.subr.mxu0 0.0
      %7040 = vmatpush1.msra.mxu0 %v6854
      %7041 = vmatprep.subr.mxu0 0.0
      %7042 = vmatpush1.msra.mxu0 %v6855
      %7043 = vmatprep.subr.mxu0 0.0
      %7044 = vmatpush1.msra.mxu0 %v6856
      %7045 = vmatprep.subr.mxu0 0.0
      %7046 = vmatpush1.msra.mxu0 %v6857
      %7047 = vmatprep.subr.mxu0 0.0
      %7048 = vmatpush1.msra.mxu0 0.0
      %7049 = vmatprep.subr.mxu0 0.0
      %7050 = vmatpush1.msra.mxu0 0.0
      %7051 = vmatprep.subr.mxu0 0.0
      %7052 = vmatpush1.msra.mxu0 0.0
      %7053 = vmatprep.subr.mxu0 0.0
      %7054 = vmatpush1.msra.mxu0 0.0
      %7055 = vmatprep.subr.mxu0 0.0
      %7056 = vmatpush1.msra.mxu0 0.0
      %7057 = vmatprep.subr.mxu0 0.0
      %7058 = vmatpush1.msra.mxu0 0.0
      %7059 = vmatprep.subr.mxu0 0.0
      %7060 = vmatpush1.msra.mxu0 0.0
      %7061 = vmatprep.subr.mxu0 0.0
      %7062 = vmatpush1.msra.mxu0 0.0
      %7063 = vmatprep.subr.mxu0 0.0
      %7064 = vmatpush1.msra.mxu0 0.0
      %7065 = vmatprep.subr.mxu0 0.0
      %7066 = vmatpush1.msra.mxu0 0.0
      %7067 = vmatprep.subr.mxu0 0.0
      %7068 = vmatpush1.msra.mxu0 0.0
      %7069 = vmatprep.subr.mxu0 0.0
      %7070 = vmatpush1.msra.mxu0 0.0
      %7071 = vmatprep.subr.mxu0 0.0
      %7072 = vmatpush1.msra.mxu0 0.0
      %7073 = vmatprep.subr.mxu0 0.0
      %7074 = vmatpush1.msra.mxu0 0.0
      %7075 = vmatprep.subr.mxu0 0.0
      %7076 = vmatpush1.msra.mxu0 0.0
      %7077 = vmatprep.subr.mxu0 0.0
      %7078 = vmatpush1.msra.mxu0 0.0
      %7079 = vmatprep.subr.mxu0 0.0
      %7080 = vmatpush1.msra.mxu0 0.0
      %7081 = vmatprep.subr.mxu0 0.0
      %7082 = vmatpush1.msra.mxu0 0.0
      %7083 = vmatprep.subr.mxu0 0.0
      %7084 = vmatpush1.msra.mxu0 0.0
      %7085 = vmatprep.subr.mxu0 0.0
      %7086 = vmatpush1.msra.mxu0 0.0
      %7087 = vmatprep.subr.mxu0 0.0
      %7088 = vmatpush1.msra.mxu0 0.0
      %7089 = vmatprep.subr.mxu0 0.0
      %7090 = vmatpush1.msra.mxu0 0.0
      %7091 = vmatprep.subr.mxu0 0.0
      %7092 = vmatpush1.msra.mxu0 0.0
      %7093 = vmatprep.subr.mxu0 0.0
      %7094 = vmatpush1.msra.mxu0 0.0
      %7095 = vmatprep.subr.mxu0 0.0
      %7096 = vmatpush1.msra.mxu0 0.0
      %7097 = vmatprep.subr.mxu0 0.0
      %7098 = vmatpush1.msra.mxu0 0.0
      %7099 = vmatprep.subr.mxu0 0.0
      %7100 = vmatpush1.msra.mxu0 0.0
      %7101 = vmatprep.subr.mxu0 0.0
      %7102 = vmatpush1.msra.mxu0 0.0
      %7103 = vmatprep.mubr.f32.mxu0 0.0
      %7104 = vmatmul.mubr.f32.gmra.mrb[0].mxu0 %v7023
      %v7105 = vpop.f32.mrb[0].mxu0
      %v7106 = vadd.f32 %v6969, %v7105
      %v7107 = vpop.f32.mrb[0].mxu0
      %7108 = vmatprep.mubr.f32.mxu0 0.0
      %7109 = vmatmul.mubr.f32.gmra.mrb[0].mxu0 %v7025
      %v7110 = vpop.f32.mrb[0].mxu0
      %v7111 = vadd.f32 %v6974, %v7110
      %v7112 = vpop.f32.mrb[0].mxu0
      %7113 = vmatprep.mubr.f32.mxu0 0.0
      %7114 = vmatmul.mubr.f32.gmra.mrb[0].mxu0 %v7027
      %v7115 = vpop.f32.mrb[0].mxu0
      %v7116 = vadd.f32 %v6979, %v7115
      %v7117 = vpop.f32.mrb[0].mxu0
      %7118 = vmatprep.mubr.f32.mxu0 0.0
      %7119 = vmatmul.mubr.f32.gmra.mrb[0].mxu0 %v7029
      %v7120 = vpop.f32.mrb[0].mxu0
      %v7121 = vadd.f32 %v6984, %v7120
      %v7122 = vpop.f32.mrb[0].mxu0
      %7123 = vmatprep.mubr.f32.mxu0 0.0
      %7124 = vmatmul.mubr.f32.gmra.mrb[0].mxu0 %v7031
      %v7125 = vpop.f32.mrb[0].mxu0
      %v7126 = vadd.f32 %v6989, %v7125
      %v7127 = vpop.f32.mrb[0].mxu0
      %7128 = vmatprep.mubr.f32.mxu0 0.0
      %7129 = vmatmul.mubr.f32.gmra.mrb[0].mxu0 %v7033
      %v7130 = vpop.f32.mrb[0].mxu0
      %v7131 = vadd.f32 %v6994, %v7130
      %v7132 = vpop.f32.mrb[0].mxu0
      %7133 = vmatprep.mubr.f32.mxu0 0.0
      %7134 = vmatmul.mubr.f32.gmra.mrb[0].mxu0 %v7035
      %v7135 = vpop.f32.mrb[0].mxu0
      %v7136 = vadd.f32 %v6999, %v7135
      %v7137 = vpop.f32.mrb[0].mxu0
      %7138 = vmatprep.mubr.f32.mxu0 0.0
      %7139 = vmatmul.mubr.f32.gmra.mrb[0].mxu0 %v7037
      %v7140 = vpop.f32.mrb[0].mxu0
      %v7141 = vadd.f32 %v7004, %v7140
      %v7142 = vpop.f32.mrb[0].mxu0
      %7143 = vdwg.mxu0
      %v7144 = vld [vmem:[%s2219 + $0x1] sm:$0xff]
      %v7145 = vld [vmem:[%s2219 + $0x41] sm:$0xff]
      %v7146 = vld [vmem:[%s2219 + $0x81] sm:$0xff]
      %v7147 = vld [vmem:[%s2219 + $0xc1] sm:$0xff]
      %v7148 = vld [vmem:[%s2219 + $0x101] sm:$0xff]
      %v7149 = vld [vmem:[%s2219 + $0x141] sm:$0xff]
      %v7150 = vld [vmem:[%s2219 + $0x181] sm:$0xff]
      %v7151 = vld [vmem:[%s2219 + $0x1c1] sm:$0xff]
      %v7152 = vld [vmem:[%s2857] sm:$0xff]
      %v7153 = vld [vmem:[%s2857 + $0x8] sm:$0xff]
      %v7154 = vld [vmem:[%s2857 + $0x10] sm:$0xff]
      %v7155 = vld [vmem:[%s2857 + $0x18] sm:$0xff]
      %v7157 = vsel %vm2178, %v7144, 0
      %v7160 = vsel %vm2178, %v7145, 0
      %v7163 = vsel %vm2178, %v7146, 0
      %v7166 = vsel %vm2178, %v7147, 0
      %v7169 = vsel %vm2178, %v7148, 0
      %v7172 = vsel %vm2178, %v7149, 0
      %v7175 = vsel %vm2178, %v7150, 0
      %v7178 = vsel %vm2178, %v7151, 0
      %7180 = vmatprep.subr.mxu0 0.0
      %7181 = vmatpush1.msra.mxu0 %v7152
      %7182 = vmatprep.subr.mxu0 0.0
      %7183 = vmatpush1.msra.mxu0 %v7153
      %7184 = vmatprep.subr.mxu0 0.0
      %7185 = vmatpush1.msra.mxu0 %v7154
      %7186 = vmatprep.subr.mxu0 0.0
      %7187 = vmatpush1.msra.mxu0 %v7155
      %7188 = vmatprep.subr.mxu0 0.0
      %7189 = vmatpush1.msra.mxu0 0.0
      %7190 = vmatprep.subr.mxu0 0.0
      %7191 = vmatpush1.msra.mxu0 0.0
      %7192 = vmatprep.subr.mxu0 0.0
      %7193 = vmatpush1.msra.mxu0 0.0
      %7194 = vmatprep.subr.mxu0 0.0
      %7195 = vmatpush1.msra.mxu0 0.0
      %7196 = vmatprep.subr.mxu0 0.0
      %7197 = vmatpush1.msra.mxu0 0.0
      %7198 = vmatprep.subr.mxu0 0.0
      %7199 = vmatpush1.msra.mxu0 0.0
      %7200 = vmatprep.subr.mxu0 0.0
      %7201 = vmatpush1.msra.mxu0 0.0
      %7202 = vmatprep.subr.mxu0 0.0
      %7203 = vmatpush1.msra.mxu0 0.0
      %7204 = vmatprep.subr.mxu0 0.0
      %7205 = vmatpush1.msra.mxu0 0.0
      %7206 = vmatprep.subr.mxu0 0.0
      %7207 = vmatpush1.msra.mxu0 0.0
      %7208 = vmatprep.subr.mxu0 0.0
      %7209 = vmatpush1.msra.mxu0 0.0
      %7210 = vmatprep.subr.mxu0 0.0
      %7211 = vmatpush1.msra.mxu0 0.0
      %7212 = vmatprep.subr.mxu0 0.0
      %7213 = vmatpush1.msra.mxu0 0.0
      %7214 = vmatprep.subr.mxu0 0.0
      %7215 = vmatpush1.msra.mxu0 0.0
      %7216 = vmatprep.subr.mxu0 0.0
      %7217 = vmatpush1.msra.mxu0 0.0
      %7218 = vmatprep.subr.mxu0 0.0
      %7219 = vmatpush1.msra.mxu0 0.0
      %7220 = vmatprep.subr.mxu0 0.0
      %7221 = vmatpush1.msra.mxu0 0.0
      %7222 = vmatprep.subr.mxu0 0.0
      %7223 = vmatpush1.msra.mxu0 0.0
      %7224 = vmatprep.subr.mxu0 0.0
      %7225 = vmatpush1.msra.mxu0 0.0
      %7226 = vmatprep.subr.mxu0 0.0
      %7227 = vmatpush1.msra.mxu0 0.0
      %7228 = vmatprep.subr.mxu0 0.0
      %7229 = vmatpush1.msra.mxu0 0.0
      %7230 = vmatprep.subr.mxu0 0.0
      %7231 = vmatpush1.msra.mxu0 0.0
      %7232 = vmatprep.subr.mxu0 0.0
      %7233 = vmatpush1.msra.mxu0 0.0
      %7234 = vmatprep.subr.mxu0 0.0
      %7235 = vmatpush1.msra.mxu0 0.0
      %7236 = vmatprep.subr.mxu0 0.0
      %7237 = vmatpush1.msra.mxu0 0.0
      %7238 = vmatprep.subr.mxu0 0.0
      %7239 = vmatpush1.msra.mxu0 0.0
      %7240 = vmatprep.subr.mxu0 0.0
      %7241 = vmatpush1.msra.mxu0 0.0
      %7242 = vmatprep.subr.mxu0 0.0
      %7243 = vmatpush1.msra.mxu0 0.0
      %7244 = vmatprep.mubr.f32.mxu0 0.0
      %7245 = vmatmul.mubr.f32.gmra.mrb[0].mxu0 %v7157
      %v7246 = vpop.f32.mrb[0].mxu0
      %v7247 = vadd.f32 0.0, %v7246
      %v7248 = vpop.f32.mrb[0].mxu0
      %7249 = vmatprep.mubr.f32.mxu0 0.0
      %7250 = vmatmul.mubr.f32.gmra.mrb[0].mxu0 %v7160
      %v7251 = vpop.f32.mrb[0].mxu0
      %v7252 = vadd.f32 0.0, %v7251
      %v7253 = vpop.f32.mrb[0].mxu0
      %7254 = vmatprep.mubr.f32.mxu0 0.0
      %7255 = vmatmul.mubr.f32.gmra.mrb[0].mxu0 %v7163
      %v7256 = vpop.f32.mrb[0].mxu0
      %v7257 = vadd.f32 0.0, %v7256
      %v7258 = vpop.f32.mrb[0].mxu0
      %7259 = vmatprep.mubr.f32.mxu0 0.0
      %7260 = vmatmul.mubr.f32.gmra.mrb[0].mxu0 %v7166
      %v7261 = vpop.f32.mrb[0].mxu0
      %v7262 = vadd.f32 0.0, %v7261
      %v7263 = vpop.f32.mrb[0].mxu0
      %7264 = vmatprep.mubr.f32.mxu0 0.0
      %7265 = vmatmul.mubr.f32.gmra.mrb[0].mxu0 %v7169
      %v7266 = vpop.f32.mrb[0].mxu0
      %v7267 = vadd.f32 0.0, %v7266
      %v7268 = vpop.f32.mrb[0].mxu0
      %7269 = vmatprep.mubr.f32.mxu0 0.0
      %7270 = vmatmul.mubr.f32.gmra.mrb[0].mxu0 %v7172
      %v7271 = vpop.f32.mrb[0].mxu0
      %v7272 = vadd.f32 0.0, %v7271
      %v7273 = vpop.f32.mrb[0].mxu0
      %7274 = vmatprep.mubr.f32.mxu0 0.0
      %7275 = vmatmul.mubr.f32.gmra.mrb[0].mxu0 %v7175
      %v7276 = vpop.f32.mrb[0].mxu0
      %v7277 = vadd.f32 0.0, %v7276
      %v7278 = vpop.f32.mrb[0].mxu0
      %7279 = vmatprep.mubr.f32.mxu0 0.0
      %7280 = vmatmul.mubr.f32.gmra.mrb[0].mxu0 %v7178
      %v7281 = vpop.f32.mrb[0].mxu0
      %v7282 = vadd.f32 0.0, %v7281
      %v7283 = vpop.f32.mrb[0].mxu0
      %7284 = vdwg.mxu0
      %v7285 = vadd.f32 %v7106, %v7247
      %v7286 = vadd.f32 %v7111, %v7252
      %v7287 = vadd.f32 %v7116, %v7257
      %v7288 = vadd.f32 %v7121, %v7262
      %v7289 = vadd.f32 %v7126, %v7267
      %v7290 = vadd.f32 %v7131, %v7272
      %v7291 = vadd.f32 %v7136, %v7277
      %v7292 = vadd.f32 %v7141, %v7282
      %v7293 = vld [vmem:[%s2348] sm:$0xff]
      %v7294 = vld [vmem:[%s2348 + $0x40] sm:$0xff]
      %v7295 = vld [vmem:[%s2348 + $0x80] sm:$0xff]
      %v7296 = vld [vmem:[%s2348 + $0xc0] sm:$0xff]
      %v7297 = vld [vmem:[%s2348 + $0x100] sm:$0xff]
      %v7298 = vld [vmem:[%s2348 + $0x140] sm:$0xff]
      %v7299 = vld [vmem:[%s2348 + $0x180] sm:$0xff]
      %v7300 = vld [vmem:[%s2348 + $0x1c0] sm:$0xff]
      %v7301 = vld [vmem:[%s3015] sm:$0xff]
      %v7302 = vld [vmem:[%s3015 + $0x8] sm:$0xff]
      %v7303 = vld [vmem:[%s3015 + $0x10] sm:$0xff]
      %v7304 = vld [vmem:[%s3015 + $0x18] sm:$0xff]
      %7313 = vrot.lane.b32.xlu0 %v7293, 64
      %v7314 = vpop.permute.xlu0 %7313
      %7315 = vrot.lane.b32.xlu0 %v7294, 64
      %v7316 = vpop.permute.xlu0 %7315
      %7317 = vrot.lane.b32.xlu0 %v7295, 64
      %v7318 = vpop.permute.xlu0 %7317
      %7319 = vrot.lane.b32.xlu0 %v7296, 64
      %v7320 = vpop.permute.xlu0 %7319
      %7321 = vrot.lane.b32.xlu0 %v7297, 64
      %v7322 = vpop.permute.xlu0 %7321
      %7323 = vrot.lane.b32.xlu0 %v7298, 64
      %v7324 = vpop.permute.xlu0 %7323
      %7325 = vrot.lane.b32.xlu0 %v7299, 64
      %v7326 = vpop.permute.xlu0 %7325
      %7327 = vrot.lane.b32.xlu0 %v7300, 64
      %v7328 = vpop.permute.xlu0 %7327
      %v7329 = vsel %vm2178, %v7314, 0
      %v7331 = vsel %vm2178, %v7316, 0
      %v7333 = vsel %vm2178, %v7318, 0
      %v7335 = vsel %vm2178, %v7320, 0
      %v7337 = vsel %vm2178, %v7322, 0
      %v7339 = vsel %vm2178, %v7324, 0
      %v7341 = vsel %vm2178, %v7326, 0
      %v7343 = vsel %vm2178, %v7328, 0
      %7345 = vmatprep.subr.mxu0 0.0
      %7346 = vmatpush1.msra.mxu0 %v7301
      %7347 = vmatprep.subr.mxu0 0.0
      %7348 = vmatpush1.msra.mxu0 %v7302
      %7349 = vmatprep.subr.mxu0 0.0
      %7350 = vmatpush1.msra.mxu0 %v7303
      %7351 = vmatprep.subr.mxu0 0.0
      %7352 = vmatpush1.msra.mxu0 %v7304
      %7353 = vmatprep.subr.mxu0 0.0
      %7354 = vmatpush1.msra.mxu0 0.0
      %7355 = vmatprep.subr.mxu0 0.0
      %7356 = vmatpush1.msra.mxu0 0.0
      %7357 = vmatprep.subr.mxu0 0.0
      %7358 = vmatpush1.msra.mxu0 0.0
      %7359 = vmatprep.subr.mxu0 0.0
      %7360 = vmatpush1.msra.mxu0 0.0
      %7361 = vmatprep.subr.mxu0 0.0
      %7362 = vmatpush1.msra.mxu0 0.0
      %7363 = vmatprep.subr.mxu0 0.0
      %7364 = vmatpush1.msra.mxu0 0.0
      %7365 = vmatprep.subr.mxu0 0.0
      %7366 = vmatpush1.msra.mxu0 0.0
      %7367 = vmatprep.subr.mxu0 0.0
      %7368 = vmatpush1.msra.mxu0 0.0
      %7369 = vmatprep.subr.mxu0 0.0
      %7370 = vmatpush1.msra.mxu0 0.0
      %7371 = vmatprep.subr.mxu0 0.0
      %7372 = vmatpush1.msra.mxu0 0.0
      %7373 = vmatprep.subr.mxu0 0.0
      %7374 = vmatpush1.msra.mxu0 0.0
      %7375 = vmatprep.subr.mxu0 0.0
      %7376 = vmatpush1.msra.mxu0 0.0
      %7377 = vmatprep.subr.mxu0 0.0
      %7378 = vmatpush1.msra.mxu0 0.0
      %7379 = vmatprep.subr.mxu0 0.0
      %7380 = vmatpush1.msra.mxu0 0.0
      %7381 = vmatprep.subr.mxu0 0.0
      %7382 = vmatpush1.msra.mxu0 0.0
      %7383 = vmatprep.subr.mxu0 0.0
      %7384 = vmatpush1.msra.mxu0 0.0
      %7385 = vmatprep.subr.mxu0 0.0
      %7386 = vmatpush1.msra.mxu0 0.0
      %7387 = vmatprep.subr.mxu0 0.0
      %7388 = vmatpush1.msra.mxu0 0.0
      %7389 = vmatprep.subr.mxu0 0.0
      %7390 = vmatpush1.msra.mxu0 0.0
      %7391 = vmatprep.subr.mxu0 0.0
      %7392 = vmatpush1.msra.mxu0 0.0
      %7393 = vmatprep.subr.mxu0 0.0
      %7394 = vmatpush1.msra.mxu0 0.0
      %7395 = vmatprep.subr.mxu0 0.0
      %7396 = vmatpush1.msra.mxu0 0.0
      %7397 = vmatprep.subr.mxu0 0.0
      %7398 = vmatpush1.msra.mxu0 0.0
      %7399 = vmatprep.subr.mxu0 0.0
      %7400 = vmatpush1.msra.mxu0 0.0
      %7401 = vmatprep.subr.mxu0 0.0
      %7402 = vmatpush1.msra.mxu0 0.0
      %7403 = vmatprep.subr.mxu0 0.0
      %7404 = vmatpush1.msra.mxu0 0.0
      %7405 = vmatprep.subr.mxu0 0.0
      %7406 = vmatpush1.msra.mxu0 0.0
      %7407 = vmatprep.subr.mxu0 0.0
      %7408 = vmatpush1.msra.mxu0 0.0
      %7409 = vmatprep.mubr.f32.mxu0 0.0
      %7410 = vmatmul.mubr.f32.gmra.mrb[0].mxu0 %v7329
      %v7411 = vpop.f32.mrb[0].mxu0
      %v7412 = vadd.f32 0.0, %v7411
      %v7413 = vpop.f32.mrb[0].mxu0
      %7414 = vmatprep.mubr.f32.mxu0 0.0
      %7415 = vmatmul.mubr.f32.gmra.mrb[0].mxu0 %v7331
      %v7416 = vpop.f32.mrb[0].mxu0
      %v7417 = vadd.f32 0.0, %v7416
      %v7418 = vpop.f32.mrb[0].mxu0
      %7419 = vmatprep.mubr.f32.mxu0 0.0
      %7420 = vmatmul.mubr.f32.gmra.mrb[0].mxu0 %v7333
      %v7421 = vpop.f32.mrb[0].mxu0
      %v7422 = vadd.f32 0.0, %v7421
      %v7423 = vpop.f32.mrb[0].mxu0
      %7424 = vmatprep.mubr.f32.mxu0 0.0
      %7425 = vmatmul.mubr.f32.gmra.mrb[0].mxu0 %v7335
      %v7426 = vpop.f32.mrb[0].mxu0
      %v7427 = vadd.f32 0.0, %v7426
      %v7428 = vpop.f32.mrb[0].mxu0
      %7429 = vmatprep.mubr.f32.mxu0 0.0
      %7430 = vmatmul.mubr.f32.gmra.mrb[0].mxu0 %v7337
      %v7431 = vpop.f32.mrb[0].mxu0
      %v7432 = vadd.f32 0.0, %v7431
      %v7433 = vpop.f32.mrb[0].mxu0
      %7434 = vmatprep.mubr.f32.mxu0 0.0
      %7435 = vmatmul.mubr.f32.gmra.mrb[0].mxu0 %v7339
      %v7436 = vpop.f32.mrb[0].mxu0
      %v7437 = vadd.f32 0.0, %v7436
      %v7438 = vpop.f32.mrb[0].mxu0
      %7439 = vmatprep.mubr.f32.mxu0 0.0
      %7440 = vmatmul.mubr.f32.gmra.mrb[0].mxu0 %v7341
      %v7441 = vpop.f32.mrb[0].mxu0
      %v7442 = vadd.f32 0.0, %v7441
      %v7443 = vpop.f32.mrb[0].mxu0
      %7444 = vmatprep.mubr.f32.mxu0 0.0
      %7445 = vmatmul.mubr.f32.gmra.mrb[0].mxu0 %v7343
      %v7446 = vpop.f32.mrb[0].mxu0
      %v7447 = vadd.f32 0.0, %v7446
      %v7448 = vpop.f32.mrb[0].mxu0
      %7449 = vdwg.mxu0
      %v7450 = vadd.f32 %v7285, %v7412
      %v7451 = vadd.f32 %v7286, %v7417
      %v7452 = vadd.f32 %v7287, %v7422
      %v7453 = vadd.f32 %v7288, %v7427
      %v7454 = vadd.f32 %v7289, %v7432
      %v7455 = vadd.f32 %v7290, %v7437
      %v7456 = vadd.f32 %v7291, %v7442
      %v7457 = vadd.f32 %v7292, %v7447
      %v7458 = vld [vmem:[%s3157] sm:$0xff]
      %v7459 = vld [vmem:[%s3157 + $0x8] sm:$0xff]
      %v7460 = vld [vmem:[%s3157 + $0x10] sm:$0xff]
      %v7461 = vld [vmem:[%s3157 + $0x18] sm:$0xff]
      %7462 = vrot.lane.b32.xlu0 %v7293, 32
      %v7463 = vpop.permute.xlu0 %7462
      %7464 = vrot.lane.b32.xlu0 %v7294, 32
      %v7465 = vpop.permute.xlu0 %7464
      %7466 = vrot.lane.b32.xlu0 %v7295, 32
      %v7467 = vpop.permute.xlu0 %7466
      %7468 = vrot.lane.b32.xlu0 %v7296, 32
      %v7469 = vpop.permute.xlu0 %7468
      %7470 = vrot.lane.b32.xlu0 %v7297, 32
      %v7471 = vpop.permute.xlu0 %7470
      %7472 = vrot.lane.b32.xlu0 %v7298, 32
      %v7473 = vpop.permute.xlu0 %7472
      %7474 = vrot.lane.b32.xlu0 %v7299, 32
      %v7475 = vpop.permute.xlu0 %7474
      %7476 = vrot.lane.b32.xlu0 %v7300, 32
      %v7477 = vpop.permute.xlu0 %7476
      %v7478 = vsel %vm2178, %v7463, 0
      %v7480 = vsel %vm2178, %v7465, 0
      %v7482 = vsel %vm2178, %v7467, 0
      %v7484 = vsel %vm2178, %v7469, 0
      %v7486 = vsel %vm2178, %v7471, 0
      %v7488 = vsel %vm2178, %v7473, 0
      %v7490 = vsel %vm2178, %v7475, 0
      %v7492 = vsel %vm2178, %v7477, 0
      %7494 = vmatprep.subr.mxu0 0.0
      %7495 = vmatpush1.msra.mxu0 %v7458
      %7496 = vmatprep.subr.mxu0 0.0
      %7497 = vmatpush1.msra.mxu0 %v7459
      %7498 = vmatprep.subr.mxu0 0.0
      %7499 = vmatpush1.msra.mxu0 %v7460
      %7500 = vmatprep.subr.mxu0 0.0
      %7501 = vmatpush1.msra.mxu0 %v7461
      %7502 = vmatprep.subr.mxu0 0.0
      %7503 = vmatpush1.msra.mxu0 0.0
      %7504 = vmatprep.subr.mxu0 0.0
      %7505 = vmatpush1.msra.mxu0 0.0
      %7506 = vmatprep.subr.mxu0 0.0
      %7507 = vmatpush1.msra.mxu0 0.0
      %7508 = vmatprep.subr.mxu0 0.0
      %7509 = vmatpush1.msra.mxu0 0.0
      %7510 = vmatprep.subr.mxu0 0.0
      %7511 = vmatpush1.msra.mxu0 0.0
      %7512 = vmatprep.subr.mxu0 0.0
      %7513 = vmatpush1.msra.mxu0 0.0
      %7514 = vmatprep.subr.mxu0 0.0
      %7515 = vmatpush1.msra.mxu0 0.0
      %7516 = vmatprep.subr.mxu0 0.0
      %7517 = vmatpush1.msra.mxu0 0.0
      %7518 = vmatprep.subr.mxu0 0.0
      %7519 = vmatpush1.msra.mxu0 0.0
      %7520 = vmatprep.subr.mxu0 0.0
      %7521 = vmatpush1.msra.mxu0 0.0
      %7522 = vmatprep.subr.mxu0 0.0
      %7523 = vmatpush1.msra.mxu0 0.0
      %7524 = vmatprep.subr.mxu0 0.0
      %7525 = vmatpush1.msra.mxu0 0.0
      %7526 = vmatprep.subr.mxu0 0.0
      %7527 = vmatpush1.msra.mxu0 0.0
      %7528 = vmatprep.subr.mxu0 0.0
      %7529 = vmatpush1.msra.mxu0 0.0
      %7530 = vmatprep.subr.mxu0 0.0
      %7531 = vmatpush1.msra.mxu0 0.0
      %7532 = vmatprep.subr.mxu0 0.0
      %7533 = vmatpush1.msra.mxu0 0.0
      %7534 = vmatprep.subr.mxu0 0.0
      %7535 = vmatpush1.msra.mxu0 0.0
      %7536 = vmatprep.subr.mxu0 0.0
      %7537 = vmatpush1.msra.mxu0 0.0
      %7538 = vmatprep.subr.mxu0 0.0
      %7539 = vmatpush1.msra.mxu0 0.0
      %7540 = vmatprep.subr.mxu0 0.0
      %7541 = vmatpush1.msra.mxu0 0.0
      %7542 = vmatprep.subr.mxu0 0.0
      %7543 = vmatpush1.msra.mxu0 0.0
      %7544 = vmatprep.subr.mxu0 0.0
      %7545 = vmatpush1.msra.mxu0 0.0
      %7546 = vmatprep.subr.mxu0 0.0
      %7547 = vmatpush1.msra.mxu0 0.0
      %7548 = vmatprep.subr.mxu0 0.0
      %7549 = vmatpush1.msra.mxu0 0.0
      %7550 = vmatprep.subr.mxu0 0.0
      %7551 = vmatpush1.msra.mxu0 0.0
      %7552 = vmatprep.subr.mxu0 0.0
      %7553 = vmatpush1.msra.mxu0 0.0
      %7554 = vmatprep.subr.mxu0 0.0
      %7555 = vmatpush1.msra.mxu0 0.0
      %7556 = vmatprep.subr.mxu0 0.0
      %7557 = vmatpush1.msra.mxu0 0.0
      %7558 = vmatprep.mubr.f32.mxu0 0.0
      %7559 = vmatmul.mubr.f32.gmra.mrb[0].mxu0 %v7478
      %v7560 = vpop.f32.mrb[0].mxu0
      %v7561 = vadd.f32 0.0, %v7560
      %v7562 = vpop.f32.mrb[0].mxu0
      %7563 = vmatprep.mubr.f32.mxu0 0.0
      %7564 = vmatmul.mubr.f32.gmra.mrb[0].mxu0 %v7480
      %v7565 = vpop.f32.mrb[0].mxu0
      %v7566 = vadd.f32 0.0, %v7565
      %v7567 = vpop.f32.mrb[0].mxu0
      %7568 = vmatprep.mubr.f32.mxu0 0.0
      %7569 = vmatmul.mubr.f32.gmra.mrb[0].mxu0 %v7482
      %v7570 = vpop.f32.mrb[0].mxu0
      %v7571 = vadd.f32 0.0, %v7570
      %v7572 = vpop.f32.mrb[0].mxu0
      %7573 = vmatprep.mubr.f32.mxu0 0.0
      %7574 = vmatmul.mubr.f32.gmra.mrb[0].mxu0 %v7484
      %v7575 = vpop.f32.mrb[0].mxu0
      %v7576 = vadd.f32 0.0, %v7575
      %v7577 = vpop.f32.mrb[0].mxu0
      %7578 = vmatprep.mubr.f32.mxu0 0.0
      %7579 = vmatmul.mubr.f32.gmra.mrb[0].mxu0 %v7486
      %v7580 = vpop.f32.mrb[0].mxu0
      %v7581 = vadd.f32 0.0, %v7580
      %v7582 = vpop.f32.mrb[0].mxu0
      %7583 = vmatprep.mubr.f32.mxu0 0.0
      %7584 = vmatmul.mubr.f32.gmra.mrb[0].mxu0 %v7488
      %v7585 = vpop.f32.mrb[0].mxu0
      %v7586 = vadd.f32 0.0, %v7585
      %v7587 = vpop.f32.mrb[0].mxu0
      %7588 = vmatprep.mubr.f32.mxu0 0.0
      %7589 = vmatmul.mubr.f32.gmra.mrb[0].mxu0 %v7490
      %v7590 = vpop.f32.mrb[0].mxu0
      %v7591 = vadd.f32 0.0, %v7590
      %v7592 = vpop.f32.mrb[0].mxu0
      %7593 = vmatprep.mubr.f32.mxu0 0.0
      %7594 = vmatmul.mubr.f32.gmra.mrb[0].mxu0 %v7492
      %v7595 = vpop.f32.mrb[0].mxu0
      %v7596 = vadd.f32 0.0, %v7595
      %v7597 = vpop.f32.mrb[0].mxu0
      %7598 = vdwg.mxu0
      %v7599 = vadd.f32 %v7450, %v7561
      %v7600 = vadd.f32 %v7451, %v7566
      %v7601 = vadd.f32 %v7452, %v7571
      %v7602 = vadd.f32 %v7453, %v7576
      %v7603 = vadd.f32 %v7454, %v7581
      %v7604 = vadd.f32 %v7455, %v7586
      %v7605 = vadd.f32 %v7456, %v7591
      %v7606 = vadd.f32 %v7457, %v7596
      %v7607 = vld [vmem:[%s2348 + $0x1] sm:$0xff]
      %v7608 = vld [vmem:[%s2348 + $0x41] sm:$0xff]
      %v7609 = vld [vmem:[%s2348 + $0x81] sm:$0xff]
      %v7610 = vld [vmem:[%s2348 + $0xc1] sm:$0xff]
      %v7611 = vld [vmem:[%s2348 + $0x101] sm:$0xff]
      %v7612 = vld [vmem:[%s2348 + $0x141] sm:$0xff]
      %v7613 = vld [vmem:[%s2348 + $0x181] sm:$0xff]
      %v7614 = vld [vmem:[%s2348 + $0x1c1] sm:$0xff]
      %v7615 = vld [vmem:[%s3307] sm:$0xff]
      %v7616 = vld [vmem:[%s3307 + $0x8] sm:$0xff]
      %v7617 = vld [vmem:[%s3307 + $0x10] sm:$0xff]
      %v7618 = vld [vmem:[%s3307 + $0x18] sm:$0xff]
      %v7620 = vsel %vm2178, %v7607, 0
      %v7623 = vsel %vm2178, %v7608, 0
      %v7626 = vsel %vm2178, %v7609, 0
      %v7629 = vsel %vm2178, %v7610, 0
      %v7632 = vsel %vm2178, %v7611, 0
      %v7635 = vsel %vm2178, %v7612, 0
      %v7638 = vsel %vm2178, %v7613, 0
      %v7641 = vsel %vm2178, %v7614, 0
      %7643 = vmatprep.subr.mxu0 0.0
      %7644 = vmatpush1.msra.mxu0 %v7615
      %7645 = vmatprep.subr.mxu0 0.0
      %7646 = vmatpush1.msra.mxu0 %v7616
      %7647 = vmatprep.subr.mxu0 0.0
      %7648 = vmatpush1.msra.mxu0 %v7617
      %7649 = vmatprep.subr.mxu0 0.0
      %7650 = vmatpush1.msra.mxu0 %v7618
      %7651 = vmatprep.subr.mxu0 0.0
      %7652 = vmatpush1.msra.mxu0 0.0
      %7653 = vmatprep.subr.mxu0 0.0
      %7654 = vmatpush1.msra.mxu0 0.0
      %7655 = vmatprep.subr.mxu0 0.0
      %7656 = vmatpush1.msra.mxu0 0.0
      %7657 = vmatprep.subr.mxu0 0.0
      %7658 = vmatpush1.msra.mxu0 0.0
      %7659 = vmatprep.subr.mxu0 0.0
      %7660 = vmatpush1.msra.mxu0 0.0
      %7661 = vmatprep.subr.mxu0 0.0
      %7662 = vmatpush1.msra.mxu0 0.0
      %7663 = vmatprep.subr.mxu0 0.0
      %7664 = vmatpush1.msra.mxu0 0.0
      %7665 = vmatprep.subr.mxu0 0.0
      %7666 = vmatpush1.msra.mxu0 0.0
      %7667 = vmatprep.subr.mxu0 0.0
      %7668 = vmatpush1.msra.mxu0 0.0
      %7669 = vmatprep.subr.mxu0 0.0
      %7670 = vmatpush1.msra.mxu0 0.0
      %7671 = vmatprep.subr.mxu0 0.0
      %7672 = vmatpush1.msra.mxu0 0.0
      %7673 = vmatprep.subr.mxu0 0.0
      %7674 = vmatpush1.msra.mxu0 0.0
      %7675 = vmatprep.subr.mxu0 0.0
      %7676 = vmatpush1.msra.mxu0 0.0
      %7677 = vmatprep.subr.mxu0 0.0
      %7678 = vmatpush1.msra.mxu0 0.0
      %7679 = vmatprep.subr.mxu0 0.0
      %7680 = vmatpush1.msra.mxu0 0.0
      %7681 = vmatprep.subr.mxu0 0.0
      %7682 = vmatpush1.msra.mxu0 0.0
      %7683 = vmatprep.subr.mxu0 0.0
      %7684 = vmatpush1.msra.mxu0 0.0
      %7685 = vmatprep.subr.mxu0 0.0
      %7686 = vmatpush1.msra.mxu0 0.0
      %7687 = vmatprep.subr.mxu0 0.0
      %7688 = vmatpush1.msra.mxu0 0.0
      %7689 = vmatprep.subr.mxu0 0.0
      %7690 = vmatpush1.msra.mxu0 0.0
      %7691 = vmatprep.subr.mxu0 0.0
      %7692 = vmatpush1.msra.mxu0 0.0
      %7693 = vmatprep.subr.mxu0 0.0
      %7694 = vmatpush1.msra.mxu0 0.0
      %7695 = vmatprep.subr.mxu0 0.0
      %7696 = vmatpush1.msra.mxu0 0.0
      %7697 = vmatprep.subr.mxu0 0.0
      %7698 = vmatpush1.msra.mxu0 0.0
      %7699 = vmatprep.subr.mxu0 0.0
      %7700 = vmatpush1.msra.mxu0 0.0
      %7701 = vmatprep.subr.mxu0 0.0
      %7702 = vmatpush1.msra.mxu0 0.0
      %7703 = vmatprep.subr.mxu0 0.0
      %7704 = vmatpush1.msra.mxu0 0.0
      %7705 = vmatprep.subr.mxu0 0.0
      %7706 = vmatpush1.msra.mxu0 0.0
      %7707 = vmatprep.mubr.f32.mxu0 0.0
      %7708 = vmatmul.mubr.f32.gmra.mrb[0].mxu0 %v7620
      %v7709 = vpop.f32.mrb[0].mxu0
      %v7710 = vadd.f32 0.0, %v7709
      %v7711 = vpop.f32.mrb[0].mxu0
      %7712 = vmatprep.mubr.f32.mxu0 0.0
      %7713 = vmatmul.mubr.f32.gmra.mrb[0].mxu0 %v7623
      %v7714 = vpop.f32.mrb[0].mxu0
      %v7715 = vadd.f32 0.0, %v7714
      %v7716 = vpop.f32.mrb[0].mxu0
      %7717 = vmatprep.mubr.f32.mxu0 0.0
      %7718 = vmatmul.mubr.f32.gmra.mrb[0].mxu0 %v7626
      %v7719 = vpop.f32.mrb[0].mxu0
      %v7720 = vadd.f32 0.0, %v7719
      %v7721 = vpop.f32.mrb[0].mxu0
      %7722 = vmatprep.mubr.f32.mxu0 0.0
      %7723 = vmatmul.mubr.f32.gmra.mrb[0].mxu0 %v7629
      %v7724 = vpop.f32.mrb[0].mxu0
      %v7725 = vadd.f32 0.0, %v7724
      %v7726 = vpop.f32.mrb[0].mxu0
      %7727 = vmatprep.mubr.f32.mxu0 0.0
      %7728 = vmatmul.mubr.f32.gmra.mrb[0].mxu0 %v7632
      %v7729 = vpop.f32.mrb[0].mxu0
      %v7730 = vadd.f32 0.0, %v7729
      %v7731 = vpop.f32.mrb[0].mxu0
      %7732 = vmatprep.mubr.f32.mxu0 0.0
      %7733 = vmatmul.mubr.f32.gmra.mrb[0].mxu0 %v7635
      %v7734 = vpop.f32.mrb[0].mxu0
      %v7735 = vadd.f32 0.0, %v7734
      %v7736 = vpop.f32.mrb[0].mxu0
      %7737 = vmatprep.mubr.f32.mxu0 0.0
      %7738 = vmatmul.mubr.f32.gmra.mrb[0].mxu0 %v7638
      %v7739 = vpop.f32.mrb[0].mxu0
      %v7740 = vadd.f32 0.0, %v7739
      %v7741 = vpop.f32.mrb[0].mxu0
      %7742 = vmatprep.mubr.f32.mxu0 0.0
      %7743 = vmatmul.mubr.f32.gmra.mrb[0].mxu0 %v7641
      %v7744 = vpop.f32.mrb[0].mxu0
      %v7745 = vadd.f32 0.0, %v7744
      %v7746 = vpop.f32.mrb[0].mxu0
      %7747 = vdwg.mxu0
      %v7748 = vadd.f32 %v7599, %v7710
      %v7749 = vadd.f32 %v7600, %v7715
      %v7750 = vadd.f32 %v7601, %v7720
      %v7751 = vadd.f32 %v7602, %v7725
      %v7752 = vadd.f32 %v7603, %v7730
      %v7753 = vadd.f32 %v7604, %v7735
      %v7754 = vadd.f32 %v7605, %v7740
      %v7755 = vadd.f32 %v7606, %v7745
      %v7756 = vld [vmem:[%s2477] sm:$0xff]
      %v7757 = vld [vmem:[%s2477 + $0x40] sm:$0xff]
      %v7758 = vld [vmem:[%s2477 + $0x80] sm:$0xff]
      %v7759 = vld [vmem:[%s2477 + $0xc0] sm:$0xff]
      %v7760 = vld [vmem:[%s2477 + $0x100] sm:$0xff]
      %v7761 = vld [vmem:[%s2477 + $0x140] sm:$0xff]
      %v7762 = vld [vmem:[%s2477 + $0x180] sm:$0xff]
      %v7763 = vld [vmem:[%s2477 + $0x1c0] sm:$0xff]
      %v7764 = vld [vmem:[%s3465] sm:$0xff]
      %v7765 = vld [vmem:[%s3465 + $0x8] sm:$0xff]
      %v7766 = vld [vmem:[%s3465 + $0x10] sm:$0xff]
      %v7767 = vld [vmem:[%s3465 + $0x18] sm:$0xff]
      %7776 = vrot.lane.b32.xlu0 %v7756, 64
      %v7777 = vpop.permute.xlu0 %7776
      %7778 = vrot.lane.b32.xlu0 %v7757, 64
      %v7779 = vpop.permute.xlu0 %7778
      %7780 = vrot.lane.b32.xlu0 %v7758, 64
      %v7781 = vpop.permute.xlu0 %7780
      %7782 = vrot.lane.b32.xlu0 %v7759, 64
      %v7783 = vpop.permute.xlu0 %7782
      %7784 = vrot.lane.b32.xlu0 %v7760, 64
      %v7785 = vpop.permute.xlu0 %7784
      %7786 = vrot.lane.b32.xlu0 %v7761, 64
      %v7787 = vpop.permute.xlu0 %7786
      %7788 = vrot.lane.b32.xlu0 %v7762, 64
      %v7789 = vpop.permute.xlu0 %7788
      %7790 = vrot.lane.b32.xlu0 %v7763, 64
      %v7791 = vpop.permute.xlu0 %7790
      %v7792 = vsel %vm2178, %v7777, 0
      %v7794 = vsel %vm2178, %v7779, 0
      %v7796 = vsel %vm2178, %v7781, 0
      %v7798 = vsel %vm2178, %v7783, 0
      %v7800 = vsel %vm2178, %v7785, 0
      %v7802 = vsel %vm2178, %v7787, 0
      %v7804 = vsel %vm2178, %v7789, 0
      %v7806 = vsel %vm2178, %v7791, 0
      %7808 = vmatprep.subr.mxu0 0.0
      %7809 = vmatpush1.msra.mxu0 %v7764
      %7810 = vmatprep.subr.mxu0 0.0
      %7811 = vmatpush1.msra.mxu0 %v7765
      %7812 = vmatprep.subr.mxu0 0.0
      %7813 = vmatpush1.msra.mxu0 %v7766
      %7814 = vmatprep.subr.mxu0 0.0
      %7815 = vmatpush1.msra.mxu0 %v7767
      %7816 = vmatprep.subr.mxu0 0.0
      %7817 = vmatpush1.msra.mxu0 0.0
      %7818 = vmatprep.subr.mxu0 0.0
      %7819 = vmatpush1.msra.mxu0 0.0
      %7820 = vmatprep.subr.mxu0 0.0
      %7821 = vmatpush1.msra.mxu0 0.0
      %7822 = vmatprep.subr.mxu0 0.0
      %7823 = vmatpush1.msra.mxu0 0.0
      %7824 = vmatprep.subr.mxu0 0.0
      %7825 = vmatpush1.msra.mxu0 0.0
      %7826 = vmatprep.subr.mxu0 0.0
      %7827 = vmatpush1.msra.mxu0 0.0
      %7828 = vmatprep.subr.mxu0 0.0
      %7829 = vmatpush1.msra.mxu0 0.0
      %7830 = vmatprep.subr.mxu0 0.0
      %7831 = vmatpush1.msra.mxu0 0.0
      %7832 = vmatprep.subr.mxu0 0.0
      %7833 = vmatpush1.msra.mxu0 0.0
      %7834 = vmatprep.subr.mxu0 0.0
      %7835 = vmatpush1.msra.mxu0 0.0
      %7836 = vmatprep.subr.mxu0 0.0
      %7837 = vmatpush1.msra.mxu0 0.0
      %7838 = vmatprep.subr.mxu0 0.0
      %7839 = vmatpush1.msra.mxu0 0.0
      %7840 = vmatprep.subr.mxu0 0.0
      %7841 = vmatpush1.msra.mxu0 0.0
      %7842 = vmatprep.subr.mxu0 0.0
      %7843 = vmatpush1.msra.mxu0 0.0
      %7844 = vmatprep.subr.mxu0 0.0
      %7845 = vmatpush1.msra.mxu0 0.0
      %7846 = vmatprep.subr.mxu0 0.0
      %7847 = vmatpush1.msra.mxu0 0.0
      %7848 = vmatprep.subr.mxu0 0.0
      %7849 = vmatpush1.msra.mxu0 0.0
      %7850 = vmatprep.subr.mxu0 0.0
      %7851 = vmatpush1.msra.mxu0 0.0
      %7852 = vmatprep.subr.mxu0 0.0
      %7853 = vmatpush1.msra.mxu0 0.0
      %7854 = vmatprep.subr.mxu0 0.0
      %7855 = vmatpush1.msra.mxu0 0.0
      %7856 = vmatprep.subr.mxu0 0.0
      %7857 = vmatpush1.msra.mxu0 0.0
      %7858 = vmatprep.subr.mxu0 0.0
      %7859 = vmatpush1.msra.mxu0 0.0
      %7860 = vmatprep.subr.mxu0 0.0
      %7861 = vmatpush1.msra.mxu0 0.0
      %7862 = vmatprep.subr.mxu0 0.0
      %7863 = vmatpush1.msra.mxu0 0.0
      %7864 = vmatprep.subr.mxu0 0.0
      %7865 = vmatpush1.msra.mxu0 0.0
      %7866 = vmatprep.subr.mxu0 0.0
      %7867 = vmatpush1.msra.mxu0 0.0
      %7868 = vmatprep.subr.mxu0 0.0
      %7869 = vmatpush1.msra.mxu0 0.0
      %7870 = vmatprep.subr.mxu0 0.0
      %7871 = vmatpush1.msra.mxu0 0.0
      %7872 = vmatprep.mubr.f32.mxu0 0.0
      %7873 = vmatmul.mubr.f32.gmra.mrb[0].mxu0 %v7792
      %v7874 = vpop.f32.mrb[0].mxu0
      %v7875 = vadd.f32 0.0, %v7874
      %v7876 = vpop.f32.mrb[0].mxu0
      %7877 = vmatprep.mubr.f32.mxu0 0.0
      %7878 = vmatmul.mubr.f32.gmra.mrb[0].mxu0 %v7794
      %v7879 = vpop.f32.mrb[0].mxu0
      %v7880 = vadd.f32 0.0, %v7879
      %v7881 = vpop.f32.mrb[0].mxu0
      %7882 = vmatprep.mubr.f32.mxu0 0.0
      %7883 = vmatmul.mubr.f32.gmra.mrb[0].mxu0 %v7796
      %v7884 = vpop.f32.mrb[0].mxu0
      %v7885 = vadd.f32 0.0, %v7884
      %v7886 = vpop.f32.mrb[0].mxu0
      %7887 = vmatprep.mubr.f32.mxu0 0.0
      %7888 = vmatmul.mubr.f32.gmra.mrb[0].mxu0 %v7798
      %v7889 = vpop.f32.mrb[0].mxu0
      %v7890 = vadd.f32 0.0, %v7889
      %v7891 = vpop.f32.mrb[0].mxu0
      %7892 = vmatprep.mubr.f32.mxu0 0.0
      %7893 = vmatmul.mubr.f32.gmra.mrb[0].mxu0 %v7800
      %v7894 = vpop.f32.mrb[0].mxu0
      %v7895 = vadd.f32 0.0, %v7894
      %v7896 = vpop.f32.mrb[0].mxu0
      %7897 = vmatprep.mubr.f32.mxu0 0.0
      %7898 = vmatmul.mubr.f32.gmra.mrb[0].mxu0 %v7802
      %v7899 = vpop.f32.mrb[0].mxu0
      %v7900 = vadd.f32 0.0, %v7899
      %v7901 = vpop.f32.mrb[0].mxu0
      %7902 = vmatprep.mubr.f32.mxu0 0.0
      %7903 = vmatmul.mubr.f32.gmra.mrb[0].mxu0 %v7804
      %v7904 = vpop.f32.mrb[0].mxu0
      %v7905 = vadd.f32 0.0, %v7904
      %v7906 = vpop.f32.mrb[0].mxu0
      %7907 = vmatprep.mubr.f32.mxu0 0.0
      %7908 = vmatmul.mubr.f32.gmra.mrb[0].mxu0 %v7806
      %v7909 = vpop.f32.mrb[0].mxu0
      %v7910 = vadd.f32 0.0, %v7909
      %v7911 = vpop.f32.mrb[0].mxu0
      %7912 = vdwg.mxu0
      %v7913 = vadd.f32 %v7748, %v7875
      %v7914 = vadd.f32 %v7749, %v7880
      %v7915 = vadd.f32 %v7750, %v7885
      %v7916 = vadd.f32 %v7751, %v7890
      %v7917 = vadd.f32 %v7752, %v7895
      %v7918 = vadd.f32 %v7753, %v7900
      %v7919 = vadd.f32 %v7754, %v7905
      %v7920 = vadd.f32 %v7755, %v7910
      %v7921 = vld [vmem:[%s3607] sm:$0xff]
      %v7922 = vld [vmem:[%s3607 + $0x8] sm:$0xff]
      %v7923 = vld [vmem:[%s3607 + $0x10] sm:$0xff]
      %v7924 = vld [vmem:[%s3607 + $0x18] sm:$0xff]
      %7925 = vrot.lane.b32.xlu0 %v7756, 32
      %v7926 = vpop.permute.xlu0 %7925
      %7927 = vrot.lane.b32.xlu0 %v7757, 32
      %v7928 = vpop.permute.xlu0 %7927
      %7929 = vrot.lane.b32.xlu0 %v7758, 32
      %v7930 = vpop.permute.xlu0 %7929
      %7931 = vrot.lane.b32.xlu0 %v7759, 32
      %v7932 = vpop.permute.xlu0 %7931
      %7933 = vrot.lane.b32.xlu0 %v7760, 32
      %v7934 = vpop.permute.xlu0 %7933
      %7935 = vrot.lane.b32.xlu0 %v7761, 32
      %v7936 = vpop.permute.xlu0 %7935
      %7937 = vrot.lane.b32.xlu0 %v7762, 32
      %v7938 = vpop.permute.xlu0 %7937
      %7939 = vrot.lane.b32.xlu0 %v7763, 32
      %v7940 = vpop.permute.xlu0 %7939
      %v7941 = vsel %vm2178, %v7926, 0
      %v7943 = vsel %vm2178, %v7928, 0
      %v7945 = vsel %vm2178, %v7930, 0
      %v7947 = vsel %vm2178, %v7932, 0
      %v7949 = vsel %vm2178, %v7934, 0
      %v7951 = vsel %vm2178, %v7936, 0
      %v7953 = vsel %vm2178, %v7938, 0
      %v7955 = vsel %vm2178, %v7940, 0
      %7957 = vmatprep.subr.mxu0 0.0
      %7958 = vmatpush1.msra.mxu0 %v7921
      %7959 = vmatprep.subr.mxu0 0.0
      %7960 = vmatpush1.msra.mxu0 %v7922
      %7961 = vmatprep.subr.mxu0 0.0
      %7962 = vmatpush1.msra.mxu0 %v7923
      %7963 = vmatprep.subr.mxu0 0.0
      %7964 = vmatpush1.msra.mxu0 %v7924
      %7965 = vmatprep.subr.mxu0 0.0
      %7966 = vmatpush1.msra.mxu0 0.0
      %7967 = vmatprep.subr.mxu0 0.0
      %7968 = vmatpush1.msra.mxu0 0.0
      %7969 = vmatprep.subr.mxu0 0.0
      %7970 = vmatpush1.msra.mxu0 0.0
      %7971 = vmatprep.subr.mxu0 0.0
      %7972 = vmatpush1.msra.mxu0 0.0
      %7973 = vmatprep.subr.mxu0 0.0
      %7974 = vmatpush1.msra.mxu0 0.0
      %7975 = vmatprep.subr.mxu0 0.0
      %7976 = vmatpush1.msra.mxu0 0.0
      %7977 = vmatprep.subr.mxu0 0.0
      %7978 = vmatpush1.msra.mxu0 0.0
      %7979 = vmatprep.subr.mxu0 0.0
      %7980 = vmatpush1.msra.mxu0 0.0
      %7981 = vmatprep.subr.mxu0 0.0
      %7982 = vmatpush1.msra.mxu0 0.0
      %7983 = vmatprep.subr.mxu0 0.0
      %7984 = vmatpush1.msra.mxu0 0.0
      %7985 = vmatprep.subr.mxu0 0.0
      %7986 = vmatpush1.msra.mxu0 0.0
      %7987 = vmatprep.subr.mxu0 0.0
      %7988 = vmatpush1.msra.mxu0 0.0
      %7989 = vmatprep.subr.mxu0 0.0
      %7990 = vmatpush1.msra.mxu0 0.0
      %7991 = vmatprep.subr.mxu0 0.0
      %7992 = vmatpush1.msra.mxu0 0.0
      %7993 = vmatprep.subr.mxu0 0.0
      %7994 = vmatpush1.msra.mxu0 0.0
      %7995 = vmatprep.subr.mxu0 0.0
      %7996 = vmatpush1.msra.mxu0 0.0
      %7997 = vmatprep.subr.mxu0 0.0
      %7998 = vmatpush1.msra.mxu0 0.0
      %7999 = vmatprep.subr.mxu0 0.0
      %8000 = vmatpush1.msra.mxu0 0.0
      %8001 = vmatprep.subr.mxu0 0.0
      %8002 = vmatpush1.msra.mxu0 0.0
      %8003 = vmatprep.subr.mxu0 0.0
      %8004 = vmatpush1.msra.mxu0 0.0
      %8005 = vmatprep.subr.mxu0 0.0
      %8006 = vmatpush1.msra.mxu0 0.0
      %8007 = vmatprep.subr.mxu0 0.0
      %8008 = vmatpush1.msra.mxu0 0.0
      %8009 = vmatprep.subr.mxu0 0.0
      %8010 = vmatpush1.msra.mxu0 0.0
      %8011 = vmatprep.subr.mxu0 0.0
      %8012 = vmatpush1.msra.mxu0 0.0
      %8013 = vmatprep.subr.mxu0 0.0
      %8014 = vmatpush1.msra.mxu0 0.0
      %8015 = vmatprep.subr.mxu0 0.0
      %8016 = vmatpush1.msra.mxu0 0.0
      %8017 = vmatprep.subr.mxu0 0.0
      %8018 = vmatpush1.msra.mxu0 0.0
      %8019 = vmatprep.subr.mxu0 0.0
      %8020 = vmatpush1.msra.mxu0 0.0
      %8021 = vmatprep.mubr.f32.mxu0 0.0
      %8022 = vmatmul.mubr.f32.gmra.mrb[0].mxu0 %v7941
      %v8023 = vpop.f32.mrb[0].mxu0
      %v8024 = vadd.f32 0.0, %v8023
      %v8025 = vpop.f32.mrb[0].mxu0
      %8026 = vmatprep.mubr.f32.mxu0 0.0
      %8027 = vmatmul.mubr.f32.gmra.mrb[0].mxu0 %v7943
      %v8028 = vpop.f32.mrb[0].mxu0
      %v8029 = vadd.f32 0.0, %v8028
      %v8030 = vpop.f32.mrb[0].mxu0
      %8031 = vmatprep.mubr.f32.mxu0 0.0
      %8032 = vmatmul.mubr.f32.gmra.mrb[0].mxu0 %v7945
      %v8033 = vpop.f32.mrb[0].mxu0
      %v8034 = vadd.f32 0.0, %v8033
      %v8035 = vpop.f32.mrb[0].mxu0
      %8036 = vmatprep.mubr.f32.mxu0 0.0
      %8037 = vmatmul.mubr.f32.gmra.mrb[0].mxu0 %v7947
      %v8038 = vpop.f32.mrb[0].mxu0
      %v8039 = vadd.f32 0.0, %v8038
      %v8040 = vpop.f32.mrb[0].mxu0
      %8041 = vmatprep.mubr.f32.mxu0 0.0
      %8042 = vmatmul.mubr.f32.gmra.mrb[0].mxu0 %v7949
      %v8043 = vpop.f32.mrb[0].mxu0
      %v8044 = vadd.f32 0.0, %v8043
      %v8045 = vpop.f32.mrb[0].mxu0
      %8046 = vmatprep.mubr.f32.mxu0 0.0
      %8047 = vmatmul.mubr.f32.gmra.mrb[0].mxu0 %v7951
      %v8048 = vpop.f32.mrb[0].mxu0
      %v8049 = vadd.f32 0.0, %v8048
      %v8050 = vpop.f32.mrb[0].mxu0
      %8051 = vmatprep.mubr.f32.mxu0 0.0
      %8052 = vmatmul.mubr.f32.gmra.mrb[0].mxu0 %v7953
      %v8053 = vpop.f32.mrb[0].mxu0
      %v8054 = vadd.f32 0.0, %v8053
      %v8055 = vpop.f32.mrb[0].mxu0
      %8056 = vmatprep.mubr.f32.mxu0 0.0
      %8057 = vmatmul.mubr.f32.gmra.mrb[0].mxu0 %v7955
      %v8058 = vpop.f32.mrb[0].mxu0
      %v8059 = vadd.f32 0.0, %v8058
      %v8060 = vpop.f32.mrb[0].mxu0
      %8061 = vdwg.mxu0
      %v8062 = vadd.f32 %v7913, %v8024
      %v8063 = vadd.f32 %v7914, %v8029
      %v8064 = vadd.f32 %v7915, %v8034
      %v8065 = vadd.f32 %v7916, %v8039
      %v8066 = vadd.f32 %v7917, %v8044
      %v8067 = vadd.f32 %v7918, %v8049
      %v8068 = vadd.f32 %v7919, %v8054
      %v8069 = vadd.f32 %v7920, %v8059
      %v8070 = vld [vmem:[%s2477 + $0x1] sm:$0xff]
      %v8071 = vld [vmem:[%s2477 + $0x41] sm:$0xff]
      %v8072 = vld [vmem:[%s2477 + $0x81] sm:$0xff]
      %v8073 = vld [vmem:[%s2477 + $0xc1] sm:$0xff]
      %v8074 = vld [vmem:[%s2477 + $0x101] sm:$0xff]
      %v8075 = vld [vmem:[%s2477 + $0x141] sm:$0xff]
      %v8076 = vld [vmem:[%s2477 + $0x181] sm:$0xff]
      %v8077 = vld [vmem:[%s2477 + $0x1c1] sm:$0xff]
      %v8078 = vld [vmem:[%s3757] sm:$0xff]
      %v8079 = vld [vmem:[%s3757 + $0x8] sm:$0xff]
      %v8080 = vld [vmem:[%s3757 + $0x10] sm:$0xff]
      %v8081 = vld [vmem:[%s3757 + $0x18] sm:$0xff]
      %v8083 = vsel %vm2178, %v8070, 0
      %v8086 = vsel %vm2178, %v8071, 0
      %v8089 = vsel %vm2178, %v8072, 0
      %v8092 = vsel %vm2178, %v8073, 0
      %v8095 = vsel %vm2178, %v8074, 0
      %v8098 = vsel %vm2178, %v8075, 0
      %v8101 = vsel %vm2178, %v8076, 0
      %v8104 = vsel %vm2178, %v8077, 0
      %8106 = vmatprep.subr.mxu0 0.0
      %8107 = vmatpush1.msra.mxu0 %v8078
      %8108 = vmatprep.subr.mxu0 0.0
      %8109 = vmatpush1.msra.mxu0 %v8079
      %8110 = vmatprep.subr.mxu0 0.0
      %8111 = vmatpush1.msra.mxu0 %v8080
      %8112 = vmatprep.subr.mxu0 0.0
      %8113 = vmatpush1.msra.mxu0 %v8081
      %8114 = vmatprep.subr.mxu0 0.0
      %8115 = vmatpush1.msra.mxu0 0.0
      %8116 = vmatprep.subr.mxu0 0.0
      %8117 = vmatpush1.msra.mxu0 0.0
      %8118 = vmatprep.subr.mxu0 0.0
      %8119 = vmatpush1.msra.mxu0 0.0
      %8120 = vmatprep.subr.mxu0 0.0
      %8121 = vmatpush1.msra.mxu0 0.0
      %8122 = vmatprep.subr.mxu0 0.0
      %8123 = vmatpush1.msra.mxu0 0.0
      %8124 = vmatprep.subr.mxu0 0.0
      %8125 = vmatpush1.msra.mxu0 0.0
      %8126 = vmatprep.subr.mxu0 0.0
      %8127 = vmatpush1.msra.mxu0 0.0
      %8128 = vmatprep.subr.mxu0 0.0
      %8129 = vmatpush1.msra.mxu0 0.0
      %8130 = vmatprep.subr.mxu0 0.0
      %8131 = vmatpush1.msra.mxu0 0.0
      %8132 = vmatprep.subr.mxu0 0.0
      %8133 = vmatpush1.msra.mxu0 0.0
      %8134 = vmatprep.subr.mxu0 0.0
      %8135 = vmatpush1.msra.mxu0 0.0
      %8136 = vmatprep.subr.mxu0 0.0
      %8137 = vmatpush1.msra.mxu0 0.0
      %8138 = vmatprep.subr.mxu0 0.0
      %8139 = vmatpush1.msra.mxu0 0.0
      %8140 = vmatprep.subr.mxu0 0.0
      %8141 = vmatpush1.msra.mxu0 0.0
      %8142 = vmatprep.subr.mxu0 0.0
      %8143 = vmatpush1.msra.mxu0 0.0
      %8144 = vmatprep.subr.mxu0 0.0
      %8145 = vmatpush1.msra.mxu0 0.0
      %8146 = vmatprep.subr.mxu0 0.0
      %8147 = vmatpush1.msra.mxu0 0.0
      %8148 = vmatprep.subr.mxu0 0.0
      %8149 = vmatpush1.msra.mxu0 0.0
      %8150 = vmatprep.subr.mxu0 0.0
      %8151 = vmatpush1.msra.mxu0 0.0
      %8152 = vmatprep.subr.mxu0 0.0
      %8153 = vmatpush1.msra.mxu0 0.0
      %8154 = vmatprep.subr.mxu0 0.0
      %8155 = vmatpush1.msra.mxu0 0.0
      %8156 = vmatprep.subr.mxu0 0.0
      %8157 = vmatpush1.msra.mxu0 0.0
      %8158 = vmatprep.subr.mxu0 0.0
      %8159 = vmatpush1.msra.mxu0 0.0
      %8160 = vmatprep.subr.mxu0 0.0
      %8161 = vmatpush1.msra.mxu0 0.0
      %8162 = vmatprep.subr.mxu0 0.0
      %8163 = vmatpush1.msra.mxu0 0.0
      %8164 = vmatprep.subr.mxu0 0.0
      %8165 = vmatpush1.msra.mxu0 0.0
      %8166 = vmatprep.subr.mxu0 0.0
      %8167 = vmatpush1.msra.mxu0 0.0
      %8168 = vmatprep.subr.mxu0 0.0
      %8169 = vmatpush1.msra.mxu0 0.0
      %8170 = vmatprep.mubr.f32.mxu0 0.0
      %8171 = vmatmul.mubr.f32.gmra.mrb[0].mxu0 %v8083
      %v8172 = vpop.f32.mrb[0].mxu0
      %v8173 = vadd.f32 0.0, %v8172
      %v8174 = vpop.f32.mrb[0].mxu0
      %8175 = vmatprep.mubr.f32.mxu0 0.0
      %8176 = vmatmul.mubr.f32.gmra.mrb[0].mxu0 %v8086
      %v8177 = vpop.f32.mrb[0].mxu0
      %v8178 = vadd.f32 0.0, %v8177
      %v8179 = vpop.f32.mrb[0].mxu0
      %8180 = vmatprep.mubr.f32.mxu0 0.0
      %8181 = vmatmul.mubr.f32.gmra.mrb[0].mxu0 %v8089
      %v8182 = vpop.f32.mrb[0].mxu0
      %v8183 = vadd.f32 0.0, %v8182
      %v8184 = vpop.f32.mrb[0].mxu0
      %8185 = vmatprep.mubr.f32.mxu0 0.0
      %8186 = vmatmul.mubr.f32.gmra.mrb[0].mxu0 %v8092
      %v8187 = vpop.f32.mrb[0].mxu0
      %v8188 = vadd.f32 0.0, %v8187
      %v8189 = vpop.f32.mrb[0].mxu0
      %8190 = vmatprep.mubr.f32.mxu0 0.0
      %8191 = vmatmul.mubr.f32.gmra.mrb[0].mxu0 %v8095
      %v8192 = vpop.f32.mrb[0].mxu0
      %v8193 = vadd.f32 0.0, %v8192
      %v8194 = vpop.f32.mrb[0].mxu0
      %8195 = vmatprep.mubr.f32.mxu0 0.0
      %8196 = vmatmul.mubr.f32.gmra.mrb[0].mxu0 %v8098
      %v8197 = vpop.f32.mrb[0].mxu0
      %v8198 = vadd.f32 0.0, %v8197
      %v8199 = vpop.f32.mrb[0].mxu0
      %8200 = vmatprep.mubr.f32.mxu0 0.0
      %8201 = vmatmul.mubr.f32.gmra.mrb[0].mxu0 %v8101
      %v8202 = vpop.f32.mrb[0].mxu0
      %v8203 = vadd.f32 0.0, %v8202
      %v8204 = vpop.f32.mrb[0].mxu0
      %8205 = vmatprep.mubr.f32.mxu0 0.0
      %8206 = vmatmul.mubr.f32.gmra.mrb[0].mxu0 %v8104
      %v8207 = vpop.f32.mrb[0].mxu0
      %v8208 = vadd.f32 0.0, %v8207
      %v8209 = vpop.f32.mrb[0].mxu0
      %8210 = vdwg.mxu0
      %v8211 = vadd.f32 %v8062, %v8173
      %v8212 = vadd.f32 %v8063, %v8178
      %v8213 = vadd.f32 %v8064, %v8183
      %v8214 = vadd.f32 %v8065, %v8188
      %v8215 = vadd.f32 %v8066, %v8193
      %v8216 = vadd.f32 %v8067, %v8198
      %v8217 = vadd.f32 %v8068, %v8203
      %v8218 = vadd.f32 %v8069, %v8208
      %v8219 = vld [vmem:[%s4] sm:$0x1]
      %v8221 = vlaneseq
      %v8222 = vshrl.u32 %v8221, 7
      %v8223 = vsub.s32 0, %v8222
      %v8224 = vrot.slane %v8219, %v8223
      %v8226 = vadd.f32 %v8211, %v8224
      %v8227 = vadd.f32 %v8212, %v8224
      %v8228 = vadd.f32 %v8213, %v8224
      %v8229 = vadd.f32 %v8214, %v8224
      %v8230 = vadd.f32 %v8215, %v8224
      %v8231 = vadd.f32 %v8216, %v8224
      %v8232 = vadd.f32 %v8217, %v8224
      %v8233 = vadd.f32 %v8218, %v8224
      %vm8234 = vcmp.gt.f32.partialorder %v8226, 0.0
      %vm8235 = vcmp.gt.f32.partialorder %v8227, 0.0
      %vm8236 = vcmp.gt.f32.partialorder %v8228, 0.0
      %vm8237 = vcmp.gt.f32.partialorder %v8229, 0.0
      %vm8238 = vcmp.gt.f32.partialorder %v8230, 0.0
      %vm8239 = vcmp.gt.f32.partialorder %v8231, 0.0
      %vm8240 = vcmp.gt.f32.partialorder %v8232, 0.0
      %vm8241 = vcmp.gt.f32.partialorder %v8233, 0.0
      %v8242 = vmul.f32 %v8226, 0.2
      %v8243 = vmul.f32 %v8227, 0.2
      %v8244 = vmul.f32 %v8228, 0.2
      %v8245 = vmul.f32 %v8229, 0.2
      %v8246 = vmul.f32 %v8230, 0.2
      %v8247 = vmul.f32 %v8231, 0.2
      %v8248 = vmul.f32 %v8232, 0.2
      %v8249 = vmul.f32 %v8233, 0.2
      %v8250 = vsel %vm8234, %v8226, %v8242
      %v8251 = vsel %vm8235, %v8227, %v8243
      %v8252 = vsel %vm8236, %v8228, %v8244
      %v8253 = vsel %vm8237, %v8229, %v8245
      %v8254 = vsel %vm8238, %v8230, %v8246
      %v8255 = vsel %vm8239, %v8231, %v8247
      %v8256 = vsel %vm8240, %v8232, %v8248
      %v8257 = vsel %vm8241, %v8233, %v8249
      %v8266 = vrot.slane %v8250, 7
      %v8267 = vrot.slane %v8251, 7
      %v8268 = vrot.slane %v8252, 7
      %v8269 = vrot.slane %v8253, 7
      %v8270 = vrot.slane %v8254, 7
      %v8271 = vrot.slane %v8255, 7
      %v8272 = vrot.slane %v8256, 7
      %v8273 = vrot.slane %v8257, 7
      %8282 = vst.msk [vmem:[%s6837] sm:$0xfe] %vm5423, %v8266
      %8283 = vst.msk [vmem:[%s6837 + $0x10] sm:$0x1] %vm5425, %v8266
      %8284 = vst.msk [vmem:[%s6837 + $0x20] sm:$0xfe] %vm5423, %v8267
      %8285 = vst.msk [vmem:[%s6837 + $0x30] sm:$0x1] %vm5425, %v8267
      %8286 = vst.msk [vmem:[%s6837 + $0x40] sm:$0xfe] %vm5423, %v8268
      %8287 = vst.msk [vmem:[%s6837 + $0x50] sm:$0x1] %vm5425, %v8268
      %8288 = vst.msk [vmem:[%s6837 + $0x60] sm:$0xfe] %vm5423, %v8269
      %8289 = vst.msk [vmem:[%s6837 + $0x70] sm:$0x1] %vm5425, %v8269
      %8290 = vst.msk [vmem:[%s6837 + $0x80] sm:$0xfe] %vm5423, %v8270
      %8291 = vst.msk [vmem:[%s6837 + $0x90] sm:$0x1] %vm5425, %v8270
      %8292 = vst.msk [vmem:[%s6837 + $0xa0] sm:$0xfe] %vm5423, %v8271
      %8293 = vst.msk [vmem:[%s6837 + $0xb0] sm:$0x1] %vm5425, %v8271
      %8294 = vst.msk [vmem:[%s6837 + $0xc0] sm:$0xfe] %vm5423, %v8272
      %8295 = vst.msk [vmem:[%s6837 + $0xd0] sm:$0x1] %vm5425, %v8272
      %8296 = vst.msk [vmem:[%s6837 + $0xe0] sm:$0xfe] %vm5423, %v8273
      %8297 = vst.msk [vmem:[%s6837 + $0xf0] sm:$0x1] %vm5425, %v8273
      %v8298 = vld [vmem:[#allocation3] sm:$0xff]
      %v8299 = vld [vmem:[#allocation3 + $0x20] sm:$0xff]
      %v8300 = vld [vmem:[#allocation3 + $0x40] sm:$0xff]
      %v8301 = vld [vmem:[#allocation3 + $0x60] sm:$0xff]
      %v8302 = vld [vmem:[#allocation3 + $0x80] sm:$0xff]
      %v8303 = vld [vmem:[#allocation3 + $0xa0] sm:$0xff]
      %v8304 = vld [vmem:[#allocation3 + $0xc0] sm:$0xff]
      %v8305 = vld [vmem:[#allocation3 + $0xe0] sm:$0xff]
      %v8306 = vld [vmem:[%s5] sm:$0xff]
      %v8307 = vld [vmem:[%s5 + $0x8] sm:$0xff]
      %v8308 = vld [vmem:[%s5 + $0x10] sm:$0xff]
      %v8309 = vld [vmem:[%s5 + $0x18] sm:$0xff]
      %v8310 = vld [vmem:[%s5 + $0x20] sm:$0xff]
      %v8311 = vld [vmem:[%s5 + $0x28] sm:$0xff]
      %v8312 = vld [vmem:[%s5 + $0x30] sm:$0xff]
      %v8313 = vld [vmem:[%s5 + $0x38] sm:$0xff]
      %s8314 = scalar_lea.vmem %s5, 64
      %v8315 = vld [vmem:[%s8314] sm:$0xff]
      %v8316 = vld [vmem:[%s8314 + $0x8] sm:$0xff]
      %v8317 = vld [vmem:[%s8314 + $0x10] sm:$0xff]
      %v8318 = vld [vmem:[%s8314 + $0x18] sm:$0xff]
      %v8319 = vld [vmem:[%s8314 + $0x20] sm:$0xff]
      %v8320 = vld [vmem:[%s8314 + $0x28] sm:$0xff]
      %v8321 = vld [vmem:[%s8314 + $0x30] sm:$0xff]
      %v8322 = vld [vmem:[%s8314 + $0x38] sm:$0xff]
      %8331 = vrot.lane.b32.xlu0 %v8298, 64
      %v8332 = vpop.permute.xlu0 %8331
      %8333 = vrot.lane.b32.xlu0 %v8299, 64
      %v8334 = vpop.permute.xlu0 %8333
      %8335 = vrot.lane.b32.xlu0 %v8300, 64
      %v8336 = vpop.permute.xlu0 %8335
      %8337 = vrot.lane.b32.xlu0 %v8301, 64
      %v8338 = vpop.permute.xlu0 %8337
      %8339 = vrot.lane.b32.xlu0 %v8302, 64
      %v8340 = vpop.permute.xlu0 %8339
      %8341 = vrot.lane.b32.xlu0 %v8303, 64
      %v8342 = vpop.permute.xlu0 %8341
      %8343 = vrot.lane.b32.xlu0 %v8304, 64
      %v8344 = vpop.permute.xlu0 %8343
      %8345 = vrot.lane.b32.xlu0 %v8305, 64
      %v8346 = vpop.permute.xlu0 %8345
      %vm8347 = vcmask 523264
      %v8348 = vsel %vm8347, %v8332, 0
      %v8350 = vsel %vm8347, %v8334, 0
      %v8352 = vsel %vm8347, %v8336, 0
      %v8354 = vsel %vm8347, %v8338, 0
      %v8356 = vsel %vm8347, %v8340, 0
      %v8358 = vsel %vm8347, %v8342, 0
      %v8360 = vsel %vm8347, %v8344, 0
      %v8362 = vsel %vm8347, %v8346, 0
      %8364 = vmatprep.subr.mxu0 0.0
      %8365 = vmatpush1.msra.mxu0 %v8315
      %8366 = vmatprep.subr.mxu0 0.0
      %8367 = vmatpush1.msra.mxu0 %v8316
      %8368 = vmatprep.subr.mxu0 0.0
      %8369 = vmatpush1.msra.mxu0 %v8317
      %8370 = vmatprep.subr.mxu0 0.0
      %8371 = vmatpush1.msra.mxu0 %v8318
      %8372 = vmatprep.subr.mxu0 0.0
      %8373 = vmatpush1.msra.mxu0 %v8319
      %8374 = vmatprep.subr.mxu0 0.0
      %8375 = vmatpush1.msra.mxu0 %v8320
      %8376 = vmatprep.subr.mxu0 0.0
      %8377 = vmatpush1.msra.mxu0 %v8321
      %8378 = vmatprep.subr.mxu0 0.0
      %8379 = vmatpush1.msra.mxu0 %v8322
      %8380 = vmatprep.subr.mxu0 0.0
      %8381 = vmatpush1.msra.mxu0 0.0
      %8382 = vmatprep.subr.mxu0 0.0
      %8383 = vmatpush1.msra.mxu0 0.0
      %8384 = vmatprep.subr.mxu0 0.0
      %8385 = vmatpush1.msra.mxu0 0.0
      %8386 = vmatprep.subr.mxu0 0.0
      %8387 = vmatpush1.msra.mxu0 0.0
      %8388 = vmatprep.subr.mxu0 0.0
      %8389 = vmatpush1.msra.mxu0 0.0
      %8390 = vmatprep.subr.mxu0 0.0
      %8391 = vmatpush1.msra.mxu0 0.0
      %8392 = vmatprep.subr.mxu0 0.0
      %8393 = vmatpush1.msra.mxu0 0.0
      %8394 = vmatprep.subr.mxu0 0.0
      %8395 = vmatpush1.msra.mxu0 0.0
      %8396 = vmatprep.subr.mxu0 0.0
      %8397 = vmatpush1.msra.mxu0 0.0
      %8398 = vmatprep.subr.mxu0 0.0
      %8399 = vmatpush1.msra.mxu0 0.0
      %8400 = vmatprep.subr.mxu0 0.0
      %8401 = vmatpush1.msra.mxu0 0.0
      %8402 = vmatprep.subr.mxu0 0.0
      %8403 = vmatpush1.msra.mxu0 0.0
      %8404 = vmatprep.subr.mxu0 0.0
      %8405 = vmatpush1.msra.mxu0 0.0
      %8406 = vmatprep.subr.mxu0 0.0
      %8407 = vmatpush1.msra.mxu0 0.0
      %8408 = vmatprep.subr.mxu0 0.0
      %8409 = vmatpush1.msra.mxu0 0.0
      %8410 = vmatprep.subr.mxu0 0.0
      %8411 = vmatpush1.msra.mxu0 0.0
      %8412 = vmatprep.subr.mxu0 0.0
      %8413 = vmatpush1.msra.mxu0 0.0
      %8414 = vmatprep.subr.mxu0 0.0
      %8415 = vmatpush1.msra.mxu0 0.0
      %8416 = vmatprep.subr.mxu0 0.0
      %8417 = vmatpush1.msra.mxu0 0.0
      %8418 = vmatprep.subr.mxu0 0.0
      %8419 = vmatpush1.msra.mxu0 0.0
      %8420 = vmatprep.subr.mxu0 0.0
      %8421 = vmatpush1.msra.mxu0 0.0
      %8422 = vmatprep.subr.mxu0 0.0
      %8423 = vmatpush1.msra.mxu0 0.0
      %8424 = vmatprep.subr.mxu0 0.0
      %8425 = vmatpush1.msra.mxu0 0.0
      %8426 = vmatprep.subr.mxu0 0.0
      %8427 = vmatpush1.msra.mxu0 0.0
      %8428 = vmatprep.mubr.f32.mxu0 0.0
      %8429 = vmatmul.mubr.f32.gmra.mrb[0].mxu0 %v8348
      %v8430 = vpop.f32.mrb[0].mxu0
      %v8431 = vadd.f32 0.0, %v8430
      %v8432 = vpop.f32.mrb[0].mxu0
      %8433 = vmatprep.mubr.f32.mxu0 0.0
      %8434 = vmatmul.mubr.f32.gmra.mrb[0].mxu0 %v8350
      %v8435 = vpop.f32.mrb[0].mxu0
      %v8436 = vadd.f32 0.0, %v8435
      %v8437 = vpop.f32.mrb[0].mxu0
      %8438 = vmatprep.mubr.f32.mxu0 0.0
      %8439 = vmatmul.mubr.f32.gmra.mrb[0].mxu0 %v8352
      %v8440 = vpop.f32.mrb[0].mxu0
      %v8441 = vadd.f32 0.0, %v8440
      %v8442 = vpop.f32.mrb[0].mxu0
      %8443 = vmatprep.mubr.f32.mxu0 0.0
      %8444 = vmatmul.mubr.f32.gmra.mrb[0].mxu0 %v8354
      %v8445 = vpop.f32.mrb[0].mxu0
      %v8446 = vadd.f32 0.0, %v8445
      %v8447 = vpop.f32.mrb[0].mxu0
      %8448 = vmatprep.mubr.f32.mxu0 0.0
      %8449 = vmatmul.mubr.f32.gmra.mrb[0].mxu0 %v8356
      %v8450 = vpop.f32.mrb[0].mxu0
      %v8451 = vadd.f32 0.0, %v8450
      %v8452 = vpop.f32.mrb[0].mxu0
      %8453 = vmatprep.mubr.f32.mxu0 0.0
      %8454 = vmatmul.mubr.f32.gmra.mrb[0].mxu0 %v8358
      %v8455 = vpop.f32.mrb[0].mxu0
      %v8456 = vadd.f32 0.0, %v8455
      %v8457 = vpop.f32.mrb[0].mxu0
      %8458 = vmatprep.mubr.f32.mxu0 0.0
      %8459 = vmatmul.mubr.f32.gmra.mrb[0].mxu0 %v8360
      %v8460 = vpop.f32.mrb[0].mxu0
      %v8461 = vadd.f32 0.0, %v8460
      %v8462 = vpop.f32.mrb[0].mxu0
      %8463 = vmatprep.mubr.f32.mxu0 0.0
      %8464 = vmatmul.mubr.f32.gmra.mrb[0].mxu0 %v8362
      %v8465 = vpop.f32.mrb[0].mxu0
      %v8466 = vadd.f32 0.0, %v8465
      %v8467 = vpop.f32.mrb[0].mxu0
      %8468 = vdwg.mxu0
      %v8469 = vsel %vm8347, %v8298, 0
      %v8471 = vsel %vm8347, %v8299, 0
      %v8473 = vsel %vm8347, %v8300, 0
      %v8475 = vsel %vm8347, %v8301, 0
      %v8477 = vsel %vm8347, %v8302, 0
      %v8479 = vsel %vm8347, %v8303, 0
      %v8481 = vsel %vm8347, %v8304, 0
      %v8483 = vsel %vm8347, %v8305, 0
      %8485 = vmatprep.subr.mxu0 0.0
      %8486 = vmatpush1.msra.mxu0 %v8306
      %8487 = vmatprep.subr.mxu0 0.0
      %8488 = vmatpush1.msra.mxu0 %v8307
      %8489 = vmatprep.subr.mxu0 0.0
      %8490 = vmatpush1.msra.mxu0 %v8308
      %8491 = vmatprep.subr.mxu0 0.0
      %8492 = vmatpush1.msra.mxu0 %v8309
      %8493 = vmatprep.subr.mxu0 0.0
      %8494 = vmatpush1.msra.mxu0 %v8310
      %8495 = vmatprep.subr.mxu0 0.0
      %8496 = vmatpush1.msra.mxu0 %v8311
      %8497 = vmatprep.subr.mxu0 0.0
      %8498 = vmatpush1.msra.mxu0 %v8312
      %8499 = vmatprep.subr.mxu0 0.0
      %8500 = vmatpush1.msra.mxu0 %v8313
      %8501 = vmatprep.subr.mxu0 0.0
      %8502 = vmatpush1.msra.mxu0 0.0
      %8503 = vmatprep.subr.mxu0 0.0
      %8504 = vmatpush1.msra.mxu0 0.0
      %8505 = vmatprep.subr.mxu0 0.0
      %8506 = vmatpush1.msra.mxu0 0.0
      %8507 = vmatprep.subr.mxu0 0.0
      %8508 = vmatpush1.msra.mxu0 0.0
      %8509 = vmatprep.subr.mxu0 0.0
      %8510 = vmatpush1.msra.mxu0 0.0
      %8511 = vmatprep.subr.mxu0 0.0
      %8512 = vmatpush1.msra.mxu0 0.0
      %8513 = vmatprep.subr.mxu0 0.0
      %8514 = vmatpush1.msra.mxu0 0.0
      %8515 = vmatprep.subr.mxu0 0.0
      %8516 = vmatpush1.msra.mxu0 0.0
      %8517 = vmatprep.subr.mxu0 0.0
      %8518 = vmatpush1.msra.mxu0 0.0
      %8519 = vmatprep.subr.mxu0 0.0
      %8520 = vmatpush1.msra.mxu0 0.0
      %8521 = vmatprep.subr.mxu0 0.0
      %8522 = vmatpush1.msra.mxu0 0.0
      %8523 = vmatprep.subr.mxu0 0.0
      %8524 = vmatpush1.msra.mxu0 0.0
      %8525 = vmatprep.subr.mxu0 0.0
      %8526 = vmatpush1.msra.mxu0 0.0
      %8527 = vmatprep.subr.mxu0 0.0
      %8528 = vmatpush1.msra.mxu0 0.0
      %8529 = vmatprep.subr.mxu0 0.0
      %8530 = vmatpush1.msra.mxu0 0.0
      %8531 = vmatprep.subr.mxu0 0.0
      %8532 = vmatpush1.msra.mxu0 0.0
      %8533 = vmatprep.subr.mxu0 0.0
      %8534 = vmatpush1.msra.mxu0 0.0
      %8535 = vmatprep.subr.mxu0 0.0
      %8536 = vmatpush1.msra.mxu0 0.0
      %8537 = vmatprep.subr.mxu0 0.0
      %8538 = vmatpush1.msra.mxu0 0.0
      %8539 = vmatprep.subr.mxu0 0.0
      %8540 = vmatpush1.msra.mxu0 0.0
      %8541 = vmatprep.subr.mxu0 0.0
      %8542 = vmatpush1.msra.mxu0 0.0
      %8543 = vmatprep.subr.mxu0 0.0
      %8544 = vmatpush1.msra.mxu0 0.0
      %8545 = vmatprep.subr.mxu0 0.0
      %8546 = vmatpush1.msra.mxu0 0.0
      %8547 = vmatprep.subr.mxu0 0.0
      %8548 = vmatpush1.msra.mxu0 0.0
      %8549 = vmatprep.mubr.f32.mxu0 0.0
      %8550 = vmatmul.mubr.f32.gmra.mrb[0].mxu0 %v8469
      %v8551 = vpop.f32.mrb[0].mxu0
      %v8552 = vadd.f32 %v8431, %v8551
      %v8553 = vpop.f32.mrb[0].mxu0
      %8554 = vmatprep.mubr.f32.mxu0 0.0
      %8555 = vmatmul.mubr.f32.gmra.mrb[0].mxu0 %v8471
      %v8556 = vpop.f32.mrb[0].mxu0
      %v8557 = vadd.f32 %v8436, %v8556
      %v8558 = vpop.f32.mrb[0].mxu0
      %8559 = vmatprep.mubr.f32.mxu0 0.0
      %8560 = vmatmul.mubr.f32.gmra.mrb[0].mxu0 %v8473
      %v8561 = vpop.f32.mrb[0].mxu0
      %v8562 = vadd.f32 %v8441, %v8561
      %v8563 = vpop.f32.mrb[0].mxu0
      %8564 = vmatprep.mubr.f32.mxu0 0.0
      %8565 = vmatmul.mubr.f32.gmra.mrb[0].mxu0 %v8475
      %v8566 = vpop.f32.mrb[0].mxu0
      %v8567 = vadd.f32 %v8446, %v8566
      %v8568 = vpop.f32.mrb[0].mxu0
      %8569 = vmatprep.mubr.f32.mxu0 0.0
      %8570 = vmatmul.mubr.f32.gmra.mrb[0].mxu0 %v8477
      %v8571 = vpop.f32.mrb[0].mxu0
      %v8572 = vadd.f32 %v8451, %v8571
      %v8573 = vpop.f32.mrb[0].mxu0
      %8574 = vmatprep.mubr.f32.mxu0 0.0
      %8575 = vmatmul.mubr.f32.gmra.mrb[0].mxu0 %v8479
      %v8576 = vpop.f32.mrb[0].mxu0
      %v8577 = vadd.f32 %v8456, %v8576
      %v8578 = vpop.f32.mrb[0].mxu0
      %8579 = vmatprep.mubr.f32.mxu0 0.0
      %8580 = vmatmul.mubr.f32.gmra.mrb[0].mxu0 %v8481
      %v8581 = vpop.f32.mrb[0].mxu0
      %v8582 = vadd.f32 %v8461, %v8581
      %v8583 = vpop.f32.mrb[0].mxu0
      %8584 = vmatprep.mubr.f32.mxu0 0.0
      %8585 = vmatmul.mubr.f32.gmra.mrb[0].mxu0 %v8483
      %v8586 = vpop.f32.mrb[0].mxu0
      %v8587 = vadd.f32 %v8466, %v8586
      %v8588 = vpop.f32.mrb[0].mxu0
      %8589 = vdwg.mxu0
      %v8590 = vld [vmem:[#allocation3] sm:$0xfe]
      %v8591 = vld [vmem:[#allocation3 + $0x10] sm:$0x1]
      %v8592 = vld [vmem:[#allocation3 + $0x20] sm:$0xfe]
      %v8593 = vld [vmem:[#allocation3 + $0x30] sm:$0x1]
      %v8594 = vld [vmem:[#allocation3 + $0x40] sm:$0xfe]
      %v8595 = vld [vmem:[#allocation3 + $0x50] sm:$0x1]
      %v8596 = vld [vmem:[#allocation3 + $0x60] sm:$0xfe]
      %v8597 = vld [vmem:[#allocation3 + $0x70] sm:$0x1]
      %v8598 = vld [vmem:[#allocation3 + $0x80] sm:$0xfe]
      %v8599 = vld [vmem:[#allocation3 + $0x90] sm:$0x1]
      %v8600 = vld [vmem:[#allocation3 + $0xa0] sm:$0xfe]
      %v8601 = vld [vmem:[#allocation3 + $0xb0] sm:$0x1]
      %v8602 = vld [vmem:[#allocation3 + $0xc0] sm:$0xfe]
      %v8603 = vld [vmem:[#allocation3 + $0xd0] sm:$0x1]
      %v8604 = vld [vmem:[#allocation3 + $0xe0] sm:$0xfe]
      %v8605 = vld [vmem:[#allocation3 + $0xf0] sm:$0x1]
      %vm8622 = vcmask 1046528
      %v8623 = vrot.slane %v8590, 1
      %v8624 = vrot.slane %v8591, 1
      %v8625 = vsel %vm8622, %v8623, %v8624
      %v8626 = vrot.slane %v8592, 1
      %v8627 = vrot.slane %v8593, 1
      %v8628 = vsel %vm8622, %v8626, %v8627
      %v8629 = vrot.slane %v8594, 1
      %v8630 = vrot.slane %v8595, 1
      %v8631 = vsel %vm8622, %v8629, %v8630
      %v8632 = vrot.slane %v8596, 1
      %v8633 = vrot.slane %v8597, 1
      %v8634 = vsel %vm8622, %v8632, %v8633
      %v8635 = vrot.slane %v8598, 1
      %v8636 = vrot.slane %v8599, 1
      %v8637 = vsel %vm8622, %v8635, %v8636
      %v8638 = vrot.slane %v8600, 1
      %v8639 = vrot.slane %v8601, 1
      %v8640 = vsel %vm8622, %v8638, %v8639
      %v8641 = vrot.slane %v8602, 1
      %v8642 = vrot.slane %v8603, 1
      %v8643 = vsel %vm8622, %v8641, %v8642
      %v8644 = vrot.slane %v8604, 1
      %v8645 = vrot.slane %v8605, 1
      %v8646 = vsel %vm8622, %v8644, %v8645
      %s8647 = scalar_lea.vmem %s5, 128
      %v8648 = vld [vmem:[%s8647] sm:$0xff]
      %v8649 = vld [vmem:[%s8647 + $0x8] sm:$0xff]
      %v8650 = vld [vmem:[%s8647 + $0x10] sm:$0xff]
      %v8651 = vld [vmem:[%s8647 + $0x18] sm:$0xff]
      %v8652 = vld [vmem:[%s8647 + $0x20] sm:$0xff]
      %v8653 = vld [vmem:[%s8647 + $0x28] sm:$0xff]
      %v8654 = vld [vmem:[%s8647 + $0x30] sm:$0xff]
      %v8655 = vld [vmem:[%s8647 + $0x38] sm:$0xff]
      %v8656 = vsel %vm8347, %v8625, 0
      %v8658 = vsel %vm8347, %v8628, 0
      %v8660 = vsel %vm8347, %v8631, 0
      %v8662 = vsel %vm8347, %v8634, 0
      %v8664 = vsel %vm8347, %v8637, 0
      %v8666 = vsel %vm8347, %v8640, 0
      %v8668 = vsel %vm8347, %v8643, 0
      %v8670 = vsel %vm8347, %v8646, 0
      %8672 = vmatprep.subr.mxu0 0.0
      %8673 = vmatpush1.msra.mxu0 %v8648
      %8674 = vmatprep.subr.mxu0 0.0
      %8675 = vmatpush1.msra.mxu0 %v8649
      %8676 = vmatprep.subr.mxu0 0.0
      %8677 = vmatpush1.msra.mxu0 %v8650
      %8678 = vmatprep.subr.mxu0 0.0
      %8679 = vmatpush1.msra.mxu0 %v8651
      %8680 = vmatprep.subr.mxu0 0.0
      %8681 = vmatpush1.msra.mxu0 %v8652
      %8682 = vmatprep.subr.mxu0 0.0
      %8683 = vmatpush1.msra.mxu0 %v8653
      %8684 = vmatprep.subr.mxu0 0.0
      %8685 = vmatpush1.msra.mxu0 %v8654
      %8686 = vmatprep.subr.mxu0 0.0
      %8687 = vmatpush1.msra.mxu0 %v8655
      %8688 = vmatprep.subr.mxu0 0.0
      %8689 = vmatpush1.msra.mxu0 0.0
      %8690 = vmatprep.subr.mxu0 0.0
      %8691 = vmatpush1.msra.mxu0 0.0
      %8692 = vmatprep.subr.mxu0 0.0
      %8693 = vmatpush1.msra.mxu0 0.0
      %8694 = vmatprep.subr.mxu0 0.0
      %8695 = vmatpush1.msra.mxu0 0.0
      %8696 = vmatprep.subr.mxu0 0.0
      %8697 = vmatpush1.msra.mxu0 0.0
      %8698 = vmatprep.subr.mxu0 0.0
      %8699 = vmatpush1.msra.mxu0 0.0
      %8700 = vmatprep.subr.mxu0 0.0
      %8701 = vmatpush1.msra.mxu0 0.0
      %8702 = vmatprep.subr.mxu0 0.0
      %8703 = vmatpush1.msra.mxu0 0.0
      %8704 = vmatprep.subr.mxu0 0.0
      %8705 = vmatpush1.msra.mxu0 0.0
      %8706 = vmatprep.subr.mxu0 0.0
      %8707 = vmatpush1.msra.mxu0 0.0
      %8708 = vmatprep.subr.mxu0 0.0
      %8709 = vmatpush1.msra.mxu0 0.0
      %8710 = vmatprep.subr.mxu0 0.0
      %8711 = vmatpush1.msra.mxu0 0.0
      %8712 = vmatprep.subr.mxu0 0.0
      %8713 = vmatpush1.msra.mxu0 0.0
      %8714 = vmatprep.subr.mxu0 0.0
      %8715 = vmatpush1.msra.mxu0 0.0
      %8716 = vmatprep.subr.mxu0 0.0
      %8717 = vmatpush1.msra.mxu0 0.0
      %8718 = vmatprep.subr.mxu0 0.0
      %8719 = vmatpush1.msra.mxu0 0.0
      %8720 = vmatprep.subr.mxu0 0.0
      %8721 = vmatpush1.msra.mxu0 0.0
      %8722 = vmatprep.subr.mxu0 0.0
      %8723 = vmatpush1.msra.mxu0 0.0
      %8724 = vmatprep.subr.mxu0 0.0
      %8725 = vmatpush1.msra.mxu0 0.0
      %8726 = vmatprep.subr.mxu0 0.0
      %8727 = vmatpush1.msra.mxu0 0.0
      %8728 = vmatprep.subr.mxu0 0.0
      %8729 = vmatpush1.msra.mxu0 0.0
      %8730 = vmatprep.subr.mxu0 0.0
      %8731 = vmatpush1.msra.mxu0 0.0
      %8732 = vmatprep.subr.mxu0 0.0
      %8733 = vmatpush1.msra.mxu0 0.0
      %8734 = vmatprep.subr.mxu0 0.0
      %8735 = vmatpush1.msra.mxu0 0.0
      %8736 = vmatprep.mubr.f32.mxu0 0.0
      %8737 = vmatmul.mubr.f32.gmra.mrb[0].mxu0 %v8656
      %v8738 = vpop.f32.mrb[0].mxu0
      %v8739 = vadd.f32 0.0, %v8738
      %v8740 = vpop.f32.mrb[0].mxu0
      %8741 = vmatprep.mubr.f32.mxu0 0.0
      %8742 = vmatmul.mubr.f32.gmra.mrb[0].mxu0 %v8658
      %v8743 = vpop.f32.mrb[0].mxu0
      %v8744 = vadd.f32 0.0, %v8743
      %v8745 = vpop.f32.mrb[0].mxu0
      %8746 = vmatprep.mubr.f32.mxu0 0.0
      %8747 = vmatmul.mubr.f32.gmra.mrb[0].mxu0 %v8660
      %v8748 = vpop.f32.mrb[0].mxu0
      %v8749 = vadd.f32 0.0, %v8748
      %v8750 = vpop.f32.mrb[0].mxu0
      %8751 = vmatprep.mubr.f32.mxu0 0.0
      %8752 = vmatmul.mubr.f32.gmra.mrb[0].mxu0 %v8662
      %v8753 = vpop.f32.mrb[0].mxu0
      %v8754 = vadd.f32 0.0, %v8753
      %v8755 = vpop.f32.mrb[0].mxu0
      %8756 = vmatprep.mubr.f32.mxu0 0.0
      %8757 = vmatmul.mubr.f32.gmra.mrb[0].mxu0 %v8664
      %v8758 = vpop.f32.mrb[0].mxu0
      %v8759 = vadd.f32 0.0, %v8758
      %v8760 = vpop.f32.mrb[0].mxu0
      %8761 = vmatprep.mubr.f32.mxu0 0.0
      %8762 = vmatmul.mubr.f32.gmra.mrb[0].mxu0 %v8666
      %v8763 = vpop.f32.mrb[0].mxu0
      %v8764 = vadd.f32 0.0, %v8763
      %v8765 = vpop.f32.mrb[0].mxu0
      %8766 = vmatprep.mubr.f32.mxu0 0.0
      %8767 = vmatmul.mubr.f32.gmra.mrb[0].mxu0 %v8668
      %v8768 = vpop.f32.mrb[0].mxu0
      %v8769 = vadd.f32 0.0, %v8768
      %v8770 = vpop.f32.mrb[0].mxu0
      %8771 = vmatprep.mubr.f32.mxu0 0.0
      %8772 = vmatmul.mubr.f32.gmra.mrb[0].mxu0 %v8670
      %v8773 = vpop.f32.mrb[0].mxu0
      %v8774 = vadd.f32 0.0, %v8773
      %v8775 = vpop.f32.mrb[0].mxu0
      %8776 = vdwg.mxu0
      %v8777 = vadd.f32 %v8552, %v8739
      %v8778 = vadd.f32 %v8557, %v8744
      %v8779 = vadd.f32 %v8562, %v8749
      %v8780 = vadd.f32 %v8567, %v8754
      %v8781 = vadd.f32 %v8572, %v8759
      %v8782 = vadd.f32 %v8577, %v8764
      %v8783 = vadd.f32 %v8582, %v8769
      %v8784 = vadd.f32 %v8587, %v8774
      %v8785 = vld [vmem:[#allocation3 + $0x8] sm:$0xff]
      %v8786 = vld [vmem:[#allocation3 + $0x28] sm:$0xff]
      %v8787 = vld [vmem:[#allocation3 + $0x48] sm:$0xff]
      %v8788 = vld [vmem:[#allocation3 + $0x68] sm:$0xff]
      %v8789 = vld [vmem:[#allocation3 + $0x88] sm:$0xff]
      %v8790 = vld [vmem:[#allocation3 + $0xa8] sm:$0xff]
      %v8791 = vld [vmem:[#allocation3 + $0xc8] sm:$0xff]
      %v8792 = vld [vmem:[#allocation3 + $0xe8] sm:$0xff]
      %s8793 = scalar_lea.vmem %s5, 192
      %v8794 = vld [vmem:[%s8793] sm:$0xff]
      %v8795 = vld [vmem:[%s8793 + $0x8] sm:$0xff]
      %v8796 = vld [vmem:[%s8793 + $0x10] sm:$0xff]
      %v8797 = vld [vmem:[%s8793 + $0x18] sm:$0xff]
      %v8798 = vld [vmem:[%s8793 + $0x20] sm:$0xff]
      %v8799 = vld [vmem:[%s8793 + $0x28] sm:$0xff]
      %v8800 = vld [vmem:[%s8793 + $0x30] sm:$0xff]
      %v8801 = vld [vmem:[%s8793 + $0x38] sm:$0xff]
      %v8803 = vsel %vm8347, %v8785, 0
      %v8806 = vsel %vm8347, %v8786, 0
      %v8809 = vsel %vm8347, %v8787, 0
      %v8812 = vsel %vm8347, %v8788, 0
      %v8815 = vsel %vm8347, %v8789, 0
      %v8818 = vsel %vm8347, %v8790, 0
      %v8821 = vsel %vm8347, %v8791, 0
      %v8824 = vsel %vm8347, %v8792, 0
      %8826 = vmatprep.subr.mxu0 0.0
      %8827 = vmatpush1.msra.mxu0 %v8794
      %8828 = vmatprep.subr.mxu0 0.0
      %8829 = vmatpush1.msra.mxu0 %v8795
      %8830 = vmatprep.subr.mxu0 0.0
      %8831 = vmatpush1.msra.mxu0 %v8796
      %8832 = vmatprep.subr.mxu0 0.0
      %8833 = vmatpush1.msra.mxu0 %v8797
      %8834 = vmatprep.subr.mxu0 0.0
      %8835 = vmatpush1.msra.mxu0 %v8798
      %8836 = vmatprep.subr.mxu0 0.0
      %8837 = vmatpush1.msra.mxu0 %v8799
      %8838 = vmatprep.subr.mxu0 0.0
      %8839 = vmatpush1.msra.mxu0 %v8800
      %8840 = vmatprep.subr.mxu0 0.0
      %8841 = vmatpush1.msra.mxu0 %v8801
      %8842 = vmatprep.subr.mxu0 0.0
      %8843 = vmatpush1.msra.mxu0 0.0
      %8844 = vmatprep.subr.mxu0 0.0
      %8845 = vmatpush1.msra.mxu0 0.0
      %8846 = vmatprep.subr.mxu0 0.0
      %8847 = vmatpush1.msra.mxu0 0.0
      %8848 = vmatprep.subr.mxu0 0.0
      %8849 = vmatpush1.msra.mxu0 0.0
      %8850 = vmatprep.subr.mxu0 0.0
      %8851 = vmatpush1.msra.mxu0 0.0
      %8852 = vmatprep.subr.mxu0 0.0
      %8853 = vmatpush1.msra.mxu0 0.0
      %8854 = vmatprep.subr.mxu0 0.0
      %8855 = vmatpush1.msra.mxu0 0.0
      %8856 = vmatprep.subr.mxu0 0.0
      %8857 = vmatpush1.msra.mxu0 0.0
      %8858 = vmatprep.subr.mxu0 0.0
      %8859 = vmatpush1.msra.mxu0 0.0
      %8860 = vmatprep.subr.mxu0 0.0
      %8861 = vmatpush1.msra.mxu0 0.0
      %8862 = vmatprep.subr.mxu0 0.0
      %8863 = vmatpush1.msra.mxu0 0.0
      %8864 = vmatprep.subr.mxu0 0.0
      %8865 = vmatpush1.msra.mxu0 0.0
      %8866 = vmatprep.subr.mxu0 0.0
      %8867 = vmatpush1.msra.mxu0 0.0
      %8868 = vmatprep.subr.mxu0 0.0
      %8869 = vmatpush1.msra.mxu0 0.0
      %8870 = vmatprep.subr.mxu0 0.0
      %8871 = vmatpush1.msra.mxu0 0.0
      %8872 = vmatprep.subr.mxu0 0.0
      %8873 = vmatpush1.msra.mxu0 0.0
      %8874 = vmatprep.subr.mxu0 0.0
      %8875 = vmatpush1.msra.mxu0 0.0
      %8876 = vmatprep.subr.mxu0 0.0
      %8877 = vmatpush1.msra.mxu0 0.0
      %8878 = vmatprep.subr.mxu0 0.0
      %8879 = vmatpush1.msra.mxu0 0.0
      %8880 = vmatprep.subr.mxu0 0.0
      %8881 = vmatpush1.msra.mxu0 0.0
      %8882 = vmatprep.subr.mxu0 0.0
      %8883 = vmatpush1.msra.mxu0 0.0
      %8884 = vmatprep.subr.mxu0 0.0
      %8885 = vmatpush1.msra.mxu0 0.0
      %8886 = vmatprep.subr.mxu0 0.0
      %8887 = vmatpush1.msra.mxu0 0.0
      %8888 = vmatprep.subr.mxu0 0.0
      %8889 = vmatpush1.msra.mxu0 0.0
      %8890 = vmatprep.mubr.f32.mxu0 0.0
      %8891 = vmatmul.mubr.f32.gmra.mrb[0].mxu0 %v8803
      %v8892 = vpop.f32.mrb[0].mxu0
      %v8893 = vadd.f32 0.0, %v8892
      %v8894 = vpop.f32.mrb[0].mxu0
      %8895 = vmatprep.mubr.f32.mxu0 0.0
      %8896 = vmatmul.mubr.f32.gmra.mrb[0].mxu0 %v8806
      %v8897 = vpop.f32.mrb[0].mxu0
      %v8898 = vadd.f32 0.0, %v8897
      %v8899 = vpop.f32.mrb[0].mxu0
      %8900 = vmatprep.mubr.f32.mxu0 0.0
      %8901 = vmatmul.mubr.f32.gmra.mrb[0].mxu0 %v8809
      %v8902 = vpop.f32.mrb[0].mxu0
      %v8903 = vadd.f32 0.0, %v8902
      %v8904 = vpop.f32.mrb[0].mxu0
      %8905 = vmatprep.mubr.f32.mxu0 0.0
      %8906 = vmatmul.mubr.f32.gmra.mrb[0].mxu0 %v8812
      %v8907 = vpop.f32.mrb[0].mxu0
      %v8908 = vadd.f32 0.0, %v8907
      %v8909 = vpop.f32.mrb[0].mxu0
      %8910 = vmatprep.mubr.f32.mxu0 0.0
      %8911 = vmatmul.mubr.f32.gmra.mrb[0].mxu0 %v8815
      %v8912 = vpop.f32.mrb[0].mxu0
      %v8913 = vadd.f32 0.0, %v8912
      %v8914 = vpop.f32.mrb[0].mxu0
      %8915 = vmatprep.mubr.f32.mxu0 0.0
      %8916 = vmatmul.mubr.f32.gmra.mrb[0].mxu0 %v8818
      %v8917 = vpop.f32.mrb[0].mxu0
      %v8918 = vadd.f32 0.0, %v8917
      %v8919 = vpop.f32.mrb[0].mxu0
      %8920 = vmatprep.mubr.f32.mxu0 0.0
      %8921 = vmatmul.mubr.f32.gmra.mrb[0].mxu0 %v8821
      %v8922 = vpop.f32.mrb[0].mxu0
      %v8923 = vadd.f32 0.0, %v8922
      %v8924 = vpop.f32.mrb[0].mxu0
      %8925 = vmatprep.mubr.f32.mxu0 0.0
      %8926 = vmatmul.mubr.f32.gmra.mrb[0].mxu0 %v8824
      %v8927 = vpop.f32.mrb[0].mxu0
      %v8928 = vadd.f32 0.0, %v8927
      %v8929 = vpop.f32.mrb[0].mxu0
      %8930 = vdwg.mxu0
      %v8931 = vadd.f32 %v8777, %v8893
      %v8932 = vadd.f32 %v8778, %v8898
      %v8933 = vadd.f32 %v8779, %v8903
      %v8934 = vadd.f32 %v8780, %v8908
      %v8935 = vadd.f32 %v8781, %v8913
      %v8936 = vadd.f32 %v8782, %v8918
      %v8937 = vadd.f32 %v8783, %v8923
      %v8938 = vadd.f32 %v8784, %v8928
      %s8939 = scalar_lea.vmem %s5, 256
      %v8940 = vld [vmem:[%s8939] sm:$0xff]
      %v8941 = vld [vmem:[%s8939 + $0x8] sm:$0xff]
      %v8942 = vld [vmem:[%s8939 + $0x10] sm:$0xff]
      %v8943 = vld [vmem:[%s8939 + $0x18] sm:$0xff]
      %v8944 = vld [vmem:[%s8939 + $0x20] sm:$0xff]
      %v8945 = vld [vmem:[%s8939 + $0x28] sm:$0xff]
      %v8946 = vld [vmem:[%s8939 + $0x30] sm:$0xff]
      %v8947 = vld [vmem:[%s8939 + $0x38] sm:$0xff]
      %8948 = vrot.lane.b32.xlu0 %v8785, 64
      %v8949 = vpop.permute.xlu0 %8948
      %8950 = vrot.lane.b32.xlu0 %v8786, 64
      %v8951 = vpop.permute.xlu0 %8950
      %8952 = vrot.lane.b32.xlu0 %v8787, 64
      %v8953 = vpop.permute.xlu0 %8952
      %8954 = vrot.lane.b32.xlu0 %v8788, 64
      %v8955 = vpop.permute.xlu0 %8954
      %8956 = vrot.lane.b32.xlu0 %v8789, 64
      %v8957 = vpop.permute.xlu0 %8956
      %8958 = vrot.lane.b32.xlu0 %v8790, 64
      %v8959 = vpop.permute.xlu0 %8958
      %8960 = vrot.lane.b32.xlu0 %v8791, 64
      %v8961 = vpop.permute.xlu0 %8960
      %8962 = vrot.lane.b32.xlu0 %v8792, 64
      %v8963 = vpop.permute.xlu0 %8962
      %v8964 = vsel %vm8347, %v8949, 0
      %v8966 = vsel %vm8347, %v8951, 0
      %v8968 = vsel %vm8347, %v8953, 0
      %v8970 = vsel %vm8347, %v8955, 0
      %v8972 = vsel %vm8347, %v8957, 0
      %v8974 = vsel %vm8347, %v8959, 0
      %v8976 = vsel %vm8347, %v8961, 0
      %v8978 = vsel %vm8347, %v8963, 0
      %8980 = vmatprep.subr.mxu0 0.0
      %8981 = vmatpush1.msra.mxu0 %v8940
      %8982 = vmatprep.subr.mxu0 0.0
      %8983 = vmatpush1.msra.mxu0 %v8941
      %8984 = vmatprep.subr.mxu0 0.0
      %8985 = vmatpush1.msra.mxu0 %v8942
      %8986 = vmatprep.subr.mxu0 0.0
      %8987 = vmatpush1.msra.mxu0 %v8943
      %8988 = vmatprep.subr.mxu0 0.0
      %8989 = vmatpush1.msra.mxu0 %v8944
      %8990 = vmatprep.subr.mxu0 0.0
      %8991 = vmatpush1.msra.mxu0 %v8945
      %8992 = vmatprep.subr.mxu0 0.0
      %8993 = vmatpush1.msra.mxu0 %v8946
      %8994 = vmatprep.subr.mxu0 0.0
      %8995 = vmatpush1.msra.mxu0 %v8947
      %8996 = vmatprep.subr.mxu0 0.0
      %8997 = vmatpush1.msra.mxu0 0.0
      %8998 = vmatprep.subr.mxu0 0.0
      %8999 = vmatpush1.msra.mxu0 0.0
      %9000 = vmatprep.subr.mxu0 0.0
      %9001 = vmatpush1.msra.mxu0 0.0
      %9002 = vmatprep.subr.mxu0 0.0
      %9003 = vmatpush1.msra.mxu0 0.0
      %9004 = vmatprep.subr.mxu0 0.0
      %9005 = vmatpush1.msra.mxu0 0.0
      %9006 = vmatprep.subr.mxu0 0.0
      %9007 = vmatpush1.msra.mxu0 0.0
      %9008 = vmatprep.subr.mxu0 0.0
      %9009 = vmatpush1.msra.mxu0 0.0
      %9010 = vmatprep.subr.mxu0 0.0
      %9011 = vmatpush1.msra.mxu0 0.0
      %9012 = vmatprep.subr.mxu0 0.0
      %9013 = vmatpush1.msra.mxu0 0.0
      %9014 = vmatprep.subr.mxu0 0.0
      %9015 = vmatpush1.msra.mxu0 0.0
      %9016 = vmatprep.subr.mxu0 0.0
      %9017 = vmatpush1.msra.mxu0 0.0
      %9018 = vmatprep.subr.mxu0 0.0
      %9019 = vmatpush1.msra.mxu0 0.0
      %9020 = vmatprep.subr.mxu0 0.0
      %9021 = vmatpush1.msra.mxu0 0.0
      %9022 = vmatprep.subr.mxu0 0.0
      %9023 = vmatpush1.msra.mxu0 0.0
      %9024 = vmatprep.subr.mxu0 0.0
      %9025 = vmatpush1.msra.mxu0 0.0
      %9026 = vmatprep.subr.mxu0 0.0
      %9027 = vmatpush1.msra.mxu0 0.0
      %9028 = vmatprep.subr.mxu0 0.0
      %9029 = vmatpush1.msra.mxu0 0.0
      %9030 = vmatprep.subr.mxu0 0.0
      %9031 = vmatpush1.msra.mxu0 0.0
      %9032 = vmatprep.subr.mxu0 0.0
      %9033 = vmatpush1.msra.mxu0 0.0
      %9034 = vmatprep.subr.mxu0 0.0
      %9035 = vmatpush1.msra.mxu0 0.0
      %9036 = vmatprep.subr.mxu0 0.0
      %9037 = vmatpush1.msra.mxu0 0.0
      %9038 = vmatprep.subr.mxu0 0.0
      %9039 = vmatpush1.msra.mxu0 0.0
      %9040 = vmatprep.subr.mxu0 0.0
      %9041 = vmatpush1.msra.mxu0 0.0
      %9042 = vmatprep.subr.mxu0 0.0
      %9043 = vmatpush1.msra.mxu0 0.0
      %9044 = vmatprep.mubr.f32.mxu0 0.0
      %9045 = vmatmul.mubr.f32.gmra.mrb[0].mxu0 %v8964
      %v9046 = vpop.f32.mrb[0].mxu0
      %v9047 = vadd.f32 0.0, %v9046
      %v9048 = vpop.f32.mrb[0].mxu0
      %9049 = vmatprep.mubr.f32.mxu0 0.0
      %9050 = vmatmul.mubr.f32.gmra.mrb[0].mxu0 %v8966
      %v9051 = vpop.f32.mrb[0].mxu0
      %v9052 = vadd.f32 0.0, %v9051
      %v9053 = vpop.f32.mrb[0].mxu0
      %9054 = vmatprep.mubr.f32.mxu0 0.0
      %9055 = vmatmul.mubr.f32.gmra.mrb[0].mxu0 %v8968
      %v9056 = vpop.f32.mrb[0].mxu0
      %v9057 = vadd.f32 0.0, %v9056
      %v9058 = vpop.f32.mrb[0].mxu0
      %9059 = vmatprep.mubr.f32.mxu0 0.0
      %9060 = vmatmul.mubr.f32.gmra.mrb[0].mxu0 %v8970
      %v9061 = vpop.f32.mrb[0].mxu0
      %v9062 = vadd.f32 0.0, %v9061
      %v9063 = vpop.f32.mrb[0].mxu0
      %9064 = vmatprep.mubr.f32.mxu0 0.0
      %9065 = vmatmul.mubr.f32.gmra.mrb[0].mxu0 %v8972
      %v9066 = vpop.f32.mrb[0].mxu0
      %v9067 = vadd.f32 0.0, %v9066
      %v9068 = vpop.f32.mrb[0].mxu0
      %9069 = vmatprep.mubr.f32.mxu0 0.0
      %9070 = vmatmul.mubr.f32.gmra.mrb[0].mxu0 %v8974
      %v9071 = vpop.f32.mrb[0].mxu0
      %v9072 = vadd.f32 0.0, %v9071
      %v9073 = vpop.f32.mrb[0].mxu0
      %9074 = vmatprep.mubr.f32.mxu0 0.0
      %9075 = vmatmul.mubr.f32.gmra.mrb[0].mxu0 %v8976
      %v9076 = vpop.f32.mrb[0].mxu0
      %v9077 = vadd.f32 0.0, %v9076
      %v9078 = vpop.f32.mrb[0].mxu0
      %9079 = vmatprep.mubr.f32.mxu0 0.0
      %9080 = vmatmul.mubr.f32.gmra.mrb[0].mxu0 %v8978
      %v9081 = vpop.f32.mrb[0].mxu0
      %v9082 = vadd.f32 0.0, %v9081
      %v9083 = vpop.f32.mrb[0].mxu0
      %9084 = vdwg.mxu0
      %v9085 = vadd.f32 %v8931, %v9047
      %v9086 = vadd.f32 %v8932, %v9052
      %v9087 = vadd.f32 %v8933, %v9057
      %v9088 = vadd.f32 %v8934, %v9062
      %v9089 = vadd.f32 %v8935, %v9067
      %v9090 = vadd.f32 %v8936, %v9072
      %v9091 = vadd.f32 %v8937, %v9077
      %v9092 = vadd.f32 %v8938, %v9082
      %v9093 = vld [vmem:[#allocation3 + $0x8] sm:$0xfe]
      %v9094 = vld [vmem:[#allocation3 + $0x18] sm:$0x1]
      %v9095 = vld [vmem:[#allocation3 + $0x28] sm:$0xfe]
      %v9096 = vld [vmem:[#allocation3 + $0x38] sm:$0x1]
      %v9097 = vld [vmem:[#allocation3 + $0x48] sm:$0xfe]
      %v9098 = vld [vmem:[#allocation3 + $0x58] sm:$0x1]
      %v9099 = vld [vmem:[#allocation3 + $0x68] sm:$0xfe]
      %v9100 = vld [vmem:[#allocation3 + $0x78] sm:$0x1]
      %v9101 = vld [vmem:[#allocation3 + $0x88] sm:$0xfe]
      %v9102 = vld [vmem:[#allocation3 + $0x98] sm:$0x1]
      %v9103 = vld [vmem:[#allocation3 + $0xa8] sm:$0xfe]
      %v9104 = vld [vmem:[#allocation3 + $0xb8] sm:$0x1]
      %v9105 = vld [vmem:[#allocation3 + $0xc8] sm:$0xfe]
      %v9106 = vld [vmem:[#allocation3 + $0xd8] sm:$0x1]
      %v9107 = vld [vmem:[#allocation3 + $0xe8] sm:$0xfe]
      %v9108 = vld [vmem:[#allocation3 + $0xf8] sm:$0x1]
      %v9125 = vrot.slane %v9093, 1
      %v9126 = vrot.slane %v9094, 1
      %v9127 = vsel %vm8622, %v9125, %v9126
      %v9128 = vrot.slane %v9095, 1
      %v9129 = vrot.slane %v9096, 1
      %v9130 = vsel %vm8622, %v9128, %v9129
      %v9131 = vrot.slane %v9097, 1
      %v9132 = vrot.slane %v9098, 1
      %v9133 = vsel %vm8622, %v9131, %v9132
      %v9134 = vrot.slane %v9099, 1
      %v9135 = vrot.slane %v9100, 1
      %v9136 = vsel %vm8622, %v9134, %v9135
      %v9137 = vrot.slane %v9101, 1
      %v9138 = vrot.slane %v9102, 1
      %v9139 = vsel %vm8622, %v9137, %v9138
      %v9140 = vrot.slane %v9103, 1
      %v9141 = vrot.slane %v9104, 1
      %v9142 = vsel %vm8622, %v9140, %v9141
      %v9143 = vrot.slane %v9105, 1
      %v9144 = vrot.slane %v9106, 1
      %v9145 = vsel %vm8622, %v9143, %v9144
      %v9146 = vrot.slane %v9107, 1
      %v9147 = vrot.slane %v9108, 1
      %v9148 = vsel %vm8622, %v9146, %v9147
      %s9149 = scalar_lea.vmem %s5, 320
      %v9150 = vld [vmem:[%s9149] sm:$0xff]
      %v9151 = vld [vmem:[%s9149 + $0x8] sm:$0xff]
      %v9152 = vld [vmem:[%s9149 + $0x10] sm:$0xff]
      %v9153 = vld [vmem:[%s9149 + $0x18] sm:$0xff]
      %v9154 = vld [vmem:[%s9149 + $0x20] sm:$0xff]
      %v9155 = vld [vmem:[%s9149 + $0x28] sm:$0xff]
      %v9156 = vld [vmem:[%s9149 + $0x30] sm:$0xff]
      %v9157 = vld [vmem:[%s9149 + $0x38] sm:$0xff]
      %v9158 = vsel %vm8347, %v9127, 0
      %v9160 = vsel %vm8347, %v9130, 0
      %v9162 = vsel %vm8347, %v9133, 0
      %v9164 = vsel %vm8347, %v9136, 0
      %v9166 = vsel %vm8347, %v9139, 0
      %v9168 = vsel %vm8347, %v9142, 0
      %v9170 = vsel %vm8347, %v9145, 0
      %v9172 = vsel %vm8347, %v9148, 0
      %9174 = vmatprep.subr.mxu0 0.0
      %9175 = vmatpush1.msra.mxu0 %v9150
      %9176 = vmatprep.subr.mxu0 0.0
      %9177 = vmatpush1.msra.mxu0 %v9151
      %9178 = vmatprep.subr.mxu0 0.0
      %9179 = vmatpush1.msra.mxu0 %v9152
      %9180 = vmatprep.subr.mxu0 0.0
      %9181 = vmatpush1.msra.mxu0 %v9153
      %9182 = vmatprep.subr.mxu0 0.0
      %9183 = vmatpush1.msra.mxu0 %v9154
      %9184 = vmatprep.subr.mxu0 0.0
      %9185 = vmatpush1.msra.mxu0 %v9155
      %9186 = vmatprep.subr.mxu0 0.0
      %9187 = vmatpush1.msra.mxu0 %v9156
      %9188 = vmatprep.subr.mxu0 0.0
      %9189 = vmatpush1.msra.mxu0 %v9157
      %9190 = vmatprep.subr.mxu0 0.0
      %9191 = vmatpush1.msra.mxu0 0.0
      %9192 = vmatprep.subr.mxu0 0.0
      %9193 = vmatpush1.msra.mxu0 0.0
      %9194 = vmatprep.subr.mxu0 0.0
      %9195 = vmatpush1.msra.mxu0 0.0
      %9196 = vmatprep.subr.mxu0 0.0
      %9197 = vmatpush1.msra.mxu0 0.0
      %9198 = vmatprep.subr.mxu0 0.0
      %9199 = vmatpush1.msra.mxu0 0.0
      %9200 = vmatprep.subr.mxu0 0.0
      %9201 = vmatpush1.msra.mxu0 0.0
      %9202 = vmatprep.subr.mxu0 0.0
      %9203 = vmatpush1.msra.mxu0 0.0
      %9204 = vmatprep.subr.mxu0 0.0
      %9205 = vmatpush1.msra.mxu0 0.0
      %9206 = vmatprep.subr.mxu0 0.0
      %9207 = vmatpush1.msra.mxu0 0.0
      %9208 = vmatprep.subr.mxu0 0.0
      %9209 = vmatpush1.msra.mxu0 0.0
      %9210 = vmatprep.subr.mxu0 0.0
      %9211 = vmatpush1.msra.mxu0 0.0
      %9212 = vmatprep.subr.mxu0 0.0
      %9213 = vmatpush1.msra.mxu0 0.0
      %9214 = vmatprep.subr.mxu0 0.0
      %9215 = vmatpush1.msra.mxu0 0.0
      %9216 = vmatprep.subr.mxu0 0.0
      %9217 = vmatpush1.msra.mxu0 0.0
      %9218 = vmatprep.subr.mxu0 0.0
      %9219 = vmatpush1.msra.mxu0 0.0
      %9220 = vmatprep.subr.mxu0 0.0
      %9221 = vmatpush1.msra.mxu0 0.0
      %9222 = vmatprep.subr.mxu0 0.0
      %9223 = vmatpush1.msra.mxu0 0.0
      %9224 = vmatprep.subr.mxu0 0.0
      %9225 = vmatpush1.msra.mxu0 0.0
      %9226 = vmatprep.subr.mxu0 0.0
      %9227 = vmatpush1.msra.mxu0 0.0
      %9228 = vmatprep.subr.mxu0 0.0
      %9229 = vmatpush1.msra.mxu0 0.0
      %9230 = vmatprep.subr.mxu0 0.0
      %9231 = vmatpush1.msra.mxu0 0.0
      %9232 = vmatprep.subr.mxu0 0.0
      %9233 = vmatpush1.msra.mxu0 0.0
      %9234 = vmatprep.subr.mxu0 0.0
      %9235 = vmatpush1.msra.mxu0 0.0
      %9236 = vmatprep.subr.mxu0 0.0
      %9237 = vmatpush1.msra.mxu0 0.0
      %9238 = vmatprep.mubr.f32.mxu0 0.0
      %9239 = vmatmul.mubr.f32.gmra.mrb[0].mxu0 %v9158
      %v9240 = vpop.f32.mrb[0].mxu0
      %v9241 = vadd.f32 0.0, %v9240
      %v9242 = vpop.f32.mrb[0].mxu0
      %9243 = vmatprep.mubr.f32.mxu0 0.0
      %9244 = vmatmul.mubr.f32.gmra.mrb[0].mxu0 %v9160
      %v9245 = vpop.f32.mrb[0].mxu0
      %v9246 = vadd.f32 0.0, %v9245
      %v9247 = vpop.f32.mrb[0].mxu0
      %9248 = vmatprep.mubr.f32.mxu0 0.0
      %9249 = vmatmul.mubr.f32.gmra.mrb[0].mxu0 %v9162
      %v9250 = vpop.f32.mrb[0].mxu0
      %v9251 = vadd.f32 0.0, %v9250
      %v9252 = vpop.f32.mrb[0].mxu0
      %9253 = vmatprep.mubr.f32.mxu0 0.0
      %9254 = vmatmul.mubr.f32.gmra.mrb[0].mxu0 %v9164
      %v9255 = vpop.f32.mrb[0].mxu0
      %v9256 = vadd.f32 0.0, %v9255
      %v9257 = vpop.f32.mrb[0].mxu0
      %9258 = vmatprep.mubr.f32.mxu0 0.0
      %9259 = vmatmul.mubr.f32.gmra.mrb[0].mxu0 %v9166
      %v9260 = vpop.f32.mrb[0].mxu0
      %v9261 = vadd.f32 0.0, %v9260
      %v9262 = vpop.f32.mrb[0].mxu0
      %9263 = vmatprep.mubr.f32.mxu0 0.0
      %9264 = vmatmul.mubr.f32.gmra.mrb[0].mxu0 %v9168
      %v9265 = vpop.f32.mrb[0].mxu0
      %v9266 = vadd.f32 0.0, %v9265
      %v9267 = vpop.f32.mrb[0].mxu0
      %9268 = vmatprep.mubr.f32.mxu0 0.0
      %9269 = vmatmul.mubr.f32.gmra.mrb[0].mxu0 %v9170
      %v9270 = vpop.f32.mrb[0].mxu0
      %v9271 = vadd.f32 0.0, %v9270
      %v9272 = vpop.f32.mrb[0].mxu0
      %9273 = vmatprep.mubr.f32.mxu0 0.0
      %9274 = vmatmul.mubr.f32.gmra.mrb[0].mxu0 %v9172
      %v9275 = vpop.f32.mrb[0].mxu0
      %v9276 = vadd.f32 0.0, %v9275
      %v9277 = vpop.f32.mrb[0].mxu0
      %9278 = vdwg.mxu0
      %v9279 = vadd.f32 %v9085, %v9241
      %v9280 = vadd.f32 %v9086, %v9246
      %v9281 = vadd.f32 %v9087, %v9251
      %v9282 = vadd.f32 %v9088, %v9256
      %v9283 = vadd.f32 %v9089, %v9261
      %v9284 = vadd.f32 %v9090, %v9266
      %v9285 = vadd.f32 %v9091, %v9271
      %v9286 = vadd.f32 %v9092, %v9276
      %v9287 = vld [vmem:[%s6837] sm:$0xff]
      %v9288 = vld [vmem:[%s6837 + $0x20] sm:$0xff]
      %v9289 = vld [vmem:[%s6837 + $0x40] sm:$0xff]
      %v9290 = vld [vmem:[%s6837 + $0x60] sm:$0xff]
      %v9291 = vld [vmem:[%s6837 + $0x80] sm:$0xff]
      %v9292 = vld [vmem:[%s6837 + $0xa0] sm:$0xff]
      %v9293 = vld [vmem:[%s6837 + $0xc0] sm:$0xff]
      %v9294 = vld [vmem:[%s6837 + $0xe0] sm:$0xff]
      %s9295 = scalar_lea.vmem %s5, 384
      %v9296 = vld [vmem:[%s9295] sm:$0xff]
      %v9297 = vld [vmem:[%s9295 + $0x8] sm:$0xff]
      %v9298 = vld [vmem:[%s9295 + $0x10] sm:$0xff]
      %v9299 = vld [vmem:[%s9295 + $0x18] sm:$0xff]
      %v9300 = vld [vmem:[%s9295 + $0x20] sm:$0xff]
      %v9301 = vld [vmem:[%s9295 + $0x28] sm:$0xff]
      %v9302 = vld [vmem:[%s9295 + $0x30] sm:$0xff]
      %v9303 = vld [vmem:[%s9295 + $0x38] sm:$0xff]
      %v9305 = vsel %vm8347, %v9287, 0
      %v9308 = vsel %vm8347, %v9288, 0
      %v9311 = vsel %vm8347, %v9289, 0
      %v9314 = vsel %vm8347, %v9290, 0
      %v9317 = vsel %vm8347, %v9291, 0
      %v9320 = vsel %vm8347, %v9292, 0
      %v9323 = vsel %vm8347, %v9293, 0
      %v9326 = vsel %vm8347, %v9294, 0
      %9328 = vmatprep.subr.mxu0 0.0
      %9329 = vmatpush1.msra.mxu0 %v9296
      %9330 = vmatprep.subr.mxu0 0.0
      %9331 = vmatpush1.msra.mxu0 %v9297
      %9332 = vmatprep.subr.mxu0 0.0
      %9333 = vmatpush1.msra.mxu0 %v9298
      %9334 = vmatprep.subr.mxu0 0.0
      %9335 = vmatpush1.msra.mxu0 %v9299
      %9336 = vmatprep.subr.mxu0 0.0
      %9337 = vmatpush1.msra.mxu0 %v9300
      %9338 = vmatprep.subr.mxu0 0.0
      %9339 = vmatpush1.msra.mxu0 %v9301
      %9340 = vmatprep.subr.mxu0 0.0
      %9341 = vmatpush1.msra.mxu0 %v9302
      %9342 = vmatprep.subr.mxu0 0.0
      %9343 = vmatpush1.msra.mxu0 %v9303
      %9344 = vmatprep.subr.mxu0 0.0
      %9345 = vmatpush1.msra.mxu0 0.0
      %9346 = vmatprep.subr.mxu0 0.0
      %9347 = vmatpush1.msra.mxu0 0.0
      %9348 = vmatprep.subr.mxu0 0.0
      %9349 = vmatpush1.msra.mxu0 0.0
      %9350 = vmatprep.subr.mxu0 0.0
      %9351 = vmatpush1.msra.mxu0 0.0
      %9352 = vmatprep.subr.mxu0 0.0
      %9353 = vmatpush1.msra.mxu0 0.0
      %9354 = vmatprep.subr.mxu0 0.0
      %9355 = vmatpush1.msra.mxu0 0.0
      %9356 = vmatprep.subr.mxu0 0.0
      %9357 = vmatpush1.msra.mxu0 0.0
      %9358 = vmatprep.subr.mxu0 0.0
      %9359 = vmatpush1.msra.mxu0 0.0
      %9360 = vmatprep.subr.mxu0 0.0
      %9361 = vmatpush1.msra.mxu0 0.0
      %9362 = vmatprep.subr.mxu0 0.0
      %9363 = vmatpush1.msra.mxu0 0.0
      %9364 = vmatprep.subr.mxu0 0.0
      %9365 = vmatpush1.msra.mxu0 0.0
      %9366 = vmatprep.subr.mxu0 0.0
      %9367 = vmatpush1.msra.mxu0 0.0
      %9368 = vmatprep.subr.mxu0 0.0
      %9369 = vmatpush1.msra.mxu0 0.0
      %9370 = vmatprep.subr.mxu0 0.0
      %9371 = vmatpush1.msra.mxu0 0.0
      %9372 = vmatprep.subr.mxu0 0.0
      %9373 = vmatpush1.msra.mxu0 0.0
      %9374 = vmatprep.subr.mxu0 0.0
      %9375 = vmatpush1.msra.mxu0 0.0
      %9376 = vmatprep.subr.mxu0 0.0
      %9377 = vmatpush1.msra.mxu0 0.0
      %9378 = vmatprep.subr.mxu0 0.0
      %9379 = vmatpush1.msra.mxu0 0.0
      %9380 = vmatprep.subr.mxu0 0.0
      %9381 = vmatpush1.msra.mxu0 0.0
      %9382 = vmatprep.subr.mxu0 0.0
      %9383 = vmatpush1.msra.mxu0 0.0
      %9384 = vmatprep.subr.mxu0 0.0
      %9385 = vmatpush1.msra.mxu0 0.0
      %9386 = vmatprep.subr.mxu0 0.0
      %9387 = vmatpush1.msra.mxu0 0.0
      %9388 = vmatprep.subr.mxu0 0.0
      %9389 = vmatpush1.msra.mxu0 0.0
      %9390 = vmatprep.subr.mxu0 0.0
      %9391 = vmatpush1.msra.mxu0 0.0
      %9392 = vmatprep.mubr.f32.mxu0 0.0
      %9393 = vmatmul.mubr.f32.gmra.mrb[0].mxu0 %v9305
      %v9394 = vpop.f32.mrb[0].mxu0
      %v9395 = vadd.f32 0.0, %v9394
      %v9396 = vpop.f32.mrb[0].mxu0
      %9397 = vmatprep.mubr.f32.mxu0 0.0
      %9398 = vmatmul.mubr.f32.gmra.mrb[0].mxu0 %v9308
      %v9399 = vpop.f32.mrb[0].mxu0
      %v9400 = vadd.f32 0.0, %v9399
      %v9401 = vpop.f32.mrb[0].mxu0
      %9402 = vmatprep.mubr.f32.mxu0 0.0
      %9403 = vmatmul.mubr.f32.gmra.mrb[0].mxu0 %v9311
      %v9404 = vpop.f32.mrb[0].mxu0
      %v9405 = vadd.f32 0.0, %v9404
      %v9406 = vpop.f32.mrb[0].mxu0
      %9407 = vmatprep.mubr.f32.mxu0 0.0
      %9408 = vmatmul.mubr.f32.gmra.mrb[0].mxu0 %v9314
      %v9409 = vpop.f32.mrb[0].mxu0
      %v9410 = vadd.f32 0.0, %v9409
      %v9411 = vpop.f32.mrb[0].mxu0
      %9412 = vmatprep.mubr.f32.mxu0 0.0
      %9413 = vmatmul.mubr.f32.gmra.mrb[0].mxu0 %v9317
      %v9414 = vpop.f32.mrb[0].mxu0
      %v9415 = vadd.f32 0.0, %v9414
      %v9416 = vpop.f32.mrb[0].mxu0
      %9417 = vmatprep.mubr.f32.mxu0 0.0
      %9418 = vmatmul.mubr.f32.gmra.mrb[0].mxu0 %v9320
      %v9419 = vpop.f32.mrb[0].mxu0
      %v9420 = vadd.f32 0.0, %v9419
      %v9421 = vpop.f32.mrb[0].mxu0
      %9422 = vmatprep.mubr.f32.mxu0 0.0
      %9423 = vmatmul.mubr.f32.gmra.mrb[0].mxu0 %v9323
      %v9424 = vpop.f32.mrb[0].mxu0
      %v9425 = vadd.f32 0.0, %v9424
      %v9426 = vpop.f32.mrb[0].mxu0
      %9427 = vmatprep.mubr.f32.mxu0 0.0
      %9428 = vmatmul.mubr.f32.gmra.mrb[0].mxu0 %v9326
      %v9429 = vpop.f32.mrb[0].mxu0
      %v9430 = vadd.f32 0.0, %v9429
      %v9431 = vpop.f32.mrb[0].mxu0
      %9432 = vdwg.mxu0
      %v9433 = vadd.f32 %v9279, %v9395
      %v9434 = vadd.f32 %v9280, %v9400
      %v9435 = vadd.f32 %v9281, %v9405
      %v9436 = vadd.f32 %v9282, %v9410
      %v9437 = vadd.f32 %v9283, %v9415
      %v9438 = vadd.f32 %v9284, %v9420
      %v9439 = vadd.f32 %v9285, %v9425
      %v9440 = vadd.f32 %v9286, %v9430
      %s9441 = scalar_lea.vmem %s5, 448
      %v9442 = vld [vmem:[%s9441] sm:$0xff]
      %v9443 = vld [vmem:[%s9441 + $0x8] sm:$0xff]
      %v9444 = vld [vmem:[%s9441 + $0x10] sm:$0xff]
      %v9445 = vld [vmem:[%s9441 + $0x18] sm:$0xff]
      %v9446 = vld [vmem:[%s9441 + $0x20] sm:$0xff]
      %v9447 = vld [vmem:[%s9441 + $0x28] sm:$0xff]
      %v9448 = vld [vmem:[%s9441 + $0x30] sm:$0xff]
      %v9449 = vld [vmem:[%s9441 + $0x38] sm:$0xff]
      %9450 = vrot.lane.b32.xlu0 %v9287, 64
      %v9451 = vpop.permute.xlu0 %9450
      %9452 = vrot.lane.b32.xlu0 %v9288, 64
      %v9453 = vpop.permute.xlu0 %9452
      %9454 = vrot.lane.b32.xlu0 %v9289, 64
      %v9455 = vpop.permute.xlu0 %9454
      %9456 = vrot.lane.b32.xlu0 %v9290, 64
      %v9457 = vpop.permute.xlu0 %9456
      %9458 = vrot.lane.b32.xlu0 %v9291, 64
      %v9459 = vpop.permute.xlu0 %9458
      %9460 = vrot.lane.b32.xlu0 %v9292, 64
      %v9461 = vpop.permute.xlu0 %9460
      %9462 = vrot.lane.b32.xlu0 %v9293, 64
      %v9463 = vpop.permute.xlu0 %9462
      %9464 = vrot.lane.b32.xlu0 %v9294, 64
      %v9465 = vpop.permute.xlu0 %9464
      %v9466 = vsel %vm8347, %v9451, 0
      %v9468 = vsel %vm8347, %v9453, 0
      %v9470 = vsel %vm8347, %v9455, 0
      %v9472 = vsel %vm8347, %v9457, 0
      %v9474 = vsel %vm8347, %v9459, 0
      %v9476 = vsel %vm8347, %v9461, 0
      %v9478 = vsel %vm8347, %v9463, 0
      %v9480 = vsel %vm8347, %v9465, 0
      %9482 = vmatprep.subr.mxu0 0.0
      %9483 = vmatpush1.msra.mxu0 %v9442
      %9484 = vmatprep.subr.mxu0 0.0
      %9485 = vmatpush1.msra.mxu0 %v9443
      %9486 = vmatprep.subr.mxu0 0.0
      %9487 = vmatpush1.msra.mxu0 %v9444
      %9488 = vmatprep.subr.mxu0 0.0
      %9489 = vmatpush1.msra.mxu0 %v9445
      %9490 = vmatprep.subr.mxu0 0.0
      %9491 = vmatpush1.msra.mxu0 %v9446
      %9492 = vmatprep.subr.mxu0 0.0
      %9493 = vmatpush1.msra.mxu0 %v9447
      %9494 = vmatprep.subr.mxu0 0.0
      %9495 = vmatpush1.msra.mxu0 %v9448
      %9496 = vmatprep.subr.mxu0 0.0
      %9497 = vmatpush1.msra.mxu0 %v9449
      %9498 = vmatprep.subr.mxu0 0.0
      %9499 = vmatpush1.msra.mxu0 0.0
      %9500 = vmatprep.subr.mxu0 0.0
      %9501 = vmatpush1.msra.mxu0 0.0
      %9502 = vmatprep.subr.mxu0 0.0
      %9503 = vmatpush1.msra.mxu0 0.0
      %9504 = vmatprep.subr.mxu0 0.0
      %9505 = vmatpush1.msra.mxu0 0.0
      %9506 = vmatprep.subr.mxu0 0.0
      %9507 = vmatpush1.msra.mxu0 0.0
      %9508 = vmatprep.subr.mxu0 0.0
      %9509 = vmatpush1.msra.mxu0 0.0
      %9510 = vmatprep.subr.mxu0 0.0
      %9511 = vmatpush1.msra.mxu0 0.0
      %9512 = vmatprep.subr.mxu0 0.0
      %9513 = vmatpush1.msra.mxu0 0.0
      %9514 = vmatprep.subr.mxu0 0.0
      %9515 = vmatpush1.msra.mxu0 0.0
      %9516 = vmatprep.subr.mxu0 0.0
      %9517 = vmatpush1.msra.mxu0 0.0
      %9518 = vmatprep.subr.mxu0 0.0
      %9519 = vmatpush1.msra.mxu0 0.0
      %9520 = vmatprep.subr.mxu0 0.0
      %9521 = vmatpush1.msra.mxu0 0.0
      %9522 = vmatprep.subr.mxu0 0.0
      %9523 = vmatpush1.msra.mxu0 0.0
      %9524 = vmatprep.subr.mxu0 0.0
      %9525 = vmatpush1.msra.mxu0 0.0
      %9526 = vmatprep.subr.mxu0 0.0
      %9527 = vmatpush1.msra.mxu0 0.0
      %9528 = vmatprep.subr.mxu0 0.0
      %9529 = vmatpush1.msra.mxu0 0.0
      %9530 = vmatprep.subr.mxu0 0.0
      %9531 = vmatpush1.msra.mxu0 0.0
      %9532 = vmatprep.subr.mxu0 0.0
      %9533 = vmatpush1.msra.mxu0 0.0
      %9534 = vmatprep.subr.mxu0 0.0
      %9535 = vmatpush1.msra.mxu0 0.0
      %9536 = vmatprep.subr.mxu0 0.0
      %9537 = vmatpush1.msra.mxu0 0.0
      %9538 = vmatprep.subr.mxu0 0.0
      %9539 = vmatpush1.msra.mxu0 0.0
      %9540 = vmatprep.subr.mxu0 0.0
      %9541 = vmatpush1.msra.mxu0 0.0
      %9542 = vmatprep.subr.mxu0 0.0
      %9543 = vmatpush1.msra.mxu0 0.0
      %9544 = vmatprep.subr.mxu0 0.0
      %9545 = vmatpush1.msra.mxu0 0.0
      %9546 = vmatprep.mubr.f32.mxu0 0.0
      %9547 = vmatmul.mubr.f32.gmra.mrb[0].mxu0 %v9466
      %v9548 = vpop.f32.mrb[0].mxu0
      %v9549 = vadd.f32 0.0, %v9548
      %v9550 = vpop.f32.mrb[0].mxu0
      %9551 = vmatprep.mubr.f32.mxu0 0.0
      %9552 = vmatmul.mubr.f32.gmra.mrb[0].mxu0 %v9468
      %v9553 = vpop.f32.mrb[0].mxu0
      %v9554 = vadd.f32 0.0, %v9553
      %v9555 = vpop.f32.mrb[0].mxu0
      %9556 = vmatprep.mubr.f32.mxu0 0.0
      %9557 = vmatmul.mubr.f32.gmra.mrb[0].mxu0 %v9470
      %v9558 = vpop.f32.mrb[0].mxu0
      %v9559 = vadd.f32 0.0, %v9558
      %v9560 = vpop.f32.mrb[0].mxu0
      %9561 = vmatprep.mubr.f32.mxu0 0.0
      %9562 = vmatmul.mubr.f32.gmra.mrb[0].mxu0 %v9472
      %v9563 = vpop.f32.mrb[0].mxu0
      %v9564 = vadd.f32 0.0, %v9563
      %v9565 = vpop.f32.mrb[0].mxu0
      %9566 = vmatprep.mubr.f32.mxu0 0.0
      %9567 = vmatmul.mubr.f32.gmra.mrb[0].mxu0 %v9474
      %v9568 = vpop.f32.mrb[0].mxu0
      %v9569 = vadd.f32 0.0, %v9568
      %v9570 = vpop.f32.mrb[0].mxu0
      %9571 = vmatprep.mubr.f32.mxu0 0.0
      %9572 = vmatmul.mubr.f32.gmra.mrb[0].mxu0 %v9476
      %v9573 = vpop.f32.mrb[0].mxu0
      %v9574 = vadd.f32 0.0, %v9573
      %v9575 = vpop.f32.mrb[0].mxu0
      %9576 = vmatprep.mubr.f32.mxu0 0.0
      %9577 = vmatmul.mubr.f32.gmra.mrb[0].mxu0 %v9478
      %v9578 = vpop.f32.mrb[0].mxu0
      %v9579 = vadd.f32 0.0, %v9578
      %v9580 = vpop.f32.mrb[0].mxu0
      %9581 = vmatprep.mubr.f32.mxu0 0.0
      %9582 = vmatmul.mubr.f32.gmra.mrb[0].mxu0 %v9480
      %v9583 = vpop.f32.mrb[0].mxu0
      %v9584 = vadd.f32 0.0, %v9583
      %v9585 = vpop.f32.mrb[0].mxu0
      %9586 = vdwg.mxu0
      %v9587 = vadd.f32 %v9433, %v9549
      %v9588 = vadd.f32 %v9434, %v9554
      %v9589 = vadd.f32 %v9435, %v9559
      %v9590 = vadd.f32 %v9436, %v9564
      %v9591 = vadd.f32 %v9437, %v9569
      %v9592 = vadd.f32 %v9438, %v9574
      %v9593 = vadd.f32 %v9439, %v9579
      %v9594 = vadd.f32 %v9440, %v9584
      %v9595 = vld [vmem:[%s6837] sm:$0xfe]
      %v9596 = vld [vmem:[%s6837 + $0x10] sm:$0x1]
      %v9597 = vld [vmem:[%s6837 + $0x20] sm:$0xfe]
      %v9598 = vld [vmem:[%s6837 + $0x30] sm:$0x1]
      %v9599 = vld [vmem:[%s6837 + $0x40] sm:$0xfe]
      %v9600 = vld [vmem:[%s6837 + $0x50] sm:$0x1]
      %v9601 = vld [vmem:[%s6837 + $0x60] sm:$0xfe]
      %v9602 = vld [vmem:[%s6837 + $0x70] sm:$0x1]
      %v9603 = vld [vmem:[%s6837 + $0x80] sm:$0xfe]
      %v9604 = vld [vmem:[%s6837 + $0x90] sm:$0x1]
      %v9605 = vld [vmem:[%s6837 + $0xa0] sm:$0xfe]
      %v9606 = vld [vmem:[%s6837 + $0xb0] sm:$0x1]
      %v9607 = vld [vmem:[%s6837 + $0xc0] sm:$0xfe]
      %v9608 = vld [vmem:[%s6837 + $0xd0] sm:$0x1]
      %v9609 = vld [vmem:[%s6837 + $0xe0] sm:$0xfe]
      %v9610 = vld [vmem:[%s6837 + $0xf0] sm:$0x1]
      %v9627 = vrot.slane %v9595, 1
      %v9628 = vrot.slane %v9596, 1
      %v9629 = vsel %vm8622, %v9627, %v9628
      %v9630 = vrot.slane %v9597, 1
      %v9631 = vrot.slane %v9598, 1
      %v9632 = vsel %vm8622, %v9630, %v9631
      %v9633 = vrot.slane %v9599, 1
      %v9634 = vrot.slane %v9600, 1
      %v9635 = vsel %vm8622, %v9633, %v9634
      %v9636 = vrot.slane %v9601, 1
      %v9637 = vrot.slane %v9602, 1
      %v9638 = vsel %vm8622, %v9636, %v9637
      %v9639 = vrot.slane %v9603, 1
      %v9640 = vrot.slane %v9604, 1
      %v9641 = vsel %vm8622, %v9639, %v9640
      %v9642 = vrot.slane %v9605, 1
      %v9643 = vrot.slane %v9606, 1
      %v9644 = vsel %vm8622, %v9642, %v9643
      %v9645 = vrot.slane %v9607, 1
      %v9646 = vrot.slane %v9608, 1
      %v9647 = vsel %vm8622, %v9645, %v9646
      %v9648 = vrot.slane %v9609, 1
      %v9649 = vrot.slane %v9610, 1
      %v9650 = vsel %vm8622, %v9648, %v9649
      %s9651 = scalar_lea.vmem %s5, 512
      %v9652 = vld [vmem:[%s9651] sm:$0xff]
      %v9653 = vld [vmem:[%s9651 + $0x8] sm:$0xff]
      %v9654 = vld [vmem:[%s9651 + $0x10] sm:$0xff]
      %v9655 = vld [vmem:[%s9651 + $0x18] sm:$0xff]
      %v9656 = vld [vmem:[%s9651 + $0x20] sm:$0xff]
      %v9657 = vld [vmem:[%s9651 + $0x28] sm:$0xff]
      %v9658 = vld [vmem:[%s9651 + $0x30] sm:$0xff]
      %v9659 = vld [vmem:[%s9651 + $0x38] sm:$0xff]
      %v9660 = vsel %vm8347, %v9629, 0
      %v9662 = vsel %vm8347, %v9632, 0
      %v9664 = vsel %vm8347, %v9635, 0
      %v9666 = vsel %vm8347, %v9638, 0
      %v9668 = vsel %vm8347, %v9641, 0
      %v9670 = vsel %vm8347, %v9644, 0
      %v9672 = vsel %vm8347, %v9647, 0
      %v9674 = vsel %vm8347, %v9650, 0
      %9676 = vmatprep.subr.mxu0 0.0
      %9677 = vmatpush1.msra.mxu0 %v9652
      %9678 = vmatprep.subr.mxu0 0.0
      %9679 = vmatpush1.msra.mxu0 %v9653
      %9680 = vmatprep.subr.mxu0 0.0
      %9681 = vmatpush1.msra.mxu0 %v9654
      %9682 = vmatprep.subr.mxu0 0.0
      %9683 = vmatpush1.msra.mxu0 %v9655
      %9684 = vmatprep.subr.mxu0 0.0
      %9685 = vmatpush1.msra.mxu0 %v9656
      %9686 = vmatprep.subr.mxu0 0.0
      %9687 = vmatpush1.msra.mxu0 %v9657
      %9688 = vmatprep.subr.mxu0 0.0
      %9689 = vmatpush1.msra.mxu0 %v9658
      %9690 = vmatprep.subr.mxu0 0.0
      %9691 = vmatpush1.msra.mxu0 %v9659
      %9692 = vmatprep.subr.mxu0 0.0
      %9693 = vmatpush1.msra.mxu0 0.0
      %9694 = vmatprep.subr.mxu0 0.0
      %9695 = vmatpush1.msra.mxu0 0.0
      %9696 = vmatprep.subr.mxu0 0.0
      %9697 = vmatpush1.msra.mxu0 0.0
      %9698 = vmatprep.subr.mxu0 0.0
      %9699 = vmatpush1.msra.mxu0 0.0
      %9700 = vmatprep.subr.mxu0 0.0
      %9701 = vmatpush1.msra.mxu0 0.0
      %9702 = vmatprep.subr.mxu0 0.0
      %9703 = vmatpush1.msra.mxu0 0.0
      %9704 = vmatprep.subr.mxu0 0.0
      %9705 = vmatpush1.msra.mxu0 0.0
      %9706 = vmatprep.subr.mxu0 0.0
      %9707 = vmatpush1.msra.mxu0 0.0
      %9708 = vmatprep.subr.mxu0 0.0
      %9709 = vmatpush1.msra.mxu0 0.0
      %9710 = vmatprep.subr.mxu0 0.0
      %9711 = vmatpush1.msra.mxu0 0.0
      %9712 = vmatprep.subr.mxu0 0.0
      %9713 = vmatpush1.msra.mxu0 0.0
      %9714 = vmatprep.subr.mxu0 0.0
      %9715 = vmatpush1.msra.mxu0 0.0
      %9716 = vmatprep.subr.mxu0 0.0
      %9717 = vmatpush1.msra.mxu0 0.0
      %9718 = vmatprep.subr.mxu0 0.0
      %9719 = vmatpush1.msra.mxu0 0.0
      %9720 = vmatprep.subr.mxu0 0.0
      %9721 = vmatpush1.msra.mxu0 0.0
      %9722 = vmatprep.subr.mxu0 0.0
      %9723 = vmatpush1.msra.mxu0 0.0
      %9724 = vmatprep.subr.mxu0 0.0
      %9725 = vmatpush1.msra.mxu0 0.0
      %9726 = vmatprep.subr.mxu0 0.0
      %9727 = vmatpush1.msra.mxu0 0.0
      %9728 = vmatprep.subr.mxu0 0.0
      %9729 = vmatpush1.msra.mxu0 0.0
      %9730 = vmatprep.subr.mxu0 0.0
      %9731 = vmatpush1.msra.mxu0 0.0
      %9732 = vmatprep.subr.mxu0 0.0
      %9733 = vmatpush1.msra.mxu0 0.0
      %9734 = vmatprep.subr.mxu0 0.0
      %9735 = vmatpush1.msra.mxu0 0.0
      %9736 = vmatprep.subr.mxu0 0.0
      %9737 = vmatpush1.msra.mxu0 0.0
      %9738 = vmatprep.subr.mxu0 0.0
      %9739 = vmatpush1.msra.mxu0 0.0
      %9740 = vmatprep.mubr.f32.mxu0 0.0
      %9741 = vmatmul.mubr.f32.gmra.mrb[0].mxu0 %v9660
      %v9742 = vpop.f32.mrb[0].mxu0
      %v9743 = vadd.f32 0.0, %v9742
      %v9744 = vpop.f32.mrb[0].mxu0
      %9745 = vmatprep.mubr.f32.mxu0 0.0
      %9746 = vmatmul.mubr.f32.gmra.mrb[0].mxu0 %v9662
      %v9747 = vpop.f32.mrb[0].mxu0
      %v9748 = vadd.f32 0.0, %v9747
      %v9749 = vpop.f32.mrb[0].mxu0
      %9750 = vmatprep.mubr.f32.mxu0 0.0
      %9751 = vmatmul.mubr.f32.gmra.mrb[0].mxu0 %v9664
      %v9752 = vpop.f32.mrb[0].mxu0
      %v9753 = vadd.f32 0.0, %v9752
      %v9754 = vpop.f32.mrb[0].mxu0
      %9755 = vmatprep.mubr.f32.mxu0 0.0
      %9756 = vmatmul.mubr.f32.gmra.mrb[0].mxu0 %v9666
      %v9757 = vpop.f32.mrb[0].mxu0
      %v9758 = vadd.f32 0.0, %v9757
      %v9759 = vpop.f32.mrb[0].mxu0
      %9760 = vmatprep.mubr.f32.mxu0 0.0
      %9761 = vmatmul.mubr.f32.gmra.mrb[0].mxu0 %v9668
      %v9762 = vpop.f32.mrb[0].mxu0
      %v9763 = vadd.f32 0.0, %v9762
      %v9764 = vpop.f32.mrb[0].mxu0
      %9765 = vmatprep.mubr.f32.mxu0 0.0
      %9766 = vmatmul.mubr.f32.gmra.mrb[0].mxu0 %v9670
      %v9767 = vpop.f32.mrb[0].mxu0
      %v9768 = vadd.f32 0.0, %v9767
      %v9769 = vpop.f32.mrb[0].mxu0
      %9770 = vmatprep.mubr.f32.mxu0 0.0
      %9771 = vmatmul.mubr.f32.gmra.mrb[0].mxu0 %v9672
      %v9772 = vpop.f32.mrb[0].mxu0
      %v9773 = vadd.f32 0.0, %v9772
      %v9774 = vpop.f32.mrb[0].mxu0
      %9775 = vmatprep.mubr.f32.mxu0 0.0
      %9776 = vmatmul.mubr.f32.gmra.mrb[0].mxu0 %v9674
      %v9777 = vpop.f32.mrb[0].mxu0
      %v9778 = vadd.f32 0.0, %v9777
      %v9779 = vpop.f32.mrb[0].mxu0
      %9780 = vdwg.mxu0
      %v9781 = vadd.f32 %v9587, %v9743
      %v9782 = vadd.f32 %v9588, %v9748
      %v9783 = vadd.f32 %v9589, %v9753
      %v9784 = vadd.f32 %v9590, %v9758
      %v9785 = vadd.f32 %v9591, %v9763
      %v9786 = vadd.f32 %v9592, %v9768
      %v9787 = vadd.f32 %v9593, %v9773
      %v9788 = vadd.f32 %v9594, %v9778
      %v9789 = vld [vmem:[%s6] sm:$0x1]
      %v9791 = vlaneseq
      %v9792 = vshrl.u32 %v9791, 7
      %v9793 = vsub.s32 0, %v9792
      %v9794 = vrot.slane %v9789, %v9793
      %v9796 = vadd.f32 %v9781, %v9794
      %v9797 = vadd.f32 %v9782, %v9794
      %v9798 = vadd.f32 %v9783, %v9794
      %v9799 = vadd.f32 %v9784, %v9794
      %v9800 = vadd.f32 %v9785, %v9794
      %v9801 = vadd.f32 %v9786, %v9794
      %v9802 = vadd.f32 %v9787, %v9794
      %v9803 = vadd.f32 %v9788, %v9794
      %vm9804 = vcmp.gt.f32.partialorder %v9796, 0.0
      %vm9805 = vcmp.gt.f32.partialorder %v9797, 0.0
      %vm9806 = vcmp.gt.f32.partialorder %v9798, 0.0
      %vm9807 = vcmp.gt.f32.partialorder %v9799, 0.0
      %vm9808 = vcmp.gt.f32.partialorder %v9800, 0.0
      %vm9809 = vcmp.gt.f32.partialorder %v9801, 0.0
      %vm9810 = vcmp.gt.f32.partialorder %v9802, 0.0
      %vm9811 = vcmp.gt.f32.partialorder %v9803, 0.0
      %v9812 = vmul.f32 %v9796, 0.2
      %v9813 = vmul.f32 %v9797, 0.2
      %v9814 = vmul.f32 %v9798, 0.2
      %v9815 = vmul.f32 %v9799, 0.2
      %v9816 = vmul.f32 %v9800, 0.2
      %v9817 = vmul.f32 %v9801, 0.2
      %v9818 = vmul.f32 %v9802, 0.2
      %v9819 = vmul.f32 %v9803, 0.2
      %v9820 = vsel %vm9804, %v9796, %v9812
      %v9821 = vsel %vm9805, %v9797, %v9813
      %v9822 = vsel %vm9806, %v9798, %v9814
      %v9823 = vsel %vm9807, %v9799, %v9815
      %v9824 = vsel %vm9808, %v9800, %v9816
      %v9825 = vsel %vm9809, %v9801, %v9817
      %v9826 = vsel %vm9810, %v9802, %v9818
      %v9827 = vsel %vm9811, %v9803, %v9819
      %v9828 = vld [vmem:[%s7] sm:$0xff]
      %v9829 = vld [vmem:[%s7 + $0x8] sm:$0xff]
      %v9830 = vld [vmem:[%s7 + $0x10] sm:$0xff]
      %v9831 = vld [vmem:[%s7 + $0x18] sm:$0xff]
      %v9832 = vld [vmem:[%s7 + $0x20] sm:$0xff]
      %v9833 = vld [vmem:[%s7 + $0x28] sm:$0xff]
      %v9834 = vld [vmem:[%s7 + $0x30] sm:$0xff]
      %v9835 = vld [vmem:[%s7 + $0x38] sm:$0xff]
      %v9836 = vmul.f32 %v9820, %v9828
      %v9837 = vmul.f32 %v9821, %v9829
      %v9838 = vmul.f32 %v9822, %v9830
      %v9839 = vmul.f32 %v9823, %v9831
      %v9840 = vmul.f32 %v9824, %v9832
      %v9841 = vmul.f32 %v9825, %v9833
      %v9842 = vmul.f32 %v9826, %v9834
      %v9843 = vmul.f32 %v9827, %v9835
      %9844 = vadd.xlane.f32.xlu0 %v9836
      %v9845 = vpop.xlane.xlu0 %9844
      %9846 = vadd.xlane.f32.xlu0 %v9837
      %v9847 = vpop.xlane.xlu0 %9846
      %9848 = vadd.xlane.f32.xlu0 %v9838
      %v9849 = vpop.xlane.xlu0 %9848
      %9850 = vadd.xlane.f32.xlu0 %v9839
      %v9851 = vpop.xlane.xlu0 %9850
      %9852 = vadd.xlane.f32.xlu0 %v9840
      %v9853 = vpop.xlane.xlu0 %9852
      %9854 = vadd.xlane.f32.xlu0 %v9841
      %v9855 = vpop.xlane.xlu0 %9854
      %9856 = vadd.xlane.f32.xlu0 %v9842
      %v9857 = vpop.xlane.xlu0 %9856
      %9858 = vadd.xlane.f32.xlu0 %v9843
      %v9859 = vpop.xlane.xlu0 %9858
      %v9860 = vadd.f32 %v9845, %v9847
      %v9861 = vadd.f32 %v9860, %v9849
      %v9862 = vadd.f32 %v9861, %v9851
      %v9863 = vadd.f32 %v9862, %v9853
      %v9864 = vadd.f32 %v9863, %v9855
      %v9865 = vadd.f32 %v9864, %v9857
      %v9866 = vadd.f32 %v9865, %v9859
      %v9867 = vrot.slane %v9866, 4
      %v9868 = vadd.f32 %v9866, %v9867
      %v9869 = vrot.slane %v9868, 2
      %v9870 = vadd.f32 %v9868, %v9869
      %v9871 = vrot.slane %v9870, 1
      %v9872 = vadd.f32 %v9870, %v9871
      %v9873 = vld [vmem:[#allocation4] sm:$0x1]
      %v9874 = vadd.f32 %v9872, %v9873
      %v9875 = vxor.u32 %v9874, 2147483648
      %v9876 = vmul.f32 %v9875, 1.442695
      %v9877 = vpow.pop %v9876
      %v9878 = vadd.f32 %v9877, 1.0
      %v9879 = vrcp.pop %v9878
      %v9880 = vmul.f32 1.0, %v9879
      %vm9881 = vcmask 0
      %9882 = vst.msk [vmem:[%s330] sm:$0x1] %vm9881, %v9880
      %p9883 = scmp.lt.s32.totalorder %s22, 1
      %s9884 = scalar_select %p9883, %s22, 1
      %s9885 = scalar_lea.vmem %s9, %s9884
      // Predicated region
      $region57: #{discriminator_forward.1} parent=55 // pred_check
        %p9886 = pneg %p234
      $region58: #{discriminator_forward.1} parent=55 // pred_check_branch
        %9888 = sbr.rel (%p9886) target = $region60
      $region59: #{discriminator_forward.1} parent=55 // pred_region
        _
      $region60: #{discriminator_forward.1} parent=55 // pred_fallthru
        _
    $region56: #{discriminator_forward.1} parent=5 // pred_fallthru
      _
    %p9889 = scmp.le.s32.totalorder 2, %s17
    // Predicated region
    $region61: #{discriminator_forward.1} parent=5 // pred_check
      %p9890 = pneg %p9889
    $region62: #{discriminator_forward.1} parent=5 // pred_check_branch
      %9892 = sbr.rel (%p9890) target = $region64
    $region63: #{discriminator_forward.1} parent=5 // pred_region
      %s9893 = ssub.s32 %s17, 2
      // Predicated region
      $region65: #{discriminator_forward.1} parent=63 // pred_check
        %p9894 = pneg %p240
      $region66: #{discriminator_forward.1} parent=63 // pred_check_branch
        %9896 = sbr.rel (%p9894) target = $region68
      $region67: #{discriminator_forward.1} parent=63 // pred_region
        %p9897 = scmp.lt.s32.totalorder %s23, 1
        %s9898 = scalar_select %p9897, %s23, 1
        %s9899 = scalar_lea.vmem %s9, %s9898
      $region68: #{discriminator_forward.1} parent=63 // pred_fallthru
        _
    $region64: #{discriminator_forward.1} parent=5 // pred_fallthru
      _
  $region6: #{discriminator_forward.1} parent=0 // loop_footer
    %s21 = sadd.s32 1, %s17
  $region7: #{discriminator_forward.1} parent=0 // loop_footer_branch
    %16 = sbr.rel target = $region3
  $region8: #{discriminator_forward.1} parent=0 // loop_exit
    _

</llo_original>
